<compile_context>
chip_gen: v7x
topology: tpu7x:2x2x1
jax: 0.10.0
libtpu: 0.0.40
codegen_flags: <defaults>
</compile_context>

<pallas_src>
import functools
import math

import jax
import jax.numpy as jnp
from jax import lax
from jax.experimental import pallas as pl
from jax.experimental.pallas import tpu as pltpu

EPS = 1e-5
LANE = 128   # TPU lane width: q/k/v segments, wo rows, emb rows, vocab padded to this


# ---------------------------------------------------------------------------
# In-kernel math helpers (traced into the kernel body)
# ---------------------------------------------------------------------------
def _layernorm(x, g, b):
    mu = jnp.mean(x, axis=-1, keepdims=True)
    var = jnp.mean(jnp.square(x - mu), axis=-1, keepdims=True)
    return (x - mu) * lax.rsqrt(var + EPS) * g + b


def _softmax(x):
    m = jnp.max(x, axis=-1, keepdims=True)
    e = jnp.exp(x - m)
    return e * pl.reciprocal(jnp.sum(e, axis=-1, keepdims=True), approx=True)


# ---------------------------------------------------------------------------
# Fused forward kernel (one batch-block of `bb` elements per grid step)
# ---------------------------------------------------------------------------
def _fused_forward_kernel(r_iters, bb, S, D,
                          tok_ref, s0_ref, pos_ref, emb_ref,
                          wqkv_ref, bqkv_ref, wo_ref, w1_ref, b1_ref, w2_ref,
                          esm_ref, xsm_ref, wa_ref, wp_ref, bp_ref,
                          out_ref):
    M = bb * S                       # rows fed to the shared-weight matmuls
    P = LANE
    bf16 = jnp.bfloat16
    f32 = jnp.float32

    def load_layer(li, bcast=False):
        """Read one encoder layer's params once (hoisted out of any loop)."""
        sm = esm_ref[li]                                   # (6, D) f32
        rows = [sm[i:i + 1] for i in range(6)]
        if bcast:                                          # pre-broadcast for the
            rows = [jnp.broadcast_to(r, (M, D)) for r in rows]   # unrolled loop
        bo, ln1g, ln1b, b2, ln2g, ln2b = rows
        return dict(wqkv=wqkv_ref[li], bqkv=bqkv_ref[li], wo=wo_ref[li],
                    w1=w1_ref[li], b1=b1_ref[li], w2=w2_ref[li],
                    bo=bo, ln1g=ln1g, ln1b=ln1b, b2=b2, ln2g=ln2g, ln2b=ln2b)

    def encoder_layer(x, p):
        """Post-LN nn.TransformerEncoderLayer (nhead=1, relu FFN, eval dropout).

        x: (M, D) f32.  1/sqrt(D) already folded into the q columns/bias.
        q/k/v segments are 128-lane aligned; wo's padded rows are zero.
        """
        qkv = jnp.dot(x.astype(bf16), p["wqkv"],
                      preferred_element_type=f32) + p["bqkv"]       # (M, 3P)
        qkv = qkv.reshape(bb, S, 3 * P)
        q = qkv[:, :, :P]
        k = qkv[:, :, P:2 * P]
        v = qkv[:, :, 2 * P:]
        # NT contraction: MXU consumes k without an explicit transpose.
        scores = jnp.einsum("bqd,bkd->bqk", q.astype(bf16), k.astype(bf16),
                            preferred_element_type=f32)             # (bb,S,S)
        attn = _softmax(scores)
        ctx = jnp.einsum("bqk,bkd->bqd", attn.astype(bf16), v.astype(bf16),
                         preferred_element_type=f32)                # (bb,S,P)
        attn_out = jnp.dot(ctx.reshape(M, P).astype(bf16), p["wo"],
                           preferred_element_type=f32) + p["bo"]    # (M, D)
        x = _layernorm(x + attn_out, p["ln1g"], p["ln1b"])
        h = jnp.maximum(jnp.dot(x.astype(bf16), p["w1"],
                                preferred_element_type=f32) + p["b1"], 0.0)
        ff = jnp.dot(h.astype(bf16), p["w2"],
                     preferred_element_type=f32) + p["b2"]
        x = _layernorm(x + ff, p["ln2g"], p["ln2b"])
        return x

    xs = xsm_ref[...]                                      # (5, D) f32
    ba = xs[0:1]
    r_ng = jnp.broadcast_to(xs[1:2], (M, D))               # hoisted broadcasts
    r_nb = jnp.broadcast_to(xs[2:3], (M, D))
    c_ng, c_nb = xs[3:4], xs[4:5]

    # ---- embedding (one-hot MXU matmul) + positional add, fully in-kernel ----
    tok = tok_ref[...].reshape(M, 1)                       # (M, 1) int32
    onehot = (tok == lax.broadcasted_iota(jnp.int32, (M, emb_ref.shape[0]), 1)
              ).astype(f32)                                # (M, 128)
    x_emb = jnp.dot(onehot, emb_ref[...], preferred_element_type=f32)   # (M, D)
    x_emb = (x_emb.reshape(bb, S, D) + pos_ref[...][None]).reshape(M, D)

    # ---- prelude (encoder layer 0) ----
    e = encoder_layer(x_emb, load_layer(0))                # (M, D) f32

    # ---- recurrent block (encoder layer 1): hoist all loop invariants ----
    rec = load_layer(1, bcast=True)
    wa_s = wa_ref[0]                                       # (D, D) bf16
    wa_e = wa_ref[1]
    # adapter: cat([s, e], -1) @ Wa + ba == s @ Wa_s + (e @ Wa_e + ba)
    e_adapt = jnp.dot(e.astype(bf16), wa_e, preferred_element_type=f32) + ba

    def body(_, s):
        x = jnp.dot(s.astype(bf16), wa_s, preferred_element_type=f32) + e_adapt
        x = encoder_layer(x, rec)
        return _layernorm(x, r_ng, r_nb)

    s = lax.fori_loop(0, r_iters, body, s0_ref[...].reshape(M, D), unroll=True)

    # ---- coda (encoder layer 2) + LayerNorm + lane-dense vocab projection ----
    x = encoder_layer(s, load_layer(2))
    x = _layernorm(x, c_ng, c_nb)
    logits = jnp.dot(x.astype(bf16), wp_ref[...],
                     preferred_element_type=f32) + bp_ref[...]      # (M, 128)
    out_ref[...] = logits.reshape(bb, S, out_ref.shape[-1])


# ---------------------------------------------------------------------------
# pallas_call wrapper
# ---------------------------------------------------------------------------
def _weight_spec(arr):
    zeros = (0,) * arr.ndim
    return pl.BlockSpec(arr.shape, lambda b, _z=zeros: _z)


_WEIGHT_ORDER = ("wqkv", "bqkv", "wo", "w1", "b1", "w2", "esm", "xsm",
                 "wa", "wp", "bp")


def _batch_per_core():
    """True on chips with two TensorCores (v7x): keep grid=(B,) 'parallel'.
    On single-TC v5e/v6e, fold batch into the matmul M dimension instead."""
    try:
        kind = jax.devices()[0].device_kind.lower()
    except Exception:
        return False
    return "7" in kind


def fused_forward(tokens, s0, pos, packed, r_iters):
    B, S = tokens.shape
    D = s0.shape[-1]
    vpad = packed["wp"].shape[-1]

    bb = 1 if (_batch_per_core() and B > 1) else B
    grid = (B // bb,)

    weights = [packed[k] for k in _WEIGHT_ORDER]
    kernel = functools.partial(_fused_forward_kernel, r_iters, bb, S, D)

    tok3 = tokens.astype(jnp.int32)[..., None]                 # (B, S, 1)
    tok_spec = pl.BlockSpec((bb, S, 1), lambda b: (b, 0, 0))
    act_spec = pl.BlockSpec((bb, S, D), lambda b: (b, 0, 0))
    out_spec = pl.BlockSpec((bb, S, vpad), lambda b: (b, 0, 0))
    pos_spec = pl.BlockSpec((S, D), lambda b: (0, 0))          # first S rows of table

    return pl.pallas_call(
        kernel,
        out_shape=jax.ShapeDtypeStruct((B, S, vpad), jnp.float32),
        grid=grid,
        in_specs=[tok_spec, act_spec, pos_spec, _weight_spec(packed["emb"])]
                 + [_weight_spec(w) for w in weights],
        out_specs=out_spec,
        compiler_params=pltpu.CompilerParams(
            dimension_semantics=("parallel",) if bb == 1 else ("arbitrary",)),
    )(tok3, s0, pos, packed["emb"], *weights)


# ---------------------------------------------------------------------------
# Parameter init (deterministic, synthetic) + packing
# ---------------------------------------------------------------------------
def init_params(key, vocab, D, ffn, max_seq_len):
    counter = [0]

    def nxt():
        counter[0] += 1
        return jax.random.fold_in(key, counter[0])

    def w(shape, std=0.02):
        return jax.random.normal(nxt(), shape, jnp.float32) * std

    def enc_params():
        return {
            "wq": w((D, D)), "bq": jnp.zeros((1, D), jnp.float32),
            "wk": w((D, D)), "bk": jnp.zeros((1, D), jnp.float32),
            "wv": w((D, D)), "bv": jnp.zeros((1, D), jnp.float32),
            "wo": w((D, D)), "bo": jnp.zeros((1, D), jnp.float32),
            "ln1g": jnp.ones((1, D), jnp.float32), "ln1b": jnp.zeros((1, D), jnp.float32),
            "w1": w((D, ffn)), "b1": jnp.zeros((1, ffn), jnp.float32),
            "w2": w((ffn, D)), "b2": jnp.zeros((1, D), jnp.float32),
            "ln2g": jnp.ones((1, D), jnp.float32), "ln2b": jnp.zeros((1, D), jnp.float32),
        }

    return {
        "emb": w((vocab, D), std=1.0),               # nn.Embedding ~ N(0, 1)
        "pos": w((max_seq_len, D), std=0.02),        # pos_embedding ~ N(0, 0.02)
        "prelude": enc_params(),                     # lP = 1
        "recurrent": {                               # lR = 1
            "wa_s": w((D, D)),                       # adapter Linear(2D, D): rows for s
            "wa_e": w((D, D)),                       # adapter Linear(2D, D): rows for e
            "ba": jnp.zeros((1, D), jnp.float32),
            "enc": enc_params(),
            "ng": jnp.ones((1, D), jnp.float32),
            "nb": jnp.zeros((1, D), jnp.float32),
        },
        "coda": {                                    # lC = 1
            "enc": enc_params(),
            "ng": jnp.ones((1, D), jnp.float32),
            "nb": jnp.zeros((1, D), jnp.float32),
            "wp": w((D, vocab)),
            "bp": jnp.zeros((1, vocab), jnp.float32),
        },
    }


def pack_params(params, vocab):
    """Pack per-layer weights for the fused kernel.

    * Attention scale 1/sqrt(D) folded into wq/bq.
    * q/k/v weight columns zero-padded to 128 lanes each (slice boundaries
      fall on lane-tile boundaries inside the kernel); wo rows padded to 128.
    * Embedding table rows and vocab projection columns padded to 128.
    * Big matmul operands stored in bfloat16 (f32 MXU accumulation).
    NOTE: packing assumes (in, out) layout with x @ W; real PyTorch
    checkpoints store (out, in) and must be transposed here.
    """
    D = params["prelude"]["wq"].shape[0]
    scale = 1.0 / math.sqrt(D)                      # nhead=1 -> head_dim = D
    P = LANE

    def enc_pack(p):
        wqkv = jnp.zeros((D, 3 * P), jnp.float32)
        wqkv = wqkv.at[:, 0:D].set(p["wq"] * scale)
        wqkv = wqkv.at[:, P:P + D].set(p["wk"])
        wqkv = wqkv.at[:, 2 * P:2 * P + D].set(p["wv"])
        bqkv = jnp.zeros((1, 3 * P), jnp.float32)
        bqkv = bqkv.at[:, 0:D].set(p["bq"] * scale)
        bqkv = bqkv.at[:, P:P + D].set(p["bk"])
        bqkv = bqkv.at[:, 2 * P:2 * P + D].set(p["bv"])
        wo = jnp.zeros((P, D), jnp.float32).at[:D].set(p["wo"])
        small = jnp.concatenate(
            [p["bo"], p["ln1g"], p["ln1b"], p["b2"], p["ln2g"], p["ln2b"]], axis=0)
        return wqkv, bqkv, wo, p["w1"], p["b1"], p["w2"], small

    layers = [enc_pack(params["prelude"]),
              enc_pack(params["recurrent"]["enc"]),
              enc_pack(params["coda"]["enc"])]

    def stack(i):
        return jnp.stack([layer[i] for layer in layers], axis=0)

    rec, coda = params["recurrent"], params["coda"]
    emb_pad = jnp.zeros((P, D), jnp.float32).at[:vocab].set(params["emb"])
    wp_pad = jnp.zeros((D, P), jnp.float32).at[:, :vocab].set(coda["wp"])
    bp_pad = jnp.zeros((1, P), jnp.float32).at[:, :vocab].set(coda["bp"])

    # TODO(synk): int8 (v5e/v6e) / fp8 (v7x) quantization of w1/w2 would halve
    # the dominant weight DMA bytes; kept bf16 for accuracy here.
    return {
        "emb":  emb_pad,                             # (128, D) f32
        "wqkv": stack(0).astype(jnp.bfloat16),       # (3, D, 3*128)
        "bqkv": stack(1),                            # (3, 1, 3*128) f32
        "wo":   stack(2).astype(jnp.bfloat16),       # (3, 128, D)
        "w1":   stack(3).astype(jnp.bfloat16),       # (3, D, F)
        "b1":   stack(4),                            # (3, 1, F) f32
        "w2":   stack(5).astype(jnp.bfloat16),       # (3, F, D)
        "esm":  stack(6),                            # (3, 6, D) f32
        "xsm":  jnp.concatenate([rec["ba"], rec["ng"], rec["nb"],
                                 coda["ng"], coda["nb"]], axis=0),   # (5, D) f32
        "wa":   jnp.stack([rec["wa_s"], rec["wa_e"]],
                          axis=0).astype(jnp.bfloat16),              # (2, D, D)
        "wp":   wp_pad.astype(jnp.bfloat16),         # (D, 128)
        "bp":   bp_pad,                              # (1, 128) f32
    }


# ---------------------------------------------------------------------------
# Full forward pass (only s0 sampling stays in JAX; everything else fused)
# ---------------------------------------------------------------------------
def latent_recurrent_transformer(tokens, params, packed, vocab, r_iters, noise_key):
    B, S = tokens.shape
    D = params["pos"].shape[-1]
    # s = torch.randn_like(e) * sigma, sigma = 1.0
    # TODO(synk): could be generated in-kernel with pltpu.prng_seed/stateful_normal.
    s0 = jax.random.normal(noise_key, (B, S, D), jnp.float32)
    # TODO(synk): sample_r uses torch.distributions (lognormal->Poisson); we pass
    # a fixed r_iters (the forward supports this path) instead of sampling.
    logits_padded = fused_forward(tokens, s0, params["pos"], packed, r_iters)
    return logits_padded[..., :vocab]                                # (B, S, vocab)


if __name__ == "__main__":
    VOCAB = 65
    EMBED_DIM = 32
    FFN_DIM = 2048          # nn.TransformerEncoderLayer default dim_feedforward
    MAX_SEQ_LEN = 256
    BATCH = 2
    SEQ = 8
    R_ITERS = 3

    root = jax.random.PRNGKey(0)
    k_params, k_tokens, k_noise = jax.random.split(root, 3)

    params = init_params(k_params, VOCAB, EMBED_DIM, FFN_DIM, MAX_SEQ_LEN)
    packed = pack_params(params, VOCAB)
    tokens = jax.random.randint(k_tokens, (BATCH, SEQ), 0, VOCAB, dtype=jnp.int32)

    logits = latent_recurrent_transformer(tokens, params, packed, VOCAB,
                                          R_ITERS, k_noise)
    logits = jax.block_until_ready(logits)

    assert logits.shape == (BATCH, SEQ, VOCAB), logits.shape
    assert logits.dtype == jnp.float32
    assert bool(jnp.all(jnp.isfinite(logits)))
    print("KERNEL_OK")
</pallas_src>

<mosaic_0001>
module attributes {stable_mosaic.version = 11 : i64} {
  func.func @_fused_forward_kernel(%arg0: i32, %arg1: memref<2x8x1xi32, #tpu.memory_space<vmem>>, %arg2: memref<2x8x32xf32, #tpu.memory_space<vmem>>, %arg3: memref<8x32xf32, #tpu.memory_space<vmem>>, %arg4: memref<128x32xf32, #tpu.memory_space<vmem>>, %arg5: memref<3x32x384xbf16, #tpu.memory_space<vmem>>, %arg6: memref<3x1x384xf32, #tpu.memory_space<vmem>>, %arg7: memref<3x128x32xbf16, #tpu.memory_space<vmem>>, %arg8: memref<3x32x2048xbf16, #tpu.memory_space<vmem>>, %arg9: memref<3x1x2048xf32, #tpu.memory_space<vmem>>, %arg10: memref<3x2048x32xbf16, #tpu.memory_space<vmem>>, %arg11: memref<3x6x32xf32, #tpu.memory_space<vmem>>, %arg12: memref<5x32xf32, #tpu.memory_space<vmem>>, %arg13: memref<2x32x32xbf16, #tpu.memory_space<vmem>>, %arg14: memref<32x128xbf16, #tpu.memory_space<vmem>>, %arg15: memref<1x128xf32, #tpu.memory_space<vmem>>, %arg16: memref<2x8x128xf32, #tpu.memory_space<vmem>>) attributes {dimension_semantics = [#tpu.dimension_semantics<arbitrary>], iteration_bounds = array<i64: 1>, scalar_prefetch = 0 : i64, scratch_operands = 0 : i64, tpu.core_type = #tpu.core_type<tc>, window_params = [{transform_indices = @transform_0, window_bounds = array<i64: 2, 8, 1>}, {transform_indices = @transform_1, window_bounds = array<i64: 2, 8, 32>}, {transform_indices = @transform_2, window_bounds = array<i64: 8, 32>}, {pipeline_mode = #tpu.pipeline_mode<synchronous>, transform_indices = @transform_3, window_bounds = array<i64: 128, 32>}, {pipeline_mode = #tpu.pipeline_mode<synchronous>, transform_indices = @transform_4, window_bounds = array<i64: 3, 32, 384>}, {pipeline_mode = #tpu.pipeline_mode<synchronous>, transform_indices = @transform_5, window_bounds = array<i64: 3, 1, 384>}, {pipeline_mode = #tpu.pipeline_mode<synchronous>, transform_indices = @transform_6, window_bounds = array<i64: 3, 128, 32>}, {pipeline_mode = #tpu.pipeline_mode<synchronous>, transform_indices = @transform_7, window_bounds = array<i64: 3, 32, 2048>}, {pipeline_mode = #tpu.pipeline_mode<synchronous>, transform_indices = @transform_8, window_bounds = array<i64: 3, 1, 2048>}, {pipeline_mode = #tpu.pipeline_mode<synchronous>, transform_indices = @transform_9, window_bounds = array<i64: 3, 2048, 32>}, {pipeline_mode = #tpu.pipeline_mode<synchronous>, transform_indices = @transform_10, window_bounds = array<i64: 3, 6, 32>}, {pipeline_mode = #tpu.pipeline_mode<synchronous>, transform_indices = @transform_11, window_bounds = array<i64: 5, 32>}, {pipeline_mode = #tpu.pipeline_mode<synchronous>, transform_indices = @transform_12, window_bounds = array<i64: 2, 32, 32>}, {pipeline_mode = #tpu.pipeline_mode<synchronous>, transform_indices = @transform_13, window_bounds = array<i64: 32, 128>}, {pipeline_mode = #tpu.pipeline_mode<synchronous>, transform_indices = @transform_14, window_bounds = array<i64: 1, 128>}, {transform_indices = @transform_15, window_bounds = array<i64: 2, 8, 128>}]} {
    %c0 = arith.constant 0 : index
    %c0_0 = arith.constant 0 : index
    %0 = vector.load %arg12[%c0, %c0_0] : memref<5x32xf32, #tpu.memory_space<vmem>>, vector<5x32xf32>
    %1 = vector.extract_strided_slice %0 {offsets = [0, 0], sizes = [1, 32], strides = [1, 1]} : vector<5x32xf32> to vector<1x32xf32>
    %2 = vector.extract_strided_slice %0 {offsets = [1, 0], sizes = [1, 32], strides = [1, 1]} : vector<5x32xf32> to vector<1x32xf32>
    %3 = vector.shape_cast %2 : vector<1x32xf32> to vector<1x32xf32>
    %4 = vector.broadcast %3 : vector<1x32xf32> to vector<16x32xf32>
    %5 = vector.extract_strided_slice %0 {offsets = [2, 0], sizes = [1, 32], strides = [1, 1]} : vector<5x32xf32> to vector<1x32xf32>
    %6 = vector.shape_cast %5 : vector<1x32xf32> to vector<1x32xf32>
    %7 = vector.broadcast %6 : vector<1x32xf32> to vector<16x32xf32>
    %8 = vector.extract_strided_slice %0 {offsets = [3, 0], sizes = [1, 32], strides = [1, 1]} : vector<5x32xf32> to vector<1x32xf32>
    %9 = vector.extract_strided_slice %0 {offsets = [4, 0], sizes = [1, 32], strides = [1, 1]} : vector<5x32xf32> to vector<1x32xf32>
    %c0_1 = arith.constant 0 : index
    %c0_2 = arith.constant 0 : index
    %c0_3 = arith.constant 0 : index
    %10 = vector.load %arg1[%c0_1, %c0_2, %c0_3] : memref<2x8x1xi32, #tpu.memory_space<vmem>>, vector<2x8x1xi32>
    %11 = vector.shape_cast %10 : vector<2x8x1xi32> to vector<16x1xi32>
    %12 = tpu.iota {dimensions = array<i32: 1>} : vector<16x128xi32>
    %13 = vector.broadcast %11 : vector<16x1xi32> to vector<16x128xi32>
    %14 = arith.cmpi eq, %13, %12 : vector<16x128xi32>
    %15 = arith.extui %14 : vector<16x128xi1> to vector<16x128xi32>
    %16 = arith.sitofp %15 : vector<16x128xi32> to vector<16x128xf32>
    %c0_4 = arith.constant 0 : index
    %c0_5 = arith.constant 0 : index
    %17 = vector.load %arg4[%c0_4, %c0_5] : memref<128x32xf32, #tpu.memory_space<vmem>>, vector<128x32xf32>
    %cst = arith.constant dense<0.000000e+00> : vector<16x32xf32>
    %18 = tpu.matmul %16, %17, %cst {dimension_numbers = #tpu.dot_dimension_numbers<[1], [0], [0], [1], [0, 0, 1, 1], [], []>} : vector<16x128xf32>, vector<128x32xf32>, vector<16x32xf32> -> vector<16x32xf32>
    %19 = vector.shape_cast %18 : vector<16x32xf32> to vector<2x8x32xf32>
    %c0_6 = arith.constant 0 : index
    %c0_7 = arith.constant 0 : index
    %20 = vector.load %arg3[%c0_6, %c0_7] : memref<8x32xf32, #tpu.memory_space<vmem>>, vector<8x32xf32>
    %21 = vector.shape_cast %20 : vector<8x32xf32> to vector<1x8x32xf32>
    %22 = vector.broadcast %21 : vector<1x8x32xf32> to vector<2x8x32xf32>
    %23 = arith.addf %19, %22 : vector<2x8x32xf32>
    %24 = vector.shape_cast %23 : vector<2x8x32xf32> to vector<16x32xf32>
    %c0_8 = arith.constant 0 : index
    %c0_9 = arith.constant 0 : index
    %c0_10 = arith.constant 0 : index
    %25 = vector.load %arg11[%c0_8, %c0_9, %c0_10] : memref<3x6x32xf32, #tpu.memory_space<vmem>>, vector<1x6x32xf32>
    %26 = vector.shape_cast %25 : vector<1x6x32xf32> to vector<6x32xf32>
    %27 = vector.extract_strided_slice %26 {offsets = [0, 0], sizes = [1, 32], strides = [1, 1]} : vector<6x32xf32> to vector<1x32xf32>
    %28 = vector.extract_strided_slice %26 {offsets = [1, 0], sizes = [1, 32], strides = [1, 1]} : vector<6x32xf32> to vector<1x32xf32>
    %29 = vector.extract_strided_slice %26 {offsets = [2, 0], sizes = [1, 32], strides = [1, 1]} : vector<6x32xf32> to vector<1x32xf32>
    %30 = vector.extract_strided_slice %26 {offsets = [3, 0], sizes = [1, 32], strides = [1, 1]} : vector<6x32xf32> to vector<1x32xf32>
    %31 = vector.extract_strided_slice %26 {offsets = [4, 0], sizes = [1, 32], strides = [1, 1]} : vector<6x32xf32> to vector<1x32xf32>
    %32 = vector.extract_strided_slice %26 {offsets = [5, 0], sizes = [1, 32], strides = [1, 1]} : vector<6x32xf32> to vector<1x32xf32>
    %c0_11 = arith.constant 0 : index
    %c0_12 = arith.constant 0 : index
    %c0_13 = arith.constant 0 : index
    %33 = vector.load %arg5[%c0_11, %c0_12, %c0_13] : memref<3x32x384xbf16, #tpu.memory_space<vmem>>, vector<1x32x384xbf16>
    %34 = vector.shape_cast %33 : vector<1x32x384xbf16> to vector<32x384xbf16>
    %c0_14 = arith.constant 0 : index
    %c0_15 = arith.constant 0 : index
    %c0_16 = arith.constant 0 : index
    %35 = vector.load %arg6[%c0_14, %c0_15, %c0_16] : memref<3x1x384xf32, #tpu.memory_space<vmem>>, vector<1x1x384xf32>
    %36 = vector.shape_cast %35 : vector<1x1x384xf32> to vector<1x384xf32>
    %c0_17 = arith.constant 0 : index
    %c0_18 = arith.constant 0 : index
    %c0_19 = arith.constant 0 : index
    %37 = vector.load %arg7[%c0_17, %c0_18, %c0_19] : memref<3x128x32xbf16, #tpu.memory_space<vmem>>, vector<1x128x32xbf16>
    %38 = vector.shape_cast %37 : vector<1x128x32xbf16> to vector<128x32xbf16>
    %c0_20 = arith.constant 0 : index
    %c0_21 = arith.constant 0 : index
    %c0_22 = arith.constant 0 : index
    %39 = vector.load %arg8[%c0_20, %c0_21, %c0_22] : memref<3x32x2048xbf16, #tpu.memory_space<vmem>>, vector<1x32x2048xbf16>
    %40 = vector.shape_cast %39 : vector<1x32x2048xbf16> to vector<32x2048xbf16>
    %c0_23 = arith.constant 0 : index
    %c0_24 = arith.constant 0 : index
    %c0_25 = arith.constant 0 : index
    %41 = vector.load %arg9[%c0_23, %c0_24, %c0_25] : memref<3x1x2048xf32, #tpu.memory_space<vmem>>, vector<1x1x2048xf32>
    %42 = vector.shape_cast %41 : vector<1x1x2048xf32> to vector<1x2048xf32>
    %c0_26 = arith.constant 0 : index
    %c0_27 = arith.constant 0 : index
    %c0_28 = arith.constant 0 : index
    %43 = vector.load %arg10[%c0_26, %c0_27, %c0_28] : memref<3x2048x32xbf16, #tpu.memory_space<vmem>>, vector<1x2048x32xbf16>
    %44 = vector.shape_cast %43 : vector<1x2048x32xbf16> to vector<2048x32xbf16>
    %45 = arith.truncf %24 : vector<16x32xf32> to vector<16x32xbf16>
    %cst_29 = arith.constant dense<0.000000e+00> : vector<16x384xf32>
    %46 = tpu.matmul %45, %34, %cst_29 {dimension_numbers = #tpu.dot_dimension_numbers<[1], [0], [0], [1], [0, 0, 1, 1], [], []>} : vector<16x32xbf16>, vector<32x384xbf16>, vector<16x384xf32> -> vector<16x384xf32>
    %47 = vector.broadcast %36 : vector<1x384xf32> to vector<16x384xf32>
    %48 = arith.addf %46, %47 : vector<16x384xf32>
    %49 = vector.shape_cast %48 : vector<16x384xf32> to vector<2x8x384xf32>
    %50 = vector.extract_strided_slice %49 {offsets = [0, 0, 0], sizes = [2, 8, 128], strides = [1, 1, 1]} : vector<2x8x384xf32> to vector<2x8x128xf32>
    %51 = vector.extract_strided_slice %49 {offsets = [0, 0, 128], sizes = [2, 8, 128], strides = [1, 1, 1]} : vector<2x8x384xf32> to vector<2x8x128xf32>
    %52 = vector.extract_strided_slice %49 {offsets = [0, 0, 256], sizes = [2, 8, 128], strides = [1, 1, 1]} : vector<2x8x384xf32> to vector<2x8x128xf32>
    %53 = arith.truncf %50 : vector<2x8x128xf32> to vector<2x8x128xbf16>
    %54 = arith.truncf %51 : vector<2x8x128xf32> to vector<2x8x128xbf16>
    "tpu.trace_start"() <{level = 10 : i32, message = "bqd,bkd->bqk"}> : () -> ()
    %cst_30 = arith.constant dense<0.000000e+00> : vector<2x8x8xf32>
    %55 = tpu.matmul %53, %54, %cst_30 {dimension_numbers = #tpu.dot_dimension_numbers<[2], [2], [1], [1], [0, 0, 0, 1, 1, 1], [0], [0]>} : vector<2x8x128xbf16>, vector<2x8x128xbf16>, vector<2x8x8xf32> -> vector<2x8x8xf32>
    "tpu.trace_stop"() : () -> ()
    %cst_31 = arith.constant dense<0xFF800000> : vector<2x8xf32>
    %56 = vector.multi_reduction <maximumf>, %55, %cst_31 [2] : vector<2x8x8xf32> to vector<2x8xf32>
    %57 = vector.shape_cast %56 : vector<2x8xf32> to vector<2x8x1xf32>
    %58 = vector.broadcast %57 : vector<2x8x1xf32> to vector<2x8x8xf32>
    %59 = arith.subf %55, %58 : vector<2x8x8xf32>
    %60 = math.exp %59 : vector<2x8x8xf32>
    %cst_32 = arith.constant dense<0.000000e+00> : vector<2x8xf32>
    %61 = vector.multi_reduction <add>, %60, %cst_32 [2] : vector<2x8x8xf32> to vector<2x8xf32>
    %62 = vector.shape_cast %61 : vector<2x8xf32> to vector<2x8x1xf32>
    %63 = tpu.reciprocal %62 {approx = true} : vector<2x8x1xf32> -> vector<2x8x1xf32>
    %64 = vector.broadcast %63 : vector<2x8x1xf32> to vector<2x8x8xf32>
    %65 = arith.mulf %60, %64 : vector<2x8x8xf32>
    %66 = arith.truncf %65 : vector<2x8x8xf32> to vector<2x8x8xbf16>
    %67 = arith.truncf %52 : vector<2x8x128xf32> to vector<2x8x128xbf16>
    "tpu.trace_start"() <{level = 10 : i32, message = "bqk,bkd->bqd"}> : () -> ()
    %cst_33 = arith.constant dense<0.000000e+00> : vector<2x8x128xf32>
    %68 = tpu.matmul %66, %67, %cst_33 {dimension_numbers = #tpu.dot_dimension_numbers<[2], [1], [1], [2], [0, 0, 0, 1, 1, 2], [0], [0]>} : vector<2x8x8xbf16>, vector<2x8x128xbf16>, vector<2x8x128xf32> -> vector<2x8x128xf32>
    "tpu.trace_stop"() : () -> ()
    %69 = vector.shape_cast %68 : vector<2x8x128xf32> to vector<16x128xf32>
    %70 = arith.truncf %69 : vector<16x128xf32> to vector<16x128xbf16>
    %cst_34 = arith.constant dense<0.000000e+00> : vector<16x32xf32>
    %71 = tpu.matmul %70, %38, %cst_34 {dimension_numbers = #tpu.dot_dimension_numbers<[1], [0], [0], [1], [0, 0, 1, 1], [], []>} : vector<16x128xbf16>, vector<128x32xbf16>, vector<16x32xf32> -> vector<16x32xf32>
    %72 = vector.broadcast %27 : vector<1x32xf32> to vector<16x32xf32>
    %73 = arith.addf %71, %72 : vector<16x32xf32>
    %74 = arith.addf %24, %73 : vector<16x32xf32>
    %cst_35 = arith.constant dense<0.000000e+00> : vector<16xf32>
    %75 = vector.multi_reduction <add>, %74, %cst_35 [1] : vector<16x32xf32> to vector<16xf32>
    %76 = vector.shape_cast %75 : vector<16xf32> to vector<16x1xf32>
    %cst_36 = arith.constant 3.200000e+01 : f32
    %77 = vector.broadcast %cst_36 : f32 to vector<16x1xf32>
    %78 = arith.divf %76, %77 : vector<16x1xf32>
    %79 = vector.broadcast %78 : vector<16x1xf32> to vector<16x32xf32>
    %80 = arith.subf %74, %79 : vector<16x32xf32>
    %81 = arith.mulf %80, %80 : vector<16x32xf32>
    %cst_37 = arith.constant dense<0.000000e+00> : vector<16xf32>
    %82 = vector.multi_reduction <add>, %81, %cst_37 [1] : vector<16x32xf32> to vector<16xf32>
    %83 = vector.shape_cast %82 : vector<16xf32> to vector<16x1xf32>
    %cst_38 = arith.constant 3.200000e+01 : f32
    %84 = vector.broadcast %cst_38 : f32 to vector<16x1xf32>
    %85 = arith.divf %83, %84 : vector<16x1xf32>
    %86 = vector.broadcast %78 : vector<16x1xf32> to vector<16x32xf32>
    %87 = arith.subf %74, %86 : vector<16x32xf32>
    %cst_39 = arith.constant 9.99999974E-6 : f32
    %88 = vector.broadcast %cst_39 : f32 to vector<16x1xf32>
    %89 = arith.addf %85, %88 : vector<16x1xf32>
    %90 = math.rsqrt %89 : vector<16x1xf32>
    %91 = vector.broadcast %90 : vector<16x1xf32> to vector<16x32xf32>
    %92 = arith.mulf %87, %91 : vector<16x32xf32>
    %93 = vector.broadcast %28 : vector<1x32xf32> to vector<16x32xf32>
    %94 = arith.mulf %92, %93 : vector<16x32xf32>
    %95 = vector.broadcast %29 : vector<1x32xf32> to vector<16x32xf32>
    %96 = arith.addf %94, %95 : vector<16x32xf32>
    %97 = arith.truncf %96 : vector<16x32xf32> to vector<16x32xbf16>
    %cst_40 = arith.constant dense<0.000000e+00> : vector<16x2048xf32>
    %98 = tpu.matmul %97, %40, %cst_40 {dimension_numbers = #tpu.dot_dimension_numbers<[1], [0], [0], [1], [0, 0, 1, 1], [], []>} : vector<16x32xbf16>, vector<32x2048xbf16>, vector<16x2048xf32> -> vector<16x2048xf32>
    %99 = vector.broadcast %42 : vector<1x2048xf32> to vector<16x2048xf32>
    %100 = arith.addf %98, %99 : vector<16x2048xf32>
    %cst_41 = arith.constant 0.000000e+00 : f32
    %101 = vector.broadcast %cst_41 : f32 to vector<16x2048xf32>
    %102 = arith.maximumf %100, %101 : vector<16x2048xf32>
    %103 = arith.truncf %102 : vector<16x2048xf32> to vector<16x2048xbf16>
    %cst_42 = arith.constant dense<0.000000e+00> : vector<16x32xf32>
    %104 = tpu.matmul %103, %44, %cst_42 {dimension_numbers = #tpu.dot_dimension_numbers<[1], [0], [0], [1], [0, 0, 1, 1], [], []>} : vector<16x2048xbf16>, vector<2048x32xbf16>, vector<16x32xf32> -> vector<16x32xf32>
    %105 = vector.broadcast %30 : vector<1x32xf32> to vector<16x32xf32>
    %106 = arith.addf %104, %105 : vector<16x32xf32>
    %107 = arith.addf %96, %106 : vector<16x32xf32>
    %cst_43 = arith.constant dense<0.000000e+00> : vector<16xf32>
    %108 = vector.multi_reduction <add>, %107, %cst_43 [1] : vector<16x32xf32> to vector<16xf32>
    %109 = vector.shape_cast %108 : vector<16xf32> to vector<16x1xf32>
    %cst_44 = arith.constant 3.200000e+01 : f32
    %110 = vector.broadcast %cst_44 : f32 to vector<16x1xf32>
    %111 = arith.divf %109, %110 : vector<16x1xf32>
    %112 = vector.broadcast %111 : vector<16x1xf32> to vector<16x32xf32>
    %113 = arith.subf %107, %112 : vector<16x32xf32>
    %114 = arith.mulf %113, %113 : vector<16x32xf32>
    %cst_45 = arith.constant dense<0.000000e+00> : vector<16xf32>
    %115 = vector.multi_reduction <add>, %114, %cst_45 [1] : vector<16x32xf32> to vector<16xf32>
    %116 = vector.shape_cast %115 : vector<16xf32> to vector<16x1xf32>
    %cst_46 = arith.constant 3.200000e+01 : f32
    %117 = vector.broadcast %cst_46 : f32 to vector<16x1xf32>
    %118 = arith.divf %116, %117 : vector<16x1xf32>
    %119 = vector.broadcast %111 : vector<16x1xf32> to vector<16x32xf32>
    %120 = arith.subf %107, %119 : vector<16x32xf32>
    %cst_47 = arith.constant 9.99999974E-6 : f32
    %121 = vector.broadcast %cst_47 : f32 to vector<16x1xf32>
    %122 = arith.addf %118, %121 : vector<16x1xf32>
    %123 = math.rsqrt %122 : vector<16x1xf32>
    %124 = vector.broadcast %123 : vector<16x1xf32> to vector<16x32xf32>
    %125 = arith.mulf %120, %124 : vector<16x32xf32>
    %126 = vector.broadcast %31 : vector<1x32xf32> to vector<16x32xf32>
    %127 = arith.mulf %125, %126 : vector<16x32xf32>
    %128 = vector.broadcast %32 : vector<1x32xf32> to vector<16x32xf32>
    %129 = arith.addf %127, %128 : vector<16x32xf32>
    %c1 = arith.constant 1 : index
    %c0_48 = arith.constant 0 : index
    %c0_49 = arith.constant 0 : index
    %130 = vector.load %arg11[%c1, %c0_48, %c0_49] : memref<3x6x32xf32, #tpu.memory_space<vmem>>, vector<1x6x32xf32>
    %131 = vector.shape_cast %130 : vector<1x6x32xf32> to vector<6x32xf32>
    %132 = vector.extract_strided_slice %131 {offsets = [0, 0], sizes = [1, 32], strides = [1, 1]} : vector<6x32xf32> to vector<1x32xf32>
    %133 = vector.extract_strided_slice %131 {offsets = [1, 0], sizes = [1, 32], strides = [1, 1]} : vector<6x32xf32> to vector<1x32xf32>
    %134 = vector.extract_strided_slice %131 {offsets = [2, 0], sizes = [1, 32], strides = [1, 1]} : vector<6x32xf32> to vector<1x32xf32>
    %135 = vector.extract_strided_slice %131 {offsets = [3, 0], sizes = [1, 32], strides = [1, 1]} : vector<6x32xf32> to vector<1x32xf32>
    %136 = vector.extract_strided_slice %131 {offsets = [4, 0], sizes = [1, 32], strides = [1, 1]} : vector<6x32xf32> to vector<1x32xf32>
    %137 = vector.extract_strided_slice %131 {offsets = [5, 0], sizes = [1, 32], strides = [1, 1]} : vector<6x32xf32> to vector<1x32xf32>
    %138 = vector.shape_cast %132 : vector<1x32xf32> to vector<1x32xf32>
    %139 = vector.broadcast %138 : vector<1x32xf32> to vector<16x32xf32>
    %140 = vector.shape_cast %133 : vector<1x32xf32> to vector<1x32xf32>
    %141 = vector.broadcast %140 : vector<1x32xf32> to vector<16x32xf32>
    %142 = vector.shape_cast %134 : vector<1x32xf32> to vector<1x32xf32>
    %143 = vector.broadcast %142 : vector<1x32xf32> to vector<16x32xf32>
    %144 = vector.shape_cast %135 : vector<1x32xf32> to vector<1x32xf32>
    %145 = vector.broadcast %144 : vector<1x32xf32> to vector<16x32xf32>
    %146 = vector.shape_cast %136 : vector<1x32xf32> to vector<1x32xf32>
    %147 = vector.broadcast %146 : vector<1x32xf32> to vector<16x32xf32>
    %148 = vector.shape_cast %137 : vector<1x32xf32> to vector<1x32xf32>
    %149 = vector.broadcast %148 : vector<1x32xf32> to vector<16x32xf32>
    %c1_50 = arith.constant 1 : index
    %c0_51 = arith.constant 0 : index
    %c0_52 = arith.constant 0 : index
    %150 = vector.load %arg5[%c1_50, %c0_51, %c0_52] : memref<3x32x384xbf16, #tpu.memory_space<vmem>>, vector<1x32x384xbf16>
    %151 = vector.shape_cast %150 : vector<1x32x384xbf16> to vector<32x384xbf16>
    %c1_53 = arith.constant 1 : index
    %c0_54 = arith.constant 0 : index
    %c0_55 = arith.constant 0 : index
    %152 = vector.load %arg6[%c1_53, %c0_54, %c0_55] : memref<3x1x384xf32, #tpu.memory_space<vmem>>, vector<1x1x384xf32>
    %153 = vector.shape_cast %152 : vector<1x1x384xf32> to vector<1x384xf32>
    %c1_56 = arith.constant 1 : index
    %c0_57 = arith.constant 0 : index
    %c0_58 = arith.constant 0 : index
    %154 = vector.load %arg7[%c1_56, %c0_57, %c0_58] : memref<3x128x32xbf16, #tpu.memory_space<vmem>>, vector<1x128x32xbf16>
    %155 = vector.shape_cast %154 : vector<1x128x32xbf16> to vector<128x32xbf16>
    %c1_59 = arith.constant 1 : index
    %c0_60 = arith.constant 0 : index
    %c0_61 = arith.constant 0 : index
    %156 = vector.load %arg8[%c1_59, %c0_60, %c0_61] : memref<3x32x2048xbf16, #tpu.memory_space<vmem>>, vector<1x32x2048xbf16>
    %157 = vector.shape_cast %156 : vector<1x32x2048xbf16> to vector<32x2048xbf16>
    %c1_62 = arith.constant 1 : index
    %c0_63 = arith.constant 0 : index
    %c0_64 = arith.constant 0 : index
    %158 = vector.load %arg9[%c1_62, %c0_63, %c0_64] : memref<3x1x2048xf32, #tpu.memory_space<vmem>>, vector<1x1x2048xf32>
    %159 = vector.shape_cast %158 : vector<1x1x2048xf32> to vector<1x2048xf32>
    %c1_65 = arith.constant 1 : index
    %c0_66 = arith.constant 0 : index
    %c0_67 = arith.constant 0 : index
    %160 = vector.load %arg10[%c1_65, %c0_66, %c0_67] : memref<3x2048x32xbf16, #tpu.memory_space<vmem>>, vector<1x2048x32xbf16>
    %161 = vector.shape_cast %160 : vector<1x2048x32xbf16> to vector<2048x32xbf16>
    %c0_68 = arith.constant 0 : index
    %c0_69 = arith.constant 0 : index
    %c0_70 = arith.constant 0 : index
    %162 = vector.load %arg13[%c0_68, %c0_69, %c0_70] : memref<2x32x32xbf16, #tpu.memory_space<vmem>>, vector<1x32x32xbf16>
    %163 = vector.shape_cast %162 : vector<1x32x32xbf16> to vector<32x32xbf16>
    %c1_71 = arith.constant 1 : index
    %c0_72 = arith.constant 0 : index
    %c0_73 = arith.constant 0 : index
    %164 = vector.load %arg13[%c1_71, %c0_72, %c0_73] : memref<2x32x32xbf16, #tpu.memory_space<vmem>>, vector<1x32x32xbf16>
    %165 = vector.shape_cast %164 : vector<1x32x32xbf16> to vector<32x32xbf16>
    %166 = arith.truncf %129 : vector<16x32xf32> to vector<16x32xbf16>
    %cst_74 = arith.constant dense<0.000000e+00> : vector<16x32xf32>
    %167 = tpu.matmul %166, %165, %cst_74 {dimension_numbers = #tpu.dot_dimension_numbers<[1], [0], [0], [1], [0, 0, 1, 1], [], []>} : vector<16x32xbf16>, vector<32x32xbf16>, vector<16x32xf32> -> vector<16x32xf32>
    %168 = vector.broadcast %1 : vector<1x32xf32> to vector<16x32xf32>
    %169 = arith.addf %167, %168 : vector<16x32xf32>
    %c0_75 = arith.constant 0 : index
    %c0_76 = arith.constant 0 : index
    %c0_77 = arith.constant 0 : index
    %170 = vector.load %arg2[%c0_75, %c0_76, %c0_77] : memref<2x8x32xf32, #tpu.memory_space<vmem>>, vector<2x8x32xf32>
    %171 = vector.shape_cast %170 : vector<2x8x32xf32> to vector<16x32xf32>
    %c0_i32 = arith.constant 0 : i32
    %172 = arith.truncf %171 : vector<16x32xf32> to vector<16x32xbf16>
    %cst_78 = arith.constant dense<0.000000e+00> : vector<16x32xf32>
    %173 = tpu.matmul %172, %163, %cst_78 {dimension_numbers = #tpu.dot_dimension_numbers<[1], [0], [0], [1], [0, 0, 1, 1], [], []>} : vector<16x32xbf16>, vector<32x32xbf16>, vector<16x32xf32> -> vector<16x32xf32>
    %174 = arith.addf %173, %169 : vector<16x32xf32>
    %175 = arith.truncf %174 : vector<16x32xf32> to vector<16x32xbf16>
    %cst_79 = arith.constant dense<0.000000e+00> : vector<16x384xf32>
    %176 = tpu.matmul %175, %151, %cst_79 {dimension_numbers = #tpu.dot_dimension_numbers<[1], [0], [0], [1], [0, 0, 1, 1], [], []>} : vector<16x32xbf16>, vector<32x384xbf16>, vector<16x384xf32> -> vector<16x384xf32>
    %177 = vector.broadcast %153 : vector<1x384xf32> to vector<16x384xf32>
    %178 = arith.addf %176, %177 : vector<16x384xf32>
    %179 = vector.shape_cast %178 : vector<16x384xf32> to vector<2x8x384xf32>
    %180 = vector.extract_strided_slice %179 {offsets = [0, 0, 0], sizes = [2, 8, 128], strides = [1, 1, 1]} : vector<2x8x384xf32> to vector<2x8x128xf32>
    %181 = vector.extract_strided_slice %179 {offsets = [0, 0, 128], sizes = [2, 8, 128], strides = [1, 1, 1]} : vector<2x8x384xf32> to vector<2x8x128xf32>
    %182 = vector.extract_strided_slice %179 {offsets = [0, 0, 256], sizes = [2, 8, 128], strides = [1, 1, 1]} : vector<2x8x384xf32> to vector<2x8x128xf32>
    %183 = arith.truncf %180 : vector<2x8x128xf32> to vector<2x8x128xbf16>
    %184 = arith.truncf %181 : vector<2x8x128xf32> to vector<2x8x128xbf16>
    "tpu.trace_start"() <{level = 10 : i32, message = "bqd,bkd->bqk"}> : () -> ()
    %cst_80 = arith.constant dense<0.000000e+00> : vector<2x8x8xf32>
    %185 = tpu.matmul %183, %184, %cst_80 {dimension_numbers = #tpu.dot_dimension_numbers<[2], [2], [1], [1], [0, 0, 0, 1, 1, 1], [0], [0]>} : vector<2x8x128xbf16>, vector<2x8x128xbf16>, vector<2x8x8xf32> -> vector<2x8x8xf32>
    "tpu.trace_stop"() : () -> ()
    %cst_81 = arith.constant dense<0xFF800000> : vector<2x8xf32>
    %186 = vector.multi_reduction <maximumf>, %185, %cst_81 [2] : vector<2x8x8xf32> to vector<2x8xf32>
    %187 = vector.shape_cast %186 : vector<2x8xf32> to vector<2x8x1xf32>
    %188 = vector.broadcast %187 : vector<2x8x1xf32> to vector<2x8x8xf32>
    %189 = arith.subf %185, %188 : vector<2x8x8xf32>
    %190 = math.exp %189 : vector<2x8x8xf32>
    %cst_82 = arith.constant dense<0.000000e+00> : vector<2x8xf32>
    %191 = vector.multi_reduction <add>, %190, %cst_82 [2] : vector<2x8x8xf32> to vector<2x8xf32>
    %192 = vector.shape_cast %191 : vector<2x8xf32> to vector<2x8x1xf32>
    %193 = tpu.reciprocal %192 {approx = true} : vector<2x8x1xf32> -> vector<2x8x1xf32>
    %194 = vector.broadcast %193 : vector<2x8x1xf32> to vector<2x8x8xf32>
    %195 = arith.mulf %190, %194 : vector<2x8x8xf32>
    %196 = arith.truncf %195 : vector<2x8x8xf32> to vector<2x8x8xbf16>
    %197 = arith.truncf %182 : vector<2x8x128xf32> to vector<2x8x128xbf16>
    "tpu.trace_start"() <{level = 10 : i32, message = "bqk,bkd->bqd"}> : () -> ()
    %cst_83 = arith.constant dense<0.000000e+00> : vector<2x8x128xf32>
    %198 = tpu.matmul %196, %197, %cst_83 {dimension_numbers = #tpu.dot_dimension_numbers<[2], [1], [1], [2], [0, 0, 0, 1, 1, 2], [0], [0]>} : vector<2x8x8xbf16>, vector<2x8x128xbf16>, vector<2x8x128xf32> -> vector<2x8x128xf32>
    "tpu.trace_stop"() : () -> ()
    %199 = vector.shape_cast %198 : vector<2x8x128xf32> to vector<16x128xf32>
    %200 = arith.truncf %199 : vector<16x128xf32> to vector<16x128xbf16>
    %cst_84 = arith.constant dense<0.000000e+00> : vector<16x32xf32>
    %201 = tpu.matmul %200, %155, %cst_84 {dimension_numbers = #tpu.dot_dimension_numbers<[1], [0], [0], [1], [0, 0, 1, 1], [], []>} : vector<16x128xbf16>, vector<128x32xbf16>, vector<16x32xf32> -> vector<16x32xf32>
    %202 = arith.addf %201, %139 : vector<16x32xf32>
    %203 = arith.addf %174, %202 : vector<16x32xf32>
    %cst_85 = arith.constant dense<0.000000e+00> : vector<16xf32>
    %204 = vector.multi_reduction <add>, %203, %cst_85 [1] : vector<16x32xf32> to vector<16xf32>
    %205 = vector.shape_cast %204 : vector<16xf32> to vector<16x1xf32>
    %cst_86 = arith.constant 3.200000e+01 : f32
    %206 = vector.broadcast %cst_86 : f32 to vector<16x1xf32>
    %207 = arith.divf %205, %206 : vector<16x1xf32>
    %208 = vector.broadcast %207 : vector<16x1xf32> to vector<16x32xf32>
    %209 = arith.subf %203, %208 : vector<16x32xf32>
    %210 = arith.mulf %209, %209 : vector<16x32xf32>
    %cst_87 = arith.constant dense<0.000000e+00> : vector<16xf32>
    %211 = vector.multi_reduction <add>, %210, %cst_87 [1] : vector<16x32xf32> to vector<16xf32>
    %212 = vector.shape_cast %211 : vector<16xf32> to vector<16x1xf32>
    %cst_88 = arith.constant 3.200000e+01 : f32
    %213 = vector.broadcast %cst_88 : f32 to vector<16x1xf32>
    %214 = arith.divf %212, %213 : vector<16x1xf32>
    %215 = vector.broadcast %207 : vector<16x1xf32> to vector<16x32xf32>
    %216 = arith.subf %203, %215 : vector<16x32xf32>
    %cst_89 = arith.constant 9.99999974E-6 : f32
    %217 = vector.broadcast %cst_89 : f32 to vector<16x1xf32>
    %218 = arith.addf %214, %217 : vector<16x1xf32>
    %219 = math.rsqrt %218 : vector<16x1xf32>
    %220 = vector.broadcast %219 : vector<16x1xf32> to vector<16x32xf32>
    %221 = arith.mulf %216, %220 : vector<16x32xf32>
    %222 = arith.mulf %221, %141 : vector<16x32xf32>
    %223 = arith.addf %222, %143 : vector<16x32xf32>
    %224 = arith.truncf %223 : vector<16x32xf32> to vector<16x32xbf16>
    %cst_90 = arith.constant dense<0.000000e+00> : vector<16x2048xf32>
    %225 = tpu.matmul %224, %157, %cst_90 {dimension_numbers = #tpu.dot_dimension_numbers<[1], [0], [0], [1], [0, 0, 1, 1], [], []>} : vector<16x32xbf16>, vector<32x2048xbf16>, vector<16x2048xf32> -> vector<16x2048xf32>
    %226 = vector.broadcast %159 : vector<1x2048xf32> to vector<16x2048xf32>
    %227 = arith.addf %225, %226 : vector<16x2048xf32>
    %cst_91 = arith.constant 0.000000e+00 : f32
    %228 = vector.broadcast %cst_91 : f32 to vector<16x2048xf32>
    %229 = arith.maximumf %227, %228 : vector<16x2048xf32>
    %230 = arith.truncf %229 : vector<16x2048xf32> to vector<16x2048xbf16>
    %cst_92 = arith.constant dense<0.000000e+00> : vector<16x32xf32>
    %231 = tpu.matmul %230, %161, %cst_92 {dimension_numbers = #tpu.dot_dimension_numbers<[1], [0], [0], [1], [0, 0, 1, 1], [], []>} : vector<16x2048xbf16>, vector<2048x32xbf16>, vector<16x32xf32> -> vector<16x32xf32>
    %232 = arith.addf %231, %145 : vector<16x32xf32>
    %233 = arith.addf %223, %232 : vector<16x32xf32>
    %cst_93 = arith.constant dense<0.000000e+00> : vector<16xf32>
    %234 = vector.multi_reduction <add>, %233, %cst_93 [1] : vector<16x32xf32> to vector<16xf32>
    %235 = vector.shape_cast %234 : vector<16xf32> to vector<16x1xf32>
    %cst_94 = arith.constant 3.200000e+01 : f32
    %236 = vector.broadcast %cst_94 : f32 to vector<16x1xf32>
    %237 = arith.divf %235, %236 : vector<16x1xf32>
    %238 = vector.broadcast %237 : vector<16x1xf32> to vector<16x32xf32>
    %239 = arith.subf %233, %238 : vector<16x32xf32>
    %240 = arith.mulf %239, %239 : vector<16x32xf32>
    %cst_95 = arith.constant dense<0.000000e+00> : vector<16xf32>
    %241 = vector.multi_reduction <add>, %240, %cst_95 [1] : vector<16x32xf32> to vector<16xf32>
    %242 = vector.shape_cast %241 : vector<16xf32> to vector<16x1xf32>
    %cst_96 = arith.constant 3.200000e+01 : f32
    %243 = vector.broadcast %cst_96 : f32 to vector<16x1xf32>
    %244 = arith.divf %242, %243 : vector<16x1xf32>
    %245 = vector.broadcast %237 : vector<16x1xf32> to vector<16x32xf32>
    %246 = arith.subf %233, %245 : vector<16x32xf32>
    %cst_97 = arith.constant 9.99999974E-6 : f32
    %247 = vector.broadcast %cst_97 : f32 to vector<16x1xf32>
    %248 = arith.addf %244, %247 : vector<16x1xf32>
    %249 = math.rsqrt %248 : vector<16x1xf32>
    %250 = vector.broadcast %249 : vector<16x1xf32> to vector<16x32xf32>
    %251 = arith.mulf %246, %250 : vector<16x32xf32>
    %252 = arith.mulf %251, %147 : vector<16x32xf32>
    %253 = arith.addf %252, %149 : vector<16x32xf32>
    %cst_98 = arith.constant dense<0.000000e+00> : vector<16xf32>
    %254 = vector.multi_reduction <add>, %253, %cst_98 [1] : vector<16x32xf32> to vector<16xf32>
    %255 = vector.shape_cast %254 : vector<16xf32> to vector<16x1xf32>
    %cst_99 = arith.constant 3.200000e+01 : f32
    %256 = vector.broadcast %cst_99 : f32 to vector<16x1xf32>
    %257 = arith.divf %255, %256 : vector<16x1xf32>
    %258 = vector.broadcast %257 : vector<16x1xf32> to vector<16x32xf32>
    %259 = arith.subf %253, %258 : vector<16x32xf32>
    %260 = arith.mulf %259, %259 : vector<16x32xf32>
    %cst_100 = arith.constant dense<0.000000e+00> : vector<16xf32>
    %261 = vector.multi_reduction <add>, %260, %cst_100 [1] : vector<16x32xf32> to vector<16xf32>
    %262 = vector.shape_cast %261 : vector<16xf32> to vector<16x1xf32>
    %cst_101 = arith.constant 3.200000e+01 : f32
    %263 = vector.broadcast %cst_101 : f32 to vector<16x1xf32>
    %264 = arith.divf %262, %263 : vector<16x1xf32>
    %265 = vector.broadcast %257 : vector<16x1xf32> to vector<16x32xf32>
    %266 = arith.subf %253, %265 : vector<16x32xf32>
    %cst_102 = arith.constant 9.99999974E-6 : f32
    %267 = vector.broadcast %cst_102 : f32 to vector<16x1xf32>
    %268 = arith.addf %264, %267 : vector<16x1xf32>
    %269 = math.rsqrt %268 : vector<16x1xf32>
    %270 = vector.broadcast %269 : vector<16x1xf32> to vector<16x32xf32>
    %271 = arith.mulf %266, %270 : vector<16x32xf32>
    %272 = arith.mulf %271, %4 : vector<16x32xf32>
    %273 = arith.addf %272, %7 : vector<16x32xf32>
    %c1_i32 = arith.constant 1 : i32
    %274 = arith.truncf %273 : vector<16x32xf32> to vector<16x32xbf16>
    %cst_103 = arith.constant dense<0.000000e+00> : vector<16x32xf32>
    %275 = tpu.matmul %274, %163, %cst_103 {dimension_numbers = #tpu.dot_dimension_numbers<[1], [0], [0], [1], [0, 0, 1, 1], [], []>} : vector<16x32xbf16>, vector<32x32xbf16>, vector<16x32xf32> -> vector<16x32xf32>
    %276 = arith.addf %275, %169 : vector<16x32xf32>
    %277 = arith.truncf %276 : vector<16x32xf32> to vector<16x32xbf16>
    %cst_104 = arith.constant dense<0.000000e+00> : vector<16x384xf32>
    %278 = tpu.matmul %277, %151, %cst_104 {dimension_numbers = #tpu.dot_dimension_numbers<[1], [0], [0], [1], [0, 0, 1, 1], [], []>} : vector<16x32xbf16>, vector<32x384xbf16>, vector<16x384xf32> -> vector<16x384xf32>
    %279 = vector.broadcast %153 : vector<1x384xf32> to vector<16x384xf32>
    %280 = arith.addf %278, %279 : vector<16x384xf32>
    %281 = vector.shape_cast %280 : vector<16x384xf32> to vector<2x8x384xf32>
    %282 = vector.extract_strided_slice %281 {offsets = [0, 0, 0], sizes = [2, 8, 128], strides = [1, 1, 1]} : vector<2x8x384xf32> to vector<2x8x128xf32>
    %283 = vector.extract_strided_slice %281 {offsets = [0, 0, 128], sizes = [2, 8, 128], strides = [1, 1, 1]} : vector<2x8x384xf32> to vector<2x8x128xf32>
    %284 = vector.extract_strided_slice %281 {offsets = [0, 0, 256], sizes = [2, 8, 128], strides = [1, 1, 1]} : vector<2x8x384xf32> to vector<2x8x128xf32>
    %285 = arith.truncf %282 : vector<2x8x128xf32> to vector<2x8x128xbf16>
    %286 = arith.truncf %283 : vector<2x8x128xf32> to vector<2x8x128xbf16>
    "tpu.trace_start"() <{level = 10 : i32, message = "bqd,bkd->bqk"}> : () -> ()
    %cst_105 = arith.constant dense<0.000000e+00> : vector<2x8x8xf32>
    %287 = tpu.matmul %285, %286, %cst_105 {dimension_numbers = #tpu.dot_dimension_numbers<[2], [2], [1], [1], [0, 0, 0, 1, 1, 1], [0], [0]>} : vector<2x8x128xbf16>, vector<2x8x128xbf16>, vector<2x8x8xf32> -> vector<2x8x8xf32>
    "tpu.trace_stop"() : () -> ()
    %cst_106 = arith.constant dense<0xFF800000> : vector<2x8xf32>
    %288 = vector.multi_reduction <maximumf>, %287, %cst_106 [2] : vector<2x8x8xf32> to vector<2x8xf32>
    %289 = vector.shape_cast %288 : vector<2x8xf32> to vector<2x8x1xf32>
    %290 = vector.broadcast %289 : vector<2x8x1xf32> to vector<2x8x8xf32>
    %291 = arith.subf %287, %290 : vector<2x8x8xf32>
    %292 = math.exp %291 : vector<2x8x8xf32>
    %cst_107 = arith.constant dense<0.000000e+00> : vector<2x8xf32>
    %293 = vector.multi_reduction <add>, %292, %cst_107 [2] : vector<2x8x8xf32> to vector<2x8xf32>
    %294 = vector.shape_cast %293 : vector<2x8xf32> to vector<2x8x1xf32>
    %295 = tpu.reciprocal %294 {approx = true} : vector<2x8x1xf32> -> vector<2x8x1xf32>
    %296 = vector.broadcast %295 : vector<2x8x1xf32> to vector<2x8x8xf32>
    %297 = arith.mulf %292, %296 : vector<2x8x8xf32>
    %298 = arith.truncf %297 : vector<2x8x8xf32> to vector<2x8x8xbf16>
    %299 = arith.truncf %284 : vector<2x8x128xf32> to vector<2x8x128xbf16>
    "tpu.trace_start"() <{level = 10 : i32, message = "bqk,bkd->bqd"}> : () -> ()
    %cst_108 = arith.constant dense<0.000000e+00> : vector<2x8x128xf32>
    %300 = tpu.matmul %298, %299, %cst_108 {dimension_numbers = #tpu.dot_dimension_numbers<[2], [1], [1], [2], [0, 0, 0, 1, 1, 2], [0], [0]>} : vector<2x8x8xbf16>, vector<2x8x128xbf16>, vector<2x8x128xf32> -> vector<2x8x128xf32>
    "tpu.trace_stop"() : () -> ()
    %301 = vector.shape_cast %300 : vector<2x8x128xf32> to vector<16x128xf32>
    %302 = arith.truncf %301 : vector<16x128xf32> to vector<16x128xbf16>
    %cst_109 = arith.constant dense<0.000000e+00> : vector<16x32xf32>
    %303 = tpu.matmul %302, %155, %cst_109 {dimension_numbers = #tpu.dot_dimension_numbers<[1], [0], [0], [1], [0, 0, 1, 1], [], []>} : vector<16x128xbf16>, vector<128x32xbf16>, vector<16x32xf32> -> vector<16x32xf32>
    %304 = arith.addf %303, %139 : vector<16x32xf32>
    %305 = arith.addf %276, %304 : vector<16x32xf32>
    %cst_110 = arith.constant dense<0.000000e+00> : vector<16xf32>
    %306 = vector.multi_reduction <add>, %305, %cst_110 [1] : vector<16x32xf32> to vector<16xf32>
    %307 = vector.shape_cast %306 : vector<16xf32> to vector<16x1xf32>
    %cst_111 = arith.constant 3.200000e+01 : f32
    %308 = vector.broadcast %cst_111 : f32 to vector<16x1xf32>
    %309 = arith.divf %307, %308 : vector<16x1xf32>
    %310 = vector.broadcast %309 : vector<16x1xf32> to vector<16x32xf32>
    %311 = arith.subf %305, %310 : vector<16x32xf32>
    %312 = arith.mulf %311, %311 : vector<16x32xf32>
    %cst_112 = arith.constant dense<0.000000e+00> : vector<16xf32>
    %313 = vector.multi_reduction <add>, %312, %cst_112 [1] : vector<16x32xf32> to vector<16xf32>
    %314 = vector.shape_cast %313 : vector<16xf32> to vector<16x1xf32>
    %cst_113 = arith.constant 3.200000e+01 : f32
    %315 = vector.broadcast %cst_113 : f32 to vector<16x1xf32>
    %316 = arith.divf %314, %315 : vector<16x1xf32>
    %317 = vector.broadcast %309 : vector<16x1xf32> to vector<16x32xf32>
    %318 = arith.subf %305, %317 : vector<16x32xf32>
    %cst_114 = arith.constant 9.99999974E-6 : f32
    %319 = vector.broadcast %cst_114 : f32 to vector<16x1xf32>
    %320 = arith.addf %316, %319 : vector<16x1xf32>
    %321 = math.rsqrt %320 : vector<16x1xf32>
    %322 = vector.broadcast %321 : vector<16x1xf32> to vector<16x32xf32>
    %323 = arith.mulf %318, %322 : vector<16x32xf32>
    %324 = arith.mulf %323, %141 : vector<16x32xf32>
    %325 = arith.addf %324, %143 : vector<16x32xf32>
    %326 = arith.truncf %325 : vector<16x32xf32> to vector<16x32xbf16>
    %cst_115 = arith.constant dense<0.000000e+00> : vector<16x2048xf32>
    %327 = tpu.matmul %326, %157, %cst_115 {dimension_numbers = #tpu.dot_dimension_numbers<[1], [0], [0], [1], [0, 0, 1, 1], [], []>} : vector<16x32xbf16>, vector<32x2048xbf16>, vector<16x2048xf32> -> vector<16x2048xf32>
    %328 = vector.broadcast %159 : vector<1x2048xf32> to vector<16x2048xf32>
    %329 = arith.addf %327, %328 : vector<16x2048xf32>
    %cst_116 = arith.constant 0.000000e+00 : f32
    %330 = vector.broadcast %cst_116 : f32 to vector<16x2048xf32>
    %331 = arith.maximumf %329, %330 : vector<16x2048xf32>
    %332 = arith.truncf %331 : vector<16x2048xf32> to vector<16x2048xbf16>
    %cst_117 = arith.constant dense<0.000000e+00> : vector<16x32xf32>
    %333 = tpu.matmul %332, %161, %cst_117 {dimension_numbers = #tpu.dot_dimension_numbers<[1], [0], [0], [1], [0, 0, 1, 1], [], []>} : vector<16x2048xbf16>, vector<2048x32xbf16>, vector<16x32xf32> -> vector<16x32xf32>
    %334 = arith.addf %333, %145 : vector<16x32xf32>
    %335 = arith.addf %325, %334 : vector<16x32xf32>
    %cst_118 = arith.constant dense<0.000000e+00> : vector<16xf32>
    %336 = vector.multi_reduction <add>, %335, %cst_118 [1] : vector<16x32xf32> to vector<16xf32>
    %337 = vector.shape_cast %336 : vector<16xf32> to vector<16x1xf32>
    %cst_119 = arith.constant 3.200000e+01 : f32
    %338 = vector.broadcast %cst_119 : f32 to vector<16x1xf32>
    %339 = arith.divf %337, %338 : vector<16x1xf32>
    %340 = vector.broadcast %339 : vector<16x1xf32> to vector<16x32xf32>
    %341 = arith.subf %335, %340 : vector<16x32xf32>
    %342 = arith.mulf %341, %341 : vector<16x32xf32>
    %cst_120 = arith.constant dense<0.000000e+00> : vector<16xf32>
    %343 = vector.multi_reduction <add>, %342, %cst_120 [1] : vector<16x32xf32> to vector<16xf32>
    %344 = vector.shape_cast %343 : vector<16xf32> to vector<16x1xf32>
    %cst_121 = arith.constant 3.200000e+01 : f32
    %345 = vector.broadcast %cst_121 : f32 to vector<16x1xf32>
    %346 = arith.divf %344, %345 : vector<16x1xf32>
    %347 = vector.broadcast %339 : vector<16x1xf32> to vector<16x32xf32>
    %348 = arith.subf %335, %347 : vector<16x32xf32>
    %cst_122 = arith.constant 9.99999974E-6 : f32
    %349 = vector.broadcast %cst_122 : f32 to vector<16x1xf32>
    %350 = arith.addf %346, %349 : vector<16x1xf32>
    %351 = math.rsqrt %350 : vector<16x1xf32>
    %352 = vector.broadcast %351 : vector<16x1xf32> to vector<16x32xf32>
    %353 = arith.mulf %348, %352 : vector<16x32xf32>
    %354 = arith.mulf %353, %147 : vector<16x32xf32>
    %355 = arith.addf %354, %149 : vector<16x32xf32>
    %cst_123 = arith.constant dense<0.000000e+00> : vector<16xf32>
    %356 = vector.multi_reduction <add>, %355, %cst_123 [1] : vector<16x32xf32> to vector<16xf32>
    %357 = vector.shape_cast %356 : vector<16xf32> to vector<16x1xf32>
    %cst_124 = arith.constant 3.200000e+01 : f32
    %358 = vector.broadcast %cst_124 : f32 to vector<16x1xf32>
    %359 = arith.divf %357, %358 : vector<16x1xf32>
    %360 = vector.broadcast %359 : vector<16x1xf32> to vector<16x32xf32>
    %361 = arith.subf %355, %360 : vector<16x32xf32>
    %362 = arith.mulf %361, %361 : vector<16x32xf32>
    %cst_125 = arith.constant dense<0.000000e+00> : vector<16xf32>
    %363 = vector.multi_reduction <add>, %362, %cst_125 [1] : vector<16x32xf32> to vector<16xf32>
    %364 = vector.shape_cast %363 : vector<16xf32> to vector<16x1xf32>
    %cst_126 = arith.constant 3.200000e+01 : f32
    %365 = vector.broadcast %cst_126 : f32 to vector<16x1xf32>
    %366 = arith.divf %364, %365 : vector<16x1xf32>
    %367 = vector.broadcast %359 : vector<16x1xf32> to vector<16x32xf32>
    %368 = arith.subf %355, %367 : vector<16x32xf32>
    %cst_127 = arith.constant 9.99999974E-6 : f32
    %369 = vector.broadcast %cst_127 : f32 to vector<16x1xf32>
    %370 = arith.addf %366, %369 : vector<16x1xf32>
    %371 = math.rsqrt %370 : vector<16x1xf32>
    %372 = vector.broadcast %371 : vector<16x1xf32> to vector<16x32xf32>
    %373 = arith.mulf %368, %372 : vector<16x32xf32>
    %374 = arith.mulf %373, %4 : vector<16x32xf32>
    %375 = arith.addf %374, %7 : vector<16x32xf32>
    %c2_i32 = arith.constant 2 : i32
    %376 = arith.truncf %375 : vector<16x32xf32> to vector<16x32xbf16>
    %cst_128 = arith.constant dense<0.000000e+00> : vector<16x32xf32>
    %377 = tpu.matmul %376, %163, %cst_128 {dimension_numbers = #tpu.dot_dimension_numbers<[1], [0], [0], [1], [0, 0, 1, 1], [], []>} : vector<16x32xbf16>, vector<32x32xbf16>, vector<16x32xf32> -> vector<16x32xf32>
    %378 = arith.addf %377, %169 : vector<16x32xf32>
    %379 = arith.truncf %378 : vector<16x32xf32> to vector<16x32xbf16>
    %cst_129 = arith.constant dense<0.000000e+00> : vector<16x384xf32>
    %380 = tpu.matmul %379, %151, %cst_129 {dimension_numbers = #tpu.dot_dimension_numbers<[1], [0], [0], [1], [0, 0, 1, 1], [], []>} : vector<16x32xbf16>, vector<32x384xbf16>, vector<16x384xf32> -> vector<16x384xf32>
    %381 = vector.broadcast %153 : vector<1x384xf32> to vector<16x384xf32>
    %382 = arith.addf %380, %381 : vector<16x384xf32>
    %383 = vector.shape_cast %382 : vector<16x384xf32> to vector<2x8x384xf32>
    %384 = vector.extract_strided_slice %383 {offsets = [0, 0, 0], sizes = [2, 8, 128], strides = [1, 1, 1]} : vector<2x8x384xf32> to vector<2x8x128xf32>
    %385 = vector.extract_strided_slice %383 {offsets = [0, 0, 128], sizes = [2, 8, 128], strides = [1, 1, 1]} : vector<2x8x384xf32> to vector<2x8x128xf32>
    %386 = vector.extract_strided_slice %383 {offsets = [0, 0, 256], sizes = [2, 8, 128], strides = [1, 1, 1]} : vector<2x8x384xf32> to vector<2x8x128xf32>
    %387 = arith.truncf %384 : vector<2x8x128xf32> to vector<2x8x128xbf16>
    %388 = arith.truncf %385 : vector<2x8x128xf32> to vector<2x8x128xbf16>
    "tpu.trace_start"() <{level = 10 : i32, message = "bqd,bkd->bqk"}> : () -> ()
    %cst_130 = arith.constant dense<0.000000e+00> : vector<2x8x8xf32>
    %389 = tpu.matmul %387, %388, %cst_130 {dimension_numbers = #tpu.dot_dimension_numbers<[2], [2], [1], [1], [0, 0, 0, 1, 1, 1], [0], [0]>} : vector<2x8x128xbf16>, vector<2x8x128xbf16>, vector<2x8x8xf32> -> vector<2x8x8xf32>
    "tpu.trace_stop"() : () -> ()
    %cst_131 = arith.constant dense<0xFF800000> : vector<2x8xf32>
    %390 = vector.multi_reduction <maximumf>, %389, %cst_131 [2] : vector<2x8x8xf32> to vector<2x8xf32>
    %391 = vector.shape_cast %390 : vector<2x8xf32> to vector<2x8x1xf32>
    %392 = vector.broadcast %391 : vector<2x8x1xf32> to vector<2x8x8xf32>
    %393 = arith.subf %389, %392 : vector<2x8x8xf32>
    %394 = math.exp %393 : vector<2x8x8xf32>
    %cst_132 = arith.constant dense<0.000000e+00> : vector<2x8xf32>
    %395 = vector.multi_reduction <add>, %394, %cst_132 [2] : vector<2x8x8xf32> to vector<2x8xf32>
    %396 = vector.shape_cast %395 : vector<2x8xf32> to vector<2x8x1xf32>
    %397 = tpu.reciprocal %396 {approx = true} : vector<2x8x1xf32> -> vector<2x8x1xf32>
    %398 = vector.broadcast %397 : vector<2x8x1xf32> to vector<2x8x8xf32>
    %399 = arith.mulf %394, %398 : vector<2x8x8xf32>
    %400 = arith.truncf %399 : vector<2x8x8xf32> to vector<2x8x8xbf16>
    %401 = arith.truncf %386 : vector<2x8x128xf32> to vector<2x8x128xbf16>
    "tpu.trace_start"() <{level = 10 : i32, message = "bqk,bkd->bqd"}> : () -> ()
    %cst_133 = arith.constant dense<0.000000e+00> : vector<2x8x128xf32>
    %402 = tpu.matmul %400, %401, %cst_133 {dimension_numbers = #tpu.dot_dimension_numbers<[2], [1], [1], [2], [0, 0, 0, 1, 1, 2], [0], [0]>} : vector<2x8x8xbf16>, vector<2x8x128xbf16>, vector<2x8x128xf32> -> vector<2x8x128xf32>
    "tpu.trace_stop"() : () -> ()
    %403 = vector.shape_cast %402 : vector<2x8x128xf32> to vector<16x128xf32>
    %404 = arith.truncf %403 : vector<16x128xf32> to vector<16x128xbf16>
    %cst_134 = arith.constant dense<0.000000e+00> : vector<16x32xf32>
    %405 = tpu.matmul %404, %155, %cst_134 {dimension_numbers = #tpu.dot_dimension_numbers<[1], [0], [0], [1], [0, 0, 1, 1], [], []>} : vector<16x128xbf16>, vector<128x32xbf16>, vector<16x32xf32> -> vector<16x32xf32>
    %406 = arith.addf %405, %139 : vector<16x32xf32>
    %407 = arith.addf %378, %406 : vector<16x32xf32>
    %cst_135 = arith.constant dense<0.000000e+00> : vector<16xf32>
    %408 = vector.multi_reduction <add>, %407, %cst_135 [1] : vector<16x32xf32> to vector<16xf32>
    %409 = vector.shape_cast %408 : vector<16xf32> to vector<16x1xf32>
    %cst_136 = arith.constant 3.200000e+01 : f32
    %410 = vector.broadcast %cst_136 : f32 to vector<16x1xf32>
    %411 = arith.divf %409, %410 : vector<16x1xf32>
    %412 = vector.broadcast %411 : vector<16x1xf32> to vector<16x32xf32>
    %413 = arith.subf %407, %412 : vector<16x32xf32>
    %414 = arith.mulf %413, %413 : vector<16x32xf32>
    %cst_137 = arith.constant dense<0.000000e+00> : vector<16xf32>
    %415 = vector.multi_reduction <add>, %414, %cst_137 [1] : vector<16x32xf32> to vector<16xf32>
    %416 = vector.shape_cast %415 : vector<16xf32> to vector<16x1xf32>
    %cst_138 = arith.constant 3.200000e+01 : f32
    %417 = vector.broadcast %cst_138 : f32 to vector<16x1xf32>
    %418 = arith.divf %416, %417 : vector<16x1xf32>
    %419 = vector.broadcast %411 : vector<16x1xf32> to vector<16x32xf32>
    %420 = arith.subf %407, %419 : vector<16x32xf32>
    %cst_139 = arith.constant 9.99999974E-6 : f32
    %421 = vector.broadcast %cst_139 : f32 to vector<16x1xf32>
    %422 = arith.addf %418, %421 : vector<16x1xf32>
    %423 = math.rsqrt %422 : vector<16x1xf32>
    %424 = vector.broadcast %423 : vector<16x1xf32> to vector<16x32xf32>
    %425 = arith.mulf %420, %424 : vector<16x32xf32>
    %426 = arith.mulf %425, %141 : vector<16x32xf32>
    %427 = arith.addf %426, %143 : vector<16x32xf32>
    %428 = arith.truncf %427 : vector<16x32xf32> to vector<16x32xbf16>
    %cst_140 = arith.constant dense<0.000000e+00> : vector<16x2048xf32>
    %429 = tpu.matmul %428, %157, %cst_140 {dimension_numbers = #tpu.dot_dimension_numbers<[1], [0], [0], [1], [0, 0, 1, 1], [], []>} : vector<16x32xbf16>, vector<32x2048xbf16>, vector<16x2048xf32> -> vector<16x2048xf32>
    %430 = vector.broadcast %159 : vector<1x2048xf32> to vector<16x2048xf32>
    %431 = arith.addf %429, %430 : vector<16x2048xf32>
    %cst_141 = arith.constant 0.000000e+00 : f32
    %432 = vector.broadcast %cst_141 : f32 to vector<16x2048xf32>
    %433 = arith.maximumf %431, %432 : vector<16x2048xf32>
    %434 = arith.truncf %433 : vector<16x2048xf32> to vector<16x2048xbf16>
    %cst_142 = arith.constant dense<0.000000e+00> : vector<16x32xf32>
    %435 = tpu.matmul %434, %161, %cst_142 {dimension_numbers = #tpu.dot_dimension_numbers<[1], [0], [0], [1], [0, 0, 1, 1], [], []>} : vector<16x2048xbf16>, vector<2048x32xbf16>, vector<16x32xf32> -> vector<16x32xf32>
    %436 = arith.addf %435, %145 : vector<16x32xf32>
    %437 = arith.addf %427, %436 : vector<16x32xf32>
    %cst_143 = arith.constant dense<0.000000e+00> : vector<16xf32>
    %438 = vector.multi_reduction <add>, %437, %cst_143 [1] : vector<16x32xf32> to vector<16xf32>
    %439 = vector.shape_cast %438 : vector<16xf32> to vector<16x1xf32>
    %cst_144 = arith.constant 3.200000e+01 : f32
    %440 = vector.broadcast %cst_144 : f32 to vector<16x1xf32>
    %441 = arith.divf %439, %440 : vector<16x1xf32>
    %442 = vector.broadcast %441 : vector<16x1xf32> to vector<16x32xf32>
    %443 = arith.subf %437, %442 : vector<16x32xf32>
    %444 = arith.mulf %443, %443 : vector<16x32xf32>
    %cst_145 = arith.constant dense<0.000000e+00> : vector<16xf32>
    %445 = vector.multi_reduction <add>, %444, %cst_145 [1] : vector<16x32xf32> to vector<16xf32>
    %446 = vector.shape_cast %445 : vector<16xf32> to vector<16x1xf32>
    %cst_146 = arith.constant 3.200000e+01 : f32
    %447 = vector.broadcast %cst_146 : f32 to vector<16x1xf32>
    %448 = arith.divf %446, %447 : vector<16x1xf32>
    %449 = vector.broadcast %441 : vector<16x1xf32> to vector<16x32xf32>
    %450 = arith.subf %437, %449 : vector<16x32xf32>
    %cst_147 = arith.constant 9.99999974E-6 : f32
    %451 = vector.broadcast %cst_147 : f32 to vector<16x1xf32>
    %452 = arith.addf %448, %451 : vector<16x1xf32>
    %453 = math.rsqrt %452 : vector<16x1xf32>
    %454 = vector.broadcast %453 : vector<16x1xf32> to vector<16x32xf32>
    %455 = arith.mulf %450, %454 : vector<16x32xf32>
    %456 = arith.mulf %455, %147 : vector<16x32xf32>
    %457 = arith.addf %456, %149 : vector<16x32xf32>
    %cst_148 = arith.constant dense<0.000000e+00> : vector<16xf32>
    %458 = vector.multi_reduction <add>, %457, %cst_148 [1] : vector<16x32xf32> to vector<16xf32>
    %459 = vector.shape_cast %458 : vector<16xf32> to vector<16x1xf32>
    %cst_149 = arith.constant 3.200000e+01 : f32
    %460 = vector.broadcast %cst_149 : f32 to vector<16x1xf32>
    %461 = arith.divf %459, %460 : vector<16x1xf32>
    %462 = vector.broadcast %461 : vector<16x1xf32> to vector<16x32xf32>
    %463 = arith.subf %457, %462 : vector<16x32xf32>
    %464 = arith.mulf %463, %463 : vector<16x32xf32>
    %cst_150 = arith.constant dense<0.000000e+00> : vector<16xf32>
    %465 = vector.multi_reduction <add>, %464, %cst_150 [1] : vector<16x32xf32> to vector<16xf32>
    %466 = vector.shape_cast %465 : vector<16xf32> to vector<16x1xf32>
    %cst_151 = arith.constant 3.200000e+01 : f32
    %467 = vector.broadcast %cst_151 : f32 to vector<16x1xf32>
    %468 = arith.divf %466, %467 : vector<16x1xf32>
    %469 = vector.broadcast %461 : vector<16x1xf32> to vector<16x32xf32>
    %470 = arith.subf %457, %469 : vector<16x32xf32>
    %cst_152 = arith.constant 9.99999974E-6 : f32
    %471 = vector.broadcast %cst_152 : f32 to vector<16x1xf32>
    %472 = arith.addf %468, %471 : vector<16x1xf32>
    %473 = math.rsqrt %472 : vector<16x1xf32>
    %474 = vector.broadcast %473 : vector<16x1xf32> to vector<16x32xf32>
    %475 = arith.mulf %470, %474 : vector<16x32xf32>
    %476 = arith.mulf %475, %4 : vector<16x32xf32>
    %477 = arith.addf %476, %7 : vector<16x32xf32>
    %c2 = arith.constant 2 : index
    %c0_153 = arith.constant 0 : index
    %c0_154 = arith.constant 0 : index
    %478 = vector.load %arg11[%c2, %c0_153, %c0_154] : memref<3x6x32xf32, #tpu.memory_space<vmem>>, vector<1x6x32xf32>
    %479 = vector.shape_cast %478 : vector<1x6x32xf32> to vector<6x32xf32>
    %480 = vector.extract_strided_slice %479 {offsets = [0, 0], sizes = [1, 32], strides = [1, 1]} : vector<6x32xf32> to vector<1x32xf32>
    %481 = vector.extract_strided_slice %479 {offsets = [1, 0], sizes = [1, 32], strides = [1, 1]} : vector<6x32xf32> to vector<1x32xf32>
    %482 = vector.extract_strided_slice %479 {offsets = [2, 0], sizes = [1, 32], strides = [1, 1]} : vector<6x32xf32> to vector<1x32xf32>
    %483 = vector.extract_strided_slice %479 {offsets = [3, 0], sizes = [1, 32], strides = [1, 1]} : vector<6x32xf32> to vector<1x32xf32>
    %484 = vector.extract_strided_slice %479 {offsets = [4, 0], sizes = [1, 32], strides = [1, 1]} : vector<6x32xf32> to vector<1x32xf32>
    %485 = vector.extract_strided_slice %479 {offsets = [5, 0], sizes = [1, 32], strides = [1, 1]} : vector<6x32xf32> to vector<1x32xf32>
    %c2_155 = arith.constant 2 : index
    %c0_156 = arith.constant 0 : index
    %c0_157 = arith.constant 0 : index
    %486 = vector.load %arg5[%c2_155, %c0_156, %c0_157] : memref<3x32x384xbf16, #tpu.memory_space<vmem>>, vector<1x32x384xbf16>
    %487 = vector.shape_cast %486 : vector<1x32x384xbf16> to vector<32x384xbf16>
    %c2_158 = arith.constant 2 : index
    %c0_159 = arith.constant 0 : index
    %c0_160 = arith.constant 0 : index
    %488 = vector.load %arg6[%c2_158, %c0_159, %c0_160] : memref<3x1x384xf32, #tpu.memory_space<vmem>>, vector<1x1x384xf32>
    %489 = vector.shape_cast %488 : vector<1x1x384xf32> to vector<1x384xf32>
    %c2_161 = arith.constant 2 : index
    %c0_162 = arith.constant 0 : index
    %c0_163 = arith.constant 0 : index
    %490 = vector.load %arg7[%c2_161, %c0_162, %c0_163] : memref<3x128x32xbf16, #tpu.memory_space<vmem>>, vector<1x128x32xbf16>
    %491 = vector.shape_cast %490 : vector<1x128x32xbf16> to vector<128x32xbf16>
    %c2_164 = arith.constant 2 : index
    %c0_165 = arith.constant 0 : index
    %c0_166 = arith.constant 0 : index
    %492 = vector.load %arg8[%c2_164, %c0_165, %c0_166] : memref<3x32x2048xbf16, #tpu.memory_space<vmem>>, vector<1x32x2048xbf16>
    %493 = vector.shape_cast %492 : vector<1x32x2048xbf16> to vector<32x2048xbf16>
    %c2_167 = arith.constant 2 : index
    %c0_168 = arith.constant 0 : index
    %c0_169 = arith.constant 0 : index
    %494 = vector.load %arg9[%c2_167, %c0_168, %c0_169] : memref<3x1x2048xf32, #tpu.memory_space<vmem>>, vector<1x1x2048xf32>
    %495 = vector.shape_cast %494 : vector<1x1x2048xf32> to vector<1x2048xf32>
    %c2_170 = arith.constant 2 : index
    %c0_171 = arith.constant 0 : index
    %c0_172 = arith.constant 0 : index
    %496 = vector.load %arg10[%c2_170, %c0_171, %c0_172] : memref<3x2048x32xbf16, #tpu.memory_space<vmem>>, vector<1x2048x32xbf16>
    %497 = vector.shape_cast %496 : vector<1x2048x32xbf16> to vector<2048x32xbf16>
    %498 = arith.truncf %477 : vector<16x32xf32> to vector<16x32xbf16>
    %cst_173 = arith.constant dense<0.000000e+00> : vector<16x384xf32>
    %499 = tpu.matmul %498, %487, %cst_173 {dimension_numbers = #tpu.dot_dimension_numbers<[1], [0], [0], [1], [0, 0, 1, 1], [], []>} : vector<16x32xbf16>, vector<32x384xbf16>, vector<16x384xf32> -> vector<16x384xf32>
    %500 = vector.broadcast %489 : vector<1x384xf32> to vector<16x384xf32>
    %501 = arith.addf %499, %500 : vector<16x384xf32>
    %502 = vector.shape_cast %501 : vector<16x384xf32> to vector<2x8x384xf32>
    %503 = vector.extract_strided_slice %502 {offsets = [0, 0, 0], sizes = [2, 8, 128], strides = [1, 1, 1]} : vector<2x8x384xf32> to vector<2x8x128xf32>
    %504 = vector.extract_strided_slice %502 {offsets = [0, 0, 128], sizes = [2, 8, 128], strides = [1, 1, 1]} : vector<2x8x384xf32> to vector<2x8x128xf32>
    %505 = vector.extract_strided_slice %502 {offsets = [0, 0, 256], sizes = [2, 8, 128], strides = [1, 1, 1]} : vector<2x8x384xf32> to vector<2x8x128xf32>
    %506 = arith.truncf %503 : vector<2x8x128xf32> to vector<2x8x128xbf16>
    %507 = arith.truncf %504 : vector<2x8x128xf32> to vector<2x8x128xbf16>
    "tpu.trace_start"() <{level = 10 : i32, message = "bqd,bkd->bqk"}> : () -> ()
    %cst_174 = arith.constant dense<0.000000e+00> : vector<2x8x8xf32>
    %508 = tpu.matmul %506, %507, %cst_174 {dimension_numbers = #tpu.dot_dimension_numbers<[2], [2], [1], [1], [0, 0, 0, 1, 1, 1], [0], [0]>} : vector<2x8x128xbf16>, vector<2x8x128xbf16>, vector<2x8x8xf32> -> vector<2x8x8xf32>
    "tpu.trace_stop"() : () -> ()
    %cst_175 = arith.constant dense<0xFF800000> : vector<2x8xf32>
    %509 = vector.multi_reduction <maximumf>, %508, %cst_175 [2] : vector<2x8x8xf32> to vector<2x8xf32>
    %510 = vector.shape_cast %509 : vector<2x8xf32> to vector<2x8x1xf32>
    %511 = vector.broadcast %510 : vector<2x8x1xf32> to vector<2x8x8xf32>
    %512 = arith.subf %508, %511 : vector<2x8x8xf32>
    %513 = math.exp %512 : vector<2x8x8xf32>
    %cst_176 = arith.constant dense<0.000000e+00> : vector<2x8xf32>
    %514 = vector.multi_reduction <add>, %513, %cst_176 [2] : vector<2x8x8xf32> to vector<2x8xf32>
    %515 = vector.shape_cast %514 : vector<2x8xf32> to vector<2x8x1xf32>
    %516 = tpu.reciprocal %515 {approx = true} : vector<2x8x1xf32> -> vector<2x8x1xf32>
    %517 = vector.broadcast %516 : vector<2x8x1xf32> to vector<2x8x8xf32>
    %518 = arith.mulf %513, %517 : vector<2x8x8xf32>
    %519 = arith.truncf %518 : vector<2x8x8xf32> to vector<2x8x8xbf16>
    %520 = arith.truncf %505 : vector<2x8x128xf32> to vector<2x8x128xbf16>
    "tpu.trace_start"() <{level = 10 : i32, message = "bqk,bkd->bqd"}> : () -> ()
    %cst_177 = arith.constant dense<0.000000e+00> : vector<2x8x128xf32>
    %521 = tpu.matmul %519, %520, %cst_177 {dimension_numbers = #tpu.dot_dimension_numbers<[2], [1], [1], [2], [0, 0, 0, 1, 1, 2], [0], [0]>} : vector<2x8x8xbf16>, vector<2x8x128xbf16>, vector<2x8x128xf32> -> vector<2x8x128xf32>
    "tpu.trace_stop"() : () -> ()
    %522 = vector.shape_cast %521 : vector<2x8x128xf32> to vector<16x128xf32>
    %523 = arith.truncf %522 : vector<16x128xf32> to vector<16x128xbf16>
    %cst_178 = arith.constant dense<0.000000e+00> : vector<16x32xf32>
    %524 = tpu.matmul %523, %491, %cst_178 {dimension_numbers = #tpu.dot_dimension_numbers<[1], [0], [0], [1], [0, 0, 1, 1], [], []>} : vector<16x128xbf16>, vector<128x32xbf16>, vector<16x32xf32> -> vector<16x32xf32>
    %525 = vector.broadcast %480 : vector<1x32xf32> to vector<16x32xf32>
    %526 = arith.addf %524, %525 : vector<16x32xf32>
    %527 = arith.addf %477, %526 : vector<16x32xf32>
    %cst_179 = arith.constant dense<0.000000e+00> : vector<16xf32>
    %528 = vector.multi_reduction <add>, %527, %cst_179 [1] : vector<16x32xf32> to vector<16xf32>
    %529 = vector.shape_cast %528 : vector<16xf32> to vector<16x1xf32>
    %cst_180 = arith.constant 3.200000e+01 : f32
    %530 = vector.broadcast %cst_180 : f32 to vector<16x1xf32>
    %531 = arith.divf %529, %530 : vector<16x1xf32>
    %532 = vector.broadcast %531 : vector<16x1xf32> to vector<16x32xf32>
    %533 = arith.subf %527, %532 : vector<16x32xf32>
    %534 = arith.mulf %533, %533 : vector<16x32xf32>
    %cst_181 = arith.constant dense<0.000000e+00> : vector<16xf32>
    %535 = vector.multi_reduction <add>, %534, %cst_181 [1] : vector<16x32xf32> to vector<16xf32>
    %536 = vector.shape_cast %535 : vector<16xf32> to vector<16x1xf32>
    %cst_182 = arith.constant 3.200000e+01 : f32
    %537 = vector.broadcast %cst_182 : f32 to vector<16x1xf32>
    %538 = arith.divf %536, %537 : vector<16x1xf32>
    %539 = vector.broadcast %531 : vector<16x1xf32> to vector<16x32xf32>
    %540 = arith.subf %527, %539 : vector<16x32xf32>
    %cst_183 = arith.constant 9.99999974E-6 : f32
    %541 = vector.broadcast %cst_183 : f32 to vector<16x1xf32>
    %542 = arith.addf %538, %541 : vector<16x1xf32>
    %543 = math.rsqrt %542 : vector<16x1xf32>
    %544 = vector.broadcast %543 : vector<16x1xf32> to vector<16x32xf32>
    %545 = arith.mulf %540, %544 : vector<16x32xf32>
    %546 = vector.broadcast %481 : vector<1x32xf32> to vector<16x32xf32>
    %547 = arith.mulf %545, %546 : vector<16x32xf32>
    %548 = vector.broadcast %482 : vector<1x32xf32> to vector<16x32xf32>
    %549 = arith.addf %547, %548 : vector<16x32xf32>
    %550 = arith.truncf %549 : vector<16x32xf32> to vector<16x32xbf16>
    %cst_184 = arith.constant dense<0.000000e+00> : vector<16x2048xf32>
    %551 = tpu.matmul %550, %493, %cst_184 {dimension_numbers = #tpu.dot_dimension_numbers<[1], [0], [0], [1], [0, 0, 1, 1], [], []>} : vector<16x32xbf16>, vector<32x2048xbf16>, vector<16x2048xf32> -> vector<16x2048xf32>
    %552 = vector.broadcast %495 : vector<1x2048xf32> to vector<16x2048xf32>
    %553 = arith.addf %551, %552 : vector<16x2048xf32>
    %cst_185 = arith.constant 0.000000e+00 : f32
    %554 = vector.broadcast %cst_185 : f32 to vector<16x2048xf32>
    %555 = arith.maximumf %553, %554 : vector<16x2048xf32>
    %556 = arith.truncf %555 : vector<16x2048xf32> to vector<16x2048xbf16>
    %cst_186 = arith.constant dense<0.000000e+00> : vector<16x32xf32>
    %557 = tpu.matmul %556, %497, %cst_186 {dimension_numbers = #tpu.dot_dimension_numbers<[1], [0], [0], [1], [0, 0, 1, 1], [], []>} : vector<16x2048xbf16>, vector<2048x32xbf16>, vector<16x32xf32> -> vector<16x32xf32>
    %558 = vector.broadcast %483 : vector<1x32xf32> to vector<16x32xf32>
    %559 = arith.addf %557, %558 : vector<16x32xf32>
    %560 = arith.addf %549, %559 : vector<16x32xf32>
    %cst_187 = arith.constant dense<0.000000e+00> : vector<16xf32>
    %561 = vector.multi_reduction <add>, %560, %cst_187 [1] : vector<16x32xf32> to vector<16xf32>
    %562 = vector.shape_cast %561 : vector<16xf32> to vector<16x1xf32>
    %cst_188 = arith.constant 3.200000e+01 : f32
    %563 = vector.broadcast %cst_188 : f32 to vector<16x1xf32>
    %564 = arith.divf %562, %563 : vector<16x1xf32>
    %565 = vector.broadcast %564 : vector<16x1xf32> to vector<16x32xf32>
    %566 = arith.subf %560, %565 : vector<16x32xf32>
    %567 = arith.mulf %566, %566 : vector<16x32xf32>
    %cst_189 = arith.constant dense<0.000000e+00> : vector<16xf32>
    %568 = vector.multi_reduction <add>, %567, %cst_189 [1] : vector<16x32xf32> to vector<16xf32>
    %569 = vector.shape_cast %568 : vector<16xf32> to vector<16x1xf32>
    %cst_190 = arith.constant 3.200000e+01 : f32
    %570 = vector.broadcast %cst_190 : f32 to vector<16x1xf32>
    %571 = arith.divf %569, %570 : vector<16x1xf32>
    %572 = vector.broadcast %564 : vector<16x1xf32> to vector<16x32xf32>
    %573 = arith.subf %560, %572 : vector<16x32xf32>
    %cst_191 = arith.constant 9.99999974E-6 : f32
    %574 = vector.broadcast %cst_191 : f32 to vector<16x1xf32>
    %575 = arith.addf %571, %574 : vector<16x1xf32>
    %576 = math.rsqrt %575 : vector<16x1xf32>
    %577 = vector.broadcast %576 : vector<16x1xf32> to vector<16x32xf32>
    %578 = arith.mulf %573, %577 : vector<16x32xf32>
    %579 = vector.broadcast %484 : vector<1x32xf32> to vector<16x32xf32>
    %580 = arith.mulf %578, %579 : vector<16x32xf32>
    %581 = vector.broadcast %485 : vector<1x32xf32> to vector<16x32xf32>
    %582 = arith.addf %580, %581 : vector<16x32xf32>
    %cst_192 = arith.constant dense<0.000000e+00> : vector<16xf32>
    %583 = vector.multi_reduction <add>, %582, %cst_192 [1] : vector<16x32xf32> to vector<16xf32>
    %584 = vector.shape_cast %583 : vector<16xf32> to vector<16x1xf32>
    %cst_193 = arith.constant 3.200000e+01 : f32
    %585 = vector.broadcast %cst_193 : f32 to vector<16x1xf32>
    %586 = arith.divf %584, %585 : vector<16x1xf32>
    %587 = vector.broadcast %586 : vector<16x1xf32> to vector<16x32xf32>
    %588 = arith.subf %582, %587 : vector<16x32xf32>
    %589 = arith.mulf %588, %588 : vector<16x32xf32>
    %cst_194 = arith.constant dense<0.000000e+00> : vector<16xf32>
    %590 = vector.multi_reduction <add>, %589, %cst_194 [1] : vector<16x32xf32> to vector<16xf32>
    %591 = vector.shape_cast %590 : vector<16xf32> to vector<16x1xf32>
    %cst_195 = arith.constant 3.200000e+01 : f32
    %592 = vector.broadcast %cst_195 : f32 to vector<16x1xf32>
    %593 = arith.divf %591, %592 : vector<16x1xf32>
    %594 = vector.broadcast %586 : vector<16x1xf32> to vector<16x32xf32>
    %595 = arith.subf %582, %594 : vector<16x32xf32>
    %cst_196 = arith.constant 9.99999974E-6 : f32
    %596 = vector.broadcast %cst_196 : f32 to vector<16x1xf32>
    %597 = arith.addf %593, %596 : vector<16x1xf32>
    %598 = math.rsqrt %597 : vector<16x1xf32>
    %599 = vector.broadcast %598 : vector<16x1xf32> to vector<16x32xf32>
    %600 = arith.mulf %595, %599 : vector<16x32xf32>
    %601 = vector.broadcast %8 : vector<1x32xf32> to vector<16x32xf32>
    %602 = arith.mulf %600, %601 : vector<16x32xf32>
    %603 = vector.broadcast %9 : vector<1x32xf32> to vector<16x32xf32>
    %604 = arith.addf %602, %603 : vector<16x32xf32>
    %605 = arith.truncf %604 : vector<16x32xf32> to vector<16x32xbf16>
    %c0_197 = arith.constant 0 : index
    %c0_198 = arith.constant 0 : index
    %606 = vector.load %arg14[%c0_197, %c0_198] : memref<32x128xbf16, #tpu.memory_space<vmem>>, vector<32x128xbf16>
    %cst_199 = arith.constant dense<0.000000e+00> : vector<16x128xf32>
    %607 = tpu.matmul %605, %606, %cst_199 {dimension_numbers = #tpu.dot_dimension_numbers<[1], [0], [0], [1], [0, 0, 1, 1], [], []>} : vector<16x32xbf16>, vector<32x128xbf16>, vector<16x128xf32> -> vector<16x128xf32>
    %c0_200 = arith.constant 0 : index
    %c0_201 = arith.constant 0 : index
    %608 = vector.load %arg15[%c0_200, %c0_201] : memref<1x128xf32, #tpu.memory_space<vmem>>, vector<1x128xf32>
    %609 = vector.broadcast %608 : vector<1x128xf32> to vector<16x128xf32>
    %610 = arith.addf %607, %609 : vector<16x128xf32>
    %611 = vector.shape_cast %610 : vector<16x128xf32> to vector<2x8x128xf32>
    %c0_202 = arith.constant 0 : index
    %c0_203 = arith.constant 0 : index
    %c0_204 = arith.constant 0 : index
    %612 = vector.load %arg16[%c0_202, %c0_203, %c0_204] : memref<2x8x128xf32, #tpu.memory_space<vmem>>, vector<2x8x128xf32>
    tpu.vector_store %arg16[%c0_202, %c0_203, %c0_204], %611 {strides = array<i32>} : memref<2x8x128xf32, #tpu.memory_space<vmem>>, vector<2x8x128xf32>,
    return
  }
  func.func @transform_0(%arg0: i32) -> (i32, i32, i32) {
    %c0_i32 = arith.constant 0 : i32
    %c0_i32_0 = arith.constant 0 : i32
    %c0_i32_1 = arith.constant 0 : i32
    return %arg0, %c0_i32, %c0_i32_0 : i32, i32, i32
  }
  func.func @transform_1(%arg0: i32) -> (i32, i32, i32) {
    %c0_i32 = arith.constant 0 : i32
    %c0_i32_0 = arith.constant 0 : i32
    %c0_i32_1 = arith.constant 0 : i32
    return %arg0, %c0_i32, %c0_i32_0 : i32, i32, i32
  }
  func.func @transform_2(%arg0: i32) -> (i32, i32) {
    %c0_i32 = arith.constant 0 : i32
    %c0_i32_0 = arith.constant 0 : i32
    %c0_i32_1 = arith.constant 0 : i32
    return %c0_i32, %c0_i32_0 : i32, i32
  }
  func.func @transform_3(%arg0: i32) -> (i32, i32) {
    %c0_i32 = arith.constant 0 : i32
    %c0_i32_0 = arith.constant 0 : i32
    %c0_i32_1 = arith.constant 0 : i32
    return %c0_i32, %c0_i32_0 : i32, i32
  }
  func.func @transform_4(%arg0: i32) -> (i32, i32, i32) {
    %c0_i32 = arith.constant 0 : i32
    %c0_i32_0 = arith.constant 0 : i32
    %c0_i32_1 = arith.constant 0 : i32
    %c0_i32_2 = arith.constant 0 : i32
    return %c0_i32, %c0_i32_0, %c0_i32_1 : i32, i32, i32
  }
  func.func @transform_5(%arg0: i32) -> (i32, i32, i32) {
    %c0_i32 = arith.constant 0 : i32
    %c0_i32_0 = arith.constant 0 : i32
    %c0_i32_1 = arith.constant 0 : i32
    %c0_i32_2 = arith.constant 0 : i32
    return %c0_i32, %c0_i32_0, %c0_i32_1 : i32, i32, i32
  }
  func.func @transform_6(%arg0: i32) -> (i32, i32, i32) {
    %c0_i32 = arith.constant 0 : i32
    %c0_i32_0 = arith.constant 0 : i32
    %c0_i32_1 = arith.constant 0 : i32
    %c0_i32_2 = arith.constant 0 : i32
    return %c0_i32, %c0_i32_0, %c0_i32_1 : i32, i32, i32
  }
  func.func @transform_7(%arg0: i32) -> (i32, i32, i32) {
    %c0_i32 = arith.constant 0 : i32
    %c0_i32_0 = arith.constant 0 : i32
    %c0_i32_1 = arith.constant 0 : i32
    %c0_i32_2 = arith.constant 0 : i32
    return %c0_i32, %c0_i32_0, %c0_i32_1 : i32, i32, i32
  }
  func.func @transform_8(%arg0: i32) -> (i32, i32, i32) {
    %c0_i32 = arith.constant 0 : i32
    %c0_i32_0 = arith.constant 0 : i32
    %c0_i32_1 = arith.constant 0 : i32
    %c0_i32_2 = arith.constant 0 : i32
    return %c0_i32, %c0_i32_0, %c0_i32_1 : i32, i32, i32
  }
  func.func @transform_9(%arg0: i32) -> (i32, i32, i32) {
    %c0_i32 = arith.constant 0 : i32
    %c0_i32_0 = arith.constant 0 : i32
    %c0_i32_1 = arith.constant 0 : i32
    %c0_i32_2 = arith.constant 0 : i32
    return %c0_i32, %c0_i32_0, %c0_i32_1 : i32, i32, i32
  }
  func.func @transform_10(%arg0: i32) -> (i32, i32, i32) {
    %c0_i32 = arith.constant 0 : i32
    %c0_i32_0 = arith.constant 0 : i32
    %c0_i32_1 = arith.constant 0 : i32
    %c0_i32_2 = arith.constant 0 : i32
    return %c0_i32, %c0_i32_0, %c0_i32_1 : i32, i32, i32
  }
  func.func @transform_11(%arg0: i32) -> (i32, i32) {
    %c0_i32 = arith.constant 0 : i32
    %c0_i32_0 = arith.constant 0 : i32
    %c0_i32_1 = arith.constant 0 : i32
    return %c0_i32, %c0_i32_0 : i32, i32
  }
  func.func @transform_12(%arg0: i32) -> (i32, i32, i32) {
    %c0_i32 = arith.constant 0 : i32
    %c0_i32_0 = arith.constant 0 : i32
    %c0_i32_1 = arith.constant 0 : i32
    %c0_i32_2 = arith.constant 0 : i32
    return %c0_i32, %c0_i32_0, %c0_i32_1 : i32, i32, i32
  }
  func.func @transform_13(%arg0: i32) -> (i32, i32) {
    %c0_i32 = arith.constant 0 : i32
    %c0_i32_0 = arith.constant 0 : i32
    %c0_i32_1 = arith.constant 0 : i32
    return %c0_i32, %c0_i32_0 : i32, i32
  }
  func.func @transform_14(%arg0: i32) -> (i32, i32) {
    %c0_i32 = arith.constant 0 : i32
    %c0_i32_0 = arith.constant 0 : i32
    %c0_i32_1 = arith.constant 0 : i32
    return %c0_i32, %c0_i32_0 : i32, i32
  }
  func.func @transform_15(%arg0: i32) -> (i32, i32, i32) {
    %c0_i32 = arith.constant 0 : i32
    %c0_i32_0 = arith.constant 0 : i32
    %c0_i32_1 = arith.constant 0 : i32
    return %arg0, %c0_i32, %c0_i32_0 : i32, i32, i32
  }
}

</mosaic_0001>

<llo_original>
// kernel: tpu_custom_call.1
$region0: #{tpu_custom_call.1}
  #allocation0 [shape = 'u32[]', space=smem, size = 0x4, offset = 0x4, fixed_abs, tag = 'smem constant byte address 0x4 - core index']
  #allocation1 [shape = 'u32[144,128]{1,0:T(1,128)}', space=vmem, size = 0x12000, scoped, tag = 'internal scratch']
  %s0 = inlined_call_operand.vmem [shape: s32[2,8,1], index: 0, kind: input, shape index: {}]
  %s1 = inlined_call_operand.vmem [shape: f32[2,8,32], index: 1, kind: input, shape index: {}]
  %s2 = inlined_call_operand.vmem [shape: f32[256,32], index: 2, kind: input, shape index: {}]
  %s3 = inlined_call_operand.vmem [shape: f32[128,32], index: 3, kind: input, shape index: {}]
  %s4 = inlined_call_operand.vmem [shape: bf16[3,32,384], index: 4, kind: input, shape index: {}]
  %s5 = inlined_call_operand.vmem [shape: f32[3,1,384], index: 5, kind: input, shape index: {}]
  %s6 = inlined_call_operand.vmem [shape: bf16[3,128,32], index: 6, kind: input, shape index: {}]
  %s7 = inlined_call_operand.vmem [shape: bf16[3,32,2048], index: 7, kind: input, shape index: {}]
  %s8 = inlined_call_operand.vmem [shape: f32[3,1,2048], index: 8, kind: input, shape index: {}]
  %s9 = inlined_call_operand.vmem [shape: bf16[3,2048,32], index: 9, kind: input, shape index: {}]
  %s10 = inlined_call_operand.vmem [shape: f32[3,6,32], index: 10, kind: input, shape index: {}]
  %s11 = inlined_call_operand.vmem [shape: f32[5,32], index: 11, kind: input, shape index: {}]
  %s12 = inlined_call_operand.vmem [shape: bf16[2,32,32], index: 12, kind: input, shape index: {}]
  %s13 = inlined_call_operand.vmem [shape: bf16[32,128], index: 13, kind: input, shape index: {}]
  %s14 = inlined_call_operand.vmem [shape: f32[1,128], index: 14, kind: input, shape index: {}]
  %s15 = inlined_call_operand.hbm [shape: f32[2,8,128], index: 15, kind: output, shape index: {}]
  %s16 = sld [smem:[#allocation0]]
  $region70: #{tpu_custom_call.1} parent=0
    _
  %s18 = ssub.s32 1, %s16
  %s19 = scalar_select 0, %s18, %s16
  $region1: #{tpu_custom_call.1} parent=0
    #allocation2 [shape = 'u8[8192]{0}', space=vmem, size = 0x2000, scoped, tag = 'output window, operand 0, single buffered']
    #allocation3 [shape = 's32[1]{0}', space=sflag, size = 0x4, scoped, tag = 'scoped memory for tpu_custom_call.1']
    %20 = vsyncpa [#allocation3], 0
    // Predicated region
    $region2: #{tpu_custom_call.1} parent=1 // pred_check
      _
    $region3: #{tpu_custom_call.1} parent=1 // pred_check_branch
      %22 = sbr.rel (0) target = $region5
    $region4: #{tpu_custom_call.1} parent=1 // pred_region
      _
    $region5: #{tpu_custom_call.1} parent=1 // pred_fallthru
      _
    // Predicated region
    $region6: #{tpu_custom_call.1} parent=1 // pred_check
      _
    $region7: #{tpu_custom_call.1} parent=1 // pred_check_branch
      %24 = sbr.rel (0) target = $region9
    $region8: #{tpu_custom_call.1} parent=1 // pred_region
      _
    $region9: #{tpu_custom_call.1} parent=1 // pred_fallthru
      _
    // Predicated region
    $region10: #{tpu_custom_call.1} parent=1 // pred_check
      _
    $region11: #{tpu_custom_call.1} parent=1 // pred_check_branch
      %26 = sbr.rel (0) target = $region13
    $region12: #{tpu_custom_call.1} parent=1 // pred_region
      _
    $region13: #{tpu_custom_call.1} parent=1 // pred_fallthru
      _
    // Predicated region
    $region14: #{tpu_custom_call.1} parent=1 // pred_check
      _
    $region15: #{tpu_custom_call.1} parent=1 // pred_check_branch
      %28 = sbr.rel (0) target = $region17
    $region16: #{tpu_custom_call.1} parent=1 // pred_region
      _
    $region17: #{tpu_custom_call.1} parent=1 // pred_fallthru
      _
    // Predicated region
    $region18: #{tpu_custom_call.1} parent=1 // pred_check
      _
    $region19: #{tpu_custom_call.1} parent=1 // pred_check_branch
      %30 = sbr.rel (0) target = $region21
    $region20: #{tpu_custom_call.1} parent=1 // pred_region
      _
    $region21: #{tpu_custom_call.1} parent=1 // pred_fallthru
      _
    // Predicated region
    $region22: #{tpu_custom_call.1} parent=1 // pred_check
      _
    $region23: #{tpu_custom_call.1} parent=1 // pred_check_branch
      %32 = sbr.rel (0) target = $region25
    $region24: #{tpu_custom_call.1} parent=1 // pred_region
      _
    $region25: #{tpu_custom_call.1} parent=1 // pred_fallthru
      _
    // Predicated region
    $region26: #{tpu_custom_call.1} parent=1 // pred_check
      _
    $region27: #{tpu_custom_call.1} parent=1 // pred_check_branch
      %34 = sbr.rel (0) target = $region29
    $region28: #{tpu_custom_call.1} parent=1 // pred_region
      _
    $region29: #{tpu_custom_call.1} parent=1 // pred_fallthru
      _
    // Predicated region
    $region30: #{tpu_custom_call.1} parent=1 // pred_check
      _
    $region31: #{tpu_custom_call.1} parent=1 // pred_check_branch
      %36 = sbr.rel (0) target = $region33
    $region32: #{tpu_custom_call.1} parent=1 // pred_region
      _
    $region33: #{tpu_custom_call.1} parent=1 // pred_fallthru
      _
    // Predicated region
    $region34: #{tpu_custom_call.1} parent=1 // pred_check
      _
    $region35: #{tpu_custom_call.1} parent=1 // pred_check_branch
      %38 = sbr.rel (0) target = $region37
    $region36: #{tpu_custom_call.1} parent=1 // pred_region
      _
    $region37: #{tpu_custom_call.1} parent=1 // pred_fallthru
      _
    // Predicated region
    $region38: #{tpu_custom_call.1} parent=1 // pred_check
      _
    $region39: #{tpu_custom_call.1} parent=1 // pred_check_branch
      %40 = sbr.rel (0) target = $region41
    $region40: #{tpu_custom_call.1} parent=1 // pred_region
      _
    $region41: #{tpu_custom_call.1} parent=1 // pred_fallthru
      _
    // Predicated region
    $region42: #{tpu_custom_call.1} parent=1 // pred_check
      _
    $region43: #{tpu_custom_call.1} parent=1 // pred_check_branch
      %42 = sbr.rel (0) target = $region45
    $region44: #{tpu_custom_call.1} parent=1 // pred_region
      _
    $region45: #{tpu_custom_call.1} parent=1 // pred_fallthru
      _
    // Predicated region
    $region46: #{tpu_custom_call.1} parent=1 // pred_check
      _
    $region47: #{tpu_custom_call.1} parent=1 // pred_check_branch
      %44 = sbr.rel (0) target = $region49
    $region48: #{tpu_custom_call.1} parent=1 // pred_region
      _
    $region49: #{tpu_custom_call.1} parent=1 // pred_fallthru
      _
    // Predicated region
    $region50: #{tpu_custom_call.1} parent=1 // pred_check
      _
    $region51: #{tpu_custom_call.1} parent=1 // pred_check_branch
      %46 = sbr.rel (0) target = $region53
    $region52: #{tpu_custom_call.1} parent=1 // pred_region
      _
    $region53: #{tpu_custom_call.1} parent=1 // pred_fallthru
      _
    // Predicated region
    $region54: #{tpu_custom_call.1} parent=1 // pred_check
      _
    $region55: #{tpu_custom_call.1} parent=1 // pred_check_branch
      %48 = sbr.rel (0) target = $region57
    $region56: #{tpu_custom_call.1} parent=1 // pred_region
      _
    $region57: #{tpu_custom_call.1} parent=1 // pred_fallthru
      _
    // Predicated region
    $region58: #{tpu_custom_call.1} parent=1 // pred_check
      _
    $region59: #{tpu_custom_call.1} parent=1 // pred_check_branch
      %50 = sbr.rel (0) target = $region61
    $region60: #{tpu_custom_call.1} parent=1 // pred_region
      _
    $region61: #{tpu_custom_call.1} parent=1 // pred_fallthru
      _
    %v52 = vld [vmem:[%s11] sm:$0x1f]
    %v53 = vlaneseq
    %v54 = vshrl.u32 %v53, 7
    %v55 = vsub.s32 1, %v54
    %v56 = vrot.slane %v52, %v55
    %v57 = vlaneseq
    %v58 = vshrl.u32 %v57, 7
    %v59 = vsub.s32 2, %v58
    %v60 = vrot.slane %v52, %v59
    %v61 = vld [vmem:[%s0] sm:$0xff]
    %v62 = vld [vmem:[%s0 + $0x8] sm:$0xff]
    %v63 = vlaneseq
    %v64 = vand.u32 %v63, 127
    %65 = vset.pattern.permute.xlu0 0
    %66 = vperm.xlu0 %65, %v61
    %v67 = vpop.permute.xlu0 %66
    %68 = vset.pattern.permute.xlu0 0
    %69 = vperm.xlu0 %68, %v62
    %v70 = vpop.permute.xlu0 %69
    %vm71 = vcmp.eq.s32.totalorder %v67, %v64
    %vm72 = vcmp.eq.s32.totalorder %v70, %v64
    %v73 = vsel %vm71, 1, 0
    %v74 = vsel %vm72, 1, 0
    %v75 = vcvt.s32.f32 %v73
    %v76 = vcvt.s32.f32 %v74
    %v77 = vld [vmem:[%s3] sm:$0xff]
    %v78 = vld [vmem:[%s3 + $0x8] sm:$0xff]
    %v79 = vld [vmem:[%s3 + $0x10] sm:$0xff]
    %v80 = vld [vmem:[%s3 + $0x18] sm:$0xff]
    %v81 = vld [vmem:[%s3 + $0x20] sm:$0xff]
    %v82 = vld [vmem:[%s3 + $0x28] sm:$0xff]
    %v83 = vld [vmem:[%s3 + $0x30] sm:$0xff]
    %v84 = vld [vmem:[%s3 + $0x38] sm:$0xff]
    %v85 = vld [vmem:[%s3 + $0x40] sm:$0xff]
    %v86 = vld [vmem:[%s3 + $0x48] sm:$0xff]
    %v87 = vld [vmem:[%s3 + $0x50] sm:$0xff]
    %v88 = vld [vmem:[%s3 + $0x58] sm:$0xff]
    %v89 = vld [vmem:[%s3 + $0x60] sm:$0xff]
    %v90 = vld [vmem:[%s3 + $0x68] sm:$0xff]
    %v91 = vld [vmem:[%s3 + $0x70] sm:$0xff]
    %v92 = vld [vmem:[%s3 + $0x78] sm:$0xff]
    %93 = vmatprep.subr.mxu0 0.0
    %94 = vmatpush1.msra.mxu0 %v77
    %95 = vmatprep.subr.mxu0 0.0
    %96 = vmatpush1.msra.mxu0 %v78
    %97 = vmatprep.subr.mxu0 0.0
    %98 = vmatpush1.msra.mxu0 %v79
    %99 = vmatprep.subr.mxu0 0.0
    %100 = vmatpush1.msra.mxu0 %v80
    %101 = vmatprep.subr.mxu0 0.0
    %102 = vmatpush1.msra.mxu0 %v81
    %103 = vmatprep.subr.mxu0 0.0
    %104 = vmatpush1.msra.mxu0 %v82
    %105 = vmatprep.subr.mxu0 0.0
    %106 = vmatpush1.msra.mxu0 %v83
    %107 = vmatprep.subr.mxu0 0.0
    %108 = vmatpush1.msra.mxu0 %v84
    %109 = vmatprep.subr.mxu0 0.0
    %110 = vmatpush1.msra.mxu0 %v85
    %111 = vmatprep.subr.mxu0 0.0
    %112 = vmatpush1.msra.mxu0 %v86
    %113 = vmatprep.subr.mxu0 0.0
    %114 = vmatpush1.msra.mxu0 %v87
    %115 = vmatprep.subr.mxu0 0.0
    %116 = vmatpush1.msra.mxu0 %v88
    %117 = vmatprep.subr.mxu0 0.0
    %118 = vmatpush1.msra.mxu0 %v89
    %119 = vmatprep.subr.mxu0 0.0
    %120 = vmatpush1.msra.mxu0 %v90
    %121 = vmatprep.subr.mxu0 0.0
    %122 = vmatpush1.msra.mxu0 %v91
    %123 = vmatprep.subr.mxu0 0.0
    %124 = vmatpush1.msra.mxu0 %v92
    %125 = vmatprep.subr.mxu0 0.0
    %126 = vmatpush1.msra.mxu0 0.0
    %127 = vmatprep.subr.mxu0 0.0
    %128 = vmatpush1.msra.mxu0 0.0
    %129 = vmatprep.subr.mxu0 0.0
    %130 = vmatpush1.msra.mxu0 0.0
    %131 = vmatprep.subr.mxu0 0.0
    %132 = vmatpush1.msra.mxu0 0.0
    %133 = vmatprep.subr.mxu0 0.0
    %134 = vmatpush1.msra.mxu0 0.0
    %135 = vmatprep.subr.mxu0 0.0
    %136 = vmatpush1.msra.mxu0 0.0
    %137 = vmatprep.subr.mxu0 0.0
    %138 = vmatpush1.msra.mxu0 0.0
    %139 = vmatprep.subr.mxu0 0.0
    %140 = vmatpush1.msra.mxu0 0.0
    %141 = vmatprep.subr.mxu0 0.0
    %142 = vmatpush1.msra.mxu0 0.0
    %143 = vmatprep.subr.mxu0 0.0
    %144 = vmatpush1.msra.mxu0 0.0
    %145 = vmatprep.subr.mxu0 0.0
    %146 = vmatpush1.msra.mxu0 0.0
    %147 = vmatprep.subr.mxu0 0.0
    %148 = vmatpush1.msra.mxu0 0.0
    %149 = vmatprep.subr.mxu0 0.0
    %150 = vmatpush1.msra.mxu0 0.0
    %151 = vmatprep.subr.mxu0 0.0
    %152 = vmatpush1.msra.mxu0 0.0
    %153 = vmatprep.subr.mxu0 0.0
    %154 = vmatpush1.msra.mxu0 0.0
    %155 = vmatprep.subr.mxu0 0.0
    %156 = vmatpush1.msra.mxu0 0.0
    %157 = vmatprep.mubr.f32.mxu0 0.0
    %158 = vmatmul.mubr.f32.gmra.mrb[0].mxu0 %v75
    %v159 = vpop.f32.mrb[0].mxu0
    %v160 = vadd.f32 0.0, %v159
    %v161 = vpop.f32.mrb[0].mxu0
    %162 = vmatprep.mubr.f32.mxu0 0.0
    %163 = vmatmul.mubr.f32.gmra.mrb[0].mxu0 %v76
    %v164 = vpop.f32.mrb[0].mxu0
    %v165 = vadd.f32 0.0, %v164
    %v166 = vpop.f32.mrb[0].mxu0
    %167 = vdwg.mxu0
    %v168 = vld [vmem:[%s2] sm:$0xff]
    %v169 = vadd.f32 %v160, %v168
    %v170 = vadd.f32 %v165, %v168
    %v171 = vld [vmem:[%s10] sm:$0x3f]
    %v172 = vld [vmem:[%s4] sm:$0xff]
    %v173 = vld [vmem:[%s4 + $0x8] sm:$0xf]
    %v174 = vld [vmem:[%s4 + $0xc] sm:$0xff]
    %v175 = vld [vmem:[%s4 + $0x14] sm:$0xf]
    %v176 = vld [vmem:[%s4 + $0x18] sm:$0xff]
    %v177 = vld [vmem:[%s4 + $0x20] sm:$0xf]
    %v178 = vld [vmem:[%s4 + $0x24] sm:$0xff]
    %v179 = vld [vmem:[%s4 + $0x2c] sm:$0xf]
    %v180 = vld [vmem:[%s5] sm:$0x7]
    %v181 = vld [vmem:[%s6] sm:$0xf]
    %v182 = vld [vmem:[%s6 + $0x4] sm:$0xf]
    %v183 = vld [vmem:[%s6 + $0x8] sm:$0xf]
    %v184 = vld [vmem:[%s6 + $0xc] sm:$0xf]
    %v185 = vld [vmem:[%s6 + $0x10] sm:$0xf]
    %v186 = vld [vmem:[%s6 + $0x14] sm:$0xf]
    %v187 = vld [vmem:[%s6 + $0x18] sm:$0xf]
    %v188 = vld [vmem:[%s6 + $0x1c] sm:$0xf]
    %v189 = vld [vmem:[%s6 + $0x20] sm:$0xf]
    %v190 = vld [vmem:[%s6 + $0x24] sm:$0xf]
    %v191 = vld [vmem:[%s6 + $0x28] sm:$0xf]
    %v192 = vld [vmem:[%s6 + $0x2c] sm:$0xf]
    %v193 = vld [vmem:[%s6 + $0x30] sm:$0xf]
    %v194 = vld [vmem:[%s6 + $0x34] sm:$0xf]
    %v195 = vld [vmem:[%s6 + $0x38] sm:$0xf]
    %v196 = vld [vmem:[%s6 + $0x3c] sm:$0xf]
    %v197 = vld [vmem:[%s7] sm:$0xff]
    %v198 = vld [vmem:[%s7 + $0x8] sm:$0xff]
    %v199 = vld [vmem:[%s7 + $0x10] sm:$0xff]
    %v200 = vld [vmem:[%s7 + $0x18] sm:$0xff]
    %v201 = vld [vmem:[%s7 + $0x20] sm:$0xff]
    %v202 = vld [vmem:[%s7 + $0x28] sm:$0xff]
    %v203 = vld [vmem:[%s7 + $0x30] sm:$0xff]
    %v204 = vld [vmem:[%s7 + $0x38] sm:$0xff]
    %v205 = vld [vmem:[%s7 + $0x40] sm:$0xff]
    %v206 = vld [vmem:[%s7 + $0x48] sm:$0xff]
    %v207 = vld [vmem:[%s7 + $0x50] sm:$0xff]
    %v208 = vld [vmem:[%s7 + $0x58] sm:$0xff]
    %v209 = vld [vmem:[%s7 + $0x60] sm:$0xff]
    %v210 = vld [vmem:[%s7 + $0x68] sm:$0xff]
    %v211 = vld [vmem:[%s7 + $0x70] sm:$0xff]
    %v212 = vld [vmem:[%s7 + $0x78] sm:$0xff]
    %v213 = vld [vmem:[%s7 + $0x80] sm:$0xff]
    %v214 = vld [vmem:[%s7 + $0x88] sm:$0xff]
    %v215 = vld [vmem:[%s7 + $0x90] sm:$0xff]
    %v216 = vld [vmem:[%s7 + $0x98] sm:$0xff]
    %v217 = vld [vmem:[%s7 + $0xa0] sm:$0xff]
    %v218 = vld [vmem:[%s7 + $0xa8] sm:$0xff]
    %v219 = vld [vmem:[%s7 + $0xb0] sm:$0xff]
    %v220 = vld [vmem:[%s7 + $0xb8] sm:$0xff]
    %v221 = vld [vmem:[%s7 + $0xc0] sm:$0xff]
    %v222 = vld [vmem:[%s7 + $0xc8] sm:$0xff]
    %v223 = vld [vmem:[%s7 + $0xd0] sm:$0xff]
    %v224 = vld [vmem:[%s7 + $0xd8] sm:$0xff]
    %v225 = vld [vmem:[%s7 + $0xe0] sm:$0xff]
    %v226 = vld [vmem:[%s7 + $0xe8] sm:$0xff]
    %v227 = vld [vmem:[%s7 + $0xf0] sm:$0xff]
    %v228 = vld [vmem:[%s7 + $0xf8] sm:$0xff]
    %v229 = vld [vmem:[%s8] sm:$0xff]
    %v230 = vld [vmem:[%s8 + $0x8] sm:$0xff]
    %v231 = vld [vmem:[%s9] sm:$0xf]
    %v232 = vld [vmem:[%s9 + $0x4] sm:$0xf]
    %v233 = vld [vmem:[%s9 + $0x8] sm:$0xf]
    %v234 = vld [vmem:[%s9 + $0xc] sm:$0xf]
    %v235 = vld [vmem:[%s9 + $0x10] sm:$0xf]
    %v236 = vld [vmem:[%s9 + $0x14] sm:$0xf]
    %v237 = vld [vmem:[%s9 + $0x18] sm:$0xf]
    %v238 = vld [vmem:[%s9 + $0x1c] sm:$0xf]
    %v239 = vld [vmem:[%s9 + $0x20] sm:$0xf]
    %v240 = vld [vmem:[%s9 + $0x24] sm:$0xf]
    %v241 = vld [vmem:[%s9 + $0x28] sm:$0xf]
    %v242 = vld [vmem:[%s9 + $0x2c] sm:$0xf]
    %v243 = vld [vmem:[%s9 + $0x30] sm:$0xf]
    %v244 = vld [vmem:[%s9 + $0x34] sm:$0xf]
    %v245 = vld [vmem:[%s9 + $0x38] sm:$0xf]
    %v246 = vld [vmem:[%s9 + $0x3c] sm:$0xf]
    %v247 = vld [vmem:[%s9 + $0x40] sm:$0xf]
    %v248 = vld [vmem:[%s9 + $0x44] sm:$0xf]
    %v249 = vld [vmem:[%s9 + $0x48] sm:$0xf]
    %v250 = vld [vmem:[%s9 + $0x4c] sm:$0xf]
    %v251 = vld [vmem:[%s9 + $0x50] sm:$0xf]
    %v252 = vld [vmem:[%s9 + $0x54] sm:$0xf]
    %v253 = vld [vmem:[%s9 + $0x58] sm:$0xf]
    %v254 = vld [vmem:[%s9 + $0x5c] sm:$0xf]
    %v255 = vld [vmem:[%s9 + $0x60] sm:$0xf]
    %v256 = vld [vmem:[%s9 + $0x64] sm:$0xf]
    %v257 = vld [vmem:[%s9 + $0x68] sm:$0xf]
    %v258 = vld [vmem:[%s9 + $0x6c] sm:$0xf]
    %v259 = vld [vmem:[%s9 + $0x70] sm:$0xf]
    %v260 = vld [vmem:[%s9 + $0x74] sm:$0xf]
    %v261 = vld [vmem:[%s9 + $0x78] sm:$0xf]
    %v262 = vld [vmem:[%s9 + $0x7c] sm:$0xf]
    %v263 = vld [vmem:[%s9 + $0x80] sm:$0xf]
    %v264 = vld [vmem:[%s9 + $0x84] sm:$0xf]
    %v265 = vld [vmem:[%s9 + $0x88] sm:$0xf]
    %v266 = vld [vmem:[%s9 + $0x8c] sm:$0xf]
    %v267 = vld [vmem:[%s9 + $0x90] sm:$0xf]
    %v268 = vld [vmem:[%s9 + $0x94] sm:$0xf]
    %v269 = vld [vmem:[%s9 + $0x98] sm:$0xf]
    %v270 = vld [vmem:[%s9 + $0x9c] sm:$0xf]
    %v271 = vld [vmem:[%s9 + $0xa0] sm:$0xf]
    %v272 = vld [vmem:[%s9 + $0xa4] sm:$0xf]
    %v273 = vld [vmem:[%s9 + $0xa8] sm:$0xf]
    %v274 = vld [vmem:[%s9 + $0xac] sm:$0xf]
    %v275 = vld [vmem:[%s9 + $0xb0] sm:$0xf]
    %v276 = vld [vmem:[%s9 + $0xb4] sm:$0xf]
    %v277 = vld [vmem:[%s9 + $0xb8] sm:$0xf]
    %v278 = vld [vmem:[%s9 + $0xbc] sm:$0xf]
    %v279 = vld [vmem:[%s9 + $0xc0] sm:$0xf]
    %v280 = vld [vmem:[%s9 + $0xc4] sm:$0xf]
    %v281 = vld [vmem:[%s9 + $0xc8] sm:$0xf]
    %v282 = vld [vmem:[%s9 + $0xcc] sm:$0xf]
    %v283 = vld [vmem:[%s9 + $0xd0] sm:$0xf]
    %v284 = vld [vmem:[%s9 + $0xd4] sm:$0xf]
    %v285 = vld [vmem:[%s9 + $0xd8] sm:$0xf]
    %v286 = vld [vmem:[%s9 + $0xdc] sm:$0xf]
    %v287 = vld [vmem:[%s9 + $0xe0] sm:$0xf]
    %v288 = vld [vmem:[%s9 + $0xe4] sm:$0xf]
    %v289 = vld [vmem:[%s9 + $0xe8] sm:$0xf]
    %v290 = vld [vmem:[%s9 + $0xec] sm:$0xf]
    %v291 = vld [vmem:[%s9 + $0xf0] sm:$0xf]
    %v292 = vld [vmem:[%s9 + $0xf4] sm:$0xf]
    %v293 = vld [vmem:[%s9 + $0xf8] sm:$0xf]
    %v294 = vld [vmem:[%s9 + $0xfc] sm:$0xf]
    %v295 = vld [vmem:[%s9 + $0x100] sm:$0xf]
    %v296 = vld [vmem:[%s9 + $0x104] sm:$0xf]
    %v297 = vld [vmem:[%s9 + $0x108] sm:$0xf]
    %v298 = vld [vmem:[%s9 + $0x10c] sm:$0xf]
    %v299 = vld [vmem:[%s9 + $0x110] sm:$0xf]
    %v300 = vld [vmem:[%s9 + $0x114] sm:$0xf]
    %v301 = vld [vmem:[%s9 + $0x118] sm:$0xf]
    %v302 = vld [vmem:[%s9 + $0x11c] sm:$0xf]
    %v303 = vld [vmem:[%s9 + $0x120] sm:$0xf]
    %v304 = vld [vmem:[%s9 + $0x124] sm:$0xf]
    %v305 = vld [vmem:[%s9 + $0x128] sm:$0xf]
    %v306 = vld [vmem:[%s9 + $0x12c] sm:$0xf]
    %v307 = vld [vmem:[%s9 + $0x130] sm:$0xf]
    %v308 = vld [vmem:[%s9 + $0x134] sm:$0xf]
    %v309 = vld [vmem:[%s9 + $0x138] sm:$0xf]
    %v310 = vld [vmem:[%s9 + $0x13c] sm:$0xf]
    %v311 = vld [vmem:[%s9 + $0x140] sm:$0xf]
    %v312 = vld [vmem:[%s9 + $0x144] sm:$0xf]
    %v313 = vld [vmem:[%s9 + $0x148] sm:$0xf]
    %v314 = vld [vmem:[%s9 + $0x14c] sm:$0xf]
    %v315 = vld [vmem:[%s9 + $0x150] sm:$0xf]
    %v316 = vld [vmem:[%s9 + $0x154] sm:$0xf]
    %v317 = vld [vmem:[%s9 + $0x158] sm:$0xf]
    %v318 = vld [vmem:[%s9 + $0x15c] sm:$0xf]
    %v319 = vld [vmem:[%s9 + $0x160] sm:$0xf]
    %v320 = vld [vmem:[%s9 + $0x164] sm:$0xf]
    %v321 = vld [vmem:[%s9 + $0x168] sm:$0xf]
    %v322 = vld [vmem:[%s9 + $0x16c] sm:$0xf]
    %v323 = vld [vmem:[%s9 + $0x170] sm:$0xf]
    %v324 = vld [vmem:[%s9 + $0x174] sm:$0xf]
    %v325 = vld [vmem:[%s9 + $0x178] sm:$0xf]
    %v326 = vld [vmem:[%s9 + $0x17c] sm:$0xf]
    %v327 = vld [vmem:[%s9 + $0x180] sm:$0xf]
    %v328 = vld [vmem:[%s9 + $0x184] sm:$0xf]
    %v329 = vld [vmem:[%s9 + $0x188] sm:$0xf]
    %v330 = vld [vmem:[%s9 + $0x18c] sm:$0xf]
    %v331 = vld [vmem:[%s9 + $0x190] sm:$0xf]
    %v332 = vld [vmem:[%s9 + $0x194] sm:$0xf]
    %v333 = vld [vmem:[%s9 + $0x198] sm:$0xf]
    %v334 = vld [vmem:[%s9 + $0x19c] sm:$0xf]
    %v335 = vld [vmem:[%s9 + $0x1a0] sm:$0xf]
    %v336 = vld [vmem:[%s9 + $0x1a4] sm:$0xf]
    %v337 = vld [vmem:[%s9 + $0x1a8] sm:$0xf]
    %v338 = vld [vmem:[%s9 + $0x1ac] sm:$0xf]
    %v339 = vld [vmem:[%s9 + $0x1b0] sm:$0xf]
    %v340 = vld [vmem:[%s9 + $0x1b4] sm:$0xf]
    %v341 = vld [vmem:[%s9 + $0x1b8] sm:$0xf]
    %v342 = vld [vmem:[%s9 + $0x1bc] sm:$0xf]
    %v343 = vld [vmem:[%s9 + $0x1c0] sm:$0xf]
    %v344 = vld [vmem:[%s9 + $0x1c4] sm:$0xf]
    %v345 = vld [vmem:[%s9 + $0x1c8] sm:$0xf]
    %v346 = vld [vmem:[%s9 + $0x1cc] sm:$0xf]
    %v347 = vld [vmem:[%s9 + $0x1d0] sm:$0xf]
    %v348 = vld [vmem:[%s9 + $0x1d4] sm:$0xf]
    %v349 = vld [vmem:[%s9 + $0x1d8] sm:$0xf]
    %v350 = vld [vmem:[%s9 + $0x1dc] sm:$0xf]
    %v351 = vld [vmem:[%s9 + $0x1e0] sm:$0xf]
    %v352 = vld [vmem:[%s9 + $0x1e4] sm:$0xf]
    %v353 = vld [vmem:[%s9 + $0x1e8] sm:$0xf]
    %v354 = vld [vmem:[%s9 + $0x1ec] sm:$0xf]
    %v355 = vld [vmem:[%s9 + $0x1f0] sm:$0xf]
    %v356 = vld [vmem:[%s9 + $0x1f4] sm:$0xf]
    %v357 = vld [vmem:[%s9 + $0x1f8] sm:$0xf]
    %v358 = vld [vmem:[%s9 + $0x1fc] sm:$0xf]
    %v359 = vld [vmem:[%s9 + $0x200] sm:$0xf]
    %v360 = vld [vmem:[%s9 + $0x204] sm:$0xf]
    %v361 = vld [vmem:[%s9 + $0x208] sm:$0xf]
    %v362 = vld [vmem:[%s9 + $0x20c] sm:$0xf]
    %v363 = vld [vmem:[%s9 + $0x210] sm:$0xf]
    %v364 = vld [vmem:[%s9 + $0x214] sm:$0xf]
    %v365 = vld [vmem:[%s9 + $0x218] sm:$0xf]
    %v366 = vld [vmem:[%s9 + $0x21c] sm:$0xf]
    %v367 = vld [vmem:[%s9 + $0x220] sm:$0xf]
    %v368 = vld [vmem:[%s9 + $0x224] sm:$0xf]
    %v369 = vld [vmem:[%s9 + $0x228] sm:$0xf]
    %v370 = vld [vmem:[%s9 + $0x22c] sm:$0xf]
    %v371 = vld [vmem:[%s9 + $0x230] sm:$0xf]
    %v372 = vld [vmem:[%s9 + $0x234] sm:$0xf]
    %v373 = vld [vmem:[%s9 + $0x238] sm:$0xf]
    %v374 = vld [vmem:[%s9 + $0x23c] sm:$0xf]
    %v375 = vld [vmem:[%s9 + $0x240] sm:$0xf]
    %v376 = vld [vmem:[%s9 + $0x244] sm:$0xf]
    %v377 = vld [vmem:[%s9 + $0x248] sm:$0xf]
    %v378 = vld [vmem:[%s9 + $0x24c] sm:$0xf]
    %v379 = vld [vmem:[%s9 + $0x250] sm:$0xf]
    %v380 = vld [vmem:[%s9 + $0x254] sm:$0xf]
    %v381 = vld [vmem:[%s9 + $0x258] sm:$0xf]
    %v382 = vld [vmem:[%s9 + $0x25c] sm:$0xf]
    %v383 = vld [vmem:[%s9 + $0x260] sm:$0xf]
    %v384 = vld [vmem:[%s9 + $0x264] sm:$0xf]
    %v385 = vld [vmem:[%s9 + $0x268] sm:$0xf]
    %v386 = vld [vmem:[%s9 + $0x26c] sm:$0xf]
    %v387 = vld [vmem:[%s9 + $0x270] sm:$0xf]
    %v388 = vld [vmem:[%s9 + $0x274] sm:$0xf]
    %v389 = vld [vmem:[%s9 + $0x278] sm:$0xf]
    %v390 = vld [vmem:[%s9 + $0x27c] sm:$0xf]
    %v391 = vld [vmem:[%s9 + $0x280] sm:$0xf]
    %v392 = vld [vmem:[%s9 + $0x284] sm:$0xf]
    %v393 = vld [vmem:[%s9 + $0x288] sm:$0xf]
    %v394 = vld [vmem:[%s9 + $0x28c] sm:$0xf]
    %v395 = vld [vmem:[%s9 + $0x290] sm:$0xf]
    %v396 = vld [vmem:[%s9 + $0x294] sm:$0xf]
    %v397 = vld [vmem:[%s9 + $0x298] sm:$0xf]
    %v398 = vld [vmem:[%s9 + $0x29c] sm:$0xf]
    %v399 = vld [vmem:[%s9 + $0x2a0] sm:$0xf]
    %v400 = vld [vmem:[%s9 + $0x2a4] sm:$0xf]
    %v401 = vld [vmem:[%s9 + $0x2a8] sm:$0xf]
    %v402 = vld [vmem:[%s9 + $0x2ac] sm:$0xf]
    %v403 = vld [vmem:[%s9 + $0x2b0] sm:$0xf]
    %v404 = vld [vmem:[%s9 + $0x2b4] sm:$0xf]
    %v405 = vld [vmem:[%s9 + $0x2b8] sm:$0xf]
    %v406 = vld [vmem:[%s9 + $0x2bc] sm:$0xf]
    %v407 = vld [vmem:[%s9 + $0x2c0] sm:$0xf]
    %v408 = vld [vmem:[%s9 + $0x2c4] sm:$0xf]
    %v409 = vld [vmem:[%s9 + $0x2c8] sm:$0xf]
    %v410 = vld [vmem:[%s9 + $0x2cc] sm:$0xf]
    %v411 = vld [vmem:[%s9 + $0x2d0] sm:$0xf]
    %v412 = vld [vmem:[%s9 + $0x2d4] sm:$0xf]
    %v413 = vld [vmem:[%s9 + $0x2d8] sm:$0xf]
    %v414 = vld [vmem:[%s9 + $0x2dc] sm:$0xf]
    %v415 = vld [vmem:[%s9 + $0x2e0] sm:$0xf]
    %v416 = vld [vmem:[%s9 + $0x2e4] sm:$0xf]
    %v417 = vld [vmem:[%s9 + $0x2e8] sm:$0xf]
    %v418 = vld [vmem:[%s9 + $0x2ec] sm:$0xf]
    %v419 = vld [vmem:[%s9 + $0x2f0] sm:$0xf]
    %v420 = vld [vmem:[%s9 + $0x2f4] sm:$0xf]
    %v421 = vld [vmem:[%s9 + $0x2f8] sm:$0xf]
    %v422 = vld [vmem:[%s9 + $0x2fc] sm:$0xf]
    %v423 = vld [vmem:[%s9 + $0x300] sm:$0xf]
    %v424 = vld [vmem:[%s9 + $0x304] sm:$0xf]
    %v425 = vld [vmem:[%s9 + $0x308] sm:$0xf]
    %v426 = vld [vmem:[%s9 + $0x30c] sm:$0xf]
    %v427 = vld [vmem:[%s9 + $0x310] sm:$0xf]
    %v428 = vld [vmem:[%s9 + $0x314] sm:$0xf]
    %v429 = vld [vmem:[%s9 + $0x318] sm:$0xf]
    %v430 = vld [vmem:[%s9 + $0x31c] sm:$0xf]
    %v431 = vld [vmem:[%s9 + $0x320] sm:$0xf]
    %v432 = vld [vmem:[%s9 + $0x324] sm:$0xf]
    %v433 = vld [vmem:[%s9 + $0x328] sm:$0xf]
    %v434 = vld [vmem:[%s9 + $0x32c] sm:$0xf]
    %v435 = vld [vmem:[%s9 + $0x330] sm:$0xf]
    %v436 = vld [vmem:[%s9 + $0x334] sm:$0xf]
    %v437 = vld [vmem:[%s9 + $0x338] sm:$0xf]
    %v438 = vld [vmem:[%s9 + $0x33c] sm:$0xf]
    %v439 = vld [vmem:[%s9 + $0x340] sm:$0xf]
    %v440 = vld [vmem:[%s9 + $0x344] sm:$0xf]
    %v441 = vld [vmem:[%s9 + $0x348] sm:$0xf]
    %v442 = vld [vmem:[%s9 + $0x34c] sm:$0xf]
    %v443 = vld [vmem:[%s9 + $0x350] sm:$0xf]
    %v444 = vld [vmem:[%s9 + $0x354] sm:$0xf]
    %v445 = vld [vmem:[%s9 + $0x358] sm:$0xf]
    %v446 = vld [vmem:[%s9 + $0x35c] sm:$0xf]
    %v447 = vld [vmem:[%s9 + $0x360] sm:$0xf]
    %v448 = vld [vmem:[%s9 + $0x364] sm:$0xf]
    %v449 = vld [vmem:[%s9 + $0x368] sm:$0xf]
    %v450 = vld [vmem:[%s9 + $0x36c] sm:$0xf]
    %v451 = vld [vmem:[%s9 + $0x370] sm:$0xf]
    %v452 = vld [vmem:[%s9 + $0x374] sm:$0xf]
    %v453 = vld [vmem:[%s9 + $0x378] sm:$0xf]
    %v454 = vld [vmem:[%s9 + $0x37c] sm:$0xf]
    %v455 = vld [vmem:[%s9 + $0x380] sm:$0xf]
    %v456 = vld [vmem:[%s9 + $0x384] sm:$0xf]
    %v457 = vld [vmem:[%s9 + $0x388] sm:$0xf]
    %v458 = vld [vmem:[%s9 + $0x38c] sm:$0xf]
    %v459 = vld [vmem:[%s9 + $0x390] sm:$0xf]
    %v460 = vld [vmem:[%s9 + $0x394] sm:$0xf]
    %v461 = vld [vmem:[%s9 + $0x398] sm:$0xf]
    %v462 = vld [vmem:[%s9 + $0x39c] sm:$0xf]
    %v463 = vld [vmem:[%s9 + $0x3a0] sm:$0xf]
    %v464 = vld [vmem:[%s9 + $0x3a4] sm:$0xf]
    %v465 = vld [vmem:[%s9 + $0x3a8] sm:$0xf]
    %v466 = vld [vmem:[%s9 + $0x3ac] sm:$0xf]
    %v467 = vld [vmem:[%s9 + $0x3b0] sm:$0xf]
    %v468 = vld [vmem:[%s9 + $0x3b4] sm:$0xf]
    %v469 = vld [vmem:[%s9 + $0x3b8] sm:$0xf]
    %v470 = vld [vmem:[%s9 + $0x3bc] sm:$0xf]
    %v471 = vld [vmem:[%s9 + $0x3c0] sm:$0xf]
    %v472 = vld [vmem:[%s9 + $0x3c4] sm:$0xf]
    %v473 = vld [vmem:[%s9 + $0x3c8] sm:$0xf]
    %v474 = vld [vmem:[%s9 + $0x3cc] sm:$0xf]
    %v475 = vld [vmem:[%s9 + $0x3d0] sm:$0xf]
    %v476 = vld [vmem:[%s9 + $0x3d4] sm:$0xf]
    %v477 = vld [vmem:[%s9 + $0x3d8] sm:$0xf]
    %v478 = vld [vmem:[%s9 + $0x3dc] sm:$0xf]
    %v479 = vld [vmem:[%s9 + $0x3e0] sm:$0xf]
    %v480 = vld [vmem:[%s9 + $0x3e4] sm:$0xf]
    %v481 = vld [vmem:[%s9 + $0x3e8] sm:$0xf]
    %v482 = vld [vmem:[%s9 + $0x3ec] sm:$0xf]
    %v483 = vld [vmem:[%s9 + $0x3f0] sm:$0xf]
    %v484 = vld [vmem:[%s9 + $0x3f4] sm:$0xf]
    %v485 = vld [vmem:[%s9 + $0x3f8] sm:$0xf]
    %v486 = vld [vmem:[%s9 + $0x3fc] sm:$0xf]
    %v487 = vpack.c.bf16 %v170, %v169
    %v489 = vlaneseq
    %v490 = vshrl.u32 %v489, 7
    %v491 = vsub.s32 0, %v490
    %v492 = vrot.slane %v180, %v491
    %v493 = vlaneseq
    %v494 = vshrl.u32 %v493, 7
    %v495 = vsub.s32 1, %v494
    %v496 = vrot.slane %v180, %v495
    %v497 = vlaneseq
    %v498 = vshrl.u32 %v497, 7
    %v499 = vsub.s32 2, %v498
    %v500 = vrot.slane %v180, %v499
    %v512 = vunpack.c.l.b16 %v172
    %v513 = vunpack.c.h.b16 %v172
    %v514 = vunpack.c.l.b16 %v173
    %v515 = vunpack.c.l.b16 %v174
    %v516 = vunpack.c.h.b16 %v174
    %v517 = vunpack.c.l.b16 %v175
    %v518 = vunpack.c.l.b16 %v176
    %v519 = vunpack.c.h.b16 %v176
    %v520 = vunpack.c.l.b16 %v177
    %v521 = vunpack.c.l.b16 %v178
    %v522 = vunpack.c.h.b16 %v178
    %v523 = vunpack.c.l.b16 %v179
    %v524 = vpack.c.b16 %v515, %v512
    %v525 = vpack.c.b16 %v516, %v513
    %v526 = vpack.c.b16 %v517, %v514
    %v527 = vpack.c.b16 %v521, %v518
    %v528 = vpack.c.b16 %v522, %v519
    %v529 = vpack.c.b16 %v523, %v520
    %vm536 = vcmask 261120
    %v538 = vsel %vm536, %v487, 0
    %540 = vmatprep.subr.bf16.mxu0 %v525
    %541 = vmatpush1.bf16.msra.mxu0 %v524
    %542 = vmatprep.subr.bf16.mxu0 %v528
    %543 = vmatpush1.bf16.msra.mxu0 %v527
    %544 = vmatprep.subr.bf16.mxu0 0
    %545 = vmatpush1.bf16.msra.mxu0 0
    %546 = vmatprep.subr.bf16.mxu0 0
    %547 = vmatpush1.bf16.msra.mxu0 0
    %548 = vmatprep.subr.bf16.mxu0 0
    %549 = vmatpush1.bf16.msra.mxu0 0
    %550 = vmatprep.subr.bf16.mxu0 0
    %551 = vmatpush1.bf16.msra.mxu0 0
    %552 = vmatprep.subr.bf16.mxu0 0
    %553 = vmatpush1.bf16.msra.mxu0 0
    %554 = vmatprep.subr.bf16.mxu0 0
    %555 = vmatpush1.bf16.msra.mxu0 0
    %556 = vmatprep.subr.bf16.mxu0 0
    %557 = vmatpush1.bf16.msra.mxu0 0
    %558 = vmatprep.subr.bf16.mxu0 0
    %559 = vmatpush1.bf16.msra.mxu0 0
    %560 = vmatprep.subr.bf16.mxu0 0
    %561 = vmatpush1.bf16.msra.mxu0 0
    %562 = vmatprep.subr.bf16.mxu0 0
    %563 = vmatpush1.bf16.msra.mxu0 0
    %564 = vmatprep.subr.bf16.mxu0 0
    %565 = vmatpush1.bf16.msra.mxu0 0
    %566 = vmatprep.subr.bf16.mxu0 0
    %567 = vmatpush1.bf16.msra.mxu0 0
    %568 = vmatprep.subr.bf16.mxu0 0
    %569 = vmatpush1.bf16.msra.mxu0 0
    %570 = vmatprep.subr.bf16.mxu0 0
    %571 = vmatpush1.bf16.msra.mxu0 0
    %572 = vmatprep.mubr.bf16.mxu0 0
    %573 = vmatmul.mubr.bf16.gmra.mrb[0].mxu0 %v538
    %v574 = vpop.f32.mrb[0].mxu0
    %v575 = vadd.f32 %v492, %v574
    %v576 = vpop.f32.mrb[0].mxu0
    %v577 = vadd.f32 %v496, %v576
    %v578 = vpop.f32.mrb[0].mxu0
    %v579 = vadd.f32 %v492, %v578
    %v580 = vpop.f32.mrb[0].mxu0
    %v581 = vadd.f32 %v496, %v580
    %582 = vdwg.mxu0
    %583 = vmatprep.subr.bf16.mxu0 0
    %584 = vmatpush1.bf16.msra.mxu0 %v526
    %585 = vmatprep.subr.bf16.mxu0 0
    %586 = vmatpush1.bf16.msra.mxu0 %v529
    %587 = vmatprep.subr.bf16.mxu0 0
    %588 = vmatpush1.bf16.msra.mxu0 0
    %589 = vmatprep.subr.bf16.mxu0 0
    %590 = vmatpush1.bf16.msra.mxu0 0
    %591 = vmatprep.subr.bf16.mxu0 0
    %592 = vmatpush1.bf16.msra.mxu0 0
    %593 = vmatprep.subr.bf16.mxu0 0
    %594 = vmatpush1.bf16.msra.mxu0 0
    %595 = vmatprep.subr.bf16.mxu0 0
    %596 = vmatpush1.bf16.msra.mxu0 0
    %597 = vmatprep.subr.bf16.mxu0 0
    %598 = vmatpush1.bf16.msra.mxu0 0
    %599 = vmatprep.subr.bf16.mxu0 0
    %600 = vmatpush1.bf16.msra.mxu0 0
    %601 = vmatprep.subr.bf16.mxu0 0
    %602 = vmatpush1.bf16.msra.mxu0 0
    %603 = vmatprep.subr.bf16.mxu0 0
    %604 = vmatpush1.bf16.msra.mxu0 0
    %605 = vmatprep.subr.bf16.mxu0 0
    %606 = vmatpush1.bf16.msra.mxu0 0
    %607 = vmatprep.subr.bf16.mxu0 0
    %608 = vmatpush1.bf16.msra.mxu0 0
    %609 = vmatprep.subr.bf16.mxu0 0
    %610 = vmatpush1.bf16.msra.mxu0 0
    %611 = vmatprep.subr.bf16.mxu0 0
    %612 = vmatpush1.bf16.msra.mxu0 0
    %613 = vmatprep.subr.bf16.mxu0 0
    %614 = vmatpush1.bf16.msra.mxu0 0
    %615 = vmatprep.mubr.bf16.mxu0 0
    %616 = vmatmul.mubr.bf16.gmra.mrb[0].mxu0 %v538
    %v617 = vpop.f32.mrb[0].mxu0
    %v618 = vadd.f32 %v500, %v617
    %v619 = vpop.f32.mrb[0].mxu0
    %v620 = vpop.f32.mrb[0].mxu0
    %v621 = vadd.f32 %v500, %v620
    %v622 = vpop.f32.mrb[0].mxu0
    %623 = vdwg.mxu0
    %v624 = vpack.c.bf16 %v575, %v575
    %v625 = vpack.c.bf16 %v579, %v579
    %v626 = vpack.c.bf16 %v577, %v577
    %v627 = vpack.c.bf16 %v581, %v581
    %628 = vmatprep.subr.bf16.mxu0 0
    %629 = vmatpush1.bf16.xpose.msra.mxu0 %v626
    %630 = vmatprep.subr.bf16.mxu0 0
    %631 = vmatpush1.bf16.xpose.msra.mxu0 0
    %632 = vmatprep.subr.bf16.mxu0 0
    %633 = vmatpush1.bf16.xpose.msra.mxu0 0
    %634 = vmatprep.subr.bf16.mxu0 0
    %635 = vmatpush1.bf16.xpose.msra.mxu0 0
    %636 = vmatprep.subr.bf16.mxu0 0
    %637 = vmatpush1.bf16.xpose.msra.mxu0 0
    %638 = vmatprep.subr.bf16.mxu0 0
    %639 = vmatpush1.bf16.xpose.msra.mxu0 0
    %640 = vmatprep.subr.bf16.mxu0 0
    %641 = vmatpush1.bf16.xpose.msra.mxu0 0
    %642 = vmatprep.subr.bf16.mxu0 0
    %643 = vmatpush1.bf16.xpose.msra.mxu0 0
    %644 = vmatprep.subr.bf16.mxu0 0
    %645 = vmatpush1.bf16.xpose.msra.mxu0 0
    %646 = vmatprep.subr.bf16.mxu0 0
    %647 = vmatpush1.bf16.xpose.msra.mxu0 0
    %648 = vmatprep.subr.bf16.mxu0 0
    %649 = vmatpush1.bf16.xpose.msra.mxu0 0
    %650 = vmatprep.subr.bf16.mxu0 0
    %651 = vmatpush1.bf16.xpose.msra.mxu0 0
    %652 = vmatprep.subr.bf16.mxu0 0
    %653 = vmatpush1.bf16.xpose.msra.mxu0 0
    %654 = vmatprep.subr.bf16.mxu0 0
    %655 = vmatpush1.bf16.xpose.msra.mxu0 0
    %656 = vmatprep.subr.bf16.mxu0 0
    %657 = vmatpush1.bf16.xpose.msra.mxu0 0
    %658 = vmatprep.subr.bf16.mxu0 0
    %659 = vmatpush1.bf16.xpose.msra.mxu0 0
    %660 = vmatprep.mubr.bf16.mxu0 0
    %661 = vmatmul.mubr.bf16.gmra.mrb[0].mxu0 %v624
    %v662 = vpop.f32.mrb[0].mxu0
    %v663 = vadd.f32 0.0, %v662
    %v664 = vpop.f32.mrb[0].mxu0
    %v665 = vpop.f32.mrb[0].mxu0
    %v666 = vpop.f32.mrb[0].mxu0
    %667 = vdwg.mxu0
    %668 = vmatprep.subr.bf16.mxu0 0
    %669 = vmatpush1.bf16.xpose.msra.mxu0 %v627
    %670 = vmatprep.subr.bf16.mxu0 0
    %671 = vmatpush1.bf16.xpose.msra.mxu0 0
    %672 = vmatprep.subr.bf16.mxu0 0
    %673 = vmatpush1.bf16.xpose.msra.mxu0 0
    %674 = vmatprep.subr.bf16.mxu0 0
    %675 = vmatpush1.bf16.xpose.msra.mxu0 0
    %676 = vmatprep.subr.bf16.mxu0 0
    %677 = vmatpush1.bf16.xpose.msra.mxu0 0
    %678 = vmatprep.subr.bf16.mxu0 0
    %679 = vmatpush1.bf16.xpose.msra.mxu0 0
    %680 = vmatprep.subr.bf16.mxu0 0
    %681 = vmatpush1.bf16.xpose.msra.mxu0 0
    %682 = vmatprep.subr.bf16.mxu0 0
    %683 = vmatpush1.bf16.xpose.msra.mxu0 0
    %684 = vmatprep.subr.bf16.mxu0 0
    %685 = vmatpush1.bf16.xpose.msra.mxu0 0
    %686 = vmatprep.subr.bf16.mxu0 0
    %687 = vmatpush1.bf16.xpose.msra.mxu0 0
    %688 = vmatprep.subr.bf16.mxu0 0
    %689 = vmatpush1.bf16.xpose.msra.mxu0 0
    %690 = vmatprep.subr.bf16.mxu0 0
    %691 = vmatpush1.bf16.xpose.msra.mxu0 0
    %692 = vmatprep.subr.bf16.mxu0 0
    %693 = vmatpush1.bf16.xpose.msra.mxu0 0
    %694 = vmatprep.subr.bf16.mxu0 0
    %695 = vmatpush1.bf16.xpose.msra.mxu0 0
    %696 = vmatprep.subr.bf16.mxu0 0
    %697 = vmatpush1.bf16.xpose.msra.mxu0 0
    %698 = vmatprep.subr.bf16.mxu0 0
    %699 = vmatpush1.bf16.xpose.msra.mxu0 0
    %700 = vmatprep.mubr.bf16.mxu0 0
    %701 = vmatmul.mubr.bf16.gmra.mrb[0].mxu0 %v625
    %v702 = vpop.f32.mrb[0].mxu0
    %v703 = vadd.f32 0.0, %v702
    %v704 = vpop.f32.mrb[0].mxu0
    %v705 = vpop.f32.mrb[0].mxu0
    %v706 = vpop.f32.mrb[0].mxu0
    %707 = vdwg.mxu0
    %vm708 = vcmask 64512
    %v709 = vsel %vm708, %v663, -inf
    %710 = vmax.xlane.f32.xlu0 %v709
    %v711 = vpop.xlane.xlu0 %710
    %v712 = vsel %vm708, %v703, -inf
    %713 = vmax.xlane.f32.xlu0 %v712
    %v714 = vpop.xlane.xlu0 %713
    %v715 = vsub.f32 %v663, %v711
    %v716 = vsub.f32 %v703, %v714
    %v717 = vmul.f32 %v715, 1.442695
    %v718 = vpow.pop %v717
    %v719 = vmul.f32 %v716, 1.442695
    %v720 = vpow.pop %v719
    %v721 = vsel %vm708, %v718, 0.0
    %722 = vadd.xlane.f32.xlu0 %v721
    %v723 = vpop.xlane.xlu0 %722
    %v724 = vsel %vm708, %v720, 0.0
    %725 = vadd.xlane.f32.xlu0 %v724
    %v726 = vpop.xlane.xlu0 %725
    %v727 = vrcp.pop %v723
    %v728 = vrcp.pop %v726
    %v729 = vmul.f32 %v718, %v727
    %v730 = vmul.f32 %v720, %v728
    %v731 = vpack.c.bf16 %v729, %v729
    %v732 = vpack.c.bf16 %v730, %v730
    %v733 = vpack.c.bf16 %v618, %v618
    %v734 = vpack.c.bf16 %v621, %v621
    %v736 = vsel %vm708, %v731, 0
    %vm738 = vcmask 1043456
    %v740 = vsel %vm738, %v733, 0
    %742 = vmatprep.subr.bf16.mxu0 0
    %743 = vmatpush1.bf16.msra.mxu0 %v740
    %744 = vmatprep.subr.bf16.mxu0 0
    %745 = vmatpush1.bf16.msra.mxu0 0
    %746 = vmatprep.subr.bf16.mxu0 0
    %747 = vmatpush1.bf16.msra.mxu0 0
    %748 = vmatprep.subr.bf16.mxu0 0
    %749 = vmatpush1.bf16.msra.mxu0 0
    %750 = vmatprep.subr.bf16.mxu0 0
    %751 = vmatpush1.bf16.msra.mxu0 0
    %752 = vmatprep.subr.bf16.mxu0 0
    %753 = vmatpush1.bf16.msra.mxu0 0
    %754 = vmatprep.subr.bf16.mxu0 0
    %755 = vmatpush1.bf16.msra.mxu0 0
    %756 = vmatprep.subr.bf16.mxu0 0
    %757 = vmatpush1.bf16.msra.mxu0 0
    %758 = vmatprep.subr.bf16.mxu0 0
    %759 = vmatpush1.bf16.msra.mxu0 0
    %760 = vmatprep.subr.bf16.mxu0 0
    %761 = vmatpush1.bf16.msra.mxu0 0
    %762 = vmatprep.subr.bf16.mxu0 0
    %763 = vmatpush1.bf16.msra.mxu0 0
    %764 = vmatprep.subr.bf16.mxu0 0
    %765 = vmatpush1.bf16.msra.mxu0 0
    %766 = vmatprep.subr.bf16.mxu0 0
    %767 = vmatpush1.bf16.msra.mxu0 0
    %768 = vmatprep.subr.bf16.mxu0 0
    %769 = vmatpush1.bf16.msra.mxu0 0
    %770 = vmatprep.subr.bf16.mxu0 0
    %771 = vmatpush1.bf16.msra.mxu0 0
    %772 = vmatprep.subr.bf16.mxu0 0
    %773 = vmatpush1.bf16.msra.mxu0 0
    %774 = vmatprep.mubr.bf16.mxu0 0
    %775 = vmatmul.mubr.bf16.gmra.mrb[0].mxu0 %v736
    %v776 = vpop.f32.mrb[0].mxu0
    %v777 = vadd.f32 0.0, %v776
    %v778 = vpop.f32.mrb[0].mxu0
    %v779 = vpop.f32.mrb[0].mxu0
    %v780 = vpop.f32.mrb[0].mxu0
    %781 = vdwg.mxu0
    %v783 = vsel %vm708, %v732, 0
    %v786 = vsel %vm738, %v734, 0
    %788 = vmatprep.subr.bf16.mxu0 0
    %789 = vmatpush1.bf16.msra.mxu0 %v786
    %790 = vmatprep.subr.bf16.mxu0 0
    %791 = vmatpush1.bf16.msra.mxu0 0
    %792 = vmatprep.subr.bf16.mxu0 0
    %793 = vmatpush1.bf16.msra.mxu0 0
    %794 = vmatprep.subr.bf16.mxu0 0
    %795 = vmatpush1.bf16.msra.mxu0 0
    %796 = vmatprep.subr.bf16.mxu0 0
    %797 = vmatpush1.bf16.msra.mxu0 0
    %798 = vmatprep.subr.bf16.mxu0 0
    %799 = vmatpush1.bf16.msra.mxu0 0
    %800 = vmatprep.subr.bf16.mxu0 0
    %801 = vmatpush1.bf16.msra.mxu0 0
    %802 = vmatprep.subr.bf16.mxu0 0
    %803 = vmatpush1.bf16.msra.mxu0 0
    %804 = vmatprep.subr.bf16.mxu0 0
    %805 = vmatpush1.bf16.msra.mxu0 0
    %806 = vmatprep.subr.bf16.mxu0 0
    %807 = vmatpush1.bf16.msra.mxu0 0
    %808 = vmatprep.subr.bf16.mxu0 0
    %809 = vmatpush1.bf16.msra.mxu0 0
    %810 = vmatprep.subr.bf16.mxu0 0
    %811 = vmatpush1.bf16.msra.mxu0 0
    %812 = vmatprep.subr.bf16.mxu0 0
    %813 = vmatpush1.bf16.msra.mxu0 0
    %814 = vmatprep.subr.bf16.mxu0 0
    %815 = vmatpush1.bf16.msra.mxu0 0
    %816 = vmatprep.subr.bf16.mxu0 0
    %817 = vmatpush1.bf16.msra.mxu0 0
    %818 = vmatprep.subr.bf16.mxu0 0
    %819 = vmatpush1.bf16.msra.mxu0 0
    %820 = vmatprep.mubr.bf16.mxu0 0
    %821 = vmatmul.mubr.bf16.gmra.mrb[0].mxu0 %v783
    %v822 = vpop.f32.mrb[0].mxu0
    %v823 = vadd.f32 0.0, %v822
    %v824 = vpop.f32.mrb[0].mxu0
    %v825 = vpop.f32.mrb[0].mxu0
    %v826 = vpop.f32.mrb[0].mxu0
    %827 = vdwg.mxu0
    %v828 = vpack.c.bf16 %v823, %v777
    %v829 = vlaneseq
    %v830 = vshrl.u32 %v829, 7
    %v831 = vsub.s32 0, %v830
    %v832 = vrot.slane %v171, %v831
    %v849 = vunpack.c.l.b16 %v181
    %v850 = vunpack.c.l.b16 %v182
    %v851 = vunpack.c.l.b16 %v183
    %v852 = vunpack.c.l.b16 %v184
    %v853 = vunpack.c.l.b16 %v185
    %v854 = vunpack.c.l.b16 %v186
    %v855 = vunpack.c.l.b16 %v187
    %v856 = vunpack.c.l.b16 %v188
    %v857 = vunpack.c.l.b16 %v189
    %v858 = vunpack.c.l.b16 %v190
    %v859 = vunpack.c.l.b16 %v191
    %v860 = vunpack.c.l.b16 %v192
    %v861 = vunpack.c.l.b16 %v193
    %v862 = vunpack.c.l.b16 %v194
    %v863 = vunpack.c.l.b16 %v195
    %v864 = vunpack.c.l.b16 %v196
    %v865 = vpack.c.b16 %v850, %v849
    %v866 = vpack.c.b16 %v852, %v851
    %v867 = vpack.c.b16 %v854, %v853
    %v868 = vpack.c.b16 %v856, %v855
    %v869 = vpack.c.b16 %v858, %v857
    %v870 = vpack.c.b16 %v860, %v859
    %v871 = vpack.c.b16 %v862, %v861
    %v872 = vpack.c.b16 %v864, %v863
    %881 = vmatprep.subr.bf16.mxu0 0
    %882 = vmatpush1.bf16.msra.mxu0 %v865
    %883 = vmatprep.subr.bf16.mxu0 0
    %884 = vmatpush1.bf16.msra.mxu0 %v866
    %885 = vmatprep.subr.bf16.mxu0 0
    %886 = vmatpush1.bf16.msra.mxu0 %v867
    %887 = vmatprep.subr.bf16.mxu0 0
    %888 = vmatpush1.bf16.msra.mxu0 %v868
    %889 = vmatprep.subr.bf16.mxu0 0
    %890 = vmatpush1.bf16.msra.mxu0 %v869
    %891 = vmatprep.subr.bf16.mxu0 0
    %892 = vmatpush1.bf16.msra.mxu0 %v870
    %893 = vmatprep.subr.bf16.mxu0 0
    %894 = vmatpush1.bf16.msra.mxu0 %v871
    %895 = vmatprep.subr.bf16.mxu0 0
    %896 = vmatpush1.bf16.msra.mxu0 %v872
    %897 = vmatprep.subr.bf16.mxu0 0
    %898 = vmatpush1.bf16.msra.mxu0 0
    %899 = vmatprep.subr.bf16.mxu0 0
    %900 = vmatpush1.bf16.msra.mxu0 0
    %901 = vmatprep.subr.bf16.mxu0 0
    %902 = vmatpush1.bf16.msra.mxu0 0
    %903 = vmatprep.subr.bf16.mxu0 0
    %904 = vmatpush1.bf16.msra.mxu0 0
    %905 = vmatprep.subr.bf16.mxu0 0
    %906 = vmatpush1.bf16.msra.mxu0 0
    %907 = vmatprep.subr.bf16.mxu0 0
    %908 = vmatpush1.bf16.msra.mxu0 0
    %909 = vmatprep.subr.bf16.mxu0 0
    %910 = vmatpush1.bf16.msra.mxu0 0
    %911 = vmatprep.subr.bf16.mxu0 0
    %912 = vmatpush1.bf16.msra.mxu0 0
    %913 = vmatprep.mubr.bf16.mxu0 0
    %914 = vmatmul.mubr.bf16.gmra.mrb[0].mxu0 %v828
    %v915 = vpop.f32.mrb[0].mxu0
    %v916 = vadd.f32 %v832, %v915
    %v917 = vpop.f32.mrb[0].mxu0
    %v918 = vpop.f32.mrb[0].mxu0
    %v919 = vadd.f32 %v832, %v918
    %v920 = vpop.f32.mrb[0].mxu0
    %921 = vdwg.mxu0
    %v922 = vadd.f32 %v169, %v916
    %v923 = vadd.f32 %v170, %v919
    %v924 = vsel %vm536, %v922, 0.0
    %925 = vadd.xlane.f32.xlu0 %v924
    %v926 = vpop.xlane.xlu0 %925
    %v927 = vsel %vm536, %v923, 0.0
    %928 = vadd.xlane.f32.xlu0 %v927
    %v929 = vpop.xlane.xlu0 %928
    %v930 = vrcp.pop 32.0
    %v931 = vmul.f32 %v926, %v930
    %v932 = vmul.f32 %v929, %v930
    %v933 = vsub.f32 %v922, %v931
    %v934 = vsub.f32 %v923, %v932
    %v935 = vmul.f32 %v933, %v933
    %v936 = vmul.f32 %v934, %v934
    %v937 = vsel %vm536, %v935, 0.0
    %938 = vadd.xlane.f32.xlu0 %v937
    %v939 = vpop.xlane.xlu0 %938
    %v940 = vsel %vm536, %v936, 0.0
    %941 = vadd.xlane.f32.xlu0 %v940
    %v942 = vpop.xlane.xlu0 %941
    %v943 = vmul.f32 %v939, %v930
    %v944 = vmul.f32 %v942, %v930
    %v945 = vadd.f32 %v943, 1e-05
    %v946 = vadd.f32 %v944, 1e-05
    %v947 = vrsqrt.pop %v945
    %v948 = vrsqrt.pop %v946
    %v949 = vmul.f32 %v933, %v947
    %v950 = vmul.f32 %v934, %v948
    %v951 = vlaneseq
    %v952 = vshrl.u32 %v951, 7
    %v953 = vsub.s32 1, %v952
    %v954 = vrot.slane %v171, %v953
    %v955 = vmul.f32 %v949, %v954
    %v956 = vmul.f32 %v950, %v954
    %v957 = vlaneseq
    %v958 = vshrl.u32 %v957, 7
    %v959 = vsub.s32 2, %v958
    %v960 = vrot.slane %v171, %v959
    %v961 = vadd.f32 %v955, %v960
    %v962 = vadd.f32 %v956, %v960
    %v963 = vpack.c.bf16 %v962, %v961
    %v966 = vlaneseq
    %v967 = vshrl.u32 %v966, 7
    %v968 = vsub.s32 0, %v967
    %v969 = vrot.slane %v229, %v968
    %v970 = vlaneseq
    %v971 = vshrl.u32 %v970, 7
    %v972 = vsub.s32 1, %v971
    %v973 = vrot.slane %v229, %v972
    %v974 = vlaneseq
    %v975 = vshrl.u32 %v974, 7
    %v976 = vsub.s32 2, %v975
    %v977 = vrot.slane %v229, %v976
    %v978 = vlaneseq
    %v979 = vshrl.u32 %v978, 7
    %v980 = vsub.s32 3, %v979
    %v981 = vrot.slane %v229, %v980
    %v982 = vlaneseq
    %v983 = vshrl.u32 %v982, 7
    %v984 = vsub.s32 4, %v983
    %v985 = vrot.slane %v229, %v984
    %v986 = vlaneseq
    %v987 = vshrl.u32 %v986, 7
    %v988 = vsub.s32 5, %v987
    %v989 = vrot.slane %v229, %v988
    %v990 = vlaneseq
    %v991 = vshrl.u32 %v990, 7
    %v992 = vsub.s32 6, %v991
    %v993 = vrot.slane %v229, %v992
    %v994 = vlaneseq
    %v995 = vshrl.u32 %v994, 7
    %v996 = vsub.s32 7, %v995
    %v997 = vrot.slane %v229, %v996
    %v998 = vlaneseq
    %v999 = vshrl.u32 %v998, 7
    %v1000 = vsub.s32 0, %v999
    %v1001 = vrot.slane %v230, %v1000
    %v1002 = vlaneseq
    %v1003 = vshrl.u32 %v1002, 7
    %v1004 = vsub.s32 1, %v1003
    %v1005 = vrot.slane %v230, %v1004
    %v1006 = vlaneseq
    %v1007 = vshrl.u32 %v1006, 7
    %v1008 = vsub.s32 2, %v1007
    %v1009 = vrot.slane %v230, %v1008
    %v1010 = vlaneseq
    %v1011 = vshrl.u32 %v1010, 7
    %v1012 = vsub.s32 3, %v1011
    %v1013 = vrot.slane %v230, %v1012
    %v1014 = vlaneseq
    %v1015 = vshrl.u32 %v1014, 7
    %v1016 = vsub.s32 4, %v1015
    %v1017 = vrot.slane %v230, %v1016
    %v1018 = vlaneseq
    %v1019 = vshrl.u32 %v1018, 7
    %v1020 = vsub.s32 5, %v1019
    %v1021 = vrot.slane %v230, %v1020
    %v1022 = vlaneseq
    %v1023 = vshrl.u32 %v1022, 7
    %v1024 = vsub.s32 6, %v1023
    %v1025 = vrot.slane %v230, %v1024
    %v1026 = vlaneseq
    %v1027 = vshrl.u32 %v1026, 7
    %v1028 = vsub.s32 7, %v1027
    %v1029 = vrot.slane %v230, %v1028
    %v1078 = vunpack.c.l.b16 %v197
    %v1079 = vunpack.c.h.b16 %v197
    %v1080 = vunpack.c.l.b16 %v198
    %v1081 = vunpack.c.h.b16 %v198
    %v1082 = vunpack.c.l.b16 %v199
    %v1083 = vunpack.c.h.b16 %v199
    %v1084 = vunpack.c.l.b16 %v200
    %v1085 = vunpack.c.h.b16 %v200
    %v1086 = vunpack.c.l.b16 %v201
    %v1087 = vunpack.c.h.b16 %v201
    %v1088 = vunpack.c.l.b16 %v202
    %v1089 = vunpack.c.h.b16 %v202
    %v1090 = vunpack.c.l.b16 %v203
    %v1091 = vunpack.c.h.b16 %v203
    %v1092 = vunpack.c.l.b16 %v204
    %v1093 = vunpack.c.h.b16 %v204
    %v1094 = vunpack.c.l.b16 %v205
    %v1095 = vunpack.c.h.b16 %v205
    %v1096 = vunpack.c.l.b16 %v206
    %v1097 = vunpack.c.h.b16 %v206
    %v1098 = vunpack.c.l.b16 %v207
    %v1099 = vunpack.c.h.b16 %v207
    %v1100 = vunpack.c.l.b16 %v208
    %v1101 = vunpack.c.h.b16 %v208
    %v1102 = vunpack.c.l.b16 %v209
    %v1103 = vunpack.c.h.b16 %v209
    %v1104 = vunpack.c.l.b16 %v210
    %v1105 = vunpack.c.h.b16 %v210
    %v1106 = vunpack.c.l.b16 %v211
    %v1107 = vunpack.c.h.b16 %v211
    %v1108 = vunpack.c.l.b16 %v212
    %v1109 = vunpack.c.h.b16 %v212
    %v1110 = vunpack.c.l.b16 %v213
    %v1111 = vunpack.c.h.b16 %v213
    %v1112 = vunpack.c.l.b16 %v214
    %v1113 = vunpack.c.h.b16 %v214
    %v1114 = vunpack.c.l.b16 %v215
    %v1115 = vunpack.c.h.b16 %v215
    %v1116 = vunpack.c.l.b16 %v216
    %v1117 = vunpack.c.h.b16 %v216
    %v1118 = vunpack.c.l.b16 %v217
    %v1119 = vunpack.c.h.b16 %v217
    %v1120 = vunpack.c.l.b16 %v218
    %v1121 = vunpack.c.h.b16 %v218
    %v1122 = vunpack.c.l.b16 %v219
    %v1123 = vunpack.c.h.b16 %v219
    %v1124 = vunpack.c.l.b16 %v220
    %v1125 = vunpack.c.h.b16 %v220
    %v1126 = vunpack.c.l.b16 %v221
    %v1127 = vunpack.c.h.b16 %v221
    %v1128 = vunpack.c.l.b16 %v222
    %v1129 = vunpack.c.h.b16 %v222
    %v1130 = vunpack.c.l.b16 %v223
    %v1131 = vunpack.c.h.b16 %v223
    %v1132 = vunpack.c.l.b16 %v224
    %v1133 = vunpack.c.h.b16 %v224
    %v1134 = vunpack.c.l.b16 %v225
    %v1135 = vunpack.c.h.b16 %v225
    %v1136 = vunpack.c.l.b16 %v226
    %v1137 = vunpack.c.h.b16 %v226
    %v1138 = vunpack.c.l.b16 %v227
    %v1139 = vunpack.c.h.b16 %v227
    %v1140 = vunpack.c.l.b16 %v228
    %v1141 = vunpack.c.h.b16 %v228
    %v1142 = vpack.c.b16 %v1094, %v1078
    %v1143 = vpack.c.b16 %v1095, %v1079
    %v1144 = vpack.c.b16 %v1096, %v1080
    %v1145 = vpack.c.b16 %v1097, %v1081
    %v1146 = vpack.c.b16 %v1098, %v1082
    %v1147 = vpack.c.b16 %v1099, %v1083
    %v1148 = vpack.c.b16 %v1100, %v1084
    %v1149 = vpack.c.b16 %v1101, %v1085
    %v1150 = vpack.c.b16 %v1102, %v1086
    %v1151 = vpack.c.b16 %v1103, %v1087
    %v1152 = vpack.c.b16 %v1104, %v1088
    %v1153 = vpack.c.b16 %v1105, %v1089
    %v1154 = vpack.c.b16 %v1106, %v1090
    %v1155 = vpack.c.b16 %v1107, %v1091
    %v1156 = vpack.c.b16 %v1108, %v1092
    %v1157 = vpack.c.b16 %v1109, %v1093
    %v1158 = vpack.c.b16 %v1126, %v1110
    %v1159 = vpack.c.b16 %v1127, %v1111
    %v1160 = vpack.c.b16 %v1128, %v1112
    %v1161 = vpack.c.b16 %v1129, %v1113
    %v1162 = vpack.c.b16 %v1130, %v1114
    %v1163 = vpack.c.b16 %v1131, %v1115
    %v1164 = vpack.c.b16 %v1132, %v1116
    %v1165 = vpack.c.b16 %v1133, %v1117
    %v1166 = vpack.c.b16 %v1134, %v1118
    %v1167 = vpack.c.b16 %v1135, %v1119
    %v1168 = vpack.c.b16 %v1136, %v1120
    %v1169 = vpack.c.b16 %v1137, %v1121
    %v1170 = vpack.c.b16 %v1138, %v1122
    %v1171 = vpack.c.b16 %v1139, %v1123
    %v1172 = vpack.c.b16 %v1140, %v1124
    %v1173 = vpack.c.b16 %v1141, %v1125
    %v1207 = vsel %vm536, %v963, 0
    %1209 = vmatprep.subr.bf16.mxu0 %v1143
    %1210 = vmatpush1.bf16.msra.mxu0 %v1142
    %1211 = vmatprep.subr.bf16.mxu0 %v1159
    %1212 = vmatpush1.bf16.msra.mxu0 %v1158
    %1213 = vmatprep.subr.bf16.mxu0 0
    %1214 = vmatpush1.bf16.msra.mxu0 0
    %1215 = vmatprep.subr.bf16.mxu0 0
    %1216 = vmatpush1.bf16.msra.mxu0 0
    %1217 = vmatprep.subr.bf16.mxu0 0
    %1218 = vmatpush1.bf16.msra.mxu0 0
    %1219 = vmatprep.subr.bf16.mxu0 0
    %1220 = vmatpush1.bf16.msra.mxu0 0
    %1221 = vmatprep.subr.bf16.mxu0 0
    %1222 = vmatpush1.bf16.msra.mxu0 0
    %1223 = vmatprep.subr.bf16.mxu0 0
    %1224 = vmatpush1.bf16.msra.mxu0 0
    %1225 = vmatprep.subr.bf16.mxu0 0
    %1226 = vmatpush1.bf16.msra.mxu0 0
    %1227 = vmatprep.subr.bf16.mxu0 0
    %1228 = vmatpush1.bf16.msra.mxu0 0
    %1229 = vmatprep.subr.bf16.mxu0 0
    %1230 = vmatpush1.bf16.msra.mxu0 0
    %1231 = vmatprep.subr.bf16.mxu0 0
    %1232 = vmatpush1.bf16.msra.mxu0 0
    %1233 = vmatprep.subr.bf16.mxu0 0
    %1234 = vmatpush1.bf16.msra.mxu0 0
    %1235 = vmatprep.subr.bf16.mxu0 0
    %1236 = vmatpush1.bf16.msra.mxu0 0
    %1237 = vmatprep.subr.bf16.mxu0 0
    %1238 = vmatpush1.bf16.msra.mxu0 0
    %1239 = vmatprep.subr.bf16.mxu0 0
    %1240 = vmatpush1.bf16.msra.mxu0 0
    %1241 = vmatprep.mubr.bf16.mxu0 0
    %1242 = vmatmul.mubr.bf16.gmra.mrb[0].mxu0 %v1207
    %v1243 = vpop.f32.mrb[0].mxu0
    %v1244 = vadd.f32 %v969, %v1243
    %v1245 = vpop.f32.mrb[0].mxu0
    %v1246 = vadd.f32 %v973, %v1245
    %v1247 = vpop.f32.mrb[0].mxu0
    %v1248 = vadd.f32 %v969, %v1247
    %v1249 = vpop.f32.mrb[0].mxu0
    %v1250 = vadd.f32 %v973, %v1249
    %1251 = vdwg.mxu0
    %1252 = vmatprep.subr.bf16.mxu0 %v1145
    %1253 = vmatpush1.bf16.msra.mxu0 %v1144
    %1254 = vmatprep.subr.bf16.mxu0 %v1161
    %1255 = vmatpush1.bf16.msra.mxu0 %v1160
    %1256 = vmatprep.subr.bf16.mxu0 0
    %1257 = vmatpush1.bf16.msra.mxu0 0
    %1258 = vmatprep.subr.bf16.mxu0 0
    %1259 = vmatpush1.bf16.msra.mxu0 0
    %1260 = vmatprep.subr.bf16.mxu0 0
    %1261 = vmatpush1.bf16.msra.mxu0 0
    %1262 = vmatprep.subr.bf16.mxu0 0
    %1263 = vmatpush1.bf16.msra.mxu0 0
    %1264 = vmatprep.subr.bf16.mxu0 0
    %1265 = vmatpush1.bf16.msra.mxu0 0
    %1266 = vmatprep.subr.bf16.mxu0 0
    %1267 = vmatpush1.bf16.msra.mxu0 0
    %1268 = vmatprep.subr.bf16.mxu0 0
    %1269 = vmatpush1.bf16.msra.mxu0 0
    %1270 = vmatprep.subr.bf16.mxu0 0
    %1271 = vmatpush1.bf16.msra.mxu0 0
    %1272 = vmatprep.subr.bf16.mxu0 0
    %1273 = vmatpush1.bf16.msra.mxu0 0
    %1274 = vmatprep.subr.bf16.mxu0 0
    %1275 = vmatpush1.bf16.msra.mxu0 0
    %1276 = vmatprep.subr.bf16.mxu0 0
    %1277 = vmatpush1.bf16.msra.mxu0 0
    %1278 = vmatprep.subr.bf16.mxu0 0
    %1279 = vmatpush1.bf16.msra.mxu0 0
    %1280 = vmatprep.subr.bf16.mxu0 0
    %1281 = vmatpush1.bf16.msra.mxu0 0
    %1282 = vmatprep.subr.bf16.mxu0 0
    %1283 = vmatpush1.bf16.msra.mxu0 0
    %1284 = vmatprep.mubr.bf16.mxu0 0
    %1285 = vmatmul.mubr.bf16.gmra.mrb[0].mxu0 %v1207
    %v1286 = vpop.f32.mrb[0].mxu0
    %v1287 = vadd.f32 %v977, %v1286
    %v1288 = vpop.f32.mrb[0].mxu0
    %v1289 = vadd.f32 %v981, %v1288
    %v1290 = vpop.f32.mrb[0].mxu0
    %v1291 = vadd.f32 %v977, %v1290
    %v1292 = vpop.f32.mrb[0].mxu0
    %v1293 = vadd.f32 %v981, %v1292
    %1294 = vdwg.mxu0
    %1295 = vmatprep.subr.bf16.mxu0 %v1147
    %1296 = vmatpush1.bf16.msra.mxu0 %v1146
    %1297 = vmatprep.subr.bf16.mxu0 %v1163
    %1298 = vmatpush1.bf16.msra.mxu0 %v1162
    %1299 = vmatprep.subr.bf16.mxu0 0
    %1300 = vmatpush1.bf16.msra.mxu0 0
    %1301 = vmatprep.subr.bf16.mxu0 0
    %1302 = vmatpush1.bf16.msra.mxu0 0
    %1303 = vmatprep.subr.bf16.mxu0 0
    %1304 = vmatpush1.bf16.msra.mxu0 0
    %1305 = vmatprep.subr.bf16.mxu0 0
    %1306 = vmatpush1.bf16.msra.mxu0 0
    %1307 = vmatprep.subr.bf16.mxu0 0
    %1308 = vmatpush1.bf16.msra.mxu0 0
    %1309 = vmatprep.subr.bf16.mxu0 0
    %1310 = vmatpush1.bf16.msra.mxu0 0
    %1311 = vmatprep.subr.bf16.mxu0 0
    %1312 = vmatpush1.bf16.msra.mxu0 0
    %1313 = vmatprep.subr.bf16.mxu0 0
    %1314 = vmatpush1.bf16.msra.mxu0 0
    %1315 = vmatprep.subr.bf16.mxu0 0
    %1316 = vmatpush1.bf16.msra.mxu0 0
    %1317 = vmatprep.subr.bf16.mxu0 0
    %1318 = vmatpush1.bf16.msra.mxu0 0
    %1319 = vmatprep.subr.bf16.mxu0 0
    %1320 = vmatpush1.bf16.msra.mxu0 0
    %1321 = vmatprep.subr.bf16.mxu0 0
    %1322 = vmatpush1.bf16.msra.mxu0 0
    %1323 = vmatprep.subr.bf16.mxu0 0
    %1324 = vmatpush1.bf16.msra.mxu0 0
    %1325 = vmatprep.subr.bf16.mxu0 0
    %1326 = vmatpush1.bf16.msra.mxu0 0
    %1327 = vmatprep.mubr.bf16.mxu0 0
    %1328 = vmatmul.mubr.bf16.gmra.mrb[0].mxu0 %v1207
    %v1329 = vpop.f32.mrb[0].mxu0
    %v1330 = vadd.f32 %v985, %v1329
    %v1331 = vpop.f32.mrb[0].mxu0
    %v1332 = vadd.f32 %v989, %v1331
    %v1333 = vpop.f32.mrb[0].mxu0
    %v1334 = vadd.f32 %v985, %v1333
    %v1335 = vpop.f32.mrb[0].mxu0
    %v1336 = vadd.f32 %v989, %v1335
    %1337 = vdwg.mxu0
    %1338 = vmatprep.subr.bf16.mxu0 %v1149
    %1339 = vmatpush1.bf16.msra.mxu0 %v1148
    %1340 = vmatprep.subr.bf16.mxu0 %v1165
    %1341 = vmatpush1.bf16.msra.mxu0 %v1164
    %1342 = vmatprep.subr.bf16.mxu0 0
    %1343 = vmatpush1.bf16.msra.mxu0 0
    %1344 = vmatprep.subr.bf16.mxu0 0
    %1345 = vmatpush1.bf16.msra.mxu0 0
    %1346 = vmatprep.subr.bf16.mxu0 0
    %1347 = vmatpush1.bf16.msra.mxu0 0
    %1348 = vmatprep.subr.bf16.mxu0 0
    %1349 = vmatpush1.bf16.msra.mxu0 0
    %1350 = vmatprep.subr.bf16.mxu0 0
    %1351 = vmatpush1.bf16.msra.mxu0 0
    %1352 = vmatprep.subr.bf16.mxu0 0
    %1353 = vmatpush1.bf16.msra.mxu0 0
    %1354 = vmatprep.subr.bf16.mxu0 0
    %1355 = vmatpush1.bf16.msra.mxu0 0
    %1356 = vmatprep.subr.bf16.mxu0 0
    %1357 = vmatpush1.bf16.msra.mxu0 0
    %1358 = vmatprep.subr.bf16.mxu0 0
    %1359 = vmatpush1.bf16.msra.mxu0 0
    %1360 = vmatprep.subr.bf16.mxu0 0
    %1361 = vmatpush1.bf16.msra.mxu0 0
    %1362 = vmatprep.subr.bf16.mxu0 0
    %1363 = vmatpush1.bf16.msra.mxu0 0
    %1364 = vmatprep.subr.bf16.mxu0 0
    %1365 = vmatpush1.bf16.msra.mxu0 0
    %1366 = vmatprep.subr.bf16.mxu0 0
    %1367 = vmatpush1.bf16.msra.mxu0 0
    %1368 = vmatprep.subr.bf16.mxu0 0
    %1369 = vmatpush1.bf16.msra.mxu0 0
    %1370 = vmatprep.mubr.bf16.mxu0 0
    %1371 = vmatmul.mubr.bf16.gmra.mrb[0].mxu0 %v1207
    %v1372 = vpop.f32.mrb[0].mxu0
    %v1373 = vadd.f32 %v993, %v1372
    %v1374 = vpop.f32.mrb[0].mxu0
    %v1375 = vadd.f32 %v997, %v1374
    %v1376 = vpop.f32.mrb[0].mxu0
    %v1377 = vadd.f32 %v993, %v1376
    %v1378 = vpop.f32.mrb[0].mxu0
    %v1379 = vadd.f32 %v997, %v1378
    %1380 = vdwg.mxu0
    %1381 = vmatprep.subr.bf16.mxu0 %v1151
    %1382 = vmatpush1.bf16.msra.mxu0 %v1150
    %1383 = vmatprep.subr.bf16.mxu0 %v1167
    %1384 = vmatpush1.bf16.msra.mxu0 %v1166
    %1385 = vmatprep.subr.bf16.mxu0 0
    %1386 = vmatpush1.bf16.msra.mxu0 0
    %1387 = vmatprep.subr.bf16.mxu0 0
    %1388 = vmatpush1.bf16.msra.mxu0 0
    %1389 = vmatprep.subr.bf16.mxu0 0
    %1390 = vmatpush1.bf16.msra.mxu0 0
    %1391 = vmatprep.subr.bf16.mxu0 0
    %1392 = vmatpush1.bf16.msra.mxu0 0
    %1393 = vmatprep.subr.bf16.mxu0 0
    %1394 = vmatpush1.bf16.msra.mxu0 0
    %1395 = vmatprep.subr.bf16.mxu0 0
    %1396 = vmatpush1.bf16.msra.mxu0 0
    %1397 = vmatprep.subr.bf16.mxu0 0
    %1398 = vmatpush1.bf16.msra.mxu0 0
    %1399 = vmatprep.subr.bf16.mxu0 0
    %1400 = vmatpush1.bf16.msra.mxu0 0
    %1401 = vmatprep.subr.bf16.mxu0 0
    %1402 = vmatpush1.bf16.msra.mxu0 0
    %1403 = vmatprep.subr.bf16.mxu0 0
    %1404 = vmatpush1.bf16.msra.mxu0 0
    %1405 = vmatprep.subr.bf16.mxu0 0
    %1406 = vmatpush1.bf16.msra.mxu0 0
    %1407 = vmatprep.subr.bf16.mxu0 0
    %1408 = vmatpush1.bf16.msra.mxu0 0
    %1409 = vmatprep.subr.bf16.mxu0 0
    %1410 = vmatpush1.bf16.msra.mxu0 0
    %1411 = vmatprep.subr.bf16.mxu0 0
    %1412 = vmatpush1.bf16.msra.mxu0 0
    %1413 = vmatprep.mubr.bf16.mxu0 0
    %1414 = vmatmul.mubr.bf16.gmra.mrb[0].mxu0 %v1207
    %v1415 = vpop.f32.mrb[0].mxu0
    %v1416 = vadd.f32 %v1001, %v1415
    %v1417 = vpop.f32.mrb[0].mxu0
    %v1418 = vadd.f32 %v1005, %v1417
    %v1419 = vpop.f32.mrb[0].mxu0
    %v1420 = vadd.f32 %v1001, %v1419
    %v1421 = vpop.f32.mrb[0].mxu0
    %v1422 = vadd.f32 %v1005, %v1421
    %1423 = vdwg.mxu0
    %1424 = vmatprep.subr.bf16.mxu0 %v1153
    %1425 = vmatpush1.bf16.msra.mxu0 %v1152
    %1426 = vmatprep.subr.bf16.mxu0 %v1169
    %1427 = vmatpush1.bf16.msra.mxu0 %v1168
    %1428 = vmatprep.subr.bf16.mxu0 0
    %1429 = vmatpush1.bf16.msra.mxu0 0
    %1430 = vmatprep.subr.bf16.mxu0 0
    %1431 = vmatpush1.bf16.msra.mxu0 0
    %1432 = vmatprep.subr.bf16.mxu0 0
    %1433 = vmatpush1.bf16.msra.mxu0 0
    %1434 = vmatprep.subr.bf16.mxu0 0
    %1435 = vmatpush1.bf16.msra.mxu0 0
    %1436 = vmatprep.subr.bf16.mxu0 0
    %1437 = vmatpush1.bf16.msra.mxu0 0
    %1438 = vmatprep.subr.bf16.mxu0 0
    %1439 = vmatpush1.bf16.msra.mxu0 0
    %1440 = vmatprep.subr.bf16.mxu0 0
    %1441 = vmatpush1.bf16.msra.mxu0 0
    %1442 = vmatprep.subr.bf16.mxu0 0
    %1443 = vmatpush1.bf16.msra.mxu0 0
    %1444 = vmatprep.subr.bf16.mxu0 0
    %1445 = vmatpush1.bf16.msra.mxu0 0
    %1446 = vmatprep.subr.bf16.mxu0 0
    %1447 = vmatpush1.bf16.msra.mxu0 0
    %1448 = vmatprep.subr.bf16.mxu0 0
    %1449 = vmatpush1.bf16.msra.mxu0 0
    %1450 = vmatprep.subr.bf16.mxu0 0
    %1451 = vmatpush1.bf16.msra.mxu0 0
    %1452 = vmatprep.subr.bf16.mxu0 0
    %1453 = vmatpush1.bf16.msra.mxu0 0
    %1454 = vmatprep.subr.bf16.mxu0 0
    %1455 = vmatpush1.bf16.msra.mxu0 0
    %1456 = vmatprep.mubr.bf16.mxu0 0
    %1457 = vmatmul.mubr.bf16.gmra.mrb[0].mxu0 %v1207
    %v1458 = vpop.f32.mrb[0].mxu0
    %v1459 = vadd.f32 %v1009, %v1458
    %v1460 = vpop.f32.mrb[0].mxu0
    %v1461 = vadd.f32 %v1013, %v1460
    %v1462 = vpop.f32.mrb[0].mxu0
    %v1463 = vadd.f32 %v1009, %v1462
    %v1464 = vpop.f32.mrb[0].mxu0
    %v1465 = vadd.f32 %v1013, %v1464
    %1466 = vdwg.mxu0
    %1467 = vmatprep.subr.bf16.mxu0 %v1155
    %1468 = vmatpush1.bf16.msra.mxu0 %v1154
    %1469 = vmatprep.subr.bf16.mxu0 %v1171
    %1470 = vmatpush1.bf16.msra.mxu0 %v1170
    %1471 = vmatprep.subr.bf16.mxu0 0
    %1472 = vmatpush1.bf16.msra.mxu0 0
    %1473 = vmatprep.subr.bf16.mxu0 0
    %1474 = vmatpush1.bf16.msra.mxu0 0
    %1475 = vmatprep.subr.bf16.mxu0 0
    %1476 = vmatpush1.bf16.msra.mxu0 0
    %1477 = vmatprep.subr.bf16.mxu0 0
    %1478 = vmatpush1.bf16.msra.mxu0 0
    %1479 = vmatprep.subr.bf16.mxu0 0
    %1480 = vmatpush1.bf16.msra.mxu0 0
    %1481 = vmatprep.subr.bf16.mxu0 0
    %1482 = vmatpush1.bf16.msra.mxu0 0
    %1483 = vmatprep.subr.bf16.mxu0 0
    %1484 = vmatpush1.bf16.msra.mxu0 0
    %1485 = vmatprep.subr.bf16.mxu0 0
    %1486 = vmatpush1.bf16.msra.mxu0 0
    %1487 = vmatprep.subr.bf16.mxu0 0
    %1488 = vmatpush1.bf16.msra.mxu0 0
    %1489 = vmatprep.subr.bf16.mxu0 0
    %1490 = vmatpush1.bf16.msra.mxu0 0
    %1491 = vmatprep.subr.bf16.mxu0 0
    %1492 = vmatpush1.bf16.msra.mxu0 0
    %1493 = vmatprep.subr.bf16.mxu0 0
    %1494 = vmatpush1.bf16.msra.mxu0 0
    %1495 = vmatprep.subr.bf16.mxu0 0
    %1496 = vmatpush1.bf16.msra.mxu0 0
    %1497 = vmatprep.subr.bf16.mxu0 0
    %1498 = vmatpush1.bf16.msra.mxu0 0
    %1499 = vmatprep.mubr.bf16.mxu0 0
    %1500 = vmatmul.mubr.bf16.gmra.mrb[0].mxu0 %v1207
    %v1501 = vpop.f32.mrb[0].mxu0
    %v1502 = vadd.f32 %v1017, %v1501
    %v1503 = vpop.f32.mrb[0].mxu0
    %v1504 = vadd.f32 %v1021, %v1503
    %v1505 = vpop.f32.mrb[0].mxu0
    %v1506 = vadd.f32 %v1017, %v1505
    %v1507 = vpop.f32.mrb[0].mxu0
    %v1508 = vadd.f32 %v1021, %v1507
    %1509 = vdwg.mxu0
    %1510 = vmatprep.subr.bf16.mxu0 %v1157
    %1511 = vmatpush1.bf16.msra.mxu0 %v1156
    %1512 = vmatprep.subr.bf16.mxu0 %v1173
    %1513 = vmatpush1.bf16.msra.mxu0 %v1172
    %1514 = vmatprep.subr.bf16.mxu0 0
    %1515 = vmatpush1.bf16.msra.mxu0 0
    %1516 = vmatprep.subr.bf16.mxu0 0
    %1517 = vmatpush1.bf16.msra.mxu0 0
    %1518 = vmatprep.subr.bf16.mxu0 0
    %1519 = vmatpush1.bf16.msra.mxu0 0
    %1520 = vmatprep.subr.bf16.mxu0 0
    %1521 = vmatpush1.bf16.msra.mxu0 0
    %1522 = vmatprep.subr.bf16.mxu0 0
    %1523 = vmatpush1.bf16.msra.mxu0 0
    %1524 = vmatprep.subr.bf16.mxu0 0
    %1525 = vmatpush1.bf16.msra.mxu0 0
    %1526 = vmatprep.subr.bf16.mxu0 0
    %1527 = vmatpush1.bf16.msra.mxu0 0
    %1528 = vmatprep.subr.bf16.mxu0 0
    %1529 = vmatpush1.bf16.msra.mxu0 0
    %1530 = vmatprep.subr.bf16.mxu0 0
    %1531 = vmatpush1.bf16.msra.mxu0 0
    %1532 = vmatprep.subr.bf16.mxu0 0
    %1533 = vmatpush1.bf16.msra.mxu0 0
    %1534 = vmatprep.subr.bf16.mxu0 0
    %1535 = vmatpush1.bf16.msra.mxu0 0
    %1536 = vmatprep.subr.bf16.mxu0 0
    %1537 = vmatpush1.bf16.msra.mxu0 0
    %1538 = vmatprep.subr.bf16.mxu0 0
    %1539 = vmatpush1.bf16.msra.mxu0 0
    %1540 = vmatprep.subr.bf16.mxu0 0
    %1541 = vmatpush1.bf16.msra.mxu0 0
    %1542 = vmatprep.mubr.bf16.mxu0 0
    %1543 = vmatmul.mubr.bf16.gmra.mrb[0].mxu0 %v1207
    %v1544 = vpop.f32.mrb[0].mxu0
    %v1545 = vadd.f32 %v1025, %v1544
    %v1546 = vpop.f32.mrb[0].mxu0
    %v1547 = vadd.f32 %v1029, %v1546
    %v1548 = vpop.f32.mrb[0].mxu0
    %v1549 = vadd.f32 %v1025, %v1548
    %v1550 = vpop.f32.mrb[0].mxu0
    %v1551 = vadd.f32 %v1029, %v1550
    %1552 = vdwg.mxu0
    %v1553 = vmax.f32 %v1244, 0.0
    %v1554 = vmax.f32 %v1246, 0.0
    %v1555 = vmax.f32 %v1287, 0.0
    %v1556 = vmax.f32 %v1289, 0.0
    %v1557 = vmax.f32 %v1330, 0.0
    %v1558 = vmax.f32 %v1332, 0.0
    %v1559 = vmax.f32 %v1373, 0.0
    %v1560 = vmax.f32 %v1375, 0.0
    %v1561 = vmax.f32 %v1416, 0.0
    %v1562 = vmax.f32 %v1418, 0.0
    %v1563 = vmax.f32 %v1459, 0.0
    %v1564 = vmax.f32 %v1461, 0.0
    %v1565 = vmax.f32 %v1502, 0.0
    %v1566 = vmax.f32 %v1504, 0.0
    %v1567 = vmax.f32 %v1545, 0.0
    %v1568 = vmax.f32 %v1547, 0.0
    %v1569 = vmax.f32 %v1248, 0.0
    %v1570 = vmax.f32 %v1250, 0.0
    %v1571 = vmax.f32 %v1291, 0.0
    %v1572 = vmax.f32 %v1293, 0.0
    %v1573 = vmax.f32 %v1334, 0.0
    %v1574 = vmax.f32 %v1336, 0.0
    %v1575 = vmax.f32 %v1377, 0.0
    %v1576 = vmax.f32 %v1379, 0.0
    %v1577 = vmax.f32 %v1420, 0.0
    %v1578 = vmax.f32 %v1422, 0.0
    %v1579 = vmax.f32 %v1463, 0.0
    %v1580 = vmax.f32 %v1465, 0.0
    %v1581 = vmax.f32 %v1506, 0.0
    %v1582 = vmax.f32 %v1508, 0.0
    %v1583 = vmax.f32 %v1549, 0.0
    %v1584 = vmax.f32 %v1551, 0.0
    %v1585 = vpack.c.bf16 %v1569, %v1553
    %v1586 = vpack.c.bf16 %v1570, %v1554
    %v1587 = vpack.c.bf16 %v1571, %v1555
    %v1588 = vpack.c.bf16 %v1572, %v1556
    %v1589 = vpack.c.bf16 %v1573, %v1557
    %v1590 = vpack.c.bf16 %v1574, %v1558
    %v1591 = vpack.c.bf16 %v1575, %v1559
    %v1592 = vpack.c.bf16 %v1576, %v1560
    %v1593 = vpack.c.bf16 %v1577, %v1561
    %v1594 = vpack.c.bf16 %v1578, %v1562
    %v1595 = vpack.c.bf16 %v1579, %v1563
    %v1596 = vpack.c.bf16 %v1580, %v1564
    %v1597 = vpack.c.bf16 %v1581, %v1565
    %v1598 = vpack.c.bf16 %v1582, %v1566
    %v1599 = vpack.c.bf16 %v1583, %v1567
    %v1600 = vpack.c.bf16 %v1584, %v1568
    %v1601 = vlaneseq
    %v1602 = vshrl.u32 %v1601, 7
    %v1603 = vsub.s32 3, %v1602
    %v1604 = vrot.slane %v171, %v1603
    %v1861 = vunpack.c.l.b16 %v231
    %v1862 = vunpack.c.l.b16 %v232
    %v1863 = vunpack.c.l.b16 %v233
    %v1864 = vunpack.c.l.b16 %v234
    %v1865 = vunpack.c.l.b16 %v235
    %v1866 = vunpack.c.l.b16 %v236
    %v1867 = vunpack.c.l.b16 %v237
    %v1868 = vunpack.c.l.b16 %v238
    %v1869 = vunpack.c.l.b16 %v239
    %v1870 = vunpack.c.l.b16 %v240
    %v1871 = vunpack.c.l.b16 %v241
    %v1872 = vunpack.c.l.b16 %v242
    %v1873 = vunpack.c.l.b16 %v243
    %v1874 = vunpack.c.l.b16 %v244
    %v1875 = vunpack.c.l.b16 %v245
    %v1876 = vunpack.c.l.b16 %v246
    %v1877 = vunpack.c.l.b16 %v247
    %v1878 = vunpack.c.l.b16 %v248
    %v1879 = vunpack.c.l.b16 %v249
    %v1880 = vunpack.c.l.b16 %v250
    %v1881 = vunpack.c.l.b16 %v251
    %v1882 = vunpack.c.l.b16 %v252
    %v1883 = vunpack.c.l.b16 %v253
    %v1884 = vunpack.c.l.b16 %v254
    %v1885 = vunpack.c.l.b16 %v255
    %v1886 = vunpack.c.l.b16 %v256
    %v1887 = vunpack.c.l.b16 %v257
    %v1888 = vunpack.c.l.b16 %v258
    %v1889 = vunpack.c.l.b16 %v259
    %v1890 = vunpack.c.l.b16 %v260
    %v1891 = vunpack.c.l.b16 %v261
    %v1892 = vunpack.c.l.b16 %v262
    %v1893 = vunpack.c.l.b16 %v263
    %v1894 = vunpack.c.l.b16 %v264
    %v1895 = vunpack.c.l.b16 %v265
    %v1896 = vunpack.c.l.b16 %v266
    %v1897 = vunpack.c.l.b16 %v267
    %v1898 = vunpack.c.l.b16 %v268
    %v1899 = vunpack.c.l.b16 %v269
    %v1900 = vunpack.c.l.b16 %v270
    %v1901 = vunpack.c.l.b16 %v271
    %v1902 = vunpack.c.l.b16 %v272
    %v1903 = vunpack.c.l.b16 %v273
    %v1904 = vunpack.c.l.b16 %v274
    %v1905 = vunpack.c.l.b16 %v275
    %v1906 = vunpack.c.l.b16 %v276
    %v1907 = vunpack.c.l.b16 %v277
    %v1908 = vunpack.c.l.b16 %v278
    %v1909 = vunpack.c.l.b16 %v279
    %v1910 = vunpack.c.l.b16 %v280
    %v1911 = vunpack.c.l.b16 %v281
    %v1912 = vunpack.c.l.b16 %v282
    %v1913 = vunpack.c.l.b16 %v283
    %v1914 = vunpack.c.l.b16 %v284
    %v1915 = vunpack.c.l.b16 %v285
    %v1916 = vunpack.c.l.b16 %v286
    %v1917 = vunpack.c.l.b16 %v287
    %v1918 = vunpack.c.l.b16 %v288
    %v1919 = vunpack.c.l.b16 %v289
    %v1920 = vunpack.c.l.b16 %v290
    %v1921 = vunpack.c.l.b16 %v291
    %v1922 = vunpack.c.l.b16 %v292
    %v1923 = vunpack.c.l.b16 %v293
    %v1924 = vunpack.c.l.b16 %v294
    %v1925 = vunpack.c.l.b16 %v295
    %v1926 = vunpack.c.l.b16 %v296
    %v1927 = vunpack.c.l.b16 %v297
    %v1928 = vunpack.c.l.b16 %v298
    %v1929 = vunpack.c.l.b16 %v299
    %v1930 = vunpack.c.l.b16 %v300
    %v1931 = vunpack.c.l.b16 %v301
    %v1932 = vunpack.c.l.b16 %v302
    %v1933 = vunpack.c.l.b16 %v303
    %v1934 = vunpack.c.l.b16 %v304
    %v1935 = vunpack.c.l.b16 %v305
    %v1936 = vunpack.c.l.b16 %v306
    %v1937 = vunpack.c.l.b16 %v307
    %v1938 = vunpack.c.l.b16 %v308
    %v1939 = vunpack.c.l.b16 %v309
    %v1940 = vunpack.c.l.b16 %v310
    %v1941 = vunpack.c.l.b16 %v311
    %v1942 = vunpack.c.l.b16 %v312
    %v1943 = vunpack.c.l.b16 %v313
    %v1944 = vunpack.c.l.b16 %v314
    %v1945 = vunpack.c.l.b16 %v315
    %v1946 = vunpack.c.l.b16 %v316
    %v1947 = vunpack.c.l.b16 %v317
    %v1948 = vunpack.c.l.b16 %v318
    %v1949 = vunpack.c.l.b16 %v319
    %v1950 = vunpack.c.l.b16 %v320
    %v1951 = vunpack.c.l.b16 %v321
    %v1952 = vunpack.c.l.b16 %v322
    %v1953 = vunpack.c.l.b16 %v323
    %v1954 = vunpack.c.l.b16 %v324
    %v1955 = vunpack.c.l.b16 %v325
    %v1956 = vunpack.c.l.b16 %v326
    %v1957 = vunpack.c.l.b16 %v327
    %v1958 = vunpack.c.l.b16 %v328
    %v1959 = vunpack.c.l.b16 %v329
    %v1960 = vunpack.c.l.b16 %v330
    %v1961 = vunpack.c.l.b16 %v331
    %v1962 = vunpack.c.l.b16 %v332
    %v1963 = vunpack.c.l.b16 %v333
    %v1964 = vunpack.c.l.b16 %v334
    %v1965 = vunpack.c.l.b16 %v335
    %v1966 = vunpack.c.l.b16 %v336
    %v1967 = vunpack.c.l.b16 %v337
    %v1968 = vunpack.c.l.b16 %v338
    %v1969 = vunpack.c.l.b16 %v339
    %v1970 = vunpack.c.l.b16 %v340
    %v1971 = vunpack.c.l.b16 %v341
    %v1972 = vunpack.c.l.b16 %v342
    %v1973 = vunpack.c.l.b16 %v343
    %v1974 = vunpack.c.l.b16 %v344
    %v1975 = vunpack.c.l.b16 %v345
    %v1976 = vunpack.c.l.b16 %v346
    %v1977 = vunpack.c.l.b16 %v347
    %v1978 = vunpack.c.l.b16 %v348
    %v1979 = vunpack.c.l.b16 %v349
    %v1980 = vunpack.c.l.b16 %v350
    %v1981 = vunpack.c.l.b16 %v351
    %v1982 = vunpack.c.l.b16 %v352
    %v1983 = vunpack.c.l.b16 %v353
    %v1984 = vunpack.c.l.b16 %v354
    %v1985 = vunpack.c.l.b16 %v355
    %v1986 = vunpack.c.l.b16 %v356
    %v1987 = vunpack.c.l.b16 %v357
    %v1988 = vunpack.c.l.b16 %v358
    %v1989 = vunpack.c.l.b16 %v359
    %v1990 = vunpack.c.l.b16 %v360
    %v1991 = vunpack.c.l.b16 %v361
    %v1992 = vunpack.c.l.b16 %v362
    %v1993 = vunpack.c.l.b16 %v363
    %v1994 = vunpack.c.l.b16 %v364
    %v1995 = vunpack.c.l.b16 %v365
    %v1996 = vunpack.c.l.b16 %v366
    %v1997 = vunpack.c.l.b16 %v367
    %v1998 = vunpack.c.l.b16 %v368
    %v1999 = vunpack.c.l.b16 %v369
    %v2000 = vunpack.c.l.b16 %v370
    %v2001 = vunpack.c.l.b16 %v371
    %v2002 = vunpack.c.l.b16 %v372
    %v2003 = vunpack.c.l.b16 %v373
    %v2004 = vunpack.c.l.b16 %v374
    %v2005 = vunpack.c.l.b16 %v375
    %v2006 = vunpack.c.l.b16 %v376
    %v2007 = vunpack.c.l.b16 %v377
    %v2008 = vunpack.c.l.b16 %v378
    %v2009 = vunpack.c.l.b16 %v379
    %v2010 = vunpack.c.l.b16 %v380
    %v2011 = vunpack.c.l.b16 %v381
    %v2012 = vunpack.c.l.b16 %v382
    %v2013 = vunpack.c.l.b16 %v383
    %v2014 = vunpack.c.l.b16 %v384
    %v2015 = vunpack.c.l.b16 %v385
    %v2016 = vunpack.c.l.b16 %v386
    %v2017 = vunpack.c.l.b16 %v387
    %v2018 = vunpack.c.l.b16 %v388
    %v2019 = vunpack.c.l.b16 %v389
    %v2020 = vunpack.c.l.b16 %v390
    %v2021 = vunpack.c.l.b16 %v391
    %v2022 = vunpack.c.l.b16 %v392
    %v2023 = vunpack.c.l.b16 %v393
    %v2024 = vunpack.c.l.b16 %v394
    %v2025 = vunpack.c.l.b16 %v395
    %v2026 = vunpack.c.l.b16 %v396
    %v2027 = vunpack.c.l.b16 %v397
    %v2028 = vunpack.c.l.b16 %v398
    %v2029 = vunpack.c.l.b16 %v399
    %v2030 = vunpack.c.l.b16 %v400
    %v2031 = vunpack.c.l.b16 %v401
    %v2032 = vunpack.c.l.b16 %v402
    %v2033 = vunpack.c.l.b16 %v403
    %v2034 = vunpack.c.l.b16 %v404
    %v2035 = vunpack.c.l.b16 %v405
    %v2036 = vunpack.c.l.b16 %v406
    %v2037 = vunpack.c.l.b16 %v407
    %v2038 = vunpack.c.l.b16 %v408
    %v2039 = vunpack.c.l.b16 %v409
    %v2040 = vunpack.c.l.b16 %v410
    %v2041 = vunpack.c.l.b16 %v411
    %v2042 = vunpack.c.l.b16 %v412
    %v2043 = vunpack.c.l.b16 %v413
    %v2044 = vunpack.c.l.b16 %v414
    %v2045 = vunpack.c.l.b16 %v415
    %v2046 = vunpack.c.l.b16 %v416
    %v2047 = vunpack.c.l.b16 %v417
    %v2048 = vunpack.c.l.b16 %v418
    %v2049 = vunpack.c.l.b16 %v419
    %v2050 = vunpack.c.l.b16 %v420
    %v2051 = vunpack.c.l.b16 %v421
    %v2052 = vunpack.c.l.b16 %v422
    %v2053 = vunpack.c.l.b16 %v423
    %v2054 = vunpack.c.l.b16 %v424
    %v2055 = vunpack.c.l.b16 %v425
    %v2056 = vunpack.c.l.b16 %v426
    %v2057 = vunpack.c.l.b16 %v427
    %v2058 = vunpack.c.l.b16 %v428
    %v2059 = vunpack.c.l.b16 %v429
    %v2060 = vunpack.c.l.b16 %v430
    %v2061 = vunpack.c.l.b16 %v431
    %v2062 = vunpack.c.l.b16 %v432
    %v2063 = vunpack.c.l.b16 %v433
    %v2064 = vunpack.c.l.b16 %v434
    %v2065 = vunpack.c.l.b16 %v435
    %v2066 = vunpack.c.l.b16 %v436
    %v2067 = vunpack.c.l.b16 %v437
    %v2068 = vunpack.c.l.b16 %v438
    %v2069 = vunpack.c.l.b16 %v439
    %v2070 = vunpack.c.l.b16 %v440
    %v2071 = vunpack.c.l.b16 %v441
    %v2072 = vunpack.c.l.b16 %v442
    %v2073 = vunpack.c.l.b16 %v443
    %v2074 = vunpack.c.l.b16 %v444
    %v2075 = vunpack.c.l.b16 %v445
    %v2076 = vunpack.c.l.b16 %v446
    %v2077 = vunpack.c.l.b16 %v447
    %v2078 = vunpack.c.l.b16 %v448
    %v2079 = vunpack.c.l.b16 %v449
    %v2080 = vunpack.c.l.b16 %v450
    %v2081 = vunpack.c.l.b16 %v451
    %v2082 = vunpack.c.l.b16 %v452
    %v2083 = vunpack.c.l.b16 %v453
    %v2084 = vunpack.c.l.b16 %v454
    %v2085 = vunpack.c.l.b16 %v455
    %v2086 = vunpack.c.l.b16 %v456
    %v2087 = vunpack.c.l.b16 %v457
    %v2088 = vunpack.c.l.b16 %v458
    %v2089 = vunpack.c.l.b16 %v459
    %v2090 = vunpack.c.l.b16 %v460
    %v2091 = vunpack.c.l.b16 %v461
    %v2092 = vunpack.c.l.b16 %v462
    %v2093 = vunpack.c.l.b16 %v463
    %v2094 = vunpack.c.l.b16 %v464
    %v2095 = vunpack.c.l.b16 %v465
    %v2096 = vunpack.c.l.b16 %v466
    %v2097 = vunpack.c.l.b16 %v467
    %v2098 = vunpack.c.l.b16 %v468
    %v2099 = vunpack.c.l.b16 %v469
    %v2100 = vunpack.c.l.b16 %v470
    %v2101 = vunpack.c.l.b16 %v471
    %v2102 = vunpack.c.l.b16 %v472
    %v2103 = vunpack.c.l.b16 %v473
    %v2104 = vunpack.c.l.b16 %v474
    %v2105 = vunpack.c.l.b16 %v475
    %v2106 = vunpack.c.l.b16 %v476
    %v2107 = vunpack.c.l.b16 %v477
    %v2108 = vunpack.c.l.b16 %v478
    %v2109 = vunpack.c.l.b16 %v479
    %v2110 = vunpack.c.l.b16 %v480
    %v2111 = vunpack.c.l.b16 %v481
    %v2112 = vunpack.c.l.b16 %v482
    %v2113 = vunpack.c.l.b16 %v483
    %v2114 = vunpack.c.l.b16 %v484
    %v2115 = vunpack.c.l.b16 %v485
    %v2116 = vunpack.c.l.b16 %v486
    %v2117 = vpack.c.b16 %v1862, %v1861
    %v2118 = vpack.c.b16 %v1864, %v1863
    %v2119 = vpack.c.b16 %v1866, %v1865
    %v2120 = vpack.c.b16 %v1868, %v1867
    %v2121 = vpack.c.b16 %v1870, %v1869
    %v2122 = vpack.c.b16 %v1872, %v1871
    %v2123 = vpack.c.b16 %v1874, %v1873
    %v2124 = vpack.c.b16 %v1876, %v1875
    %v2125 = vpack.c.b16 %v1878, %v1877
    %v2126 = vpack.c.b16 %v1880, %v1879
    %v2127 = vpack.c.b16 %v1882, %v1881
    %v2128 = vpack.c.b16 %v1884, %v1883
    %v2129 = vpack.c.b16 %v1886, %v1885
    %v2130 = vpack.c.b16 %v1888, %v1887
    %v2131 = vpack.c.b16 %v1890, %v1889
    %v2132 = vpack.c.b16 %v1892, %v1891
    %v2133 = vpack.c.b16 %v1894, %v1893
    %v2134 = vpack.c.b16 %v1896, %v1895
    %v2135 = vpack.c.b16 %v1898, %v1897
    %v2136 = vpack.c.b16 %v1900, %v1899
    %v2137 = vpack.c.b16 %v1902, %v1901
    %v2138 = vpack.c.b16 %v1904, %v1903
    %v2139 = vpack.c.b16 %v1906, %v1905
    %v2140 = vpack.c.b16 %v1908, %v1907
    %v2141 = vpack.c.b16 %v1910, %v1909
    %v2142 = vpack.c.b16 %v1912, %v1911
    %v2143 = vpack.c.b16 %v1914, %v1913
    %v2144 = vpack.c.b16 %v1916, %v1915
    %v2145 = vpack.c.b16 %v1918, %v1917
    %v2146 = vpack.c.b16 %v1920, %v1919
    %v2147 = vpack.c.b16 %v1922, %v1921
    %v2148 = vpack.c.b16 %v1924, %v1923
    %v2149 = vpack.c.b16 %v1926, %v1925
    %v2150 = vpack.c.b16 %v1928, %v1927
    %v2151 = vpack.c.b16 %v1930, %v1929
    %v2152 = vpack.c.b16 %v1932, %v1931
    %v2153 = vpack.c.b16 %v1934, %v1933
    %v2154 = vpack.c.b16 %v1936, %v1935
    %v2155 = vpack.c.b16 %v1938, %v1937
    %v2156 = vpack.c.b16 %v1940, %v1939
    %v2157 = vpack.c.b16 %v1942, %v1941
    %v2158 = vpack.c.b16 %v1944, %v1943
    %v2159 = vpack.c.b16 %v1946, %v1945
    %v2160 = vpack.c.b16 %v1948, %v1947
    %v2161 = vpack.c.b16 %v1950, %v1949
    %v2162 = vpack.c.b16 %v1952, %v1951
    %v2163 = vpack.c.b16 %v1954, %v1953
    %v2164 = vpack.c.b16 %v1956, %v1955
    %v2165 = vpack.c.b16 %v1958, %v1957
    %v2166 = vpack.c.b16 %v1960, %v1959
    %v2167 = vpack.c.b16 %v1962, %v1961
    %v2168 = vpack.c.b16 %v1964, %v1963
    %v2169 = vpack.c.b16 %v1966, %v1965
    %v2170 = vpack.c.b16 %v1968, %v1967
    %v2171 = vpack.c.b16 %v1970, %v1969
    %v2172 = vpack.c.b16 %v1972, %v1971
    %v2173 = vpack.c.b16 %v1974, %v1973
    %v2174 = vpack.c.b16 %v1976, %v1975
    %v2175 = vpack.c.b16 %v1978, %v1977
    %v2176 = vpack.c.b16 %v1980, %v1979
    %v2177 = vpack.c.b16 %v1982, %v1981
    %v2178 = vpack.c.b16 %v1984, %v1983
    %v2179 = vpack.c.b16 %v1986, %v1985
    %v2180 = vpack.c.b16 %v1988, %v1987
    %v2181 = vpack.c.b16 %v1990, %v1989
    %v2182 = vpack.c.b16 %v1992, %v1991
    %v2183 = vpack.c.b16 %v1994, %v1993
    %v2184 = vpack.c.b16 %v1996, %v1995
    %v2185 = vpack.c.b16 %v1998, %v1997
    %v2186 = vpack.c.b16 %v2000, %v1999
    %v2187 = vpack.c.b16 %v2002, %v2001
    %v2188 = vpack.c.b16 %v2004, %v2003
    %v2189 = vpack.c.b16 %v2006, %v2005
    %v2190 = vpack.c.b16 %v2008, %v2007
    %v2191 = vpack.c.b16 %v2010, %v2009
    %v2192 = vpack.c.b16 %v2012, %v2011
    %v2193 = vpack.c.b16 %v2014, %v2013
    %v2194 = vpack.c.b16 %v2016, %v2015
    %v2195 = vpack.c.b16 %v2018, %v2017
    %v2196 = vpack.c.b16 %v2020, %v2019
    %v2197 = vpack.c.b16 %v2022, %v2021
    %v2198 = vpack.c.b16 %v2024, %v2023
    %v2199 = vpack.c.b16 %v2026, %v2025
    %v2200 = vpack.c.b16 %v2028, %v2027
    %v2201 = vpack.c.b16 %v2030, %v2029
    %v2202 = vpack.c.b16 %v2032, %v2031
    %v2203 = vpack.c.b16 %v2034, %v2033
    %v2204 = vpack.c.b16 %v2036, %v2035
    %v2205 = vpack.c.b16 %v2038, %v2037
    %v2206 = vpack.c.b16 %v2040, %v2039
    %v2207 = vpack.c.b16 %v2042, %v2041
    %v2208 = vpack.c.b16 %v2044, %v2043
    %v2209 = vpack.c.b16 %v2046, %v2045
    %v2210 = vpack.c.b16 %v2048, %v2047
    %v2211 = vpack.c.b16 %v2050, %v2049
    %v2212 = vpack.c.b16 %v2052, %v2051
    %v2213 = vpack.c.b16 %v2054, %v2053
    %v2214 = vpack.c.b16 %v2056, %v2055
    %v2215 = vpack.c.b16 %v2058, %v2057
    %v2216 = vpack.c.b16 %v2060, %v2059
    %v2217 = vpack.c.b16 %v2062, %v2061
    %v2218 = vpack.c.b16 %v2064, %v2063
    %v2219 = vpack.c.b16 %v2066, %v2065
    %v2220 = vpack.c.b16 %v2068, %v2067
    %v2221 = vpack.c.b16 %v2070, %v2069
    %v2222 = vpack.c.b16 %v2072, %v2071
    %v2223 = vpack.c.b16 %v2074, %v2073
    %v2224 = vpack.c.b16 %v2076, %v2075
    %v2225 = vpack.c.b16 %v2078, %v2077
    %v2226 = vpack.c.b16 %v2080, %v2079
    %v2227 = vpack.c.b16 %v2082, %v2081
    %v2228 = vpack.c.b16 %v2084, %v2083
    %v2229 = vpack.c.b16 %v2086, %v2085
    %v2230 = vpack.c.b16 %v2088, %v2087
    %v2231 = vpack.c.b16 %v2090, %v2089
    %v2232 = vpack.c.b16 %v2092, %v2091
    %v2233 = vpack.c.b16 %v2094, %v2093
    %v2234 = vpack.c.b16 %v2096, %v2095
    %v2235 = vpack.c.b16 %v2098, %v2097
    %v2236 = vpack.c.b16 %v2100, %v2099
    %v2237 = vpack.c.b16 %v2102, %v2101
    %v2238 = vpack.c.b16 %v2104, %v2103
    %v2239 = vpack.c.b16 %v2106, %v2105
    %v2240 = vpack.c.b16 %v2108, %v2107
    %v2241 = vpack.c.b16 %v2110, %v2109
    %v2242 = vpack.c.b16 %v2112, %v2111
    %v2243 = vpack.c.b16 %v2114, %v2113
    %v2244 = vpack.c.b16 %v2116, %v2115
    %2373 = vmatprep.subr.bf16.mxu0 0
    %2374 = vmatpush1.bf16.msra.mxu0 %v2117
    %2375 = vmatprep.subr.bf16.mxu0 0
    %2376 = vmatpush1.bf16.msra.mxu0 %v2118
    %2377 = vmatprep.subr.bf16.mxu0 0
    %2378 = vmatpush1.bf16.msra.mxu0 %v2119
    %2379 = vmatprep.subr.bf16.mxu0 0
    %2380 = vmatpush1.bf16.msra.mxu0 %v2120
    %2381 = vmatprep.subr.bf16.mxu0 0
    %2382 = vmatpush1.bf16.msra.mxu0 %v2121
    %2383 = vmatprep.subr.bf16.mxu0 0
    %2384 = vmatpush1.bf16.msra.mxu0 %v2122
    %2385 = vmatprep.subr.bf16.mxu0 0
    %2386 = vmatpush1.bf16.msra.mxu0 %v2123
    %2387 = vmatprep.subr.bf16.mxu0 0
    %2388 = vmatpush1.bf16.msra.mxu0 %v2124
    %2389 = vmatprep.subr.bf16.mxu0 0
    %2390 = vmatpush1.bf16.msra.mxu0 %v2125
    %2391 = vmatprep.subr.bf16.mxu0 0
    %2392 = vmatpush1.bf16.msra.mxu0 %v2126
    %2393 = vmatprep.subr.bf16.mxu0 0
    %2394 = vmatpush1.bf16.msra.mxu0 %v2127
    %2395 = vmatprep.subr.bf16.mxu0 0
    %2396 = vmatpush1.bf16.msra.mxu0 %v2128
    %2397 = vmatprep.subr.bf16.mxu0 0
    %2398 = vmatpush1.bf16.msra.mxu0 %v2129
    %2399 = vmatprep.subr.bf16.mxu0 0
    %2400 = vmatpush1.bf16.msra.mxu0 %v2130
    %2401 = vmatprep.subr.bf16.mxu0 0
    %2402 = vmatpush1.bf16.msra.mxu0 %v2131
    %2403 = vmatprep.subr.bf16.mxu0 0
    %2404 = vmatpush1.bf16.msra.mxu0 %v2132
    %2405 = vmatprep.mubr.bf16.mxu0 %v1586
    %2406 = vmatmul.mubr.bf16.gmra.mrb[0].mxu0 %v1585
    %v2407 = vpop.f32.mrb[0].mxu0
    %v2408 = vadd.f32 %v1604, %v2407
    %v2409 = vpop.f32.mrb[0].mxu0
    %v2410 = vpop.f32.mrb[0].mxu0
    %v2411 = vadd.f32 %v1604, %v2410
    %v2412 = vpop.f32.mrb[0].mxu0
    %2413 = vdwg.mxu0
    %2414 = vmatprep.subr.bf16.mxu0 0
    %2415 = vmatpush1.bf16.msra.mxu0 %v2133
    %2416 = vmatprep.subr.bf16.mxu0 0
    %2417 = vmatpush1.bf16.msra.mxu0 %v2134
    %2418 = vmatprep.subr.bf16.mxu0 0
    %2419 = vmatpush1.bf16.msra.mxu0 %v2135
    %2420 = vmatprep.subr.bf16.mxu0 0
    %2421 = vmatpush1.bf16.msra.mxu0 %v2136
    %2422 = vmatprep.subr.bf16.mxu0 0
    %2423 = vmatpush1.bf16.msra.mxu0 %v2137
    %2424 = vmatprep.subr.bf16.mxu0 0
    %2425 = vmatpush1.bf16.msra.mxu0 %v2138
    %2426 = vmatprep.subr.bf16.mxu0 0
    %2427 = vmatpush1.bf16.msra.mxu0 %v2139
    %2428 = vmatprep.subr.bf16.mxu0 0
    %2429 = vmatpush1.bf16.msra.mxu0 %v2140
    %2430 = vmatprep.subr.bf16.mxu0 0
    %2431 = vmatpush1.bf16.msra.mxu0 %v2141
    %2432 = vmatprep.subr.bf16.mxu0 0
    %2433 = vmatpush1.bf16.msra.mxu0 %v2142
    %2434 = vmatprep.subr.bf16.mxu0 0
    %2435 = vmatpush1.bf16.msra.mxu0 %v2143
    %2436 = vmatprep.subr.bf16.mxu0 0
    %2437 = vmatpush1.bf16.msra.mxu0 %v2144
    %2438 = vmatprep.subr.bf16.mxu0 0
    %2439 = vmatpush1.bf16.msra.mxu0 %v2145
    %2440 = vmatprep.subr.bf16.mxu0 0
    %2441 = vmatpush1.bf16.msra.mxu0 %v2146
    %2442 = vmatprep.subr.bf16.mxu0 0
    %2443 = vmatpush1.bf16.msra.mxu0 %v2147
    %2444 = vmatprep.subr.bf16.mxu0 0
    %2445 = vmatpush1.bf16.msra.mxu0 %v2148
    %2446 = vmatprep.mubr.bf16.mxu0 %v1588
    %2447 = vmatmul.mubr.bf16.gmra.mrb[0].mxu0 %v1587
    %v2448 = vpop.f32.mrb[0].mxu0
    %v2449 = vadd.f32 %v2408, %v2448
    %v2450 = vpop.f32.mrb[0].mxu0
    %v2451 = vpop.f32.mrb[0].mxu0
    %v2452 = vadd.f32 %v2411, %v2451
    %v2453 = vpop.f32.mrb[0].mxu0
    %2454 = vdwg.mxu0
    %2455 = vmatprep.subr.bf16.mxu0 0
    %2456 = vmatpush1.bf16.msra.mxu0 %v2149
    %2457 = vmatprep.subr.bf16.mxu0 0
    %2458 = vmatpush1.bf16.msra.mxu0 %v2150
    %2459 = vmatprep.subr.bf16.mxu0 0
    %2460 = vmatpush1.bf16.msra.mxu0 %v2151
    %2461 = vmatprep.subr.bf16.mxu0 0
    %2462 = vmatpush1.bf16.msra.mxu0 %v2152
    %2463 = vmatprep.subr.bf16.mxu0 0
    %2464 = vmatpush1.bf16.msra.mxu0 %v2153
    %2465 = vmatprep.subr.bf16.mxu0 0
    %2466 = vmatpush1.bf16.msra.mxu0 %v2154
    %2467 = vmatprep.subr.bf16.mxu0 0
    %2468 = vmatpush1.bf16.msra.mxu0 %v2155
    %2469 = vmatprep.subr.bf16.mxu0 0
    %2470 = vmatpush1.bf16.msra.mxu0 %v2156
    %2471 = vmatprep.subr.bf16.mxu0 0
    %2472 = vmatpush1.bf16.msra.mxu0 %v2157
    %2473 = vmatprep.subr.bf16.mxu0 0
    %2474 = vmatpush1.bf16.msra.mxu0 %v2158
    %2475 = vmatprep.subr.bf16.mxu0 0
    %2476 = vmatpush1.bf16.msra.mxu0 %v2159
    %2477 = vmatprep.subr.bf16.mxu0 0
    %2478 = vmatpush1.bf16.msra.mxu0 %v2160
    %2479 = vmatprep.subr.bf16.mxu0 0
    %2480 = vmatpush1.bf16.msra.mxu0 %v2161
    %2481 = vmatprep.subr.bf16.mxu0 0
    %2482 = vmatpush1.bf16.msra.mxu0 %v2162
    %2483 = vmatprep.subr.bf16.mxu0 0
    %2484 = vmatpush1.bf16.msra.mxu0 %v2163
    %2485 = vmatprep.subr.bf16.mxu0 0
    %2486 = vmatpush1.bf16.msra.mxu0 %v2164
    %2487 = vmatprep.mubr.bf16.mxu0 %v1590
    %2488 = vmatmul.mubr.bf16.gmra.mrb[0].mxu0 %v1589
    %v2489 = vpop.f32.mrb[0].mxu0
    %v2490 = vadd.f32 %v2449, %v2489
    %v2491 = vpop.f32.mrb[0].mxu0
    %v2492 = vpop.f32.mrb[0].mxu0
    %v2493 = vadd.f32 %v2452, %v2492
    %v2494 = vpop.f32.mrb[0].mxu0
    %2495 = vdwg.mxu0
    %2496 = vmatprep.subr.bf16.mxu0 0
    %2497 = vmatpush1.bf16.msra.mxu0 %v2165
    %2498 = vmatprep.subr.bf16.mxu0 0
    %2499 = vmatpush1.bf16.msra.mxu0 %v2166
    %2500 = vmatprep.subr.bf16.mxu0 0
    %2501 = vmatpush1.bf16.msra.mxu0 %v2167
    %2502 = vmatprep.subr.bf16.mxu0 0
    %2503 = vmatpush1.bf16.msra.mxu0 %v2168
    %2504 = vmatprep.subr.bf16.mxu0 0
    %2505 = vmatpush1.bf16.msra.mxu0 %v2169
    %2506 = vmatprep.subr.bf16.mxu0 0
    %2507 = vmatpush1.bf16.msra.mxu0 %v2170
    %2508 = vmatprep.subr.bf16.mxu0 0
    %2509 = vmatpush1.bf16.msra.mxu0 %v2171
    %2510 = vmatprep.subr.bf16.mxu0 0
    %2511 = vmatpush1.bf16.msra.mxu0 %v2172
    %2512 = vmatprep.subr.bf16.mxu0 0
    %2513 = vmatpush1.bf16.msra.mxu0 %v2173
    %2514 = vmatprep.subr.bf16.mxu0 0
    %2515 = vmatpush1.bf16.msra.mxu0 %v2174
    %2516 = vmatprep.subr.bf16.mxu0 0
    %2517 = vmatpush1.bf16.msra.mxu0 %v2175
    %2518 = vmatprep.subr.bf16.mxu0 0
    %2519 = vmatpush1.bf16.msra.mxu0 %v2176
    %2520 = vmatprep.subr.bf16.mxu0 0
    %2521 = vmatpush1.bf16.msra.mxu0 %v2177
    %2522 = vmatprep.subr.bf16.mxu0 0
    %2523 = vmatpush1.bf16.msra.mxu0 %v2178
    %2524 = vmatprep.subr.bf16.mxu0 0
    %2525 = vmatpush1.bf16.msra.mxu0 %v2179
    %2526 = vmatprep.subr.bf16.mxu0 0
    %2527 = vmatpush1.bf16.msra.mxu0 %v2180
    %2528 = vmatprep.mubr.bf16.mxu0 %v1592
    %2529 = vmatmul.mubr.bf16.gmra.mrb[0].mxu0 %v1591
    %v2530 = vpop.f32.mrb[0].mxu0
    %v2531 = vadd.f32 %v2490, %v2530
    %v2532 = vpop.f32.mrb[0].mxu0
    %v2533 = vpop.f32.mrb[0].mxu0
    %v2534 = vadd.f32 %v2493, %v2533
    %v2535 = vpop.f32.mrb[0].mxu0
    %2536 = vdwg.mxu0
    %2537 = vmatprep.subr.bf16.mxu0 0
    %2538 = vmatpush1.bf16.msra.mxu0 %v2181
    %2539 = vmatprep.subr.bf16.mxu0 0
    %2540 = vmatpush1.bf16.msra.mxu0 %v2182
    %2541 = vmatprep.subr.bf16.mxu0 0
    %2542 = vmatpush1.bf16.msra.mxu0 %v2183
    %2543 = vmatprep.subr.bf16.mxu0 0
    %2544 = vmatpush1.bf16.msra.mxu0 %v2184
    %2545 = vmatprep.subr.bf16.mxu0 0
    %2546 = vmatpush1.bf16.msra.mxu0 %v2185
    %2547 = vmatprep.subr.bf16.mxu0 0
    %2548 = vmatpush1.bf16.msra.mxu0 %v2186
    %2549 = vmatprep.subr.bf16.mxu0 0
    %2550 = vmatpush1.bf16.msra.mxu0 %v2187
    %2551 = vmatprep.subr.bf16.mxu0 0
    %2552 = vmatpush1.bf16.msra.mxu0 %v2188
    %2553 = vmatprep.subr.bf16.mxu0 0
    %2554 = vmatpush1.bf16.msra.mxu0 %v2189
    %2555 = vmatprep.subr.bf16.mxu0 0
    %2556 = vmatpush1.bf16.msra.mxu0 %v2190
    %2557 = vmatprep.subr.bf16.mxu0 0
    %2558 = vmatpush1.bf16.msra.mxu0 %v2191
    %2559 = vmatprep.subr.bf16.mxu0 0
    %2560 = vmatpush1.bf16.msra.mxu0 %v2192
    %2561 = vmatprep.subr.bf16.mxu0 0
    %2562 = vmatpush1.bf16.msra.mxu0 %v2193
    %2563 = vmatprep.subr.bf16.mxu0 0
    %2564 = vmatpush1.bf16.msra.mxu0 %v2194
    %2565 = vmatprep.subr.bf16.mxu0 0
    %2566 = vmatpush1.bf16.msra.mxu0 %v2195
    %2567 = vmatprep.subr.bf16.mxu0 0
    %2568 = vmatpush1.bf16.msra.mxu0 %v2196
    %2569 = vmatprep.mubr.bf16.mxu0 %v1594
    %2570 = vmatmul.mubr.bf16.gmra.mrb[0].mxu0 %v1593
    %v2571 = vpop.f32.mrb[0].mxu0
    %v2572 = vadd.f32 %v2531, %v2571
    %v2573 = vpop.f32.mrb[0].mxu0
    %v2574 = vpop.f32.mrb[0].mxu0
    %v2575 = vadd.f32 %v2534, %v2574
    %v2576 = vpop.f32.mrb[0].mxu0
    %2577 = vdwg.mxu0
    %2578 = vmatprep.subr.bf16.mxu0 0
    %2579 = vmatpush1.bf16.msra.mxu0 %v2197
    %2580 = vmatprep.subr.bf16.mxu0 0
    %2581 = vmatpush1.bf16.msra.mxu0 %v2198
    %2582 = vmatprep.subr.bf16.mxu0 0
    %2583 = vmatpush1.bf16.msra.mxu0 %v2199
    %2584 = vmatprep.subr.bf16.mxu0 0
    %2585 = vmatpush1.bf16.msra.mxu0 %v2200
    %2586 = vmatprep.subr.bf16.mxu0 0
    %2587 = vmatpush1.bf16.msra.mxu0 %v2201
    %2588 = vmatprep.subr.bf16.mxu0 0
    %2589 = vmatpush1.bf16.msra.mxu0 %v2202
    %2590 = vmatprep.subr.bf16.mxu0 0
    %2591 = vmatpush1.bf16.msra.mxu0 %v2203
    %2592 = vmatprep.subr.bf16.mxu0 0
    %2593 = vmatpush1.bf16.msra.mxu0 %v2204
    %2594 = vmatprep.subr.bf16.mxu0 0
    %2595 = vmatpush1.bf16.msra.mxu0 %v2205
    %2596 = vmatprep.subr.bf16.mxu0 0
    %2597 = vmatpush1.bf16.msra.mxu0 %v2206
    %2598 = vmatprep.subr.bf16.mxu0 0
    %2599 = vmatpush1.bf16.msra.mxu0 %v2207
    %2600 = vmatprep.subr.bf16.mxu0 0
    %2601 = vmatpush1.bf16.msra.mxu0 %v2208
    %2602 = vmatprep.subr.bf16.mxu0 0
    %2603 = vmatpush1.bf16.msra.mxu0 %v2209
    %2604 = vmatprep.subr.bf16.mxu0 0
    %2605 = vmatpush1.bf16.msra.mxu0 %v2210
    %2606 = vmatprep.subr.bf16.mxu0 0
    %2607 = vmatpush1.bf16.msra.mxu0 %v2211
    %2608 = vmatprep.subr.bf16.mxu0 0
    %2609 = vmatpush1.bf16.msra.mxu0 %v2212
    %2610 = vmatprep.mubr.bf16.mxu0 %v1596
    %2611 = vmatmul.mubr.bf16.gmra.mrb[0].mxu0 %v1595
    %v2612 = vpop.f32.mrb[0].mxu0
    %v2613 = vadd.f32 %v2572, %v2612
    %v2614 = vpop.f32.mrb[0].mxu0
    %v2615 = vpop.f32.mrb[0].mxu0
    %v2616 = vadd.f32 %v2575, %v2615
    %v2617 = vpop.f32.mrb[0].mxu0
    %2618 = vdwg.mxu0
    %2619 = vmatprep.subr.bf16.mxu0 0
    %2620 = vmatpush1.bf16.msra.mxu0 %v2213
    %2621 = vmatprep.subr.bf16.mxu0 0
    %2622 = vmatpush1.bf16.msra.mxu0 %v2214
    %2623 = vmatprep.subr.bf16.mxu0 0
    %2624 = vmatpush1.bf16.msra.mxu0 %v2215
    %2625 = vmatprep.subr.bf16.mxu0 0
    %2626 = vmatpush1.bf16.msra.mxu0 %v2216
    %2627 = vmatprep.subr.bf16.mxu0 0
    %2628 = vmatpush1.bf16.msra.mxu0 %v2217
    %2629 = vmatprep.subr.bf16.mxu0 0
    %2630 = vmatpush1.bf16.msra.mxu0 %v2218
    %2631 = vmatprep.subr.bf16.mxu0 0
    %2632 = vmatpush1.bf16.msra.mxu0 %v2219
    %2633 = vmatprep.subr.bf16.mxu0 0
    %2634 = vmatpush1.bf16.msra.mxu0 %v2220
    %2635 = vmatprep.subr.bf16.mxu0 0
    %2636 = vmatpush1.bf16.msra.mxu0 %v2221
    %2637 = vmatprep.subr.bf16.mxu0 0
    %2638 = vmatpush1.bf16.msra.mxu0 %v2222
    %2639 = vmatprep.subr.bf16.mxu0 0
    %2640 = vmatpush1.bf16.msra.mxu0 %v2223
    %2641 = vmatprep.subr.bf16.mxu0 0
    %2642 = vmatpush1.bf16.msra.mxu0 %v2224
    %2643 = vmatprep.subr.bf16.mxu0 0
    %2644 = vmatpush1.bf16.msra.mxu0 %v2225
    %2645 = vmatprep.subr.bf16.mxu0 0
    %2646 = vmatpush1.bf16.msra.mxu0 %v2226
    %2647 = vmatprep.subr.bf16.mxu0 0
    %2648 = vmatpush1.bf16.msra.mxu0 %v2227
    %2649 = vmatprep.subr.bf16.mxu0 0
    %2650 = vmatpush1.bf16.msra.mxu0 %v2228
    %2651 = vmatprep.mubr.bf16.mxu0 %v1598
    %2652 = vmatmul.mubr.bf16.gmra.mrb[0].mxu0 %v1597
    %v2653 = vpop.f32.mrb[0].mxu0
    %v2654 = vadd.f32 %v2613, %v2653
    %v2655 = vpop.f32.mrb[0].mxu0
    %v2656 = vpop.f32.mrb[0].mxu0
    %v2657 = vadd.f32 %v2616, %v2656
    %v2658 = vpop.f32.mrb[0].mxu0
    %2659 = vdwg.mxu0
    %2660 = vmatprep.subr.bf16.mxu0 0
    %2661 = vmatpush1.bf16.msra.mxu0 %v2229
    %2662 = vmatprep.subr.bf16.mxu0 0
    %2663 = vmatpush1.bf16.msra.mxu0 %v2230
    %2664 = vmatprep.subr.bf16.mxu0 0
    %2665 = vmatpush1.bf16.msra.mxu0 %v2231
    %2666 = vmatprep.subr.bf16.mxu0 0
    %2667 = vmatpush1.bf16.msra.mxu0 %v2232
    %2668 = vmatprep.subr.bf16.mxu0 0
    %2669 = vmatpush1.bf16.msra.mxu0 %v2233
    %2670 = vmatprep.subr.bf16.mxu0 0
    %2671 = vmatpush1.bf16.msra.mxu0 %v2234
    %2672 = vmatprep.subr.bf16.mxu0 0
    %2673 = vmatpush1.bf16.msra.mxu0 %v2235
    %2674 = vmatprep.subr.bf16.mxu0 0
    %2675 = vmatpush1.bf16.msra.mxu0 %v2236
    %2676 = vmatprep.subr.bf16.mxu0 0
    %2677 = vmatpush1.bf16.msra.mxu0 %v2237
    %2678 = vmatprep.subr.bf16.mxu0 0
    %2679 = vmatpush1.bf16.msra.mxu0 %v2238
    %2680 = vmatprep.subr.bf16.mxu0 0
    %2681 = vmatpush1.bf16.msra.mxu0 %v2239
    %2682 = vmatprep.subr.bf16.mxu0 0
    %2683 = vmatpush1.bf16.msra.mxu0 %v2240
    %2684 = vmatprep.subr.bf16.mxu0 0
    %2685 = vmatpush1.bf16.msra.mxu0 %v2241
    %2686 = vmatprep.subr.bf16.mxu0 0
    %2687 = vmatpush1.bf16.msra.mxu0 %v2242
    %2688 = vmatprep.subr.bf16.mxu0 0
    %2689 = vmatpush1.bf16.msra.mxu0 %v2243
    %2690 = vmatprep.subr.bf16.mxu0 0
    %2691 = vmatpush1.bf16.msra.mxu0 %v2244
    %2692 = vmatprep.mubr.bf16.mxu0 %v1600
    %2693 = vmatmul.mubr.bf16.gmra.mrb[0].mxu0 %v1599
    %v2694 = vpop.f32.mrb[0].mxu0
    %v2695 = vadd.f32 %v2654, %v2694
    %v2696 = vpop.f32.mrb[0].mxu0
    %v2697 = vpop.f32.mrb[0].mxu0
    %v2698 = vadd.f32 %v2657, %v2697
    %v2699 = vpop.f32.mrb[0].mxu0
    %2700 = vdwg.mxu0
    %v2701 = vadd.f32 %v961, %v2695
    %v2702 = vadd.f32 %v962, %v2698
    %v2703 = vsel %vm536, %v2701, 0.0
    %2704 = vadd.xlane.f32.xlu0 %v2703
    %v2705 = vpop.xlane.xlu0 %2704
    %v2706 = vsel %vm536, %v2702, 0.0
    %2707 = vadd.xlane.f32.xlu0 %v2706
    %v2708 = vpop.xlane.xlu0 %2707
    %v2709 = vmul.f32 %v2705, %v930
    %v2710 = vmul.f32 %v2708, %v930
    %v2711 = vsub.f32 %v2701, %v2709
    %v2712 = vsub.f32 %v2702, %v2710
    %v2713 = vmul.f32 %v2711, %v2711
    %v2714 = vmul.f32 %v2712, %v2712
    %v2715 = vsel %vm536, %v2713, 0.0
    %2716 = vadd.xlane.f32.xlu0 %v2715
    %v2717 = vpop.xlane.xlu0 %2716
    %v2718 = vsel %vm536, %v2714, 0.0
    %2719 = vadd.xlane.f32.xlu0 %v2718
    %v2720 = vpop.xlane.xlu0 %2719
    %v2721 = vmul.f32 %v2717, %v930
    %v2722 = vmul.f32 %v2720, %v930
    %v2723 = vadd.f32 %v2721, 1e-05
    %v2724 = vadd.f32 %v2722, 1e-05
    %v2725 = vrsqrt.pop %v2723
    %v2726 = vrsqrt.pop %v2724
    %v2727 = vmul.f32 %v2711, %v2725
    %v2728 = vmul.f32 %v2712, %v2726
    %v2729 = vlaneseq
    %v2730 = vshrl.u32 %v2729, 7
    %v2731 = vsub.s32 4, %v2730
    %v2732 = vrot.slane %v171, %v2731
    %v2733 = vmul.f32 %v2727, %v2732
    %v2734 = vmul.f32 %v2728, %v2732
    %v2735 = vlaneseq
    %v2736 = vshrl.u32 %v2735, 7
    %v2737 = vsub.s32 5, %v2736
    %v2738 = vrot.slane %v171, %v2737
    %v2739 = vadd.f32 %v2733, %v2738
    %v2740 = vadd.f32 %v2734, %v2738
    %s2741 = scalar_lea.vmem %s10, 8
    %v2742 = vld [vmem:[%s2741] sm:$0x3f]
    %v2743 = vlaneseq
    %v2744 = vshrl.u32 %v2743, 7
    %v2745 = vsub.s32 0, %v2744
    %v2746 = vrot.slane %v2742, %v2745
    %v2747 = vlaneseq
    %v2748 = vshrl.u32 %v2747, 7
    %v2749 = vsub.s32 1, %v2748
    %v2750 = vrot.slane %v2742, %v2749
    %v2751 = vlaneseq
    %v2752 = vshrl.u32 %v2751, 7
    %v2753 = vsub.s32 2, %v2752
    %v2754 = vrot.slane %v2742, %v2753
    %v2755 = vlaneseq
    %v2756 = vshrl.u32 %v2755, 7
    %v2757 = vsub.s32 3, %v2756
    %v2758 = vrot.slane %v2742, %v2757
    %v2759 = vlaneseq
    %v2760 = vshrl.u32 %v2759, 7
    %v2761 = vsub.s32 4, %v2760
    %v2762 = vrot.slane %v2742, %v2761
    %v2763 = vlaneseq
    %v2764 = vshrl.u32 %v2763, 7
    %v2765 = vsub.s32 5, %v2764
    %v2766 = vrot.slane %v2742, %v2765
    %s2767 = scalar_lea.vmem %s4, 48
    %v2768 = vld [vmem:[%s2767] sm:$0xff]
    %v2769 = vld [vmem:[%s2767 + $0x8] sm:$0xf]
    %v2770 = vld [vmem:[%s2767 + $0xc] sm:$0xff]
    %v2771 = vld [vmem:[%s2767 + $0x14] sm:$0xf]
    %v2772 = vld [vmem:[%s2767 + $0x18] sm:$0xff]
    %v2773 = vld [vmem:[%s2767 + $0x20] sm:$0xf]
    %v2774 = vld [vmem:[%s2767 + $0x24] sm:$0xff]
    %v2775 = vld [vmem:[%s2767 + $0x2c] sm:$0xf]
    %s2776 = scalar_lea.vmem %s5, 3
    %v2777 = vld [vmem:[%s2776] sm:$0x7]
    %s2778 = scalar_lea.vmem %s6, 64
    %v2779 = vld [vmem:[%s2778] sm:$0xf]
    %v2780 = vld [vmem:[%s2778 + $0x4] sm:$0xf]
    %v2781 = vld [vmem:[%s2778 + $0x8] sm:$0xf]
    %v2782 = vld [vmem:[%s2778 + $0xc] sm:$0xf]
    %v2783 = vld [vmem:[%s2778 + $0x10] sm:$0xf]
    %v2784 = vld [vmem:[%s2778 + $0x14] sm:$0xf]
    %v2785 = vld [vmem:[%s2778 + $0x18] sm:$0xf]
    %v2786 = vld [vmem:[%s2778 + $0x1c] sm:$0xf]
    %v2787 = vld [vmem:[%s2778 + $0x20] sm:$0xf]
    %v2788 = vld [vmem:[%s2778 + $0x24] sm:$0xf]
    %v2789 = vld [vmem:[%s2778 + $0x28] sm:$0xf]
    %v2790 = vld [vmem:[%s2778 + $0x2c] sm:$0xf]
    %v2791 = vld [vmem:[%s2778 + $0x30] sm:$0xf]
    %v2792 = vld [vmem:[%s2778 + $0x34] sm:$0xf]
    %v2793 = vld [vmem:[%s2778 + $0x38] sm:$0xf]
    %v2794 = vld [vmem:[%s2778 + $0x3c] sm:$0xf]
    %s2795 = scalar_lea.vmem %s7, 256
    %v2796 = vld [vmem:[%s2795] sm:$0xff]
    %v2797 = vld [vmem:[%s2795 + $0x8] sm:$0xff]
    %v2798 = vld [vmem:[%s2795 + $0x10] sm:$0xff]
    %v2799 = vld [vmem:[%s2795 + $0x18] sm:$0xff]
    %v2800 = vld [vmem:[%s2795 + $0x20] sm:$0xff]
    %v2801 = vld [vmem:[%s2795 + $0x28] sm:$0xff]
    %v2802 = vld [vmem:[%s2795 + $0x30] sm:$0xff]
    %v2803 = vld [vmem:[%s2795 + $0x38] sm:$0xff]
    %v2804 = vld [vmem:[%s2795 + $0x40] sm:$0xff]
    %v2805 = vld [vmem:[%s2795 + $0x48] sm:$0xff]
    %v2806 = vld [vmem:[%s2795 + $0x50] sm:$0xff]
    %v2807 = vld [vmem:[%s2795 + $0x58] sm:$0xff]
    %v2808 = vld [vmem:[%s2795 + $0x60] sm:$0xff]
    %v2809 = vld [vmem:[%s2795 + $0x68] sm:$0xff]
    %v2810 = vld [vmem:[%s2795 + $0x70] sm:$0xff]
    %v2811 = vld [vmem:[%s2795 + $0x78] sm:$0xff]
    %v2812 = vld [vmem:[%s2795 + $0x80] sm:$0xff]
    %v2813 = vld [vmem:[%s2795 + $0x88] sm:$0xff]
    %v2814 = vld [vmem:[%s2795 + $0x90] sm:$0xff]
    %v2815 = vld [vmem:[%s2795 + $0x98] sm:$0xff]
    %v2816 = vld [vmem:[%s2795 + $0xa0] sm:$0xff]
    %v2817 = vld [vmem:[%s2795 + $0xa8] sm:$0xff]
    %v2818 = vld [vmem:[%s2795 + $0xb0] sm:$0xff]
    %v2819 = vld [vmem:[%s2795 + $0xb8] sm:$0xff]
    %v2820 = vld [vmem:[%s2795 + $0xc0] sm:$0xff]
    %v2821 = vld [vmem:[%s2795 + $0xc8] sm:$0xff]
    %v2822 = vld [vmem:[%s2795 + $0xd0] sm:$0xff]
    %v2823 = vld [vmem:[%s2795 + $0xd8] sm:$0xff]
    %v2824 = vld [vmem:[%s2795 + $0xe0] sm:$0xff]
    %v2825 = vld [vmem:[%s2795 + $0xe8] sm:$0xff]
    %v2826 = vld [vmem:[%s2795 + $0xf0] sm:$0xff]
    %v2827 = vld [vmem:[%s2795 + $0xf8] sm:$0xff]
    %s2828 = scalar_lea.vmem %s8, 16
    %v2829 = vld [vmem:[%s2828] sm:$0xff]
    %v2830 = vld [vmem:[%s2828 + $0x8] sm:$0xff]
    %s2831 = scalar_lea.vmem %s9, 1024
    %v2832 = vld [vmem:[%s2831] sm:$0xf]
    %v2833 = vld [vmem:[%s2831 + $0x4] sm:$0xf]
    %v2834 = vld [vmem:[%s2831 + $0x8] sm:$0xf]
    %v2835 = vld [vmem:[%s2831 + $0xc] sm:$0xf]
    %v2836 = vld [vmem:[%s2831 + $0x10] sm:$0xf]
    %v2837 = vld [vmem:[%s2831 + $0x14] sm:$0xf]
    %v2838 = vld [vmem:[%s2831 + $0x18] sm:$0xf]
    %v2839 = vld [vmem:[%s2831 + $0x1c] sm:$0xf]
    %v2840 = vld [vmem:[%s2831 + $0x20] sm:$0xf]
    %v2841 = vld [vmem:[%s2831 + $0x24] sm:$0xf]
    %v2842 = vld [vmem:[%s2831 + $0x28] sm:$0xf]
    %v2843 = vld [vmem:[%s2831 + $0x2c] sm:$0xf]
    %v2844 = vld [vmem:[%s2831 + $0x30] sm:$0xf]
    %v2845 = vld [vmem:[%s2831 + $0x34] sm:$0xf]
    %v2846 = vld [vmem:[%s2831 + $0x38] sm:$0xf]
    %v2847 = vld [vmem:[%s2831 + $0x3c] sm:$0xf]
    %v2848 = vld [vmem:[%s2831 + $0x40] sm:$0xf]
    %v2849 = vld [vmem:[%s2831 + $0x44] sm:$0xf]
    %v2850 = vld [vmem:[%s2831 + $0x48] sm:$0xf]
    %v2851 = vld [vmem:[%s2831 + $0x4c] sm:$0xf]
    %v2852 = vld [vmem:[%s2831 + $0x50] sm:$0xf]
    %v2853 = vld [vmem:[%s2831 + $0x54] sm:$0xf]
    %v2854 = vld [vmem:[%s2831 + $0x58] sm:$0xf]
    %v2855 = vld [vmem:[%s2831 + $0x5c] sm:$0xf]
    %v2856 = vld [vmem:[%s2831 + $0x60] sm:$0xf]
    %v2857 = vld [vmem:[%s2831 + $0x64] sm:$0xf]
    %v2858 = vld [vmem:[%s2831 + $0x68] sm:$0xf]
    %v2859 = vld [vmem:[%s2831 + $0x6c] sm:$0xf]
    %v2860 = vld [vmem:[%s2831 + $0x70] sm:$0xf]
    %v2861 = vld [vmem:[%s2831 + $0x74] sm:$0xf]
    %v2862 = vld [vmem:[%s2831 + $0x78] sm:$0xf]
    %v2863 = vld [vmem:[%s2831 + $0x7c] sm:$0xf]
    %v2864 = vld [vmem:[%s2831 + $0x80] sm:$0xf]
    %v2865 = vld [vmem:[%s2831 + $0x84] sm:$0xf]
    %v2866 = vld [vmem:[%s2831 + $0x88] sm:$0xf]
    %v2867 = vld [vmem:[%s2831 + $0x8c] sm:$0xf]
    %v2868 = vld [vmem:[%s2831 + $0x90] sm:$0xf]
    %v2869 = vld [vmem:[%s2831 + $0x94] sm:$0xf]
    %v2870 = vld [vmem:[%s2831 + $0x98] sm:$0xf]
    %v2871 = vld [vmem:[%s2831 + $0x9c] sm:$0xf]
    %v2872 = vld [vmem:[%s2831 + $0xa0] sm:$0xf]
    %v2873 = vld [vmem:[%s2831 + $0xa4] sm:$0xf]
    %v2874 = vld [vmem:[%s2831 + $0xa8] sm:$0xf]
    %v2875 = vld [vmem:[%s2831 + $0xac] sm:$0xf]
    %v2876 = vld [vmem:[%s2831 + $0xb0] sm:$0xf]
    %v2877 = vld [vmem:[%s2831 + $0xb4] sm:$0xf]
    %v2878 = vld [vmem:[%s2831 + $0xb8] sm:$0xf]
    %v2879 = vld [vmem:[%s2831 + $0xbc] sm:$0xf]
    %v2880 = vld [vmem:[%s2831 + $0xc0] sm:$0xf]
    %v2881 = vld [vmem:[%s2831 + $0xc4] sm:$0xf]
    %v2882 = vld [vmem:[%s2831 + $0xc8] sm:$0xf]
    %v2883 = vld [vmem:[%s2831 + $0xcc] sm:$0xf]
    %v2884 = vld [vmem:[%s2831 + $0xd0] sm:$0xf]
    %v2885 = vld [vmem:[%s2831 + $0xd4] sm:$0xf]
    %v2886 = vld [vmem:[%s2831 + $0xd8] sm:$0xf]
    %v2887 = vld [vmem:[%s2831 + $0xdc] sm:$0xf]
    %v2888 = vld [vmem:[%s2831 + $0xe0] sm:$0xf]
    %v2889 = vld [vmem:[%s2831 + $0xe4] sm:$0xf]
    %v2890 = vld [vmem:[%s2831 + $0xe8] sm:$0xf]
    %v2891 = vld [vmem:[%s2831 + $0xec] sm:$0xf]
    %v2892 = vld [vmem:[%s2831 + $0xf0] sm:$0xf]
    %v2893 = vld [vmem:[%s2831 + $0xf4] sm:$0xf]
    %v2894 = vld [vmem:[%s2831 + $0xf8] sm:$0xf]
    %v2895 = vld [vmem:[%s2831 + $0xfc] sm:$0xf]
    %v2896 = vld [vmem:[%s2831 + $0x100] sm:$0xf]
    %v2897 = vld [vmem:[%s2831 + $0x104] sm:$0xf]
    %v2898 = vld [vmem:[%s2831 + $0x108] sm:$0xf]
    %v2899 = vld [vmem:[%s2831 + $0x10c] sm:$0xf]
    %v2900 = vld [vmem:[%s2831 + $0x110] sm:$0xf]
    %v2901 = vld [vmem:[%s2831 + $0x114] sm:$0xf]
    %v2902 = vld [vmem:[%s2831 + $0x118] sm:$0xf]
    %v2903 = vld [vmem:[%s2831 + $0x11c] sm:$0xf]
    %v2904 = vld [vmem:[%s2831 + $0x120] sm:$0xf]
    %v2905 = vld [vmem:[%s2831 + $0x124] sm:$0xf]
    %v2906 = vld [vmem:[%s2831 + $0x128] sm:$0xf]
    %v2907 = vld [vmem:[%s2831 + $0x12c] sm:$0xf]
    %v2908 = vld [vmem:[%s2831 + $0x130] sm:$0xf]
    %v2909 = vld [vmem:[%s2831 + $0x134] sm:$0xf]
    %v2910 = vld [vmem:[%s2831 + $0x138] sm:$0xf]
    %v2911 = vld [vmem:[%s2831 + $0x13c] sm:$0xf]
    %v2912 = vld [vmem:[%s2831 + $0x140] sm:$0xf]
    %v2913 = vld [vmem:[%s2831 + $0x144] sm:$0xf]
    %v2914 = vld [vmem:[%s2831 + $0x148] sm:$0xf]
    %v2915 = vld [vmem:[%s2831 + $0x14c] sm:$0xf]
    %v2916 = vld [vmem:[%s2831 + $0x150] sm:$0xf]
    %v2917 = vld [vmem:[%s2831 + $0x154] sm:$0xf]
    %v2918 = vld [vmem:[%s2831 + $0x158] sm:$0xf]
    %v2919 = vld [vmem:[%s2831 + $0x15c] sm:$0xf]
    %v2920 = vld [vmem:[%s2831 + $0x160] sm:$0xf]
    %v2921 = vld [vmem:[%s2831 + $0x164] sm:$0xf]
    %v2922 = vld [vmem:[%s2831 + $0x168] sm:$0xf]
    %v2923 = vld [vmem:[%s2831 + $0x16c] sm:$0xf]
    %v2924 = vld [vmem:[%s2831 + $0x170] sm:$0xf]
    %v2925 = vld [vmem:[%s2831 + $0x174] sm:$0xf]
    %v2926 = vld [vmem:[%s2831 + $0x178] sm:$0xf]
    %v2927 = vld [vmem:[%s2831 + $0x17c] sm:$0xf]
    %v2928 = vld [vmem:[%s2831 + $0x180] sm:$0xf]
    %v2929 = vld [vmem:[%s2831 + $0x184] sm:$0xf]
    %v2930 = vld [vmem:[%s2831 + $0x188] sm:$0xf]
    %v2931 = vld [vmem:[%s2831 + $0x18c] sm:$0xf]
    %v2932 = vld [vmem:[%s2831 + $0x190] sm:$0xf]
    %v2933 = vld [vmem:[%s2831 + $0x194] sm:$0xf]
    %v2934 = vld [vmem:[%s2831 + $0x198] sm:$0xf]
    %v2935 = vld [vmem:[%s2831 + $0x19c] sm:$0xf]
    %v2936 = vld [vmem:[%s2831 + $0x1a0] sm:$0xf]
    %v2937 = vld [vmem:[%s2831 + $0x1a4] sm:$0xf]
    %v2938 = vld [vmem:[%s2831 + $0x1a8] sm:$0xf]
    %v2939 = vld [vmem:[%s2831 + $0x1ac] sm:$0xf]
    %v2940 = vld [vmem:[%s2831 + $0x1b0] sm:$0xf]
    %v2941 = vld [vmem:[%s2831 + $0x1b4] sm:$0xf]
    %v2942 = vld [vmem:[%s2831 + $0x1b8] sm:$0xf]
    %v2943 = vld [vmem:[%s2831 + $0x1bc] sm:$0xf]
    %v2944 = vld [vmem:[%s2831 + $0x1c0] sm:$0xf]
    %v2945 = vld [vmem:[%s2831 + $0x1c4] sm:$0xf]
    %v2946 = vld [vmem:[%s2831 + $0x1c8] sm:$0xf]
    %v2947 = vld [vmem:[%s2831 + $0x1cc] sm:$0xf]
    %v2948 = vld [vmem:[%s2831 + $0x1d0] sm:$0xf]
    %v2949 = vld [vmem:[%s2831 + $0x1d4] sm:$0xf]
    %v2950 = vld [vmem:[%s2831 + $0x1d8] sm:$0xf]
    %v2951 = vld [vmem:[%s2831 + $0x1dc] sm:$0xf]
    %v2952 = vld [vmem:[%s2831 + $0x1e0] sm:$0xf]
    %v2953 = vld [vmem:[%s2831 + $0x1e4] sm:$0xf]
    %v2954 = vld [vmem:[%s2831 + $0x1e8] sm:$0xf]
    %v2955 = vld [vmem:[%s2831 + $0x1ec] sm:$0xf]
    %v2956 = vld [vmem:[%s2831 + $0x1f0] sm:$0xf]
    %v2957 = vld [vmem:[%s2831 + $0x1f4] sm:$0xf]
    %v2958 = vld [vmem:[%s2831 + $0x1f8] sm:$0xf]
    %v2959 = vld [vmem:[%s2831 + $0x1fc] sm:$0xf]
    %v2960 = vld [vmem:[%s2831 + $0x200] sm:$0xf]
    %v2961 = vld [vmem:[%s2831 + $0x204] sm:$0xf]
    %v2962 = vld [vmem:[%s2831 + $0x208] sm:$0xf]
    %v2963 = vld [vmem:[%s2831 + $0x20c] sm:$0xf]
    %v2964 = vld [vmem:[%s2831 + $0x210] sm:$0xf]
    %v2965 = vld [vmem:[%s2831 + $0x214] sm:$0xf]
    %v2966 = vld [vmem:[%s2831 + $0x218] sm:$0xf]
    %v2967 = vld [vmem:[%s2831 + $0x21c] sm:$0xf]
    %v2968 = vld [vmem:[%s2831 + $0x220] sm:$0xf]
    %v2969 = vld [vmem:[%s2831 + $0x224] sm:$0xf]
    %v2970 = vld [vmem:[%s2831 + $0x228] sm:$0xf]
    %v2971 = vld [vmem:[%s2831 + $0x22c] sm:$0xf]
    %v2972 = vld [vmem:[%s2831 + $0x230] sm:$0xf]
    %v2973 = vld [vmem:[%s2831 + $0x234] sm:$0xf]
    %v2974 = vld [vmem:[%s2831 + $0x238] sm:$0xf]
    %v2975 = vld [vmem:[%s2831 + $0x23c] sm:$0xf]
    %v2976 = vld [vmem:[%s2831 + $0x240] sm:$0xf]
    %v2977 = vld [vmem:[%s2831 + $0x244] sm:$0xf]
    %v2978 = vld [vmem:[%s2831 + $0x248] sm:$0xf]
    %v2979 = vld [vmem:[%s2831 + $0x24c] sm:$0xf]
    %v2980 = vld [vmem:[%s2831 + $0x250] sm:$0xf]
    %v2981 = vld [vmem:[%s2831 + $0x254] sm:$0xf]
    %v2982 = vld [vmem:[%s2831 + $0x258] sm:$0xf]
    %v2983 = vld [vmem:[%s2831 + $0x25c] sm:$0xf]
    %v2984 = vld [vmem:[%s2831 + $0x260] sm:$0xf]
    %v2985 = vld [vmem:[%s2831 + $0x264] sm:$0xf]
    %v2986 = vld [vmem:[%s2831 + $0x268] sm:$0xf]
    %v2987 = vld [vmem:[%s2831 + $0x26c] sm:$0xf]
    %v2988 = vld [vmem:[%s2831 + $0x270] sm:$0xf]
    %v2989 = vld [vmem:[%s2831 + $0x274] sm:$0xf]
    %v2990 = vld [vmem:[%s2831 + $0x278] sm:$0xf]
    %v2991 = vld [vmem:[%s2831 + $0x27c] sm:$0xf]
    %v2992 = vld [vmem:[%s2831 + $0x280] sm:$0xf]
    %v2993 = vld [vmem:[%s2831 + $0x284] sm:$0xf]
    %v2994 = vld [vmem:[%s2831 + $0x288] sm:$0xf]
    %v2995 = vld [vmem:[%s2831 + $0x28c] sm:$0xf]
    %v2996 = vld [vmem:[%s2831 + $0x290] sm:$0xf]
    %v2997 = vld [vmem:[%s2831 + $0x294] sm:$0xf]
    %v2998 = vld [vmem:[%s2831 + $0x298] sm:$0xf]
    %v2999 = vld [vmem:[%s2831 + $0x29c] sm:$0xf]
    %v3000 = vld [vmem:[%s2831 + $0x2a0] sm:$0xf]
    %v3001 = vld [vmem:[%s2831 + $0x2a4] sm:$0xf]
    %v3002 = vld [vmem:[%s2831 + $0x2a8] sm:$0xf]
    %v3003 = vld [vmem:[%s2831 + $0x2ac] sm:$0xf]
    %v3004 = vld [vmem:[%s2831 + $0x2b0] sm:$0xf]
    %v3005 = vld [vmem:[%s2831 + $0x2b4] sm:$0xf]
    %v3006 = vld [vmem:[%s2831 + $0x2b8] sm:$0xf]
    %v3007 = vld [vmem:[%s2831 + $0x2bc] sm:$0xf]
    %v3008 = vld [vmem:[%s2831 + $0x2c0] sm:$0xf]
    %v3009 = vld [vmem:[%s2831 + $0x2c4] sm:$0xf]
    %v3010 = vld [vmem:[%s2831 + $0x2c8] sm:$0xf]
    %v3011 = vld [vmem:[%s2831 + $0x2cc] sm:$0xf]
    %v3012 = vld [vmem:[%s2831 + $0x2d0] sm:$0xf]
    %v3013 = vld [vmem:[%s2831 + $0x2d4] sm:$0xf]
    %v3014 = vld [vmem:[%s2831 + $0x2d8] sm:$0xf]
    %v3015 = vld [vmem:[%s2831 + $0x2dc] sm:$0xf]
    %v3016 = vld [vmem:[%s2831 + $0x2e0] sm:$0xf]
    %v3017 = vld [vmem:[%s2831 + $0x2e4] sm:$0xf]
    %v3018 = vld [vmem:[%s2831 + $0x2e8] sm:$0xf]
    %v3019 = vld [vmem:[%s2831 + $0x2ec] sm:$0xf]
    %v3020 = vld [vmem:[%s2831 + $0x2f0] sm:$0xf]
    %v3021 = vld [vmem:[%s2831 + $0x2f4] sm:$0xf]
    %v3022 = vld [vmem:[%s2831 + $0x2f8] sm:$0xf]
    %v3023 = vld [vmem:[%s2831 + $0x2fc] sm:$0xf]
    %v3024 = vld [vmem:[%s2831 + $0x300] sm:$0xf]
    %v3025 = vld [vmem:[%s2831 + $0x304] sm:$0xf]
    %v3026 = vld [vmem:[%s2831 + $0x308] sm:$0xf]
    %v3027 = vld [vmem:[%s2831 + $0x30c] sm:$0xf]
    %v3028 = vld [vmem:[%s2831 + $0x310] sm:$0xf]
    %v3029 = vld [vmem:[%s2831 + $0x314] sm:$0xf]
    %v3030 = vld [vmem:[%s2831 + $0x318] sm:$0xf]
    %v3031 = vld [vmem:[%s2831 + $0x31c] sm:$0xf]
    %v3032 = vld [vmem:[%s2831 + $0x320] sm:$0xf]
    %v3033 = vld [vmem:[%s2831 + $0x324] sm:$0xf]
    %v3034 = vld [vmem:[%s2831 + $0x328] sm:$0xf]
    %v3035 = vld [vmem:[%s2831 + $0x32c] sm:$0xf]
    %v3036 = vld [vmem:[%s2831 + $0x330] sm:$0xf]
    %v3037 = vld [vmem:[%s2831 + $0x334] sm:$0xf]
    %v3038 = vld [vmem:[%s2831 + $0x338] sm:$0xf]
    %v3039 = vld [vmem:[%s2831 + $0x33c] sm:$0xf]
    %v3040 = vld [vmem:[%s2831 + $0x340] sm:$0xf]
    %v3041 = vld [vmem:[%s2831 + $0x344] sm:$0xf]
    %v3042 = vld [vmem:[%s2831 + $0x348] sm:$0xf]
    %v3043 = vld [vmem:[%s2831 + $0x34c] sm:$0xf]
    %v3044 = vld [vmem:[%s2831 + $0x350] sm:$0xf]
    %v3045 = vld [vmem:[%s2831 + $0x354] sm:$0xf]
    %v3046 = vld [vmem:[%s2831 + $0x358] sm:$0xf]
    %v3047 = vld [vmem:[%s2831 + $0x35c] sm:$0xf]
    %v3048 = vld [vmem:[%s2831 + $0x360] sm:$0xf]
    %v3049 = vld [vmem:[%s2831 + $0x364] sm:$0xf]
    %v3050 = vld [vmem:[%s2831 + $0x368] sm:$0xf]
    %v3051 = vld [vmem:[%s2831 + $0x36c] sm:$0xf]
    %v3052 = vld [vmem:[%s2831 + $0x370] sm:$0xf]
    %v3053 = vld [vmem:[%s2831 + $0x374] sm:$0xf]
    %v3054 = vld [vmem:[%s2831 + $0x378] sm:$0xf]
    %v3055 = vld [vmem:[%s2831 + $0x37c] sm:$0xf]
    %v3056 = vld [vmem:[%s2831 + $0x380] sm:$0xf]
    %v3057 = vld [vmem:[%s2831 + $0x384] sm:$0xf]
    %v3058 = vld [vmem:[%s2831 + $0x388] sm:$0xf]
    %v3059 = vld [vmem:[%s2831 + $0x38c] sm:$0xf]
    %v3060 = vld [vmem:[%s2831 + $0x390] sm:$0xf]
    %v3061 = vld [vmem:[%s2831 + $0x394] sm:$0xf]
    %v3062 = vld [vmem:[%s2831 + $0x398] sm:$0xf]
    %v3063 = vld [vmem:[%s2831 + $0x39c] sm:$0xf]
    %v3064 = vld [vmem:[%s2831 + $0x3a0] sm:$0xf]
    %v3065 = vld [vmem:[%s2831 + $0x3a4] sm:$0xf]
    %v3066 = vld [vmem:[%s2831 + $0x3a8] sm:$0xf]
    %v3067 = vld [vmem:[%s2831 + $0x3ac] sm:$0xf]
    %v3068 = vld [vmem:[%s2831 + $0x3b0] sm:$0xf]
    %v3069 = vld [vmem:[%s2831 + $0x3b4] sm:$0xf]
    %v3070 = vld [vmem:[%s2831 + $0x3b8] sm:$0xf]
    %v3071 = vld [vmem:[%s2831 + $0x3bc] sm:$0xf]
    %v3072 = vld [vmem:[%s2831 + $0x3c0] sm:$0xf]
    %v3073 = vld [vmem:[%s2831 + $0x3c4] sm:$0xf]
    %v3074 = vld [vmem:[%s2831 + $0x3c8] sm:$0xf]
    %v3075 = vld [vmem:[%s2831 + $0x3cc] sm:$0xf]
    %v3076 = vld [vmem:[%s2831 + $0x3d0] sm:$0xf]
    %v3077 = vld [vmem:[%s2831 + $0x3d4] sm:$0xf]
    %v3078 = vld [vmem:[%s2831 + $0x3d8] sm:$0xf]
    %v3079 = vld [vmem:[%s2831 + $0x3dc] sm:$0xf]
    %v3080 = vld [vmem:[%s2831 + $0x3e0] sm:$0xf]
    %v3081 = vld [vmem:[%s2831 + $0x3e4] sm:$0xf]
    %v3082 = vld [vmem:[%s2831 + $0x3e8] sm:$0xf]
    %v3083 = vld [vmem:[%s2831 + $0x3ec] sm:$0xf]
    %v3084 = vld [vmem:[%s2831 + $0x3f0] sm:$0xf]
    %v3085 = vld [vmem:[%s2831 + $0x3f4] sm:$0xf]
    %v3086 = vld [vmem:[%s2831 + $0x3f8] sm:$0xf]
    %v3087 = vld [vmem:[%s2831 + $0x3fc] sm:$0xf]
    %v3088 = vld [vmem:[%s12] sm:$0xf]
    %v3089 = vld [vmem:[%s12 + $0x4] sm:$0xf]
    %v3090 = vld [vmem:[%s12 + $0x8] sm:$0xf]
    %v3091 = vld [vmem:[%s12 + $0xc] sm:$0xf]
    %s3092 = scalar_lea.vmem %s12, 16
    %v3093 = vld [vmem:[%s3092] sm:$0xf]
    %v3094 = vld [vmem:[%s3092 + $0x4] sm:$0xf]
    %v3095 = vld [vmem:[%s3092 + $0x8] sm:$0xf]
    %v3096 = vld [vmem:[%s3092 + $0xc] sm:$0xf]
    %v3097 = vpack.c.bf16 %v2740, %v2739
    %v3098 = vlaneseq
    %v3099 = vshrl.u32 %v3098, 7
    %v3100 = vsub.s32 0, %v3099
    %v3101 = vrot.slane %v52, %v3100
    %v3106 = vunpack.c.l.b16 %v3093
    %v3107 = vunpack.c.l.b16 %v3094
    %v3108 = vunpack.c.l.b16 %v3095
    %v3109 = vunpack.c.l.b16 %v3096
    %v3110 = vpack.c.b16 %v3107, %v3106
    %v3111 = vpack.c.b16 %v3109, %v3108
    %v3115 = vsel %vm536, %v3097, 0
    %3117 = vmatprep.subr.bf16.mxu0 0
    %3118 = vmatpush1.bf16.msra.mxu0 %v3110
    %3119 = vmatprep.subr.bf16.mxu0 0
    %3120 = vmatpush1.bf16.msra.mxu0 %v3111
    %3121 = vmatprep.subr.bf16.mxu0 0
    %3122 = vmatpush1.bf16.msra.mxu0 0
    %3123 = vmatprep.subr.bf16.mxu0 0
    %3124 = vmatpush1.bf16.msra.mxu0 0
    %3125 = vmatprep.subr.bf16.mxu0 0
    %3126 = vmatpush1.bf16.msra.mxu0 0
    %3127 = vmatprep.subr.bf16.mxu0 0
    %3128 = vmatpush1.bf16.msra.mxu0 0
    %3129 = vmatprep.subr.bf16.mxu0 0
    %3130 = vmatpush1.bf16.msra.mxu0 0
    %3131 = vmatprep.subr.bf16.mxu0 0
    %3132 = vmatpush1.bf16.msra.mxu0 0
    %3133 = vmatprep.subr.bf16.mxu0 0
    %3134 = vmatpush1.bf16.msra.mxu0 0
    %3135 = vmatprep.subr.bf16.mxu0 0
    %3136 = vmatpush1.bf16.msra.mxu0 0
    %3137 = vmatprep.subr.bf16.mxu0 0
    %3138 = vmatpush1.bf16.msra.mxu0 0
    %3139 = vmatprep.subr.bf16.mxu0 0
    %3140 = vmatpush1.bf16.msra.mxu0 0
    %3141 = vmatprep.subr.bf16.mxu0 0
    %3142 = vmatpush1.bf16.msra.mxu0 0
    %3143 = vmatprep.subr.bf16.mxu0 0
    %3144 = vmatpush1.bf16.msra.mxu0 0
    %3145 = vmatprep.subr.bf16.mxu0 0
    %3146 = vmatpush1.bf16.msra.mxu0 0
    %3147 = vmatprep.subr.bf16.mxu0 0
    %3148 = vmatpush1.bf16.msra.mxu0 0
    %3149 = vmatprep.mubr.bf16.mxu0 0
    %3150 = vmatmul.mubr.bf16.gmra.mrb[0].mxu0 %v3115
    %v3151 = vpop.f32.mrb[0].mxu0
    %v3152 = vadd.f32 %v3101, %v3151
    %v3153 = vpop.f32.mrb[0].mxu0
    %v3154 = vpop.f32.mrb[0].mxu0
    %v3155 = vadd.f32 %v3101, %v3154
    %v3156 = vpop.f32.mrb[0].mxu0
    %3157 = vdwg.mxu0
    %v3158 = vld [vmem:[%s1] sm:$0xff]
    %v3159 = vld [vmem:[%s1 + $0x8] sm:$0xff]
    %v3160 = vpack.c.bf16 %v3159, %v3158
    %v3165 = vunpack.c.l.b16 %v3088
    %v3166 = vunpack.c.l.b16 %v3089
    %v3167 = vunpack.c.l.b16 %v3090
    %v3168 = vunpack.c.l.b16 %v3091
    %v3169 = vpack.c.b16 %v3166, %v3165
    %v3170 = vpack.c.b16 %v3168, %v3167
    %v3174 = vsel %vm536, %v3160, 0
    %3176 = vmatprep.subr.bf16.mxu0 0
    %3177 = vmatpush1.bf16.msra.mxu0 %v3169
    %3178 = vmatprep.subr.bf16.mxu0 0
    %3179 = vmatpush1.bf16.msra.mxu0 %v3170
    %3180 = vmatprep.subr.bf16.mxu0 0
    %3181 = vmatpush1.bf16.msra.mxu0 0
    %3182 = vmatprep.subr.bf16.mxu0 0
    %3183 = vmatpush1.bf16.msra.mxu0 0
    %3184 = vmatprep.subr.bf16.mxu0 0
    %3185 = vmatpush1.bf16.msra.mxu0 0
    %3186 = vmatprep.subr.bf16.mxu0 0
    %3187 = vmatpush1.bf16.msra.mxu0 0
    %3188 = vmatprep.subr.bf16.mxu0 0
    %3189 = vmatpush1.bf16.msra.mxu0 0
    %3190 = vmatprep.subr.bf16.mxu0 0
    %3191 = vmatpush1.bf16.msra.mxu0 0
    %3192 = vmatprep.subr.bf16.mxu0 0
    %3193 = vmatpush1.bf16.msra.mxu0 0
    %3194 = vmatprep.subr.bf16.mxu0 0
    %3195 = vmatpush1.bf16.msra.mxu0 0
    %3196 = vmatprep.subr.bf16.mxu0 0
    %3197 = vmatpush1.bf16.msra.mxu0 0
    %3198 = vmatprep.subr.bf16.mxu0 0
    %3199 = vmatpush1.bf16.msra.mxu0 0
    %3200 = vmatprep.subr.bf16.mxu0 0
    %3201 = vmatpush1.bf16.msra.mxu0 0
    %3202 = vmatprep.subr.bf16.mxu0 0
    %3203 = vmatpush1.bf16.msra.mxu0 0
    %3204 = vmatprep.subr.bf16.mxu0 0
    %3205 = vmatpush1.bf16.msra.mxu0 0
    %3206 = vmatprep.subr.bf16.mxu0 0
    %3207 = vmatpush1.bf16.msra.mxu0 0
    %3208 = vmatprep.mubr.bf16.mxu0 0
    %3209 = vmatmul.mubr.bf16.gmra.mrb[0].mxu0 %v3174
    %v3210 = vpop.f32.mrb[0].mxu0
    %v3211 = vadd.f32 %v3152, %v3210
    %v3212 = vpop.f32.mrb[0].mxu0
    %v3213 = vpop.f32.mrb[0].mxu0
    %v3214 = vadd.f32 %v3155, %v3213
    %v3215 = vpop.f32.mrb[0].mxu0
    %3216 = vdwg.mxu0
    %v3217 = vpack.c.bf16 %v3214, %v3211
    %v3219 = vlaneseq
    %v3220 = vshrl.u32 %v3219, 7
    %v3221 = vsub.s32 0, %v3220
    %v3222 = vrot.slane %v2777, %v3221
    %v3223 = vlaneseq
    %v3224 = vshrl.u32 %v3223, 7
    %v3225 = vsub.s32 1, %v3224
    %v3226 = vrot.slane %v2777, %v3225
    %v3227 = vlaneseq
    %v3228 = vshrl.u32 %v3227, 7
    %v3229 = vsub.s32 2, %v3228
    %v3230 = vrot.slane %v2777, %v3229
    %v3242 = vunpack.c.l.b16 %v2768
    %v3243 = vunpack.c.h.b16 %v2768
    %v3244 = vunpack.c.l.b16 %v2769
    %v3245 = vunpack.c.l.b16 %v2770
    %v3246 = vunpack.c.h.b16 %v2770
    %v3247 = vunpack.c.l.b16 %v2771
    %v3248 = vunpack.c.l.b16 %v2772
    %v3249 = vunpack.c.h.b16 %v2772
    %v3250 = vunpack.c.l.b16 %v2773
    %v3251 = vunpack.c.l.b16 %v2774
    %v3252 = vunpack.c.h.b16 %v2774
    %v3253 = vunpack.c.l.b16 %v2775
    %v3254 = vpack.c.b16 %v3245, %v3242
    %v3255 = vpack.c.b16 %v3246, %v3243
    %v3256 = vpack.c.b16 %v3247, %v3244
    %v3257 = vpack.c.b16 %v3251, %v3248
    %v3258 = vpack.c.b16 %v3252, %v3249
    %v3259 = vpack.c.b16 %v3253, %v3250
    %v3267 = vsel %vm536, %v3217, 0
    %3269 = vmatprep.subr.bf16.mxu0 %v3255
    %3270 = vmatpush1.bf16.msra.mxu0 %v3254
    %3271 = vmatprep.subr.bf16.mxu0 %v3258
    %3272 = vmatpush1.bf16.msra.mxu0 %v3257
    %3273 = vmatprep.subr.bf16.mxu0 0
    %3274 = vmatpush1.bf16.msra.mxu0 0
    %3275 = vmatprep.subr.bf16.mxu0 0
    %3276 = vmatpush1.bf16.msra.mxu0 0
    %3277 = vmatprep.subr.bf16.mxu0 0
    %3278 = vmatpush1.bf16.msra.mxu0 0
    %3279 = vmatprep.subr.bf16.mxu0 0
    %3280 = vmatpush1.bf16.msra.mxu0 0
    %3281 = vmatprep.subr.bf16.mxu0 0
    %3282 = vmatpush1.bf16.msra.mxu0 0
    %3283 = vmatprep.subr.bf16.mxu0 0
    %3284 = vmatpush1.bf16.msra.mxu0 0
    %3285 = vmatprep.subr.bf16.mxu0 0
    %3286 = vmatpush1.bf16.msra.mxu0 0
    %3287 = vmatprep.subr.bf16.mxu0 0
    %3288 = vmatpush1.bf16.msra.mxu0 0
    %3289 = vmatprep.subr.bf16.mxu0 0
    %3290 = vmatpush1.bf16.msra.mxu0 0
    %3291 = vmatprep.subr.bf16.mxu0 0
    %3292 = vmatpush1.bf16.msra.mxu0 0
    %3293 = vmatprep.subr.bf16.mxu0 0
    %3294 = vmatpush1.bf16.msra.mxu0 0
    %3295 = vmatprep.subr.bf16.mxu0 0
    %3296 = vmatpush1.bf16.msra.mxu0 0
    %3297 = vmatprep.subr.bf16.mxu0 0
    %3298 = vmatpush1.bf16.msra.mxu0 0
    %3299 = vmatprep.subr.bf16.mxu0 0
    %3300 = vmatpush1.bf16.msra.mxu0 0
    %3301 = vmatprep.mubr.bf16.mxu0 0
    %3302 = vmatmul.mubr.bf16.gmra.mrb[0].mxu0 %v3267
    %v3303 = vpop.f32.mrb[0].mxu0
    %v3304 = vadd.f32 %v3222, %v3303
    %v3305 = vpop.f32.mrb[0].mxu0
    %v3306 = vadd.f32 %v3226, %v3305
    %v3307 = vpop.f32.mrb[0].mxu0
    %v3308 = vadd.f32 %v3222, %v3307
    %v3309 = vpop.f32.mrb[0].mxu0
    %v3310 = vadd.f32 %v3226, %v3309
    %3311 = vdwg.mxu0
    %3312 = vmatprep.subr.bf16.mxu0 0
    %3313 = vmatpush1.bf16.msra.mxu0 %v3256
    %3314 = vmatprep.subr.bf16.mxu0 0
    %3315 = vmatpush1.bf16.msra.mxu0 %v3259
    %3316 = vmatprep.subr.bf16.mxu0 0
    %3317 = vmatpush1.bf16.msra.mxu0 0
    %3318 = vmatprep.subr.bf16.mxu0 0
    %3319 = vmatpush1.bf16.msra.mxu0 0
    %3320 = vmatprep.subr.bf16.mxu0 0
    %3321 = vmatpush1.bf16.msra.mxu0 0
    %3322 = vmatprep.subr.bf16.mxu0 0
    %3323 = vmatpush1.bf16.msra.mxu0 0
    %3324 = vmatprep.subr.bf16.mxu0 0
    %3325 = vmatpush1.bf16.msra.mxu0 0
    %3326 = vmatprep.subr.bf16.mxu0 0
    %3327 = vmatpush1.bf16.msra.mxu0 0
    %3328 = vmatprep.subr.bf16.mxu0 0
    %3329 = vmatpush1.bf16.msra.mxu0 0
    %3330 = vmatprep.subr.bf16.mxu0 0
    %3331 = vmatpush1.bf16.msra.mxu0 0
    %3332 = vmatprep.subr.bf16.mxu0 0
    %3333 = vmatpush1.bf16.msra.mxu0 0
    %3334 = vmatprep.subr.bf16.mxu0 0
    %3335 = vmatpush1.bf16.msra.mxu0 0
    %3336 = vmatprep.subr.bf16.mxu0 0
    %3337 = vmatpush1.bf16.msra.mxu0 0
    %3338 = vmatprep.subr.bf16.mxu0 0
    %3339 = vmatpush1.bf16.msra.mxu0 0
    %3340 = vmatprep.subr.bf16.mxu0 0
    %3341 = vmatpush1.bf16.msra.mxu0 0
    %3342 = vmatprep.subr.bf16.mxu0 0
    %3343 = vmatpush1.bf16.msra.mxu0 0
    %3344 = vmatprep.mubr.bf16.mxu0 0
    %3345 = vmatmul.mubr.bf16.gmra.mrb[0].mxu0 %v3267
    %v3346 = vpop.f32.mrb[0].mxu0
    %v3347 = vadd.f32 %v3230, %v3346
    %v3348 = vpop.f32.mrb[0].mxu0
    %v3349 = vpop.f32.mrb[0].mxu0
    %v3350 = vadd.f32 %v3230, %v3349
    %v3351 = vpop.f32.mrb[0].mxu0
    %3352 = vdwg.mxu0
    %v3353 = vpack.c.bf16 %v3304, %v3304
    %v3354 = vpack.c.bf16 %v3308, %v3308
    %v3355 = vpack.c.bf16 %v3306, %v3306
    %v3356 = vpack.c.bf16 %v3310, %v3310
    %3357 = vmatprep.subr.bf16.mxu0 0
    %3358 = vmatpush1.bf16.xpose.msra.mxu0 %v3355
    %3359 = vmatprep.subr.bf16.mxu0 0
    %3360 = vmatpush1.bf16.xpose.msra.mxu0 0
    %3361 = vmatprep.subr.bf16.mxu0 0
    %3362 = vmatpush1.bf16.xpose.msra.mxu0 0
    %3363 = vmatprep.subr.bf16.mxu0 0
    %3364 = vmatpush1.bf16.xpose.msra.mxu0 0
    %3365 = vmatprep.subr.bf16.mxu0 0
    %3366 = vmatpush1.bf16.xpose.msra.mxu0 0
    %3367 = vmatprep.subr.bf16.mxu0 0
    %3368 = vmatpush1.bf16.xpose.msra.mxu0 0
    %3369 = vmatprep.subr.bf16.mxu0 0
    %3370 = vmatpush1.bf16.xpose.msra.mxu0 0
    %3371 = vmatprep.subr.bf16.mxu0 0
    %3372 = vmatpush1.bf16.xpose.msra.mxu0 0
    %3373 = vmatprep.subr.bf16.mxu0 0
    %3374 = vmatpush1.bf16.xpose.msra.mxu0 0
    %3375 = vmatprep.subr.bf16.mxu0 0
    %3376 = vmatpush1.bf16.xpose.msra.mxu0 0
    %3377 = vmatprep.subr.bf16.mxu0 0
    %3378 = vmatpush1.bf16.xpose.msra.mxu0 0
    %3379 = vmatprep.subr.bf16.mxu0 0
    %3380 = vmatpush1.bf16.xpose.msra.mxu0 0
    %3381 = vmatprep.subr.bf16.mxu0 0
    %3382 = vmatpush1.bf16.xpose.msra.mxu0 0
    %3383 = vmatprep.subr.bf16.mxu0 0
    %3384 = vmatpush1.bf16.xpose.msra.mxu0 0
    %3385 = vmatprep.subr.bf16.mxu0 0
    %3386 = vmatpush1.bf16.xpose.msra.mxu0 0
    %3387 = vmatprep.subr.bf16.mxu0 0
    %3388 = vmatpush1.bf16.xpose.msra.mxu0 0
    %3389 = vmatprep.mubr.bf16.mxu0 0
    %3390 = vmatmul.mubr.bf16.gmra.mrb[0].mxu0 %v3353
    %v3391 = vpop.f32.mrb[0].mxu0
    %v3392 = vadd.f32 0.0, %v3391
    %v3393 = vpop.f32.mrb[0].mxu0
    %v3394 = vpop.f32.mrb[0].mxu0
    %v3395 = vpop.f32.mrb[0].mxu0
    %3396 = vdwg.mxu0
    %3397 = vmatprep.subr.bf16.mxu0 0
    %3398 = vmatpush1.bf16.xpose.msra.mxu0 %v3356
    %3399 = vmatprep.subr.bf16.mxu0 0
    %3400 = vmatpush1.bf16.xpose.msra.mxu0 0
    %3401 = vmatprep.subr.bf16.mxu0 0
    %3402 = vmatpush1.bf16.xpose.msra.mxu0 0
    %3403 = vmatprep.subr.bf16.mxu0 0
    %3404 = vmatpush1.bf16.xpose.msra.mxu0 0
    %3405 = vmatprep.subr.bf16.mxu0 0
    %3406 = vmatpush1.bf16.xpose.msra.mxu0 0
    %3407 = vmatprep.subr.bf16.mxu0 0
    %3408 = vmatpush1.bf16.xpose.msra.mxu0 0
    %3409 = vmatprep.subr.bf16.mxu0 0
    %3410 = vmatpush1.bf16.xpose.msra.mxu0 0
    %3411 = vmatprep.subr.bf16.mxu0 0
    %3412 = vmatpush1.bf16.xpose.msra.mxu0 0
    %3413 = vmatprep.subr.bf16.mxu0 0
    %3414 = vmatpush1.bf16.xpose.msra.mxu0 0
    %3415 = vmatprep.subr.bf16.mxu0 0
    %3416 = vmatpush1.bf16.xpose.msra.mxu0 0
    %3417 = vmatprep.subr.bf16.mxu0 0
    %3418 = vmatpush1.bf16.xpose.msra.mxu0 0
    %3419 = vmatprep.subr.bf16.mxu0 0
    %3420 = vmatpush1.bf16.xpose.msra.mxu0 0
    %3421 = vmatprep.subr.bf16.mxu0 0
    %3422 = vmatpush1.bf16.xpose.msra.mxu0 0
    %3423 = vmatprep.subr.bf16.mxu0 0
    %3424 = vmatpush1.bf16.xpose.msra.mxu0 0
    %3425 = vmatprep.subr.bf16.mxu0 0
    %3426 = vmatpush1.bf16.xpose.msra.mxu0 0
    %3427 = vmatprep.subr.bf16.mxu0 0
    %3428 = vmatpush1.bf16.xpose.msra.mxu0 0
    %3429 = vmatprep.mubr.bf16.mxu0 0
    %3430 = vmatmul.mubr.bf16.gmra.mrb[0].mxu0 %v3354
    %v3431 = vpop.f32.mrb[0].mxu0
    %v3432 = vadd.f32 0.0, %v3431
    %v3433 = vpop.f32.mrb[0].mxu0
    %v3434 = vpop.f32.mrb[0].mxu0
    %v3435 = vpop.f32.mrb[0].mxu0
    %3436 = vdwg.mxu0
    %v3437 = vsel %vm708, %v3392, -inf
    %3438 = vmax.xlane.f32.xlu0 %v3437
    %v3439 = vpop.xlane.xlu0 %3438
    %v3440 = vsel %vm708, %v3432, -inf
    %3441 = vmax.xlane.f32.xlu0 %v3440
    %v3442 = vpop.xlane.xlu0 %3441
    %v3443 = vsub.f32 %v3392, %v3439
    %v3444 = vsub.f32 %v3432, %v3442
    %v3445 = vmul.f32 %v3443, 1.442695
    %v3446 = vpow.pop %v3445
    %v3447 = vmul.f32 %v3444, 1.442695
    %v3448 = vpow.pop %v3447
    %v3449 = vsel %vm708, %v3446, 0.0
    %3450 = vadd.xlane.f32.xlu0 %v3449
    %v3451 = vpop.xlane.xlu0 %3450
    %v3452 = vsel %vm708, %v3448, 0.0
    %3453 = vadd.xlane.f32.xlu0 %v3452
    %v3454 = vpop.xlane.xlu0 %3453
    %v3455 = vrcp.pop %v3451
    %v3456 = vrcp.pop %v3454
    %v3457 = vmul.f32 %v3446, %v3455
    %v3458 = vmul.f32 %v3448, %v3456
    %v3459 = vpack.c.bf16 %v3457, %v3457
    %v3460 = vpack.c.bf16 %v3458, %v3458
    %v3461 = vpack.c.bf16 %v3347, %v3347
    %v3462 = vpack.c.bf16 %v3350, %v3350
    %v3464 = vsel %vm708, %v3459, 0
    %v3467 = vsel %vm738, %v3461, 0
    %3469 = vmatprep.subr.bf16.mxu0 0
    %3470 = vmatpush1.bf16.msra.mxu0 %v3467
    %3471 = vmatprep.subr.bf16.mxu0 0
    %3472 = vmatpush1.bf16.msra.mxu0 0
    %3473 = vmatprep.subr.bf16.mxu0 0
    %3474 = vmatpush1.bf16.msra.mxu0 0
    %3475 = vmatprep.subr.bf16.mxu0 0
    %3476 = vmatpush1.bf16.msra.mxu0 0
    %3477 = vmatprep.subr.bf16.mxu0 0
    %3478 = vmatpush1.bf16.msra.mxu0 0
    %3479 = vmatprep.subr.bf16.mxu0 0
    %3480 = vmatpush1.bf16.msra.mxu0 0
    %3481 = vmatprep.subr.bf16.mxu0 0
    %3482 = vmatpush1.bf16.msra.mxu0 0
    %3483 = vmatprep.subr.bf16.mxu0 0
    %3484 = vmatpush1.bf16.msra.mxu0 0
    %3485 = vmatprep.subr.bf16.mxu0 0
    %3486 = vmatpush1.bf16.msra.mxu0 0
    %3487 = vmatprep.subr.bf16.mxu0 0
    %3488 = vmatpush1.bf16.msra.mxu0 0
    %3489 = vmatprep.subr.bf16.mxu0 0
    %3490 = vmatpush1.bf16.msra.mxu0 0
    %3491 = vmatprep.subr.bf16.mxu0 0
    %3492 = vmatpush1.bf16.msra.mxu0 0
    %3493 = vmatprep.subr.bf16.mxu0 0
    %3494 = vmatpush1.bf16.msra.mxu0 0
    %3495 = vmatprep.subr.bf16.mxu0 0
    %3496 = vmatpush1.bf16.msra.mxu0 0
    %3497 = vmatprep.subr.bf16.mxu0 0
    %3498 = vmatpush1.bf16.msra.mxu0 0
    %3499 = vmatprep.subr.bf16.mxu0 0
    %3500 = vmatpush1.bf16.msra.mxu0 0
    %3501 = vmatprep.mubr.bf16.mxu0 0
    %3502 = vmatmul.mubr.bf16.gmra.mrb[0].mxu0 %v3464
    %v3503 = vpop.f32.mrb[0].mxu0
    %v3504 = vadd.f32 0.0, %v3503
    %v3505 = vpop.f32.mrb[0].mxu0
    %v3506 = vpop.f32.mrb[0].mxu0
    %v3507 = vpop.f32.mrb[0].mxu0
    %3508 = vdwg.mxu0
    %v3510 = vsel %vm708, %v3460, 0
    %v3513 = vsel %vm738, %v3462, 0
    %3515 = vmatprep.subr.bf16.mxu0 0
    %3516 = vmatpush1.bf16.msra.mxu0 %v3513
    %3517 = vmatprep.subr.bf16.mxu0 0
    %3518 = vmatpush1.bf16.msra.mxu0 0
    %3519 = vmatprep.subr.bf16.mxu0 0
    %3520 = vmatpush1.bf16.msra.mxu0 0
    %3521 = vmatprep.subr.bf16.mxu0 0
    %3522 = vmatpush1.bf16.msra.mxu0 0
    %3523 = vmatprep.subr.bf16.mxu0 0
    %3524 = vmatpush1.bf16.msra.mxu0 0
    %3525 = vmatprep.subr.bf16.mxu0 0
    %3526 = vmatpush1.bf16.msra.mxu0 0
    %3527 = vmatprep.subr.bf16.mxu0 0
    %3528 = vmatpush1.bf16.msra.mxu0 0
    %3529 = vmatprep.subr.bf16.mxu0 0
    %3530 = vmatpush1.bf16.msra.mxu0 0
    %3531 = vmatprep.subr.bf16.mxu0 0
    %3532 = vmatpush1.bf16.msra.mxu0 0
    %3533 = vmatprep.subr.bf16.mxu0 0
    %3534 = vmatpush1.bf16.msra.mxu0 0
    %3535 = vmatprep.subr.bf16.mxu0 0
    %3536 = vmatpush1.bf16.msra.mxu0 0
    %3537 = vmatprep.subr.bf16.mxu0 0
    %3538 = vmatpush1.bf16.msra.mxu0 0
    %3539 = vmatprep.subr.bf16.mxu0 0
    %3540 = vmatpush1.bf16.msra.mxu0 0
    %3541 = vmatprep.subr.bf16.mxu0 0
    %3542 = vmatpush1.bf16.msra.mxu0 0
    %3543 = vmatprep.subr.bf16.mxu0 0
    %3544 = vmatpush1.bf16.msra.mxu0 0
    %3545 = vmatprep.subr.bf16.mxu0 0
    %3546 = vmatpush1.bf16.msra.mxu0 0
    %3547 = vmatprep.mubr.bf16.mxu0 0
    %3548 = vmatmul.mubr.bf16.gmra.mrb[0].mxu0 %v3510
    %v3549 = vpop.f32.mrb[0].mxu0
    %v3550 = vadd.f32 0.0, %v3549
    %v3551 = vpop.f32.mrb[0].mxu0
    %v3552 = vpop.f32.mrb[0].mxu0
    %v3553 = vpop.f32.mrb[0].mxu0
    %3554 = vdwg.mxu0
    %v3555 = vpack.c.bf16 %v3550, %v3504
    %v3572 = vunpack.c.l.b16 %v2779
    %v3573 = vunpack.c.l.b16 %v2780
    %v3574 = vunpack.c.l.b16 %v2781
    %v3575 = vunpack.c.l.b16 %v2782
    %v3576 = vunpack.c.l.b16 %v2783
    %v3577 = vunpack.c.l.b16 %v2784
    %v3578 = vunpack.c.l.b16 %v2785
    %v3579 = vunpack.c.l.b16 %v2786
    %v3580 = vunpack.c.l.b16 %v2787
    %v3581 = vunpack.c.l.b16 %v2788
    %v3582 = vunpack.c.l.b16 %v2789
    %v3583 = vunpack.c.l.b16 %v2790
    %v3584 = vunpack.c.l.b16 %v2791
    %v3585 = vunpack.c.l.b16 %v2792
    %v3586 = vunpack.c.l.b16 %v2793
    %v3587 = vunpack.c.l.b16 %v2794
    %v3588 = vpack.c.b16 %v3573, %v3572
    %v3589 = vpack.c.b16 %v3575, %v3574
    %v3590 = vpack.c.b16 %v3577, %v3576
    %v3591 = vpack.c.b16 %v3579, %v3578
    %v3592 = vpack.c.b16 %v3581, %v3580
    %v3593 = vpack.c.b16 %v3583, %v3582
    %v3594 = vpack.c.b16 %v3585, %v3584
    %v3595 = vpack.c.b16 %v3587, %v3586
    %3604 = vmatprep.subr.bf16.mxu0 0
    %3605 = vmatpush1.bf16.msra.mxu0 %v3588
    %3606 = vmatprep.subr.bf16.mxu0 0
    %3607 = vmatpush1.bf16.msra.mxu0 %v3589
    %3608 = vmatprep.subr.bf16.mxu0 0
    %3609 = vmatpush1.bf16.msra.mxu0 %v3590
    %3610 = vmatprep.subr.bf16.mxu0 0
    %3611 = vmatpush1.bf16.msra.mxu0 %v3591
    %3612 = vmatprep.subr.bf16.mxu0 0
    %3613 = vmatpush1.bf16.msra.mxu0 %v3592
    %3614 = vmatprep.subr.bf16.mxu0 0
    %3615 = vmatpush1.bf16.msra.mxu0 %v3593
    %3616 = vmatprep.subr.bf16.mxu0 0
    %3617 = vmatpush1.bf16.msra.mxu0 %v3594
    %3618 = vmatprep.subr.bf16.mxu0 0
    %3619 = vmatpush1.bf16.msra.mxu0 %v3595
    %3620 = vmatprep.subr.bf16.mxu0 0
    %3621 = vmatpush1.bf16.msra.mxu0 0
    %3622 = vmatprep.subr.bf16.mxu0 0
    %3623 = vmatpush1.bf16.msra.mxu0 0
    %3624 = vmatprep.subr.bf16.mxu0 0
    %3625 = vmatpush1.bf16.msra.mxu0 0
    %3626 = vmatprep.subr.bf16.mxu0 0
    %3627 = vmatpush1.bf16.msra.mxu0 0
    %3628 = vmatprep.subr.bf16.mxu0 0
    %3629 = vmatpush1.bf16.msra.mxu0 0
    %3630 = vmatprep.subr.bf16.mxu0 0
    %3631 = vmatpush1.bf16.msra.mxu0 0
    %3632 = vmatprep.subr.bf16.mxu0 0
    %3633 = vmatpush1.bf16.msra.mxu0 0
    %3634 = vmatprep.subr.bf16.mxu0 0
    %3635 = vmatpush1.bf16.msra.mxu0 0
    %3636 = vmatprep.mubr.bf16.mxu0 0
    %3637 = vmatmul.mubr.bf16.gmra.mrb[0].mxu0 %v3555
    %v3638 = vpop.f32.mrb[0].mxu0
    %v3639 = vadd.f32 %v2746, %v3638
    %v3640 = vpop.f32.mrb[0].mxu0
    %v3641 = vpop.f32.mrb[0].mxu0
    %v3642 = vadd.f32 %v2746, %v3641
    %v3643 = vpop.f32.mrb[0].mxu0
    %3644 = vdwg.mxu0
    %v3645 = vadd.f32 %v3211, %v3639
    %v3646 = vadd.f32 %v3214, %v3642
    %v3647 = vsel %vm536, %v3645, 0.0
    %3648 = vadd.xlane.f32.xlu0 %v3647
    %v3649 = vpop.xlane.xlu0 %3648
    %v3650 = vsel %vm536, %v3646, 0.0
    %3651 = vadd.xlane.f32.xlu0 %v3650
    %v3652 = vpop.xlane.xlu0 %3651
    %v3653 = vmul.f32 %v3649, %v930
    %v3654 = vmul.f32 %v3652, %v930
    %v3655 = vsub.f32 %v3645, %v3653
    %v3656 = vsub.f32 %v3646, %v3654
    %v3657 = vmul.f32 %v3655, %v3655
    %v3658 = vmul.f32 %v3656, %v3656
    %v3659 = vsel %vm536, %v3657, 0.0
    %3660 = vadd.xlane.f32.xlu0 %v3659
    %v3661 = vpop.xlane.xlu0 %3660
    %v3662 = vsel %vm536, %v3658, 0.0
    %3663 = vadd.xlane.f32.xlu0 %v3662
    %v3664 = vpop.xlane.xlu0 %3663
    %v3665 = vmul.f32 %v3661, %v930
    %v3666 = vmul.f32 %v3664, %v930
    %v3667 = vadd.f32 %v3665, 1e-05
    %v3668 = vadd.f32 %v3666, 1e-05
    %v3669 = vrsqrt.pop %v3667
    %v3670 = vrsqrt.pop %v3668
    %v3671 = vmul.f32 %v3655, %v3669
    %v3672 = vmul.f32 %v3656, %v3670
    %v3673 = vmul.f32 %v3671, %v2750
    %v3674 = vmul.f32 %v3672, %v2750
    %v3675 = vadd.f32 %v3673, %v2754
    %v3676 = vadd.f32 %v3674, %v2754
    %v3677 = vpack.c.bf16 %v3676, %v3675
    %v3680 = vlaneseq
    %v3681 = vshrl.u32 %v3680, 7
    %v3682 = vsub.s32 0, %v3681
    %v3683 = vrot.slane %v2829, %v3682
    %v3684 = vlaneseq
    %v3685 = vshrl.u32 %v3684, 7
    %v3686 = vsub.s32 1, %v3685
    %v3687 = vrot.slane %v2829, %v3686
    %v3688 = vlaneseq
    %v3689 = vshrl.u32 %v3688, 7
    %v3690 = vsub.s32 2, %v3689
    %v3691 = vrot.slane %v2829, %v3690
    %v3692 = vlaneseq
    %v3693 = vshrl.u32 %v3692, 7
    %v3694 = vsub.s32 3, %v3693
    %v3695 = vrot.slane %v2829, %v3694
    %v3696 = vlaneseq
    %v3697 = vshrl.u32 %v3696, 7
    %v3698 = vsub.s32 4, %v3697
    %v3699 = vrot.slane %v2829, %v3698
    %v3700 = vlaneseq
    %v3701 = vshrl.u32 %v3700, 7
    %v3702 = vsub.s32 5, %v3701
    %v3703 = vrot.slane %v2829, %v3702
    %v3704 = vlaneseq
    %v3705 = vshrl.u32 %v3704, 7
    %v3706 = vsub.s32 6, %v3705
    %v3707 = vrot.slane %v2829, %v3706
    %v3708 = vlaneseq
    %v3709 = vshrl.u32 %v3708, 7
    %v3710 = vsub.s32 7, %v3709
    %v3711 = vrot.slane %v2829, %v3710
    %v3712 = vlaneseq
    %v3713 = vshrl.u32 %v3712, 7
    %v3714 = vsub.s32 0, %v3713
    %v3715 = vrot.slane %v2830, %v3714
    %v3716 = vlaneseq
    %v3717 = vshrl.u32 %v3716, 7
    %v3718 = vsub.s32 1, %v3717
    %v3719 = vrot.slane %v2830, %v3718
    %v3720 = vlaneseq
    %v3721 = vshrl.u32 %v3720, 7
    %v3722 = vsub.s32 2, %v3721
    %v3723 = vrot.slane %v2830, %v3722
    %v3724 = vlaneseq
    %v3725 = vshrl.u32 %v3724, 7
    %v3726 = vsub.s32 3, %v3725
    %v3727 = vrot.slane %v2830, %v3726
    %v3728 = vlaneseq
    %v3729 = vshrl.u32 %v3728, 7
    %v3730 = vsub.s32 4, %v3729
    %v3731 = vrot.slane %v2830, %v3730
    %v3732 = vlaneseq
    %v3733 = vshrl.u32 %v3732, 7
    %v3734 = vsub.s32 5, %v3733
    %v3735 = vrot.slane %v2830, %v3734
    %v3736 = vlaneseq
    %v3737 = vshrl.u32 %v3736, 7
    %v3738 = vsub.s32 6, %v3737
    %v3739 = vrot.slane %v2830, %v3738
    %v3740 = vlaneseq
    %v3741 = vshrl.u32 %v3740, 7
    %v3742 = vsub.s32 7, %v3741
    %v3743 = vrot.slane %v2830, %v3742
    %v3792 = vunpack.c.l.b16 %v2796
    %v3793 = vunpack.c.h.b16 %v2796
    %v3794 = vunpack.c.l.b16 %v2797
    %v3795 = vunpack.c.h.b16 %v2797
    %v3796 = vunpack.c.l.b16 %v2798
    %v3797 = vunpack.c.h.b16 %v2798
    %v3798 = vunpack.c.l.b16 %v2799
    %v3799 = vunpack.c.h.b16 %v2799
    %v3800 = vunpack.c.l.b16 %v2800
    %v3801 = vunpack.c.h.b16 %v2800
    %v3802 = vunpack.c.l.b16 %v2801
    %v3803 = vunpack.c.h.b16 %v2801
    %v3804 = vunpack.c.l.b16 %v2802
    %v3805 = vunpack.c.h.b16 %v2802
    %v3806 = vunpack.c.l.b16 %v2803
    %v3807 = vunpack.c.h.b16 %v2803
    %v3808 = vunpack.c.l.b16 %v2804
    %v3809 = vunpack.c.h.b16 %v2804
    %v3810 = vunpack.c.l.b16 %v2805
    %v3811 = vunpack.c.h.b16 %v2805
    %v3812 = vunpack.c.l.b16 %v2806
    %v3813 = vunpack.c.h.b16 %v2806
    %v3814 = vunpack.c.l.b16 %v2807
    %v3815 = vunpack.c.h.b16 %v2807
    %v3816 = vunpack.c.l.b16 %v2808
    %v3817 = vunpack.c.h.b16 %v2808
    %v3818 = vunpack.c.l.b16 %v2809
    %v3819 = vunpack.c.h.b16 %v2809
    %v3820 = vunpack.c.l.b16 %v2810
    %v3821 = vunpack.c.h.b16 %v2810
    %v3822 = vunpack.c.l.b16 %v2811
    %v3823 = vunpack.c.h.b16 %v2811
    %v3824 = vunpack.c.l.b16 %v2812
    %v3825 = vunpack.c.h.b16 %v2812
    %v3826 = vunpack.c.l.b16 %v2813
    %v3827 = vunpack.c.h.b16 %v2813
    %v3828 = vunpack.c.l.b16 %v2814
    %v3829 = vunpack.c.h.b16 %v2814
    %v3830 = vunpack.c.l.b16 %v2815
    %v3831 = vunpack.c.h.b16 %v2815
    %v3832 = vunpack.c.l.b16 %v2816
    %v3833 = vunpack.c.h.b16 %v2816
    %v3834 = vunpack.c.l.b16 %v2817
    %v3835 = vunpack.c.h.b16 %v2817
    %v3836 = vunpack.c.l.b16 %v2818
    %v3837 = vunpack.c.h.b16 %v2818
    %v3838 = vunpack.c.l.b16 %v2819
    %v3839 = vunpack.c.h.b16 %v2819
    %v3840 = vunpack.c.l.b16 %v2820
    %v3841 = vunpack.c.h.b16 %v2820
    %v3842 = vunpack.c.l.b16 %v2821
    %v3843 = vunpack.c.h.b16 %v2821
    %v3844 = vunpack.c.l.b16 %v2822
    %v3845 = vunpack.c.h.b16 %v2822
    %v3846 = vunpack.c.l.b16 %v2823
    %v3847 = vunpack.c.h.b16 %v2823
    %v3848 = vunpack.c.l.b16 %v2824
    %v3849 = vunpack.c.h.b16 %v2824
    %v3850 = vunpack.c.l.b16 %v2825
    %v3851 = vunpack.c.h.b16 %v2825
    %v3852 = vunpack.c.l.b16 %v2826
    %v3853 = vunpack.c.h.b16 %v2826
    %v3854 = vunpack.c.l.b16 %v2827
    %v3855 = vunpack.c.h.b16 %v2827
    %v3856 = vpack.c.b16 %v3808, %v3792
    %v3857 = vpack.c.b16 %v3809, %v3793
    %v3858 = vpack.c.b16 %v3810, %v3794
    %v3859 = vpack.c.b16 %v3811, %v3795
    %v3860 = vpack.c.b16 %v3812, %v3796
    %v3861 = vpack.c.b16 %v3813, %v3797
    %v3862 = vpack.c.b16 %v3814, %v3798
    %v3863 = vpack.c.b16 %v3815, %v3799
    %v3864 = vpack.c.b16 %v3816, %v3800
    %v3865 = vpack.c.b16 %v3817, %v3801
    %v3866 = vpack.c.b16 %v3818, %v3802
    %v3867 = vpack.c.b16 %v3819, %v3803
    %v3868 = vpack.c.b16 %v3820, %v3804
    %v3869 = vpack.c.b16 %v3821, %v3805
    %v3870 = vpack.c.b16 %v3822, %v3806
    %v3871 = vpack.c.b16 %v3823, %v3807
    %v3872 = vpack.c.b16 %v3840, %v3824
    %v3873 = vpack.c.b16 %v3841, %v3825
    %v3874 = vpack.c.b16 %v3842, %v3826
    %v3875 = vpack.c.b16 %v3843, %v3827
    %v3876 = vpack.c.b16 %v3844, %v3828
    %v3877 = vpack.c.b16 %v3845, %v3829
    %v3878 = vpack.c.b16 %v3846, %v3830
    %v3879 = vpack.c.b16 %v3847, %v3831
    %v3880 = vpack.c.b16 %v3848, %v3832
    %v3881 = vpack.c.b16 %v3849, %v3833
    %v3882 = vpack.c.b16 %v3850, %v3834
    %v3883 = vpack.c.b16 %v3851, %v3835
    %v3884 = vpack.c.b16 %v3852, %v3836
    %v3885 = vpack.c.b16 %v3853, %v3837
    %v3886 = vpack.c.b16 %v3854, %v3838
    %v3887 = vpack.c.b16 %v3855, %v3839
    %v3921 = vsel %vm536, %v3677, 0
    %3923 = vmatprep.subr.bf16.mxu0 %v3857
    %3924 = vmatpush1.bf16.msra.mxu0 %v3856
    %3925 = vmatprep.subr.bf16.mxu0 %v3873
    %3926 = vmatpush1.bf16.msra.mxu0 %v3872
    %3927 = vmatprep.subr.bf16.mxu0 0
    %3928 = vmatpush1.bf16.msra.mxu0 0
    %3929 = vmatprep.subr.bf16.mxu0 0
    %3930 = vmatpush1.bf16.msra.mxu0 0
    %3931 = vmatprep.subr.bf16.mxu0 0
    %3932 = vmatpush1.bf16.msra.mxu0 0
    %3933 = vmatprep.subr.bf16.mxu0 0
    %3934 = vmatpush1.bf16.msra.mxu0 0
    %3935 = vmatprep.subr.bf16.mxu0 0
    %3936 = vmatpush1.bf16.msra.mxu0 0
    %3937 = vmatprep.subr.bf16.mxu0 0
    %3938 = vmatpush1.bf16.msra.mxu0 0
    %3939 = vmatprep.subr.bf16.mxu0 0
    %3940 = vmatpush1.bf16.msra.mxu0 0
    %3941 = vmatprep.subr.bf16.mxu0 0
    %3942 = vmatpush1.bf16.msra.mxu0 0
    %3943 = vmatprep.subr.bf16.mxu0 0
    %3944 = vmatpush1.bf16.msra.mxu0 0
    %3945 = vmatprep.subr.bf16.mxu0 0
    %3946 = vmatpush1.bf16.msra.mxu0 0
    %3947 = vmatprep.subr.bf16.mxu0 0
    %3948 = vmatpush1.bf16.msra.mxu0 0
    %3949 = vmatprep.subr.bf16.mxu0 0
    %3950 = vmatpush1.bf16.msra.mxu0 0
    %3951 = vmatprep.subr.bf16.mxu0 0
    %3952 = vmatpush1.bf16.msra.mxu0 0
    %3953 = vmatprep.subr.bf16.mxu0 0
    %3954 = vmatpush1.bf16.msra.mxu0 0
    %3955 = vmatprep.mubr.bf16.mxu0 0
    %3956 = vmatmul.mubr.bf16.gmra.mrb[0].mxu0 %v3921
    %v3957 = vpop.f32.mrb[0].mxu0
    %v3958 = vadd.f32 %v3683, %v3957
    %v3959 = vpop.f32.mrb[0].mxu0
    %v3960 = vadd.f32 %v3687, %v3959
    %v3961 = vpop.f32.mrb[0].mxu0
    %v3962 = vadd.f32 %v3683, %v3961
    %v3963 = vpop.f32.mrb[0].mxu0
    %v3964 = vadd.f32 %v3687, %v3963
    %3965 = vdwg.mxu0
    %3966 = vmatprep.subr.bf16.mxu0 %v3859
    %3967 = vmatpush1.bf16.msra.mxu0 %v3858
    %3968 = vmatprep.subr.bf16.mxu0 %v3875
    %3969 = vmatpush1.bf16.msra.mxu0 %v3874
    %3970 = vmatprep.subr.bf16.mxu0 0
    %3971 = vmatpush1.bf16.msra.mxu0 0
    %3972 = vmatprep.subr.bf16.mxu0 0
    %3973 = vmatpush1.bf16.msra.mxu0 0
    %3974 = vmatprep.subr.bf16.mxu0 0
    %3975 = vmatpush1.bf16.msra.mxu0 0
    %3976 = vmatprep.subr.bf16.mxu0 0
    %3977 = vmatpush1.bf16.msra.mxu0 0
    %3978 = vmatprep.subr.bf16.mxu0 0
    %3979 = vmatpush1.bf16.msra.mxu0 0
    %3980 = vmatprep.subr.bf16.mxu0 0
    %3981 = vmatpush1.bf16.msra.mxu0 0
    %3982 = vmatprep.subr.bf16.mxu0 0
    %3983 = vmatpush1.bf16.msra.mxu0 0
    %3984 = vmatprep.subr.bf16.mxu0 0
    %3985 = vmatpush1.bf16.msra.mxu0 0
    %3986 = vmatprep.subr.bf16.mxu0 0
    %3987 = vmatpush1.bf16.msra.mxu0 0
    %3988 = vmatprep.subr.bf16.mxu0 0
    %3989 = vmatpush1.bf16.msra.mxu0 0
    %3990 = vmatprep.subr.bf16.mxu0 0
    %3991 = vmatpush1.bf16.msra.mxu0 0
    %3992 = vmatprep.subr.bf16.mxu0 0
    %3993 = vmatpush1.bf16.msra.mxu0 0
    %3994 = vmatprep.subr.bf16.mxu0 0
    %3995 = vmatpush1.bf16.msra.mxu0 0
    %3996 = vmatprep.subr.bf16.mxu0 0
    %3997 = vmatpush1.bf16.msra.mxu0 0
    %3998 = vmatprep.mubr.bf16.mxu0 0
    %3999 = vmatmul.mubr.bf16.gmra.mrb[0].mxu0 %v3921
    %v4000 = vpop.f32.mrb[0].mxu0
    %v4001 = vadd.f32 %v3691, %v4000
    %v4002 = vpop.f32.mrb[0].mxu0
    %v4003 = vadd.f32 %v3695, %v4002
    %v4004 = vpop.f32.mrb[0].mxu0
    %v4005 = vadd.f32 %v3691, %v4004
    %v4006 = vpop.f32.mrb[0].mxu0
    %v4007 = vadd.f32 %v3695, %v4006
    %4008 = vdwg.mxu0
    %4009 = vmatprep.subr.bf16.mxu0 %v3861
    %4010 = vmatpush1.bf16.msra.mxu0 %v3860
    %4011 = vmatprep.subr.bf16.mxu0 %v3877
    %4012 = vmatpush1.bf16.msra.mxu0 %v3876
    %4013 = vmatprep.subr.bf16.mxu0 0
    %4014 = vmatpush1.bf16.msra.mxu0 0
    %4015 = vmatprep.subr.bf16.mxu0 0
    %4016 = vmatpush1.bf16.msra.mxu0 0
    %4017 = vmatprep.subr.bf16.mxu0 0
    %4018 = vmatpush1.bf16.msra.mxu0 0
    %4019 = vmatprep.subr.bf16.mxu0 0
    %4020 = vmatpush1.bf16.msra.mxu0 0
    %4021 = vmatprep.subr.bf16.mxu0 0
    %4022 = vmatpush1.bf16.msra.mxu0 0
    %4023 = vmatprep.subr.bf16.mxu0 0
    %4024 = vmatpush1.bf16.msra.mxu0 0
    %4025 = vmatprep.subr.bf16.mxu0 0
    %4026 = vmatpush1.bf16.msra.mxu0 0
    %4027 = vmatprep.subr.bf16.mxu0 0
    %4028 = vmatpush1.bf16.msra.mxu0 0
    %4029 = vmatprep.subr.bf16.mxu0 0
    %4030 = vmatpush1.bf16.msra.mxu0 0
    %4031 = vmatprep.subr.bf16.mxu0 0
    %4032 = vmatpush1.bf16.msra.mxu0 0
    %4033 = vmatprep.subr.bf16.mxu0 0
    %4034 = vmatpush1.bf16.msra.mxu0 0
    %4035 = vmatprep.subr.bf16.mxu0 0
    %4036 = vmatpush1.bf16.msra.mxu0 0
    %4037 = vmatprep.subr.bf16.mxu0 0
    %4038 = vmatpush1.bf16.msra.mxu0 0
    %4039 = vmatprep.subr.bf16.mxu0 0
    %4040 = vmatpush1.bf16.msra.mxu0 0
    %4041 = vmatprep.mubr.bf16.mxu0 0
    %4042 = vmatmul.mubr.bf16.gmra.mrb[0].mxu0 %v3921
    %v4043 = vpop.f32.mrb[0].mxu0
    %v4044 = vadd.f32 %v3699, %v4043
    %v4045 = vpop.f32.mrb[0].mxu0
    %v4046 = vadd.f32 %v3703, %v4045
    %v4047 = vpop.f32.mrb[0].mxu0
    %v4048 = vadd.f32 %v3699, %v4047
    %v4049 = vpop.f32.mrb[0].mxu0
    %v4050 = vadd.f32 %v3703, %v4049
    %4051 = vdwg.mxu0
    %4052 = vmatprep.subr.bf16.mxu0 %v3863
    %4053 = vmatpush1.bf16.msra.mxu0 %v3862
    %4054 = vmatprep.subr.bf16.mxu0 %v3879
    %4055 = vmatpush1.bf16.msra.mxu0 %v3878
    %4056 = vmatprep.subr.bf16.mxu0 0
    %4057 = vmatpush1.bf16.msra.mxu0 0
    %4058 = vmatprep.subr.bf16.mxu0 0
    %4059 = vmatpush1.bf16.msra.mxu0 0
    %4060 = vmatprep.subr.bf16.mxu0 0
    %4061 = vmatpush1.bf16.msra.mxu0 0
    %4062 = vmatprep.subr.bf16.mxu0 0
    %4063 = vmatpush1.bf16.msra.mxu0 0
    %4064 = vmatprep.subr.bf16.mxu0 0
    %4065 = vmatpush1.bf16.msra.mxu0 0
    %4066 = vmatprep.subr.bf16.mxu0 0
    %4067 = vmatpush1.bf16.msra.mxu0 0
    %4068 = vmatprep.subr.bf16.mxu0 0
    %4069 = vmatpush1.bf16.msra.mxu0 0
    %4070 = vmatprep.subr.bf16.mxu0 0
    %4071 = vmatpush1.bf16.msra.mxu0 0
    %4072 = vmatprep.subr.bf16.mxu0 0
    %4073 = vmatpush1.bf16.msra.mxu0 0
    %4074 = vmatprep.subr.bf16.mxu0 0
    %4075 = vmatpush1.bf16.msra.mxu0 0
    %4076 = vmatprep.subr.bf16.mxu0 0
    %4077 = vmatpush1.bf16.msra.mxu0 0
    %4078 = vmatprep.subr.bf16.mxu0 0
    %4079 = vmatpush1.bf16.msra.mxu0 0
    %4080 = vmatprep.subr.bf16.mxu0 0
    %4081 = vmatpush1.bf16.msra.mxu0 0
    %4082 = vmatprep.subr.bf16.mxu0 0
    %4083 = vmatpush1.bf16.msra.mxu0 0
    %4084 = vmatprep.mubr.bf16.mxu0 0
    %4085 = vmatmul.mubr.bf16.gmra.mrb[0].mxu0 %v3921
    %v4086 = vpop.f32.mrb[0].mxu0
    %v4087 = vadd.f32 %v3707, %v4086
    %v4088 = vpop.f32.mrb[0].mxu0
    %v4089 = vadd.f32 %v3711, %v4088
    %v4090 = vpop.f32.mrb[0].mxu0
    %v4091 = vadd.f32 %v3707, %v4090
    %v4092 = vpop.f32.mrb[0].mxu0
    %v4093 = vadd.f32 %v3711, %v4092
    %4094 = vdwg.mxu0
    %4095 = vmatprep.subr.bf16.mxu0 %v3865
    %4096 = vmatpush1.bf16.msra.mxu0 %v3864
    %4097 = vmatprep.subr.bf16.mxu0 %v3881
    %4098 = vmatpush1.bf16.msra.mxu0 %v3880
    %4099 = vmatprep.subr.bf16.mxu0 0
    %4100 = vmatpush1.bf16.msra.mxu0 0
    %4101 = vmatprep.subr.bf16.mxu0 0
    %4102 = vmatpush1.bf16.msra.mxu0 0
    %4103 = vmatprep.subr.bf16.mxu0 0
    %4104 = vmatpush1.bf16.msra.mxu0 0
    %4105 = vmatprep.subr.bf16.mxu0 0
    %4106 = vmatpush1.bf16.msra.mxu0 0
    %4107 = vmatprep.subr.bf16.mxu0 0
    %4108 = vmatpush1.bf16.msra.mxu0 0
    %4109 = vmatprep.subr.bf16.mxu0 0
    %4110 = vmatpush1.bf16.msra.mxu0 0
    %4111 = vmatprep.subr.bf16.mxu0 0
    %4112 = vmatpush1.bf16.msra.mxu0 0
    %4113 = vmatprep.subr.bf16.mxu0 0
    %4114 = vmatpush1.bf16.msra.mxu0 0
    %4115 = vmatprep.subr.bf16.mxu0 0
    %4116 = vmatpush1.bf16.msra.mxu0 0
    %4117 = vmatprep.subr.bf16.mxu0 0
    %4118 = vmatpush1.bf16.msra.mxu0 0
    %4119 = vmatprep.subr.bf16.mxu0 0
    %4120 = vmatpush1.bf16.msra.mxu0 0
    %4121 = vmatprep.subr.bf16.mxu0 0
    %4122 = vmatpush1.bf16.msra.mxu0 0
    %4123 = vmatprep.subr.bf16.mxu0 0
    %4124 = vmatpush1.bf16.msra.mxu0 0
    %4125 = vmatprep.subr.bf16.mxu0 0
    %4126 = vmatpush1.bf16.msra.mxu0 0
    %4127 = vmatprep.mubr.bf16.mxu0 0
    %4128 = vmatmul.mubr.bf16.gmra.mrb[0].mxu0 %v3921
    %v4129 = vpop.f32.mrb[0].mxu0
    %v4130 = vadd.f32 %v3715, %v4129
    %v4131 = vpop.f32.mrb[0].mxu0
    %v4132 = vadd.f32 %v3719, %v4131
    %v4133 = vpop.f32.mrb[0].mxu0
    %v4134 = vadd.f32 %v3715, %v4133
    %v4135 = vpop.f32.mrb[0].mxu0
    %v4136 = vadd.f32 %v3719, %v4135
    %4137 = vdwg.mxu0
    %4138 = vmatprep.subr.bf16.mxu0 %v3867
    %4139 = vmatpush1.bf16.msra.mxu0 %v3866
    %4140 = vmatprep.subr.bf16.mxu0 %v3883
    %4141 = vmatpush1.bf16.msra.mxu0 %v3882
    %4142 = vmatprep.subr.bf16.mxu0 0
    %4143 = vmatpush1.bf16.msra.mxu0 0
    %4144 = vmatprep.subr.bf16.mxu0 0
    %4145 = vmatpush1.bf16.msra.mxu0 0
    %4146 = vmatprep.subr.bf16.mxu0 0
    %4147 = vmatpush1.bf16.msra.mxu0 0
    %4148 = vmatprep.subr.bf16.mxu0 0
    %4149 = vmatpush1.bf16.msra.mxu0 0
    %4150 = vmatprep.subr.bf16.mxu0 0
    %4151 = vmatpush1.bf16.msra.mxu0 0
    %4152 = vmatprep.subr.bf16.mxu0 0
    %4153 = vmatpush1.bf16.msra.mxu0 0
    %4154 = vmatprep.subr.bf16.mxu0 0
    %4155 = vmatpush1.bf16.msra.mxu0 0
    %4156 = vmatprep.subr.bf16.mxu0 0
    %4157 = vmatpush1.bf16.msra.mxu0 0
    %4158 = vmatprep.subr.bf16.mxu0 0
    %4159 = vmatpush1.bf16.msra.mxu0 0
    %4160 = vmatprep.subr.bf16.mxu0 0
    %4161 = vmatpush1.bf16.msra.mxu0 0
    %4162 = vmatprep.subr.bf16.mxu0 0
    %4163 = vmatpush1.bf16.msra.mxu0 0
    %4164 = vmatprep.subr.bf16.mxu0 0
    %4165 = vmatpush1.bf16.msra.mxu0 0
    %4166 = vmatprep.subr.bf16.mxu0 0
    %4167 = vmatpush1.bf16.msra.mxu0 0
    %4168 = vmatprep.subr.bf16.mxu0 0
    %4169 = vmatpush1.bf16.msra.mxu0 0
    %4170 = vmatprep.mubr.bf16.mxu0 0
    %4171 = vmatmul.mubr.bf16.gmra.mrb[0].mxu0 %v3921
    %v4172 = vpop.f32.mrb[0].mxu0
    %v4173 = vadd.f32 %v3723, %v4172
    %v4174 = vpop.f32.mrb[0].mxu0
    %v4175 = vadd.f32 %v3727, %v4174
    %v4176 = vpop.f32.mrb[0].mxu0
    %v4177 = vadd.f32 %v3723, %v4176
    %v4178 = vpop.f32.mrb[0].mxu0
    %v4179 = vadd.f32 %v3727, %v4178
    %4180 = vdwg.mxu0
    %4181 = vmatprep.subr.bf16.mxu0 %v3869
    %4182 = vmatpush1.bf16.msra.mxu0 %v3868
    %4183 = vmatprep.subr.bf16.mxu0 %v3885
    %4184 = vmatpush1.bf16.msra.mxu0 %v3884
    %4185 = vmatprep.subr.bf16.mxu0 0
    %4186 = vmatpush1.bf16.msra.mxu0 0
    %4187 = vmatprep.subr.bf16.mxu0 0
    %4188 = vmatpush1.bf16.msra.mxu0 0
    %4189 = vmatprep.subr.bf16.mxu0 0
    %4190 = vmatpush1.bf16.msra.mxu0 0
    %4191 = vmatprep.subr.bf16.mxu0 0
    %4192 = vmatpush1.bf16.msra.mxu0 0
    %4193 = vmatprep.subr.bf16.mxu0 0
    %4194 = vmatpush1.bf16.msra.mxu0 0
    %4195 = vmatprep.subr.bf16.mxu0 0
    %4196 = vmatpush1.bf16.msra.mxu0 0
    %4197 = vmatprep.subr.bf16.mxu0 0
    %4198 = vmatpush1.bf16.msra.mxu0 0
    %4199 = vmatprep.subr.bf16.mxu0 0
    %4200 = vmatpush1.bf16.msra.mxu0 0
    %4201 = vmatprep.subr.bf16.mxu0 0
    %4202 = vmatpush1.bf16.msra.mxu0 0
    %4203 = vmatprep.subr.bf16.mxu0 0
    %4204 = vmatpush1.bf16.msra.mxu0 0
    %4205 = vmatprep.subr.bf16.mxu0 0
    %4206 = vmatpush1.bf16.msra.mxu0 0
    %4207 = vmatprep.subr.bf16.mxu0 0
    %4208 = vmatpush1.bf16.msra.mxu0 0
    %4209 = vmatprep.subr.bf16.mxu0 0
    %4210 = vmatpush1.bf16.msra.mxu0 0
    %4211 = vmatprep.subr.bf16.mxu0 0
    %4212 = vmatpush1.bf16.msra.mxu0 0
    %4213 = vmatprep.mubr.bf16.mxu0 0
    %4214 = vmatmul.mubr.bf16.gmra.mrb[0].mxu0 %v3921
    %v4215 = vpop.f32.mrb[0].mxu0
    %v4216 = vadd.f32 %v3731, %v4215
    %v4217 = vpop.f32.mrb[0].mxu0
    %v4218 = vadd.f32 %v3735, %v4217
    %v4219 = vpop.f32.mrb[0].mxu0
    %v4220 = vadd.f32 %v3731, %v4219
    %v4221 = vpop.f32.mrb[0].mxu0
    %v4222 = vadd.f32 %v3735, %v4221
    %4223 = vdwg.mxu0
    %4224 = vmatprep.subr.bf16.mxu0 %v3871
    %4225 = vmatpush1.bf16.msra.mxu0 %v3870
    %4226 = vmatprep.subr.bf16.mxu0 %v3887
    %4227 = vmatpush1.bf16.msra.mxu0 %v3886
    %4228 = vmatprep.subr.bf16.mxu0 0
    %4229 = vmatpush1.bf16.msra.mxu0 0
    %4230 = vmatprep.subr.bf16.mxu0 0
    %4231 = vmatpush1.bf16.msra.mxu0 0
    %4232 = vmatprep.subr.bf16.mxu0 0
    %4233 = vmatpush1.bf16.msra.mxu0 0
    %4234 = vmatprep.subr.bf16.mxu0 0
    %4235 = vmatpush1.bf16.msra.mxu0 0
    %4236 = vmatprep.subr.bf16.mxu0 0
    %4237 = vmatpush1.bf16.msra.mxu0 0
    %4238 = vmatprep.subr.bf16.mxu0 0
    %4239 = vmatpush1.bf16.msra.mxu0 0
    %4240 = vmatprep.subr.bf16.mxu0 0
    %4241 = vmatpush1.bf16.msra.mxu0 0
    %4242 = vmatprep.subr.bf16.mxu0 0
    %4243 = vmatpush1.bf16.msra.mxu0 0
    %4244 = vmatprep.subr.bf16.mxu0 0
    %4245 = vmatpush1.bf16.msra.mxu0 0
    %4246 = vmatprep.subr.bf16.mxu0 0
    %4247 = vmatpush1.bf16.msra.mxu0 0
    %4248 = vmatprep.subr.bf16.mxu0 0
    %4249 = vmatpush1.bf16.msra.mxu0 0
    %4250 = vmatprep.subr.bf16.mxu0 0
    %4251 = vmatpush1.bf16.msra.mxu0 0
    %4252 = vmatprep.subr.bf16.mxu0 0
    %4253 = vmatpush1.bf16.msra.mxu0 0
    %4254 = vmatprep.subr.bf16.mxu0 0
    %4255 = vmatpush1.bf16.msra.mxu0 0
    %4256 = vmatprep.mubr.bf16.mxu0 0
    %4257 = vmatmul.mubr.bf16.gmra.mrb[0].mxu0 %v3921
    %v4258 = vpop.f32.mrb[0].mxu0
    %v4259 = vadd.f32 %v3739, %v4258
    %v4260 = vpop.f32.mrb[0].mxu0
    %v4261 = vadd.f32 %v3743, %v4260
    %v4262 = vpop.f32.mrb[0].mxu0
    %v4263 = vadd.f32 %v3739, %v4262
    %v4264 = vpop.f32.mrb[0].mxu0
    %v4265 = vadd.f32 %v3743, %v4264
    %4266 = vdwg.mxu0
    %v4267 = vmax.f32 %v3958, 0.0
    %v4268 = vmax.f32 %v3960, 0.0
    %v4269 = vmax.f32 %v4001, 0.0
    %v4270 = vmax.f32 %v4003, 0.0
    %v4271 = vmax.f32 %v4044, 0.0
    %v4272 = vmax.f32 %v4046, 0.0
    %v4273 = vmax.f32 %v4087, 0.0
    %v4274 = vmax.f32 %v4089, 0.0
    %v4275 = vmax.f32 %v4130, 0.0
    %v4276 = vmax.f32 %v4132, 0.0
    %v4277 = vmax.f32 %v4173, 0.0
    %v4278 = vmax.f32 %v4175, 0.0
    %v4279 = vmax.f32 %v4216, 0.0
    %v4280 = vmax.f32 %v4218, 0.0
    %v4281 = vmax.f32 %v4259, 0.0
    %v4282 = vmax.f32 %v4261, 0.0
    %v4283 = vmax.f32 %v3962, 0.0
    %v4284 = vmax.f32 %v3964, 0.0
    %v4285 = vmax.f32 %v4005, 0.0
    %v4286 = vmax.f32 %v4007, 0.0
    %v4287 = vmax.f32 %v4048, 0.0
    %v4288 = vmax.f32 %v4050, 0.0
    %v4289 = vmax.f32 %v4091, 0.0
    %v4290 = vmax.f32 %v4093, 0.0
    %v4291 = vmax.f32 %v4134, 0.0
    %v4292 = vmax.f32 %v4136, 0.0
    %v4293 = vmax.f32 %v4177, 0.0
    %v4294 = vmax.f32 %v4179, 0.0
    %v4295 = vmax.f32 %v4220, 0.0
    %v4296 = vmax.f32 %v4222, 0.0
    %v4297 = vmax.f32 %v4263, 0.0
    %v4298 = vmax.f32 %v4265, 0.0
    %v4299 = vpack.c.bf16 %v4283, %v4267
    %v4300 = vpack.c.bf16 %v4284, %v4268
    %v4301 = vpack.c.bf16 %v4285, %v4269
    %v4302 = vpack.c.bf16 %v4286, %v4270
    %v4303 = vpack.c.bf16 %v4287, %v4271
    %v4304 = vpack.c.bf16 %v4288, %v4272
    %v4305 = vpack.c.bf16 %v4289, %v4273
    %v4306 = vpack.c.bf16 %v4290, %v4274
    %v4307 = vpack.c.bf16 %v4291, %v4275
    %v4308 = vpack.c.bf16 %v4292, %v4276
    %v4309 = vpack.c.bf16 %v4293, %v4277
    %v4310 = vpack.c.bf16 %v4294, %v4278
    %v4311 = vpack.c.bf16 %v4295, %v4279
    %v4312 = vpack.c.bf16 %v4296, %v4280
    %v4313 = vpack.c.bf16 %v4297, %v4281
    %v4314 = vpack.c.bf16 %v4298, %v4282
    %v4571 = vunpack.c.l.b16 %v2832
    %v4572 = vunpack.c.l.b16 %v2833
    %v4573 = vunpack.c.l.b16 %v2834
    %v4574 = vunpack.c.l.b16 %v2835
    %v4575 = vunpack.c.l.b16 %v2836
    %v4576 = vunpack.c.l.b16 %v2837
    %v4577 = vunpack.c.l.b16 %v2838
    %v4578 = vunpack.c.l.b16 %v2839
    %v4579 = vunpack.c.l.b16 %v2840
    %v4580 = vunpack.c.l.b16 %v2841
    %v4581 = vunpack.c.l.b16 %v2842
    %v4582 = vunpack.c.l.b16 %v2843
    %v4583 = vunpack.c.l.b16 %v2844
    %v4584 = vunpack.c.l.b16 %v2845
    %v4585 = vunpack.c.l.b16 %v2846
    %v4586 = vunpack.c.l.b16 %v2847
    %v4587 = vunpack.c.l.b16 %v2848
    %v4588 = vunpack.c.l.b16 %v2849
    %v4589 = vunpack.c.l.b16 %v2850
    %v4590 = vunpack.c.l.b16 %v2851
    %v4591 = vunpack.c.l.b16 %v2852
    %v4592 = vunpack.c.l.b16 %v2853
    %v4593 = vunpack.c.l.b16 %v2854
    %v4594 = vunpack.c.l.b16 %v2855
    %v4595 = vunpack.c.l.b16 %v2856
    %v4596 = vunpack.c.l.b16 %v2857
    %v4597 = vunpack.c.l.b16 %v2858
    %v4598 = vunpack.c.l.b16 %v2859
    %v4599 = vunpack.c.l.b16 %v2860
    %v4600 = vunpack.c.l.b16 %v2861
    %v4601 = vunpack.c.l.b16 %v2862
    %v4602 = vunpack.c.l.b16 %v2863
    %v4603 = vunpack.c.l.b16 %v2864
    %v4604 = vunpack.c.l.b16 %v2865
    %v4605 = vunpack.c.l.b16 %v2866
    %v4606 = vunpack.c.l.b16 %v2867
    %v4607 = vunpack.c.l.b16 %v2868
    %v4608 = vunpack.c.l.b16 %v2869
    %v4609 = vunpack.c.l.b16 %v2870
    %v4610 = vunpack.c.l.b16 %v2871
    %v4611 = vunpack.c.l.b16 %v2872
    %v4612 = vunpack.c.l.b16 %v2873
    %v4613 = vunpack.c.l.b16 %v2874
    %v4614 = vunpack.c.l.b16 %v2875
    %v4615 = vunpack.c.l.b16 %v2876
    %v4616 = vunpack.c.l.b16 %v2877
    %v4617 = vunpack.c.l.b16 %v2878
    %v4618 = vunpack.c.l.b16 %v2879
    %v4619 = vunpack.c.l.b16 %v2880
    %v4620 = vunpack.c.l.b16 %v2881
    %v4621 = vunpack.c.l.b16 %v2882
    %v4622 = vunpack.c.l.b16 %v2883
    %v4623 = vunpack.c.l.b16 %v2884
    %v4624 = vunpack.c.l.b16 %v2885
    %v4625 = vunpack.c.l.b16 %v2886
    %v4626 = vunpack.c.l.b16 %v2887
    %v4627 = vunpack.c.l.b16 %v2888
    %v4628 = vunpack.c.l.b16 %v2889
    %v4629 = vunpack.c.l.b16 %v2890
    %v4630 = vunpack.c.l.b16 %v2891
    %v4631 = vunpack.c.l.b16 %v2892
    %v4632 = vunpack.c.l.b16 %v2893
    %v4633 = vunpack.c.l.b16 %v2894
    %v4634 = vunpack.c.l.b16 %v2895
    %v4635 = vunpack.c.l.b16 %v2896
    %v4636 = vunpack.c.l.b16 %v2897
    %v4637 = vunpack.c.l.b16 %v2898
    %v4638 = vunpack.c.l.b16 %v2899
    %v4639 = vunpack.c.l.b16 %v2900
    %v4640 = vunpack.c.l.b16 %v2901
    %v4641 = vunpack.c.l.b16 %v2902
    %v4642 = vunpack.c.l.b16 %v2903
    %v4643 = vunpack.c.l.b16 %v2904
    %v4644 = vunpack.c.l.b16 %v2905
    %v4645 = vunpack.c.l.b16 %v2906
    %v4646 = vunpack.c.l.b16 %v2907
    %v4647 = vunpack.c.l.b16 %v2908
    %v4648 = vunpack.c.l.b16 %v2909
    %v4649 = vunpack.c.l.b16 %v2910
    %v4650 = vunpack.c.l.b16 %v2911
    %v4651 = vunpack.c.l.b16 %v2912
    %v4652 = vunpack.c.l.b16 %v2913
    %v4653 = vunpack.c.l.b16 %v2914
    %v4654 = vunpack.c.l.b16 %v2915
    %v4655 = vunpack.c.l.b16 %v2916
    %v4656 = vunpack.c.l.b16 %v2917
    %v4657 = vunpack.c.l.b16 %v2918
    %v4658 = vunpack.c.l.b16 %v2919
    %v4659 = vunpack.c.l.b16 %v2920
    %v4660 = vunpack.c.l.b16 %v2921
    %v4661 = vunpack.c.l.b16 %v2922
    %v4662 = vunpack.c.l.b16 %v2923
    %v4663 = vunpack.c.l.b16 %v2924
    %v4664 = vunpack.c.l.b16 %v2925
    %v4665 = vunpack.c.l.b16 %v2926
    %v4666 = vunpack.c.l.b16 %v2927
    %v4667 = vunpack.c.l.b16 %v2928
    %v4668 = vunpack.c.l.b16 %v2929
    %v4669 = vunpack.c.l.b16 %v2930
    %v4670 = vunpack.c.l.b16 %v2931
    %v4671 = vunpack.c.l.b16 %v2932
    %v4672 = vunpack.c.l.b16 %v2933
    %v4673 = vunpack.c.l.b16 %v2934
    %v4674 = vunpack.c.l.b16 %v2935
    %v4675 = vunpack.c.l.b16 %v2936
    %v4676 = vunpack.c.l.b16 %v2937
    %v4677 = vunpack.c.l.b16 %v2938
    %v4678 = vunpack.c.l.b16 %v2939
    %v4679 = vunpack.c.l.b16 %v2940
    %v4680 = vunpack.c.l.b16 %v2941
    %v4681 = vunpack.c.l.b16 %v2942
    %v4682 = vunpack.c.l.b16 %v2943
    %v4683 = vunpack.c.l.b16 %v2944
    %v4684 = vunpack.c.l.b16 %v2945
    %v4685 = vunpack.c.l.b16 %v2946
    %v4686 = vunpack.c.l.b16 %v2947
    %v4687 = vunpack.c.l.b16 %v2948
    %v4688 = vunpack.c.l.b16 %v2949
    %v4689 = vunpack.c.l.b16 %v2950
    %v4690 = vunpack.c.l.b16 %v2951
    %v4691 = vunpack.c.l.b16 %v2952
    %v4692 = vunpack.c.l.b16 %v2953
    %v4693 = vunpack.c.l.b16 %v2954
    %v4694 = vunpack.c.l.b16 %v2955
    %v4695 = vunpack.c.l.b16 %v2956
    %v4696 = vunpack.c.l.b16 %v2957
    %v4697 = vunpack.c.l.b16 %v2958
    %v4698 = vunpack.c.l.b16 %v2959
    %v4699 = vunpack.c.l.b16 %v2960
    %v4700 = vunpack.c.l.b16 %v2961
    %v4701 = vunpack.c.l.b16 %v2962
    %v4702 = vunpack.c.l.b16 %v2963
    %v4703 = vunpack.c.l.b16 %v2964
    %v4704 = vunpack.c.l.b16 %v2965
    %v4705 = vunpack.c.l.b16 %v2966
    %v4706 = vunpack.c.l.b16 %v2967
    %v4707 = vunpack.c.l.b16 %v2968
    %v4708 = vunpack.c.l.b16 %v2969
    %v4709 = vunpack.c.l.b16 %v2970
    %v4710 = vunpack.c.l.b16 %v2971
    %v4711 = vunpack.c.l.b16 %v2972
    %v4712 = vunpack.c.l.b16 %v2973
    %v4713 = vunpack.c.l.b16 %v2974
    %v4714 = vunpack.c.l.b16 %v2975
    %v4715 = vunpack.c.l.b16 %v2976
    %v4716 = vunpack.c.l.b16 %v2977
    %v4717 = vunpack.c.l.b16 %v2978
    %v4718 = vunpack.c.l.b16 %v2979
    %v4719 = vunpack.c.l.b16 %v2980
    %v4720 = vunpack.c.l.b16 %v2981
    %v4721 = vunpack.c.l.b16 %v2982
    %v4722 = vunpack.c.l.b16 %v2983
    %v4723 = vunpack.c.l.b16 %v2984
    %v4724 = vunpack.c.l.b16 %v2985
    %v4725 = vunpack.c.l.b16 %v2986
    %v4726 = vunpack.c.l.b16 %v2987
    %v4727 = vunpack.c.l.b16 %v2988
    %v4728 = vunpack.c.l.b16 %v2989
    %v4729 = vunpack.c.l.b16 %v2990
    %v4730 = vunpack.c.l.b16 %v2991
    %v4731 = vunpack.c.l.b16 %v2992
    %v4732 = vunpack.c.l.b16 %v2993
    %v4733 = vunpack.c.l.b16 %v2994
    %v4734 = vunpack.c.l.b16 %v2995
    %v4735 = vunpack.c.l.b16 %v2996
    %v4736 = vunpack.c.l.b16 %v2997
    %v4737 = vunpack.c.l.b16 %v2998
    %v4738 = vunpack.c.l.b16 %v2999
    %v4739 = vunpack.c.l.b16 %v3000
    %v4740 = vunpack.c.l.b16 %v3001
    %v4741 = vunpack.c.l.b16 %v3002
    %v4742 = vunpack.c.l.b16 %v3003
    %v4743 = vunpack.c.l.b16 %v3004
    %v4744 = vunpack.c.l.b16 %v3005
    %v4745 = vunpack.c.l.b16 %v3006
    %v4746 = vunpack.c.l.b16 %v3007
    %v4747 = vunpack.c.l.b16 %v3008
    %v4748 = vunpack.c.l.b16 %v3009
    %v4749 = vunpack.c.l.b16 %v3010
    %v4750 = vunpack.c.l.b16 %v3011
    %v4751 = vunpack.c.l.b16 %v3012
    %v4752 = vunpack.c.l.b16 %v3013
    %v4753 = vunpack.c.l.b16 %v3014
    %v4754 = vunpack.c.l.b16 %v3015
    %v4755 = vunpack.c.l.b16 %v3016
    %v4756 = vunpack.c.l.b16 %v3017
    %v4757 = vunpack.c.l.b16 %v3018
    %v4758 = vunpack.c.l.b16 %v3019
    %v4759 = vunpack.c.l.b16 %v3020
    %v4760 = vunpack.c.l.b16 %v3021
    %v4761 = vunpack.c.l.b16 %v3022
    %v4762 = vunpack.c.l.b16 %v3023
    %v4763 = vunpack.c.l.b16 %v3024
    %v4764 = vunpack.c.l.b16 %v3025
    %v4765 = vunpack.c.l.b16 %v3026
    %v4766 = vunpack.c.l.b16 %v3027
    %v4767 = vunpack.c.l.b16 %v3028
    %v4768 = vunpack.c.l.b16 %v3029
    %v4769 = vunpack.c.l.b16 %v3030
    %v4770 = vunpack.c.l.b16 %v3031
    %v4771 = vunpack.c.l.b16 %v3032
    %v4772 = vunpack.c.l.b16 %v3033
    %v4773 = vunpack.c.l.b16 %v3034
    %v4774 = vunpack.c.l.b16 %v3035
    %v4775 = vunpack.c.l.b16 %v3036
    %v4776 = vunpack.c.l.b16 %v3037
    %v4777 = vunpack.c.l.b16 %v3038
    %v4778 = vunpack.c.l.b16 %v3039
    %v4779 = vunpack.c.l.b16 %v3040
    %v4780 = vunpack.c.l.b16 %v3041
    %v4781 = vunpack.c.l.b16 %v3042
    %v4782 = vunpack.c.l.b16 %v3043
    %v4783 = vunpack.c.l.b16 %v3044
    %v4784 = vunpack.c.l.b16 %v3045
    %v4785 = vunpack.c.l.b16 %v3046
    %v4786 = vunpack.c.l.b16 %v3047
    %v4787 = vunpack.c.l.b16 %v3048
    %v4788 = vunpack.c.l.b16 %v3049
    %v4789 = vunpack.c.l.b16 %v3050
    %v4790 = vunpack.c.l.b16 %v3051
    %v4791 = vunpack.c.l.b16 %v3052
    %v4792 = vunpack.c.l.b16 %v3053
    %v4793 = vunpack.c.l.b16 %v3054
    %v4794 = vunpack.c.l.b16 %v3055
    %v4795 = vunpack.c.l.b16 %v3056
    %v4796 = vunpack.c.l.b16 %v3057
    %v4797 = vunpack.c.l.b16 %v3058
    %v4798 = vunpack.c.l.b16 %v3059
    %v4799 = vunpack.c.l.b16 %v3060
    %v4800 = vunpack.c.l.b16 %v3061
    %v4801 = vunpack.c.l.b16 %v3062
    %v4802 = vunpack.c.l.b16 %v3063
    %v4803 = vunpack.c.l.b16 %v3064
    %v4804 = vunpack.c.l.b16 %v3065
    %v4805 = vunpack.c.l.b16 %v3066
    %v4806 = vunpack.c.l.b16 %v3067
    %v4807 = vunpack.c.l.b16 %v3068
    %v4808 = vunpack.c.l.b16 %v3069
    %v4809 = vunpack.c.l.b16 %v3070
    %v4810 = vunpack.c.l.b16 %v3071
    %v4811 = vunpack.c.l.b16 %v3072
    %v4812 = vunpack.c.l.b16 %v3073
    %v4813 = vunpack.c.l.b16 %v3074
    %v4814 = vunpack.c.l.b16 %v3075
    %v4815 = vunpack.c.l.b16 %v3076
    %v4816 = vunpack.c.l.b16 %v3077
    %v4817 = vunpack.c.l.b16 %v3078
    %v4818 = vunpack.c.l.b16 %v3079
    %v4819 = vunpack.c.l.b16 %v3080
    %v4820 = vunpack.c.l.b16 %v3081
    %v4821 = vunpack.c.l.b16 %v3082
    %v4822 = vunpack.c.l.b16 %v3083
    %v4823 = vunpack.c.l.b16 %v3084
    %v4824 = vunpack.c.l.b16 %v3085
    %v4825 = vunpack.c.l.b16 %v3086
    %v4826 = vunpack.c.l.b16 %v3087
    %v4827 = vpack.c.b16 %v4572, %v4571
    %v4828 = vpack.c.b16 %v4574, %v4573
    %v4829 = vpack.c.b16 %v4576, %v4575
    %v4830 = vpack.c.b16 %v4578, %v4577
    %v4831 = vpack.c.b16 %v4580, %v4579
    %v4832 = vpack.c.b16 %v4582, %v4581
    %v4833 = vpack.c.b16 %v4584, %v4583
    %v4834 = vpack.c.b16 %v4586, %v4585
    %v4835 = vpack.c.b16 %v4588, %v4587
    %v4836 = vpack.c.b16 %v4590, %v4589
    %v4837 = vpack.c.b16 %v4592, %v4591
    %v4838 = vpack.c.b16 %v4594, %v4593
    %v4839 = vpack.c.b16 %v4596, %v4595
    %v4840 = vpack.c.b16 %v4598, %v4597
    %v4841 = vpack.c.b16 %v4600, %v4599
    %v4842 = vpack.c.b16 %v4602, %v4601
    %v4843 = vpack.c.b16 %v4604, %v4603
    %v4844 = vpack.c.b16 %v4606, %v4605
    %v4845 = vpack.c.b16 %v4608, %v4607
    %v4846 = vpack.c.b16 %v4610, %v4609
    %v4847 = vpack.c.b16 %v4612, %v4611
    %v4848 = vpack.c.b16 %v4614, %v4613
    %v4849 = vpack.c.b16 %v4616, %v4615
    %v4850 = vpack.c.b16 %v4618, %v4617
    %v4851 = vpack.c.b16 %v4620, %v4619
    %v4852 = vpack.c.b16 %v4622, %v4621
    %v4853 = vpack.c.b16 %v4624, %v4623
    %v4854 = vpack.c.b16 %v4626, %v4625
    %v4855 = vpack.c.b16 %v4628, %v4627
    %v4856 = vpack.c.b16 %v4630, %v4629
    %v4857 = vpack.c.b16 %v4632, %v4631
    %v4858 = vpack.c.b16 %v4634, %v4633
    %v4859 = vpack.c.b16 %v4636, %v4635
    %v4860 = vpack.c.b16 %v4638, %v4637
    %v4861 = vpack.c.b16 %v4640, %v4639
    %v4862 = vpack.c.b16 %v4642, %v4641
    %v4863 = vpack.c.b16 %v4644, %v4643
    %v4864 = vpack.c.b16 %v4646, %v4645
    %v4865 = vpack.c.b16 %v4648, %v4647
    %v4866 = vpack.c.b16 %v4650, %v4649
    %v4867 = vpack.c.b16 %v4652, %v4651
    %v4868 = vpack.c.b16 %v4654, %v4653
    %v4869 = vpack.c.b16 %v4656, %v4655
    %v4870 = vpack.c.b16 %v4658, %v4657
    %v4871 = vpack.c.b16 %v4660, %v4659
    %v4872 = vpack.c.b16 %v4662, %v4661
    %v4873 = vpack.c.b16 %v4664, %v4663
    %v4874 = vpack.c.b16 %v4666, %v4665
    %v4875 = vpack.c.b16 %v4668, %v4667
    %v4876 = vpack.c.b16 %v4670, %v4669
    %v4877 = vpack.c.b16 %v4672, %v4671
    %v4878 = vpack.c.b16 %v4674, %v4673
    %v4879 = vpack.c.b16 %v4676, %v4675
    %v4880 = vpack.c.b16 %v4678, %v4677
    %v4881 = vpack.c.b16 %v4680, %v4679
    %v4882 = vpack.c.b16 %v4682, %v4681
    %v4883 = vpack.c.b16 %v4684, %v4683
    %v4884 = vpack.c.b16 %v4686, %v4685
    %v4885 = vpack.c.b16 %v4688, %v4687
    %v4886 = vpack.c.b16 %v4690, %v4689
    %v4887 = vpack.c.b16 %v4692, %v4691
    %v4888 = vpack.c.b16 %v4694, %v4693
    %v4889 = vpack.c.b16 %v4696, %v4695
    %v4890 = vpack.c.b16 %v4698, %v4697
    %v4891 = vpack.c.b16 %v4700, %v4699
    %v4892 = vpack.c.b16 %v4702, %v4701
    %v4893 = vpack.c.b16 %v4704, %v4703
    %v4894 = vpack.c.b16 %v4706, %v4705
    %v4895 = vpack.c.b16 %v4708, %v4707
    %v4896 = vpack.c.b16 %v4710, %v4709
    %v4897 = vpack.c.b16 %v4712, %v4711
    %v4898 = vpack.c.b16 %v4714, %v4713
    %v4899 = vpack.c.b16 %v4716, %v4715
    %v4900 = vpack.c.b16 %v4718, %v4717
    %v4901 = vpack.c.b16 %v4720, %v4719
    %v4902 = vpack.c.b16 %v4722, %v4721
    %v4903 = vpack.c.b16 %v4724, %v4723
    %v4904 = vpack.c.b16 %v4726, %v4725
    %v4905 = vpack.c.b16 %v4728, %v4727
    %v4906 = vpack.c.b16 %v4730, %v4729
    %v4907 = vpack.c.b16 %v4732, %v4731
    %v4908 = vpack.c.b16 %v4734, %v4733
    %v4909 = vpack.c.b16 %v4736, %v4735
    %v4910 = vpack.c.b16 %v4738, %v4737
    %v4911 = vpack.c.b16 %v4740, %v4739
    %v4912 = vpack.c.b16 %v4742, %v4741
    %v4913 = vpack.c.b16 %v4744, %v4743
    %v4914 = vpack.c.b16 %v4746, %v4745
    %v4915 = vpack.c.b16 %v4748, %v4747
    %v4916 = vpack.c.b16 %v4750, %v4749
    %v4917 = vpack.c.b16 %v4752, %v4751
    %v4918 = vpack.c.b16 %v4754, %v4753
    %v4919 = vpack.c.b16 %v4756, %v4755
    %v4920 = vpack.c.b16 %v4758, %v4757
    %v4921 = vpack.c.b16 %v4760, %v4759
    %v4922 = vpack.c.b16 %v4762, %v4761
    %v4923 = vpack.c.b16 %v4764, %v4763
    %v4924 = vpack.c.b16 %v4766, %v4765
    %v4925 = vpack.c.b16 %v4768, %v4767
    %v4926 = vpack.c.b16 %v4770, %v4769
    %v4927 = vpack.c.b16 %v4772, %v4771
    %v4928 = vpack.c.b16 %v4774, %v4773
    %v4929 = vpack.c.b16 %v4776, %v4775
    %v4930 = vpack.c.b16 %v4778, %v4777
    %v4931 = vpack.c.b16 %v4780, %v4779
    %v4932 = vpack.c.b16 %v4782, %v4781
    %v4933 = vpack.c.b16 %v4784, %v4783
    %v4934 = vpack.c.b16 %v4786, %v4785
    %v4935 = vpack.c.b16 %v4788, %v4787
    %v4936 = vpack.c.b16 %v4790, %v4789
    %v4937 = vpack.c.b16 %v4792, %v4791
    %v4938 = vpack.c.b16 %v4794, %v4793
    %v4939 = vpack.c.b16 %v4796, %v4795
    %v4940 = vpack.c.b16 %v4798, %v4797
    %v4941 = vpack.c.b16 %v4800, %v4799
    %v4942 = vpack.c.b16 %v4802, %v4801
    %v4943 = vpack.c.b16 %v4804, %v4803
    %v4944 = vpack.c.b16 %v4806, %v4805
    %v4945 = vpack.c.b16 %v4808, %v4807
    %v4946 = vpack.c.b16 %v4810, %v4809
    %v4947 = vpack.c.b16 %v4812, %v4811
    %v4948 = vpack.c.b16 %v4814, %v4813
    %v4949 = vpack.c.b16 %v4816, %v4815
    %v4950 = vpack.c.b16 %v4818, %v4817
    %v4951 = vpack.c.b16 %v4820, %v4819
    %v4952 = vpack.c.b16 %v4822, %v4821
    %v4953 = vpack.c.b16 %v4824, %v4823
    %v4954 = vpack.c.b16 %v4826, %v4825
    %5083 = vmatprep.subr.bf16.mxu0 0
    %5084 = vmatpush1.bf16.msra.mxu0 %v4827
    %5085 = vmatprep.subr.bf16.mxu0 0
    %5086 = vmatpush1.bf16.msra.mxu0 %v4828
    %5087 = vmatprep.subr.bf16.mxu0 0
    %5088 = vmatpush1.bf16.msra.mxu0 %v4829
    %5089 = vmatprep.subr.bf16.mxu0 0
    %5090 = vmatpush1.bf16.msra.mxu0 %v4830
    %5091 = vmatprep.subr.bf16.mxu0 0
    %5092 = vmatpush1.bf16.msra.mxu0 %v4831
    %5093 = vmatprep.subr.bf16.mxu0 0
    %5094 = vmatpush1.bf16.msra.mxu0 %v4832
    %5095 = vmatprep.subr.bf16.mxu0 0
    %5096 = vmatpush1.bf16.msra.mxu0 %v4833
    %5097 = vmatprep.subr.bf16.mxu0 0
    %5098 = vmatpush1.bf16.msra.mxu0 %v4834
    %5099 = vmatprep.subr.bf16.mxu0 0
    %5100 = vmatpush1.bf16.msra.mxu0 %v4835
    %5101 = vmatprep.subr.bf16.mxu0 0
    %5102 = vmatpush1.bf16.msra.mxu0 %v4836
    %5103 = vmatprep.subr.bf16.mxu0 0
    %5104 = vmatpush1.bf16.msra.mxu0 %v4837
    %5105 = vmatprep.subr.bf16.mxu0 0
    %5106 = vmatpush1.bf16.msra.mxu0 %v4838
    %5107 = vmatprep.subr.bf16.mxu0 0
    %5108 = vmatpush1.bf16.msra.mxu0 %v4839
    %5109 = vmatprep.subr.bf16.mxu0 0
    %5110 = vmatpush1.bf16.msra.mxu0 %v4840
    %5111 = vmatprep.subr.bf16.mxu0 0
    %5112 = vmatpush1.bf16.msra.mxu0 %v4841
    %5113 = vmatprep.subr.bf16.mxu0 0
    %5114 = vmatpush1.bf16.msra.mxu0 %v4842
    %5115 = vmatprep.mubr.bf16.mxu0 %v4300
    %5116 = vmatmul.mubr.bf16.gmra.mrb[0].mxu0 %v4299
    %v5117 = vpop.f32.mrb[0].mxu0
    %v5118 = vadd.f32 %v2758, %v5117
    %v5119 = vpop.f32.mrb[0].mxu0
    %v5120 = vpop.f32.mrb[0].mxu0
    %v5121 = vadd.f32 %v2758, %v5120
    %v5122 = vpop.f32.mrb[0].mxu0
    %5123 = vdwg.mxu0
    %5124 = vmatprep.subr.bf16.mxu0 0
    %5125 = vmatpush1.bf16.msra.mxu0 %v4843
    %5126 = vmatprep.subr.bf16.mxu0 0
    %5127 = vmatpush1.bf16.msra.mxu0 %v4844
    %5128 = vmatprep.subr.bf16.mxu0 0
    %5129 = vmatpush1.bf16.msra.mxu0 %v4845
    %5130 = vmatprep.subr.bf16.mxu0 0
    %5131 = vmatpush1.bf16.msra.mxu0 %v4846
    %5132 = vmatprep.subr.bf16.mxu0 0
    %5133 = vmatpush1.bf16.msra.mxu0 %v4847
    %5134 = vmatprep.subr.bf16.mxu0 0
    %5135 = vmatpush1.bf16.msra.mxu0 %v4848
    %5136 = vmatprep.subr.bf16.mxu0 0
    %5137 = vmatpush1.bf16.msra.mxu0 %v4849
    %5138 = vmatprep.subr.bf16.mxu0 0
    %5139 = vmatpush1.bf16.msra.mxu0 %v4850
    %5140 = vmatprep.subr.bf16.mxu0 0
    %5141 = vmatpush1.bf16.msra.mxu0 %v4851
    %5142 = vmatprep.subr.bf16.mxu0 0
    %5143 = vmatpush1.bf16.msra.mxu0 %v4852
    %5144 = vmatprep.subr.bf16.mxu0 0
    %5145 = vmatpush1.bf16.msra.mxu0 %v4853
    %5146 = vmatprep.subr.bf16.mxu0 0
    %5147 = vmatpush1.bf16.msra.mxu0 %v4854
    %5148 = vmatprep.subr.bf16.mxu0 0
    %5149 = vmatpush1.bf16.msra.mxu0 %v4855
    %5150 = vmatprep.subr.bf16.mxu0 0
    %5151 = vmatpush1.bf16.msra.mxu0 %v4856
    %5152 = vmatprep.subr.bf16.mxu0 0
    %5153 = vmatpush1.bf16.msra.mxu0 %v4857
    %5154 = vmatprep.subr.bf16.mxu0 0
    %5155 = vmatpush1.bf16.msra.mxu0 %v4858
    %5156 = vmatprep.mubr.bf16.mxu0 %v4302
    %5157 = vmatmul.mubr.bf16.gmra.mrb[0].mxu0 %v4301
    %v5158 = vpop.f32.mrb[0].mxu0
    %v5159 = vadd.f32 %v5118, %v5158
    %v5160 = vpop.f32.mrb[0].mxu0
    %v5161 = vpop.f32.mrb[0].mxu0
    %v5162 = vadd.f32 %v5121, %v5161
    %v5163 = vpop.f32.mrb[0].mxu0
    %5164 = vdwg.mxu0
    %5165 = vmatprep.subr.bf16.mxu0 0
    %5166 = vmatpush1.bf16.msra.mxu0 %v4859
    %5167 = vmatprep.subr.bf16.mxu0 0
    %5168 = vmatpush1.bf16.msra.mxu0 %v4860
    %5169 = vmatprep.subr.bf16.mxu0 0
    %5170 = vmatpush1.bf16.msra.mxu0 %v4861
    %5171 = vmatprep.subr.bf16.mxu0 0
    %5172 = vmatpush1.bf16.msra.mxu0 %v4862
    %5173 = vmatprep.subr.bf16.mxu0 0
    %5174 = vmatpush1.bf16.msra.mxu0 %v4863
    %5175 = vmatprep.subr.bf16.mxu0 0
    %5176 = vmatpush1.bf16.msra.mxu0 %v4864
    %5177 = vmatprep.subr.bf16.mxu0 0
    %5178 = vmatpush1.bf16.msra.mxu0 %v4865
    %5179 = vmatprep.subr.bf16.mxu0 0
    %5180 = vmatpush1.bf16.msra.mxu0 %v4866
    %5181 = vmatprep.subr.bf16.mxu0 0
    %5182 = vmatpush1.bf16.msra.mxu0 %v4867
    %5183 = vmatprep.subr.bf16.mxu0 0
    %5184 = vmatpush1.bf16.msra.mxu0 %v4868
    %5185 = vmatprep.subr.bf16.mxu0 0
    %5186 = vmatpush1.bf16.msra.mxu0 %v4869
    %5187 = vmatprep.subr.bf16.mxu0 0
    %5188 = vmatpush1.bf16.msra.mxu0 %v4870
    %5189 = vmatprep.subr.bf16.mxu0 0
    %5190 = vmatpush1.bf16.msra.mxu0 %v4871
    %5191 = vmatprep.subr.bf16.mxu0 0
    %5192 = vmatpush1.bf16.msra.mxu0 %v4872
    %5193 = vmatprep.subr.bf16.mxu0 0
    %5194 = vmatpush1.bf16.msra.mxu0 %v4873
    %5195 = vmatprep.subr.bf16.mxu0 0
    %5196 = vmatpush1.bf16.msra.mxu0 %v4874
    %5197 = vmatprep.mubr.bf16.mxu0 %v4304
    %5198 = vmatmul.mubr.bf16.gmra.mrb[0].mxu0 %v4303
    %v5199 = vpop.f32.mrb[0].mxu0
    %v5200 = vadd.f32 %v5159, %v5199
    %v5201 = vpop.f32.mrb[0].mxu0
    %v5202 = vpop.f32.mrb[0].mxu0
    %v5203 = vadd.f32 %v5162, %v5202
    %v5204 = vpop.f32.mrb[0].mxu0
    %5205 = vdwg.mxu0
    %5206 = vmatprep.subr.bf16.mxu0 0
    %5207 = vmatpush1.bf16.msra.mxu0 %v4875
    %5208 = vmatprep.subr.bf16.mxu0 0
    %5209 = vmatpush1.bf16.msra.mxu0 %v4876
    %5210 = vmatprep.subr.bf16.mxu0 0
    %5211 = vmatpush1.bf16.msra.mxu0 %v4877
    %5212 = vmatprep.subr.bf16.mxu0 0
    %5213 = vmatpush1.bf16.msra.mxu0 %v4878
    %5214 = vmatprep.subr.bf16.mxu0 0
    %5215 = vmatpush1.bf16.msra.mxu0 %v4879
    %5216 = vmatprep.subr.bf16.mxu0 0
    %5217 = vmatpush1.bf16.msra.mxu0 %v4880
    %5218 = vmatprep.subr.bf16.mxu0 0
    %5219 = vmatpush1.bf16.msra.mxu0 %v4881
    %5220 = vmatprep.subr.bf16.mxu0 0
    %5221 = vmatpush1.bf16.msra.mxu0 %v4882
    %5222 = vmatprep.subr.bf16.mxu0 0
    %5223 = vmatpush1.bf16.msra.mxu0 %v4883
    %5224 = vmatprep.subr.bf16.mxu0 0
    %5225 = vmatpush1.bf16.msra.mxu0 %v4884
    %5226 = vmatprep.subr.bf16.mxu0 0
    %5227 = vmatpush1.bf16.msra.mxu0 %v4885
    %5228 = vmatprep.subr.bf16.mxu0 0
    %5229 = vmatpush1.bf16.msra.mxu0 %v4886
    %5230 = vmatprep.subr.bf16.mxu0 0
    %5231 = vmatpush1.bf16.msra.mxu0 %v4887
    %5232 = vmatprep.subr.bf16.mxu0 0
    %5233 = vmatpush1.bf16.msra.mxu0 %v4888
    %5234 = vmatprep.subr.bf16.mxu0 0
    %5235 = vmatpush1.bf16.msra.mxu0 %v4889
    %5236 = vmatprep.subr.bf16.mxu0 0
    %5237 = vmatpush1.bf16.msra.mxu0 %v4890
    %5238 = vmatprep.mubr.bf16.mxu0 %v4306
    %5239 = vmatmul.mubr.bf16.gmra.mrb[0].mxu0 %v4305
    %v5240 = vpop.f32.mrb[0].mxu0
    %v5241 = vadd.f32 %v5200, %v5240
    %v5242 = vpop.f32.mrb[0].mxu0
    %v5243 = vpop.f32.mrb[0].mxu0
    %v5244 = vadd.f32 %v5203, %v5243
    %v5245 = vpop.f32.mrb[0].mxu0
    %5246 = vdwg.mxu0
    %5247 = vmatprep.subr.bf16.mxu0 0
    %5248 = vmatpush1.bf16.msra.mxu0 %v4891
    %5249 = vmatprep.subr.bf16.mxu0 0
    %5250 = vmatpush1.bf16.msra.mxu0 %v4892
    %5251 = vmatprep.subr.bf16.mxu0 0
    %5252 = vmatpush1.bf16.msra.mxu0 %v4893
    %5253 = vmatprep.subr.bf16.mxu0 0
    %5254 = vmatpush1.bf16.msra.mxu0 %v4894
    %5255 = vmatprep.subr.bf16.mxu0 0
    %5256 = vmatpush1.bf16.msra.mxu0 %v4895
    %5257 = vmatprep.subr.bf16.mxu0 0
    %5258 = vmatpush1.bf16.msra.mxu0 %v4896
    %5259 = vmatprep.subr.bf16.mxu0 0
    %5260 = vmatpush1.bf16.msra.mxu0 %v4897
    %5261 = vmatprep.subr.bf16.mxu0 0
    %5262 = vmatpush1.bf16.msra.mxu0 %v4898
    %5263 = vmatprep.subr.bf16.mxu0 0
    %5264 = vmatpush1.bf16.msra.mxu0 %v4899
    %5265 = vmatprep.subr.bf16.mxu0 0
    %5266 = vmatpush1.bf16.msra.mxu0 %v4900
    %5267 = vmatprep.subr.bf16.mxu0 0
    %5268 = vmatpush1.bf16.msra.mxu0 %v4901
    %5269 = vmatprep.subr.bf16.mxu0 0
    %5270 = vmatpush1.bf16.msra.mxu0 %v4902
    %5271 = vmatprep.subr.bf16.mxu0 0
    %5272 = vmatpush1.bf16.msra.mxu0 %v4903
    %5273 = vmatprep.subr.bf16.mxu0 0
    %5274 = vmatpush1.bf16.msra.mxu0 %v4904
    %5275 = vmatprep.subr.bf16.mxu0 0
    %5276 = vmatpush1.bf16.msra.mxu0 %v4905
    %5277 = vmatprep.subr.bf16.mxu0 0
    %5278 = vmatpush1.bf16.msra.mxu0 %v4906
    %5279 = vmatprep.mubr.bf16.mxu0 %v4308
    %5280 = vmatmul.mubr.bf16.gmra.mrb[0].mxu0 %v4307
    %v5281 = vpop.f32.mrb[0].mxu0
    %v5282 = vadd.f32 %v5241, %v5281
    %v5283 = vpop.f32.mrb[0].mxu0
    %v5284 = vpop.f32.mrb[0].mxu0
    %v5285 = vadd.f32 %v5244, %v5284
    %v5286 = vpop.f32.mrb[0].mxu0
    %5287 = vdwg.mxu0
    %5288 = vmatprep.subr.bf16.mxu0 0
    %5289 = vmatpush1.bf16.msra.mxu0 %v4907
    %5290 = vmatprep.subr.bf16.mxu0 0
    %5291 = vmatpush1.bf16.msra.mxu0 %v4908
    %5292 = vmatprep.subr.bf16.mxu0 0
    %5293 = vmatpush1.bf16.msra.mxu0 %v4909
    %5294 = vmatprep.subr.bf16.mxu0 0
    %5295 = vmatpush1.bf16.msra.mxu0 %v4910
    %5296 = vmatprep.subr.bf16.mxu0 0
    %5297 = vmatpush1.bf16.msra.mxu0 %v4911
    %5298 = vmatprep.subr.bf16.mxu0 0
    %5299 = vmatpush1.bf16.msra.mxu0 %v4912
    %5300 = vmatprep.subr.bf16.mxu0 0
    %5301 = vmatpush1.bf16.msra.mxu0 %v4913
    %5302 = vmatprep.subr.bf16.mxu0 0
    %5303 = vmatpush1.bf16.msra.mxu0 %v4914
    %5304 = vmatprep.subr.bf16.mxu0 0
    %5305 = vmatpush1.bf16.msra.mxu0 %v4915
    %5306 = vmatprep.subr.bf16.mxu0 0
    %5307 = vmatpush1.bf16.msra.mxu0 %v4916
    %5308 = vmatprep.subr.bf16.mxu0 0
    %5309 = vmatpush1.bf16.msra.mxu0 %v4917
    %5310 = vmatprep.subr.bf16.mxu0 0
    %5311 = vmatpush1.bf16.msra.mxu0 %v4918
    %5312 = vmatprep.subr.bf16.mxu0 0
    %5313 = vmatpush1.bf16.msra.mxu0 %v4919
    %5314 = vmatprep.subr.bf16.mxu0 0
    %5315 = vmatpush1.bf16.msra.mxu0 %v4920
    %5316 = vmatprep.subr.bf16.mxu0 0
    %5317 = vmatpush1.bf16.msra.mxu0 %v4921
    %5318 = vmatprep.subr.bf16.mxu0 0
    %5319 = vmatpush1.bf16.msra.mxu0 %v4922
    %5320 = vmatprep.mubr.bf16.mxu0 %v4310
    %5321 = vmatmul.mubr.bf16.gmra.mrb[0].mxu0 %v4309
    %v5322 = vpop.f32.mrb[0].mxu0
    %v5323 = vadd.f32 %v5282, %v5322
    %v5324 = vpop.f32.mrb[0].mxu0
    %v5325 = vpop.f32.mrb[0].mxu0
    %v5326 = vadd.f32 %v5285, %v5325
    %v5327 = vpop.f32.mrb[0].mxu0
    %5328 = vdwg.mxu0
    %5329 = vmatprep.subr.bf16.mxu0 0
    %5330 = vmatpush1.bf16.msra.mxu0 %v4923
    %5331 = vmatprep.subr.bf16.mxu0 0
    %5332 = vmatpush1.bf16.msra.mxu0 %v4924
    %5333 = vmatprep.subr.bf16.mxu0 0
    %5334 = vmatpush1.bf16.msra.mxu0 %v4925
    %5335 = vmatprep.subr.bf16.mxu0 0
    %5336 = vmatpush1.bf16.msra.mxu0 %v4926
    %5337 = vmatprep.subr.bf16.mxu0 0
    %5338 = vmatpush1.bf16.msra.mxu0 %v4927
    %5339 = vmatprep.subr.bf16.mxu0 0
    %5340 = vmatpush1.bf16.msra.mxu0 %v4928
    %5341 = vmatprep.subr.bf16.mxu0 0
    %5342 = vmatpush1.bf16.msra.mxu0 %v4929
    %5343 = vmatprep.subr.bf16.mxu0 0
    %5344 = vmatpush1.bf16.msra.mxu0 %v4930
    %5345 = vmatprep.subr.bf16.mxu0 0
    %5346 = vmatpush1.bf16.msra.mxu0 %v4931
    %5347 = vmatprep.subr.bf16.mxu0 0
    %5348 = vmatpush1.bf16.msra.mxu0 %v4932
    %5349 = vmatprep.subr.bf16.mxu0 0
    %5350 = vmatpush1.bf16.msra.mxu0 %v4933
    %5351 = vmatprep.subr.bf16.mxu0 0
    %5352 = vmatpush1.bf16.msra.mxu0 %v4934
    %5353 = vmatprep.subr.bf16.mxu0 0
    %5354 = vmatpush1.bf16.msra.mxu0 %v4935
    %5355 = vmatprep.subr.bf16.mxu0 0
    %5356 = vmatpush1.bf16.msra.mxu0 %v4936
    %5357 = vmatprep.subr.bf16.mxu0 0
    %5358 = vmatpush1.bf16.msra.mxu0 %v4937
    %5359 = vmatprep.subr.bf16.mxu0 0
    %5360 = vmatpush1.bf16.msra.mxu0 %v4938
    %5361 = vmatprep.mubr.bf16.mxu0 %v4312
    %5362 = vmatmul.mubr.bf16.gmra.mrb[0].mxu0 %v4311
    %v5363 = vpop.f32.mrb[0].mxu0
    %v5364 = vadd.f32 %v5323, %v5363
    %v5365 = vpop.f32.mrb[0].mxu0
    %v5366 = vpop.f32.mrb[0].mxu0
    %v5367 = vadd.f32 %v5326, %v5366
    %v5368 = vpop.f32.mrb[0].mxu0
    %5369 = vdwg.mxu0
    %5370 = vmatprep.subr.bf16.mxu0 0
    %5371 = vmatpush1.bf16.msra.mxu0 %v4939
    %5372 = vmatprep.subr.bf16.mxu0 0
    %5373 = vmatpush1.bf16.msra.mxu0 %v4940
    %5374 = vmatprep.subr.bf16.mxu0 0
    %5375 = vmatpush1.bf16.msra.mxu0 %v4941
    %5376 = vmatprep.subr.bf16.mxu0 0
    %5377 = vmatpush1.bf16.msra.mxu0 %v4942
    %5378 = vmatprep.subr.bf16.mxu0 0
    %5379 = vmatpush1.bf16.msra.mxu0 %v4943
    %5380 = vmatprep.subr.bf16.mxu0 0
    %5381 = vmatpush1.bf16.msra.mxu0 %v4944
    %5382 = vmatprep.subr.bf16.mxu0 0
    %5383 = vmatpush1.bf16.msra.mxu0 %v4945
    %5384 = vmatprep.subr.bf16.mxu0 0
    %5385 = vmatpush1.bf16.msra.mxu0 %v4946
    %5386 = vmatprep.subr.bf16.mxu0 0
    %5387 = vmatpush1.bf16.msra.mxu0 %v4947
    %5388 = vmatprep.subr.bf16.mxu0 0
    %5389 = vmatpush1.bf16.msra.mxu0 %v4948
    %5390 = vmatprep.subr.bf16.mxu0 0
    %5391 = vmatpush1.bf16.msra.mxu0 %v4949
    %5392 = vmatprep.subr.bf16.mxu0 0
    %5393 = vmatpush1.bf16.msra.mxu0 %v4950
    %5394 = vmatprep.subr.bf16.mxu0 0
    %5395 = vmatpush1.bf16.msra.mxu0 %v4951
    %5396 = vmatprep.subr.bf16.mxu0 0
    %5397 = vmatpush1.bf16.msra.mxu0 %v4952
    %5398 = vmatprep.subr.bf16.mxu0 0
    %5399 = vmatpush1.bf16.msra.mxu0 %v4953
    %5400 = vmatprep.subr.bf16.mxu0 0
    %5401 = vmatpush1.bf16.msra.mxu0 %v4954
    %5402 = vmatprep.mubr.bf16.mxu0 %v4314
    %5403 = vmatmul.mubr.bf16.gmra.mrb[0].mxu0 %v4313
    %v5404 = vpop.f32.mrb[0].mxu0
    %v5405 = vadd.f32 %v5364, %v5404
    %v5406 = vpop.f32.mrb[0].mxu0
    %v5407 = vpop.f32.mrb[0].mxu0
    %v5408 = vadd.f32 %v5367, %v5407
    %v5409 = vpop.f32.mrb[0].mxu0
    %5410 = vdwg.mxu0
    %v5411 = vadd.f32 %v3675, %v5405
    %v5412 = vadd.f32 %v3676, %v5408
    %v5413 = vsel %vm536, %v5411, 0.0
    %5414 = vadd.xlane.f32.xlu0 %v5413
    %v5415 = vpop.xlane.xlu0 %5414
    %v5416 = vsel %vm536, %v5412, 0.0
    %5417 = vadd.xlane.f32.xlu0 %v5416
    %v5418 = vpop.xlane.xlu0 %5417
    %v5419 = vmul.f32 %v5415, %v930
    %v5420 = vmul.f32 %v5418, %v930
    %v5421 = vsub.f32 %v5411, %v5419
    %v5422 = vsub.f32 %v5412, %v5420
    %v5423 = vmul.f32 %v5421, %v5421
    %v5424 = vmul.f32 %v5422, %v5422
    %v5425 = vsel %vm536, %v5423, 0.0
    %5426 = vadd.xlane.f32.xlu0 %v5425
    %v5427 = vpop.xlane.xlu0 %5426
    %v5428 = vsel %vm536, %v5424, 0.0
    %5429 = vadd.xlane.f32.xlu0 %v5428
    %v5430 = vpop.xlane.xlu0 %5429
    %v5431 = vmul.f32 %v5427, %v930
    %v5432 = vmul.f32 %v5430, %v930
    %v5433 = vadd.f32 %v5431, 1e-05
    %v5434 = vadd.f32 %v5432, 1e-05
    %v5435 = vrsqrt.pop %v5433
    %v5436 = vrsqrt.pop %v5434
    %v5437 = vmul.f32 %v5421, %v5435
    %v5438 = vmul.f32 %v5422, %v5436
    %v5439 = vmul.f32 %v5437, %v2762
    %v5440 = vmul.f32 %v5438, %v2762
    %v5441 = vadd.f32 %v5439, %v2766
    %v5442 = vadd.f32 %v5440, %v2766
    %v5443 = vsel %vm536, %v5441, 0.0
    %5444 = vadd.xlane.f32.xlu0 %v5443
    %v5445 = vpop.xlane.xlu0 %5444
    %v5446 = vsel %vm536, %v5442, 0.0
    %5447 = vadd.xlane.f32.xlu0 %v5446
    %v5448 = vpop.xlane.xlu0 %5447
    %v5449 = vmul.f32 %v5445, %v930
    %v5450 = vmul.f32 %v5448, %v930
    %v5451 = vsub.f32 %v5441, %v5449
    %v5452 = vsub.f32 %v5442, %v5450
    %v5453 = vmul.f32 %v5451, %v5451
    %v5454 = vmul.f32 %v5452, %v5452
    %v5455 = vsel %vm536, %v5453, 0.0
    %5456 = vadd.xlane.f32.xlu0 %v5455
    %v5457 = vpop.xlane.xlu0 %5456
    %v5458 = vsel %vm536, %v5454, 0.0
    %5459 = vadd.xlane.f32.xlu0 %v5458
    %v5460 = vpop.xlane.xlu0 %5459
    %v5461 = vmul.f32 %v5457, %v930
    %v5462 = vmul.f32 %v5460, %v930
    %v5463 = vadd.f32 %v5461, 1e-05
    %v5464 = vadd.f32 %v5462, 1e-05
    %v5465 = vrsqrt.pop %v5463
    %v5466 = vrsqrt.pop %v5464
    %v5467 = vmul.f32 %v5451, %v5465
    %v5468 = vmul.f32 %v5452, %v5466
    %v5469 = vmul.f32 %v5467, %v56
    %v5470 = vmul.f32 %v5468, %v56
    %v5471 = vadd.f32 %v5469, %v60
    %v5472 = vadd.f32 %v5470, %v60
    %v5473 = vpack.c.bf16 %v5472, %v5471
    %v5475 = vsel %vm536, %v5473, 0
    %5477 = vmatprep.subr.bf16.mxu0 0
    %5478 = vmatpush1.bf16.msra.mxu0 %v3169
    %5479 = vmatprep.subr.bf16.mxu0 0
    %5480 = vmatpush1.bf16.msra.mxu0 %v3170
    %5481 = vmatprep.subr.bf16.mxu0 0
    %5482 = vmatpush1.bf16.msra.mxu0 0
    %5483 = vmatprep.subr.bf16.mxu0 0
    %5484 = vmatpush1.bf16.msra.mxu0 0
    %5485 = vmatprep.subr.bf16.mxu0 0
    %5486 = vmatpush1.bf16.msra.mxu0 0
    %5487 = vmatprep.subr.bf16.mxu0 0
    %5488 = vmatpush1.bf16.msra.mxu0 0
    %5489 = vmatprep.subr.bf16.mxu0 0
    %5490 = vmatpush1.bf16.msra.mxu0 0
    %5491 = vmatprep.subr.bf16.mxu0 0
    %5492 = vmatpush1.bf16.msra.mxu0 0
    %5493 = vmatprep.subr.bf16.mxu0 0
    %5494 = vmatpush1.bf16.msra.mxu0 0
    %5495 = vmatprep.subr.bf16.mxu0 0
    %5496 = vmatpush1.bf16.msra.mxu0 0
    %5497 = vmatprep.subr.bf16.mxu0 0
    %5498 = vmatpush1.bf16.msra.mxu0 0
    %5499 = vmatprep.subr.bf16.mxu0 0
    %5500 = vmatpush1.bf16.msra.mxu0 0
    %5501 = vmatprep.subr.bf16.mxu0 0
    %5502 = vmatpush1.bf16.msra.mxu0 0
    %5503 = vmatprep.subr.bf16.mxu0 0
    %5504 = vmatpush1.bf16.msra.mxu0 0
    %5505 = vmatprep.subr.bf16.mxu0 0
    %5506 = vmatpush1.bf16.msra.mxu0 0
    %5507 = vmatprep.subr.bf16.mxu0 0
    %5508 = vmatpush1.bf16.msra.mxu0 0
    %5509 = vmatprep.mubr.bf16.mxu0 0
    %5510 = vmatmul.mubr.bf16.gmra.mrb[0].mxu0 %v5475
    %v5511 = vpop.f32.mrb[0].mxu0
    %v5512 = vadd.f32 %v3152, %v5511
    %v5513 = vpop.f32.mrb[0].mxu0
    %v5514 = vpop.f32.mrb[0].mxu0
    %v5515 = vadd.f32 %v3155, %v5514
    %v5516 = vpop.f32.mrb[0].mxu0
    %5517 = vdwg.mxu0
    %v5518 = vpack.c.bf16 %v5515, %v5512
    %v5520 = vsel %vm536, %v5518, 0
    %5522 = vmatprep.subr.bf16.mxu0 %v3255
    %5523 = vmatpush1.bf16.msra.mxu0 %v3254
    %5524 = vmatprep.subr.bf16.mxu0 %v3258
    %5525 = vmatpush1.bf16.msra.mxu0 %v3257
    %5526 = vmatprep.subr.bf16.mxu0 0
    %5527 = vmatpush1.bf16.msra.mxu0 0
    %5528 = vmatprep.subr.bf16.mxu0 0
    %5529 = vmatpush1.bf16.msra.mxu0 0
    %5530 = vmatprep.subr.bf16.mxu0 0
    %5531 = vmatpush1.bf16.msra.mxu0 0
    %5532 = vmatprep.subr.bf16.mxu0 0
    %5533 = vmatpush1.bf16.msra.mxu0 0
    %5534 = vmatprep.subr.bf16.mxu0 0
    %5535 = vmatpush1.bf16.msra.mxu0 0
    %5536 = vmatprep.subr.bf16.mxu0 0
    %5537 = vmatpush1.bf16.msra.mxu0 0
    %5538 = vmatprep.subr.bf16.mxu0 0
    %5539 = vmatpush1.bf16.msra.mxu0 0
    %5540 = vmatprep.subr.bf16.mxu0 0
    %5541 = vmatpush1.bf16.msra.mxu0 0
    %5542 = vmatprep.subr.bf16.mxu0 0
    %5543 = vmatpush1.bf16.msra.mxu0 0
    %5544 = vmatprep.subr.bf16.mxu0 0
    %5545 = vmatpush1.bf16.msra.mxu0 0
    %5546 = vmatprep.subr.bf16.mxu0 0
    %5547 = vmatpush1.bf16.msra.mxu0 0
    %5548 = vmatprep.subr.bf16.mxu0 0
    %5549 = vmatpush1.bf16.msra.mxu0 0
    %5550 = vmatprep.subr.bf16.mxu0 0
    %5551 = vmatpush1.bf16.msra.mxu0 0
    %5552 = vmatprep.subr.bf16.mxu0 0
    %5553 = vmatpush1.bf16.msra.mxu0 0
    %5554 = vmatprep.mubr.bf16.mxu0 0
    %5555 = vmatmul.mubr.bf16.gmra.mrb[0].mxu0 %v5520
    %v5556 = vpop.f32.mrb[0].mxu0
    %v5557 = vadd.f32 %v3222, %v5556
    %v5558 = vpop.f32.mrb[0].mxu0
    %v5559 = vadd.f32 %v3226, %v5558
    %v5560 = vpop.f32.mrb[0].mxu0
    %v5561 = vadd.f32 %v3222, %v5560
    %v5562 = vpop.f32.mrb[0].mxu0
    %v5563 = vadd.f32 %v3226, %v5562
    %5564 = vdwg.mxu0
    %5565 = vmatprep.subr.bf16.mxu0 0
    %5566 = vmatpush1.bf16.msra.mxu0 %v3256
    %5567 = vmatprep.subr.bf16.mxu0 0
    %5568 = vmatpush1.bf16.msra.mxu0 %v3259
    %5569 = vmatprep.subr.bf16.mxu0 0
    %5570 = vmatpush1.bf16.msra.mxu0 0
    %5571 = vmatprep.subr.bf16.mxu0 0
    %5572 = vmatpush1.bf16.msra.mxu0 0
    %5573 = vmatprep.subr.bf16.mxu0 0
    %5574 = vmatpush1.bf16.msra.mxu0 0
    %5575 = vmatprep.subr.bf16.mxu0 0
    %5576 = vmatpush1.bf16.msra.mxu0 0
    %5577 = vmatprep.subr.bf16.mxu0 0
    %5578 = vmatpush1.bf16.msra.mxu0 0
    %5579 = vmatprep.subr.bf16.mxu0 0
    %5580 = vmatpush1.bf16.msra.mxu0 0
    %5581 = vmatprep.subr.bf16.mxu0 0
    %5582 = vmatpush1.bf16.msra.mxu0 0
    %5583 = vmatprep.subr.bf16.mxu0 0
    %5584 = vmatpush1.bf16.msra.mxu0 0
    %5585 = vmatprep.subr.bf16.mxu0 0
    %5586 = vmatpush1.bf16.msra.mxu0 0
    %5587 = vmatprep.subr.bf16.mxu0 0
    %5588 = vmatpush1.bf16.msra.mxu0 0
    %5589 = vmatprep.subr.bf16.mxu0 0
    %5590 = vmatpush1.bf16.msra.mxu0 0
    %5591 = vmatprep.subr.bf16.mxu0 0
    %5592 = vmatpush1.bf16.msra.mxu0 0
    %5593 = vmatprep.subr.bf16.mxu0 0
    %5594 = vmatpush1.bf16.msra.mxu0 0
    %5595 = vmatprep.subr.bf16.mxu0 0
    %5596 = vmatpush1.bf16.msra.mxu0 0
    %5597 = vmatprep.mubr.bf16.mxu0 0
    %5598 = vmatmul.mubr.bf16.gmra.mrb[0].mxu0 %v5520
    %v5599 = vpop.f32.mrb[0].mxu0
    %v5600 = vadd.f32 %v3230, %v5599
    %v5601 = vpop.f32.mrb[0].mxu0
    %v5602 = vpop.f32.mrb[0].mxu0
    %v5603 = vadd.f32 %v3230, %v5602
    %v5604 = vpop.f32.mrb[0].mxu0
    %5605 = vdwg.mxu0
    %v5606 = vpack.c.bf16 %v5557, %v5557
    %v5607 = vpack.c.bf16 %v5561, %v5561
    %v5608 = vpack.c.bf16 %v5559, %v5559
    %v5609 = vpack.c.bf16 %v5563, %v5563
    %5610 = vmatprep.subr.bf16.mxu0 0
    %5611 = vmatpush1.bf16.xpose.msra.mxu0 %v5608
    %5612 = vmatprep.subr.bf16.mxu0 0
    %5613 = vmatpush1.bf16.xpose.msra.mxu0 0
    %5614 = vmatprep.subr.bf16.mxu0 0
    %5615 = vmatpush1.bf16.xpose.msra.mxu0 0
    %5616 = vmatprep.subr.bf16.mxu0 0
    %5617 = vmatpush1.bf16.xpose.msra.mxu0 0
    %5618 = vmatprep.subr.bf16.mxu0 0
    %5619 = vmatpush1.bf16.xpose.msra.mxu0 0
    %5620 = vmatprep.subr.bf16.mxu0 0
    %5621 = vmatpush1.bf16.xpose.msra.mxu0 0
    %5622 = vmatprep.subr.bf16.mxu0 0
    %5623 = vmatpush1.bf16.xpose.msra.mxu0 0
    %5624 = vmatprep.subr.bf16.mxu0 0
    %5625 = vmatpush1.bf16.xpose.msra.mxu0 0
    %5626 = vmatprep.subr.bf16.mxu0 0
    %5627 = vmatpush1.bf16.xpose.msra.mxu0 0
    %5628 = vmatprep.subr.bf16.mxu0 0
    %5629 = vmatpush1.bf16.xpose.msra.mxu0 0
    %5630 = vmatprep.subr.bf16.mxu0 0
    %5631 = vmatpush1.bf16.xpose.msra.mxu0 0
    %5632 = vmatprep.subr.bf16.mxu0 0
    %5633 = vmatpush1.bf16.xpose.msra.mxu0 0
    %5634 = vmatprep.subr.bf16.mxu0 0
    %5635 = vmatpush1.bf16.xpose.msra.mxu0 0
    %5636 = vmatprep.subr.bf16.mxu0 0
    %5637 = vmatpush1.bf16.xpose.msra.mxu0 0
    %5638 = vmatprep.subr.bf16.mxu0 0
    %5639 = vmatpush1.bf16.xpose.msra.mxu0 0
    %5640 = vmatprep.subr.bf16.mxu0 0
    %5641 = vmatpush1.bf16.xpose.msra.mxu0 0
    %5642 = vmatprep.mubr.bf16.mxu0 0
    %5643 = vmatmul.mubr.bf16.gmra.mrb[0].mxu0 %v5606
    %v5644 = vpop.f32.mrb[0].mxu0
    %v5645 = vadd.f32 0.0, %v5644
    %v5646 = vpop.f32.mrb[0].mxu0
    %v5647 = vpop.f32.mrb[0].mxu0
    %v5648 = vpop.f32.mrb[0].mxu0
    %5649 = vdwg.mxu0
    %5650 = vmatprep.subr.bf16.mxu0 0
    %5651 = vmatpush1.bf16.xpose.msra.mxu0 %v5609
    %5652 = vmatprep.subr.bf16.mxu0 0
    %5653 = vmatpush1.bf16.xpose.msra.mxu0 0
    %5654 = vmatprep.subr.bf16.mxu0 0
    %5655 = vmatpush1.bf16.xpose.msra.mxu0 0
    %5656 = vmatprep.subr.bf16.mxu0 0
    %5657 = vmatpush1.bf16.xpose.msra.mxu0 0
    %5658 = vmatprep.subr.bf16.mxu0 0
    %5659 = vmatpush1.bf16.xpose.msra.mxu0 0
    %5660 = vmatprep.subr.bf16.mxu0 0
    %5661 = vmatpush1.bf16.xpose.msra.mxu0 0
    %5662 = vmatprep.subr.bf16.mxu0 0
    %5663 = vmatpush1.bf16.xpose.msra.mxu0 0
    %5664 = vmatprep.subr.bf16.mxu0 0
    %5665 = vmatpush1.bf16.xpose.msra.mxu0 0
    %5666 = vmatprep.subr.bf16.mxu0 0
    %5667 = vmatpush1.bf16.xpose.msra.mxu0 0
    %5668 = vmatprep.subr.bf16.mxu0 0
    %5669 = vmatpush1.bf16.xpose.msra.mxu0 0
    %5670 = vmatprep.subr.bf16.mxu0 0
    %5671 = vmatpush1.bf16.xpose.msra.mxu0 0
    %5672 = vmatprep.subr.bf16.mxu0 0
    %5673 = vmatpush1.bf16.xpose.msra.mxu0 0
    %5674 = vmatprep.subr.bf16.mxu0 0
    %5675 = vmatpush1.bf16.xpose.msra.mxu0 0
    %5676 = vmatprep.subr.bf16.mxu0 0
    %5677 = vmatpush1.bf16.xpose.msra.mxu0 0
    %5678 = vmatprep.subr.bf16.mxu0 0
    %5679 = vmatpush1.bf16.xpose.msra.mxu0 0
    %5680 = vmatprep.subr.bf16.mxu0 0
    %5681 = vmatpush1.bf16.xpose.msra.mxu0 0
    %5682 = vmatprep.mubr.bf16.mxu0 0
    %5683 = vmatmul.mubr.bf16.gmra.mrb[0].mxu0 %v5607
    %v5684 = vpop.f32.mrb[0].mxu0
    %v5685 = vadd.f32 0.0, %v5684
    %v5686 = vpop.f32.mrb[0].mxu0
    %v5687 = vpop.f32.mrb[0].mxu0
    %v5688 = vpop.f32.mrb[0].mxu0
    %5689 = vdwg.mxu0
    %v5690 = vsel %vm708, %v5645, -inf
    %5691 = vmax.xlane.f32.xlu0 %v5690
    %v5692 = vpop.xlane.xlu0 %5691
    %v5693 = vsel %vm708, %v5685, -inf
    %5694 = vmax.xlane.f32.xlu0 %v5693
    %v5695 = vpop.xlane.xlu0 %5694
    %v5696 = vsub.f32 %v5645, %v5692
    %v5697 = vsub.f32 %v5685, %v5695
    %v5698 = vmul.f32 %v5696, 1.442695
    %v5699 = vpow.pop %v5698
    %v5700 = vmul.f32 %v5697, 1.442695
    %v5701 = vpow.pop %v5700
    %v5702 = vsel %vm708, %v5699, 0.0
    %5703 = vadd.xlane.f32.xlu0 %v5702
    %v5704 = vpop.xlane.xlu0 %5703
    %v5705 = vsel %vm708, %v5701, 0.0
    %5706 = vadd.xlane.f32.xlu0 %v5705
    %v5707 = vpop.xlane.xlu0 %5706
    %v5708 = vrcp.pop %v5704
    %v5709 = vrcp.pop %v5707
    %v5710 = vmul.f32 %v5699, %v5708
    %v5711 = vmul.f32 %v5701, %v5709
    %v5712 = vpack.c.bf16 %v5710, %v5710
    %v5713 = vpack.c.bf16 %v5711, %v5711
    %v5714 = vpack.c.bf16 %v5600, %v5600
    %v5715 = vpack.c.bf16 %v5603, %v5603
    %v5717 = vsel %vm708, %v5712, 0
    %v5720 = vsel %vm738, %v5714, 0
    %5722 = vmatprep.subr.bf16.mxu0 0
    %5723 = vmatpush1.bf16.msra.mxu0 %v5720
    %5724 = vmatprep.subr.bf16.mxu0 0
    %5725 = vmatpush1.bf16.msra.mxu0 0
    %5726 = vmatprep.subr.bf16.mxu0 0
    %5727 = vmatpush1.bf16.msra.mxu0 0
    %5728 = vmatprep.subr.bf16.mxu0 0
    %5729 = vmatpush1.bf16.msra.mxu0 0
    %5730 = vmatprep.subr.bf16.mxu0 0
    %5731 = vmatpush1.bf16.msra.mxu0 0
    %5732 = vmatprep.subr.bf16.mxu0 0
    %5733 = vmatpush1.bf16.msra.mxu0 0
    %5734 = vmatprep.subr.bf16.mxu0 0
    %5735 = vmatpush1.bf16.msra.mxu0 0
    %5736 = vmatprep.subr.bf16.mxu0 0
    %5737 = vmatpush1.bf16.msra.mxu0 0
    %5738 = vmatprep.subr.bf16.mxu0 0
    %5739 = vmatpush1.bf16.msra.mxu0 0
    %5740 = vmatprep.subr.bf16.mxu0 0
    %5741 = vmatpush1.bf16.msra.mxu0 0
    %5742 = vmatprep.subr.bf16.mxu0 0
    %5743 = vmatpush1.bf16.msra.mxu0 0
    %5744 = vmatprep.subr.bf16.mxu0 0
    %5745 = vmatpush1.bf16.msra.mxu0 0
    %5746 = vmatprep.subr.bf16.mxu0 0
    %5747 = vmatpush1.bf16.msra.mxu0 0
    %5748 = vmatprep.subr.bf16.mxu0 0
    %5749 = vmatpush1.bf16.msra.mxu0 0
    %5750 = vmatprep.subr.bf16.mxu0 0
    %5751 = vmatpush1.bf16.msra.mxu0 0
    %5752 = vmatprep.subr.bf16.mxu0 0
    %5753 = vmatpush1.bf16.msra.mxu0 0
    %5754 = vmatprep.mubr.bf16.mxu0 0
    %5755 = vmatmul.mubr.bf16.gmra.mrb[0].mxu0 %v5717
    %v5756 = vpop.f32.mrb[0].mxu0
    %v5757 = vadd.f32 0.0, %v5756
    %v5758 = vpop.f32.mrb[0].mxu0
    %v5759 = vpop.f32.mrb[0].mxu0
    %v5760 = vpop.f32.mrb[0].mxu0
    %5761 = vdwg.mxu0
    %v5763 = vsel %vm708, %v5713, 0
    %v5766 = vsel %vm738, %v5715, 0
    %5768 = vmatprep.subr.bf16.mxu0 0
    %5769 = vmatpush1.bf16.msra.mxu0 %v5766
    %5770 = vmatprep.subr.bf16.mxu0 0
    %5771 = vmatpush1.bf16.msra.mxu0 0
    %5772 = vmatprep.subr.bf16.mxu0 0
    %5773 = vmatpush1.bf16.msra.mxu0 0
    %5774 = vmatprep.subr.bf16.mxu0 0
    %5775 = vmatpush1.bf16.msra.mxu0 0
    %5776 = vmatprep.subr.bf16.mxu0 0
    %5777 = vmatpush1.bf16.msra.mxu0 0
    %5778 = vmatprep.subr.bf16.mxu0 0
    %5779 = vmatpush1.bf16.msra.mxu0 0
    %5780 = vmatprep.subr.bf16.mxu0 0
    %5781 = vmatpush1.bf16.msra.mxu0 0
    %5782 = vmatprep.subr.bf16.mxu0 0
    %5783 = vmatpush1.bf16.msra.mxu0 0
    %5784 = vmatprep.subr.bf16.mxu0 0
    %5785 = vmatpush1.bf16.msra.mxu0 0
    %5786 = vmatprep.subr.bf16.mxu0 0
    %5787 = vmatpush1.bf16.msra.mxu0 0
    %5788 = vmatprep.subr.bf16.mxu0 0
    %5789 = vmatpush1.bf16.msra.mxu0 0
    %5790 = vmatprep.subr.bf16.mxu0 0
    %5791 = vmatpush1.bf16.msra.mxu0 0
    %5792 = vmatprep.subr.bf16.mxu0 0
    %5793 = vmatpush1.bf16.msra.mxu0 0
    %5794 = vmatprep.subr.bf16.mxu0 0
    %5795 = vmatpush1.bf16.msra.mxu0 0
    %5796 = vmatprep.subr.bf16.mxu0 0
    %5797 = vmatpush1.bf16.msra.mxu0 0
    %5798 = vmatprep.subr.bf16.mxu0 0
    %5799 = vmatpush1.bf16.msra.mxu0 0
    %5800 = vmatprep.mubr.bf16.mxu0 0
    %5801 = vmatmul.mubr.bf16.gmra.mrb[0].mxu0 %v5763
    %v5802 = vpop.f32.mrb[0].mxu0
    %v5803 = vadd.f32 0.0, %v5802
    %v5804 = vpop.f32.mrb[0].mxu0
    %v5805 = vpop.f32.mrb[0].mxu0
    %v5806 = vpop.f32.mrb[0].mxu0
    %5807 = vdwg.mxu0
    %v5808 = vpack.c.bf16 %v5803, %v5757
    %5809 = vmatprep.subr.bf16.mxu0 0
    %5810 = vmatpush1.bf16.msra.mxu0 %v3588
    %5811 = vmatprep.subr.bf16.mxu0 0
    %5812 = vmatpush1.bf16.msra.mxu0 %v3589
    %5813 = vmatprep.subr.bf16.mxu0 0
    %5814 = vmatpush1.bf16.msra.mxu0 %v3590
    %5815 = vmatprep.subr.bf16.mxu0 0
    %5816 = vmatpush1.bf16.msra.mxu0 %v3591
    %5817 = vmatprep.subr.bf16.mxu0 0
    %5818 = vmatpush1.bf16.msra.mxu0 %v3592
    %5819 = vmatprep.subr.bf16.mxu0 0
    %5820 = vmatpush1.bf16.msra.mxu0 %v3593
    %5821 = vmatprep.subr.bf16.mxu0 0
    %5822 = vmatpush1.bf16.msra.mxu0 %v3594
    %5823 = vmatprep.subr.bf16.mxu0 0
    %5824 = vmatpush1.bf16.msra.mxu0 %v3595
    %5825 = vmatprep.subr.bf16.mxu0 0
    %5826 = vmatpush1.bf16.msra.mxu0 0
    %5827 = vmatprep.subr.bf16.mxu0 0
    %5828 = vmatpush1.bf16.msra.mxu0 0
    %5829 = vmatprep.subr.bf16.mxu0 0
    %5830 = vmatpush1.bf16.msra.mxu0 0
    %5831 = vmatprep.subr.bf16.mxu0 0
    %5832 = vmatpush1.bf16.msra.mxu0 0
    %5833 = vmatprep.subr.bf16.mxu0 0
    %5834 = vmatpush1.bf16.msra.mxu0 0
    %5835 = vmatprep.subr.bf16.mxu0 0
    %5836 = vmatpush1.bf16.msra.mxu0 0
    %5837 = vmatprep.subr.bf16.mxu0 0
    %5838 = vmatpush1.bf16.msra.mxu0 0
    %5839 = vmatprep.subr.bf16.mxu0 0
    %5840 = vmatpush1.bf16.msra.mxu0 0
    %5841 = vmatprep.mubr.bf16.mxu0 0
    %5842 = vmatmul.mubr.bf16.gmra.mrb[0].mxu0 %v5808
    %v5843 = vpop.f32.mrb[0].mxu0
    %v5844 = vadd.f32 %v2746, %v5843
    %v5845 = vpop.f32.mrb[0].mxu0
    %v5846 = vpop.f32.mrb[0].mxu0
    %v5847 = vadd.f32 %v2746, %v5846
    %v5848 = vpop.f32.mrb[0].mxu0
    %5849 = vdwg.mxu0
    %v5850 = vadd.f32 %v5512, %v5844
    %v5851 = vadd.f32 %v5515, %v5847
    %v5852 = vsel %vm536, %v5850, 0.0
    %5853 = vadd.xlane.f32.xlu0 %v5852
    %v5854 = vpop.xlane.xlu0 %5853
    %v5855 = vsel %vm536, %v5851, 0.0
    %5856 = vadd.xlane.f32.xlu0 %v5855
    %v5857 = vpop.xlane.xlu0 %5856
    %v5858 = vmul.f32 %v5854, %v930
    %v5859 = vmul.f32 %v5857, %v930
    %v5860 = vsub.f32 %v5850, %v5858
    %v5861 = vsub.f32 %v5851, %v5859
    %v5862 = vmul.f32 %v5860, %v5860
    %v5863 = vmul.f32 %v5861, %v5861
    %v5864 = vsel %vm536, %v5862, 0.0
    %5865 = vadd.xlane.f32.xlu0 %v5864
    %v5866 = vpop.xlane.xlu0 %5865
    %v5867 = vsel %vm536, %v5863, 0.0
    %5868 = vadd.xlane.f32.xlu0 %v5867
    %v5869 = vpop.xlane.xlu0 %5868
    %v5870 = vmul.f32 %v5866, %v930
    %v5871 = vmul.f32 %v5869, %v930
    %v5872 = vadd.f32 %v5870, 1e-05
    %v5873 = vadd.f32 %v5871, 1e-05
    %v5874 = vrsqrt.pop %v5872
    %v5875 = vrsqrt.pop %v5873
    %v5876 = vmul.f32 %v5860, %v5874
    %v5877 = vmul.f32 %v5861, %v5875
    %v5878 = vmul.f32 %v5876, %v2750
    %v5879 = vmul.f32 %v5877, %v2750
    %v5880 = vadd.f32 %v5878, %v2754
    %v5881 = vadd.f32 %v5879, %v2754
    %v5882 = vpack.c.bf16 %v5881, %v5880
    %v5884 = vsel %vm536, %v5882, 0
    %5886 = vmatprep.subr.bf16.mxu0 %v3857
    %5887 = vmatpush1.bf16.msra.mxu0 %v3856
    %5888 = vmatprep.subr.bf16.mxu0 %v3873
    %5889 = vmatpush1.bf16.msra.mxu0 %v3872
    %5890 = vmatprep.subr.bf16.mxu0 0
    %5891 = vmatpush1.bf16.msra.mxu0 0
    %5892 = vmatprep.subr.bf16.mxu0 0
    %5893 = vmatpush1.bf16.msra.mxu0 0
    %5894 = vmatprep.subr.bf16.mxu0 0
    %5895 = vmatpush1.bf16.msra.mxu0 0
    %5896 = vmatprep.subr.bf16.mxu0 0
    %5897 = vmatpush1.bf16.msra.mxu0 0
    %5898 = vmatprep.subr.bf16.mxu0 0
    %5899 = vmatpush1.bf16.msra.mxu0 0
    %5900 = vmatprep.subr.bf16.mxu0 0
    %5901 = vmatpush1.bf16.msra.mxu0 0
    %5902 = vmatprep.subr.bf16.mxu0 0
    %5903 = vmatpush1.bf16.msra.mxu0 0
    %5904 = vmatprep.subr.bf16.mxu0 0
    %5905 = vmatpush1.bf16.msra.mxu0 0
    %5906 = vmatprep.subr.bf16.mxu0 0
    %5907 = vmatpush1.bf16.msra.mxu0 0
    %5908 = vmatprep.subr.bf16.mxu0 0
    %5909 = vmatpush1.bf16.msra.mxu0 0
    %5910 = vmatprep.subr.bf16.mxu0 0
    %5911 = vmatpush1.bf16.msra.mxu0 0
    %5912 = vmatprep.subr.bf16.mxu0 0
    %5913 = vmatpush1.bf16.msra.mxu0 0
    %5914 = vmatprep.subr.bf16.mxu0 0
    %5915 = vmatpush1.bf16.msra.mxu0 0
    %5916 = vmatprep.subr.bf16.mxu0 0
    %5917 = vmatpush1.bf16.msra.mxu0 0
    %5918 = vmatprep.mubr.bf16.mxu0 0
    %5919 = vmatmul.mubr.bf16.gmra.mrb[0].mxu0 %v5884
    %v5920 = vpop.f32.mrb[0].mxu0
    %v5921 = vadd.f32 %v3683, %v5920
    %v5922 = vpop.f32.mrb[0].mxu0
    %v5923 = vadd.f32 %v3687, %v5922
    %v5924 = vpop.f32.mrb[0].mxu0
    %v5925 = vadd.f32 %v3683, %v5924
    %v5926 = vpop.f32.mrb[0].mxu0
    %v5927 = vadd.f32 %v3687, %v5926
    %5928 = vdwg.mxu0
    %5929 = vmatprep.subr.bf16.mxu0 %v3859
    %5930 = vmatpush1.bf16.msra.mxu0 %v3858
    %5931 = vmatprep.subr.bf16.mxu0 %v3875
    %5932 = vmatpush1.bf16.msra.mxu0 %v3874
    %5933 = vmatprep.subr.bf16.mxu0 0
    %5934 = vmatpush1.bf16.msra.mxu0 0
    %5935 = vmatprep.subr.bf16.mxu0 0
    %5936 = vmatpush1.bf16.msra.mxu0 0
    %5937 = vmatprep.subr.bf16.mxu0 0
    %5938 = vmatpush1.bf16.msra.mxu0 0
    %5939 = vmatprep.subr.bf16.mxu0 0
    %5940 = vmatpush1.bf16.msra.mxu0 0
    %5941 = vmatprep.subr.bf16.mxu0 0
    %5942 = vmatpush1.bf16.msra.mxu0 0
    %5943 = vmatprep.subr.bf16.mxu0 0
    %5944 = vmatpush1.bf16.msra.mxu0 0
    %5945 = vmatprep.subr.bf16.mxu0 0
    %5946 = vmatpush1.bf16.msra.mxu0 0
    %5947 = vmatprep.subr.bf16.mxu0 0
    %5948 = vmatpush1.bf16.msra.mxu0 0
    %5949 = vmatprep.subr.bf16.mxu0 0
    %5950 = vmatpush1.bf16.msra.mxu0 0
    %5951 = vmatprep.subr.bf16.mxu0 0
    %5952 = vmatpush1.bf16.msra.mxu0 0
    %5953 = vmatprep.subr.bf16.mxu0 0
    %5954 = vmatpush1.bf16.msra.mxu0 0
    %5955 = vmatprep.subr.bf16.mxu0 0
    %5956 = vmatpush1.bf16.msra.mxu0 0
    %5957 = vmatprep.subr.bf16.mxu0 0
    %5958 = vmatpush1.bf16.msra.mxu0 0
    %5959 = vmatprep.subr.bf16.mxu0 0
    %5960 = vmatpush1.bf16.msra.mxu0 0
    %5961 = vmatprep.mubr.bf16.mxu0 0
    %5962 = vmatmul.mubr.bf16.gmra.mrb[0].mxu0 %v5884
    %v5963 = vpop.f32.mrb[0].mxu0
    %v5964 = vadd.f32 %v3691, %v5963
    %v5965 = vpop.f32.mrb[0].mxu0
    %v5966 = vadd.f32 %v3695, %v5965
    %v5967 = vpop.f32.mrb[0].mxu0
    %v5968 = vadd.f32 %v3691, %v5967
    %v5969 = vpop.f32.mrb[0].mxu0
    %v5970 = vadd.f32 %v3695, %v5969
    %5971 = vdwg.mxu0
    %5972 = vmatprep.subr.bf16.mxu0 %v3861
    %5973 = vmatpush1.bf16.msra.mxu0 %v3860
    %5974 = vmatprep.subr.bf16.mxu0 %v3877
    %5975 = vmatpush1.bf16.msra.mxu0 %v3876
    %5976 = vmatprep.subr.bf16.mxu0 0
    %5977 = vmatpush1.bf16.msra.mxu0 0
    %5978 = vmatprep.subr.bf16.mxu0 0
    %5979 = vmatpush1.bf16.msra.mxu0 0
    %5980 = vmatprep.subr.bf16.mxu0 0
    %5981 = vmatpush1.bf16.msra.mxu0 0
    %5982 = vmatprep.subr.bf16.mxu0 0
    %5983 = vmatpush1.bf16.msra.mxu0 0
    %5984 = vmatprep.subr.bf16.mxu0 0
    %5985 = vmatpush1.bf16.msra.mxu0 0
    %5986 = vmatprep.subr.bf16.mxu0 0
    %5987 = vmatpush1.bf16.msra.mxu0 0
    %5988 = vmatprep.subr.bf16.mxu0 0
    %5989 = vmatpush1.bf16.msra.mxu0 0
    %5990 = vmatprep.subr.bf16.mxu0 0
    %5991 = vmatpush1.bf16.msra.mxu0 0
    %5992 = vmatprep.subr.bf16.mxu0 0
    %5993 = vmatpush1.bf16.msra.mxu0 0
    %5994 = vmatprep.subr.bf16.mxu0 0
    %5995 = vmatpush1.bf16.msra.mxu0 0
    %5996 = vmatprep.subr.bf16.mxu0 0
    %5997 = vmatpush1.bf16.msra.mxu0 0
    %5998 = vmatprep.subr.bf16.mxu0 0
    %5999 = vmatpush1.bf16.msra.mxu0 0
    %6000 = vmatprep.subr.bf16.mxu0 0
    %6001 = vmatpush1.bf16.msra.mxu0 0
    %6002 = vmatprep.subr.bf16.mxu0 0
    %6003 = vmatpush1.bf16.msra.mxu0 0
    %6004 = vmatprep.mubr.bf16.mxu0 0
    %6005 = vmatmul.mubr.bf16.gmra.mrb[0].mxu0 %v5884
    %v6006 = vpop.f32.mrb[0].mxu0
    %v6007 = vadd.f32 %v3699, %v6006
    %v6008 = vpop.f32.mrb[0].mxu0
    %v6009 = vadd.f32 %v3703, %v6008
    %v6010 = vpop.f32.mrb[0].mxu0
    %v6011 = vadd.f32 %v3699, %v6010
    %v6012 = vpop.f32.mrb[0].mxu0
    %v6013 = vadd.f32 %v3703, %v6012
    %6014 = vdwg.mxu0
    %6015 = vmatprep.subr.bf16.mxu0 %v3863
    %6016 = vmatpush1.bf16.msra.mxu0 %v3862
    %6017 = vmatprep.subr.bf16.mxu0 %v3879
    %6018 = vmatpush1.bf16.msra.mxu0 %v3878
    %6019 = vmatprep.subr.bf16.mxu0 0
    %6020 = vmatpush1.bf16.msra.mxu0 0
    %6021 = vmatprep.subr.bf16.mxu0 0
    %6022 = vmatpush1.bf16.msra.mxu0 0
    %6023 = vmatprep.subr.bf16.mxu0 0
    %6024 = vmatpush1.bf16.msra.mxu0 0
    %6025 = vmatprep.subr.bf16.mxu0 0
    %6026 = vmatpush1.bf16.msra.mxu0 0
    %6027 = vmatprep.subr.bf16.mxu0 0
    %6028 = vmatpush1.bf16.msra.mxu0 0
    %6029 = vmatprep.subr.bf16.mxu0 0
    %6030 = vmatpush1.bf16.msra.mxu0 0
    %6031 = vmatprep.subr.bf16.mxu0 0
    %6032 = vmatpush1.bf16.msra.mxu0 0
    %6033 = vmatprep.subr.bf16.mxu0 0
    %6034 = vmatpush1.bf16.msra.mxu0 0
    %6035 = vmatprep.subr.bf16.mxu0 0
    %6036 = vmatpush1.bf16.msra.mxu0 0
    %6037 = vmatprep.subr.bf16.mxu0 0
    %6038 = vmatpush1.bf16.msra.mxu0 0
    %6039 = vmatprep.subr.bf16.mxu0 0
    %6040 = vmatpush1.bf16.msra.mxu0 0
    %6041 = vmatprep.subr.bf16.mxu0 0
    %6042 = vmatpush1.bf16.msra.mxu0 0
    %6043 = vmatprep.subr.bf16.mxu0 0
    %6044 = vmatpush1.bf16.msra.mxu0 0
    %6045 = vmatprep.subr.bf16.mxu0 0
    %6046 = vmatpush1.bf16.msra.mxu0 0
    %6047 = vmatprep.mubr.bf16.mxu0 0
    %6048 = vmatmul.mubr.bf16.gmra.mrb[0].mxu0 %v5884
    %v6049 = vpop.f32.mrb[0].mxu0
    %v6050 = vadd.f32 %v3707, %v6049
    %v6051 = vpop.f32.mrb[0].mxu0
    %v6052 = vadd.f32 %v3711, %v6051
    %v6053 = vpop.f32.mrb[0].mxu0
    %v6054 = vadd.f32 %v3707, %v6053
    %v6055 = vpop.f32.mrb[0].mxu0
    %v6056 = vadd.f32 %v3711, %v6055
    %6057 = vdwg.mxu0
    %6058 = vmatprep.subr.bf16.mxu0 %v3865
    %6059 = vmatpush1.bf16.msra.mxu0 %v3864
    %6060 = vmatprep.subr.bf16.mxu0 %v3881
    %6061 = vmatpush1.bf16.msra.mxu0 %v3880
    %6062 = vmatprep.subr.bf16.mxu0 0
    %6063 = vmatpush1.bf16.msra.mxu0 0
    %6064 = vmatprep.subr.bf16.mxu0 0
    %6065 = vmatpush1.bf16.msra.mxu0 0
    %6066 = vmatprep.subr.bf16.mxu0 0
    %6067 = vmatpush1.bf16.msra.mxu0 0
    %6068 = vmatprep.subr.bf16.mxu0 0
    %6069 = vmatpush1.bf16.msra.mxu0 0
    %6070 = vmatprep.subr.bf16.mxu0 0
    %6071 = vmatpush1.bf16.msra.mxu0 0
    %6072 = vmatprep.subr.bf16.mxu0 0
    %6073 = vmatpush1.bf16.msra.mxu0 0
    %6074 = vmatprep.subr.bf16.mxu0 0
    %6075 = vmatpush1.bf16.msra.mxu0 0
    %6076 = vmatprep.subr.bf16.mxu0 0
    %6077 = vmatpush1.bf16.msra.mxu0 0
    %6078 = vmatprep.subr.bf16.mxu0 0
    %6079 = vmatpush1.bf16.msra.mxu0 0
    %6080 = vmatprep.subr.bf16.mxu0 0
    %6081 = vmatpush1.bf16.msra.mxu0 0
    %6082 = vmatprep.subr.bf16.mxu0 0
    %6083 = vmatpush1.bf16.msra.mxu0 0
    %6084 = vmatprep.subr.bf16.mxu0 0
    %6085 = vmatpush1.bf16.msra.mxu0 0
    %6086 = vmatprep.subr.bf16.mxu0 0
    %6087 = vmatpush1.bf16.msra.mxu0 0
    %6088 = vmatprep.subr.bf16.mxu0 0
    %6089 = vmatpush1.bf16.msra.mxu0 0
    %6090 = vmatprep.mubr.bf16.mxu0 0
    %6091 = vmatmul.mubr.bf16.gmra.mrb[0].mxu0 %v5884
    %v6092 = vpop.f32.mrb[0].mxu0
    %v6093 = vadd.f32 %v3715, %v6092
    %v6094 = vpop.f32.mrb[0].mxu0
    %v6095 = vadd.f32 %v3719, %v6094
    %v6096 = vpop.f32.mrb[0].mxu0
    %v6097 = vadd.f32 %v3715, %v6096
    %v6098 = vpop.f32.mrb[0].mxu0
    %v6099 = vadd.f32 %v3719, %v6098
    %6100 = vdwg.mxu0
    %6101 = vmatprep.subr.bf16.mxu0 %v3867
    %6102 = vmatpush1.bf16.msra.mxu0 %v3866
    %6103 = vmatprep.subr.bf16.mxu0 %v3883
    %6104 = vmatpush1.bf16.msra.mxu0 %v3882
    %6105 = vmatprep.subr.bf16.mxu0 0
    %6106 = vmatpush1.bf16.msra.mxu0 0
    %6107 = vmatprep.subr.bf16.mxu0 0
    %6108 = vmatpush1.bf16.msra.mxu0 0
    %6109 = vmatprep.subr.bf16.mxu0 0
    %6110 = vmatpush1.bf16.msra.mxu0 0
    %6111 = vmatprep.subr.bf16.mxu0 0
    %6112 = vmatpush1.bf16.msra.mxu0 0
    %6113 = vmatprep.subr.bf16.mxu0 0
    %6114 = vmatpush1.bf16.msra.mxu0 0
    %6115 = vmatprep.subr.bf16.mxu0 0
    %6116 = vmatpush1.bf16.msra.mxu0 0
    %6117 = vmatprep.subr.bf16.mxu0 0
    %6118 = vmatpush1.bf16.msra.mxu0 0
    %6119 = vmatprep.subr.bf16.mxu0 0
    %6120 = vmatpush1.bf16.msra.mxu0 0
    %6121 = vmatprep.subr.bf16.mxu0 0
    %6122 = vmatpush1.bf16.msra.mxu0 0
    %6123 = vmatprep.subr.bf16.mxu0 0
    %6124 = vmatpush1.bf16.msra.mxu0 0
    %6125 = vmatprep.subr.bf16.mxu0 0
    %6126 = vmatpush1.bf16.msra.mxu0 0
    %6127 = vmatprep.subr.bf16.mxu0 0
    %6128 = vmatpush1.bf16.msra.mxu0 0
    %6129 = vmatprep.subr.bf16.mxu0 0
    %6130 = vmatpush1.bf16.msra.mxu0 0
    %6131 = vmatprep.subr.bf16.mxu0 0
    %6132 = vmatpush1.bf16.msra.mxu0 0
    %6133 = vmatprep.mubr.bf16.mxu0 0
    %6134 = vmatmul.mubr.bf16.gmra.mrb[0].mxu0 %v5884
    %v6135 = vpop.f32.mrb[0].mxu0
    %v6136 = vadd.f32 %v3723, %v6135
    %v6137 = vpop.f32.mrb[0].mxu0
    %v6138 = vadd.f32 %v3727, %v6137
    %v6139 = vpop.f32.mrb[0].mxu0
    %v6140 = vadd.f32 %v3723, %v6139
    %v6141 = vpop.f32.mrb[0].mxu0
    %v6142 = vadd.f32 %v3727, %v6141
    %6143 = vdwg.mxu0
    %6144 = vmatprep.subr.bf16.mxu0 %v3869
    %6145 = vmatpush1.bf16.msra.mxu0 %v3868
    %6146 = vmatprep.subr.bf16.mxu0 %v3885
    %6147 = vmatpush1.bf16.msra.mxu0 %v3884
    %6148 = vmatprep.subr.bf16.mxu0 0
    %6149 = vmatpush1.bf16.msra.mxu0 0
    %6150 = vmatprep.subr.bf16.mxu0 0
    %6151 = vmatpush1.bf16.msra.mxu0 0
    %6152 = vmatprep.subr.bf16.mxu0 0
    %6153 = vmatpush1.bf16.msra.mxu0 0
    %6154 = vmatprep.subr.bf16.mxu0 0
    %6155 = vmatpush1.bf16.msra.mxu0 0
    %6156 = vmatprep.subr.bf16.mxu0 0
    %6157 = vmatpush1.bf16.msra.mxu0 0
    %6158 = vmatprep.subr.bf16.mxu0 0
    %6159 = vmatpush1.bf16.msra.mxu0 0
    %6160 = vmatprep.subr.bf16.mxu0 0
    %6161 = vmatpush1.bf16.msra.mxu0 0
    %6162 = vmatprep.subr.bf16.mxu0 0
    %6163 = vmatpush1.bf16.msra.mxu0 0
    %6164 = vmatprep.subr.bf16.mxu0 0
    %6165 = vmatpush1.bf16.msra.mxu0 0
    %6166 = vmatprep.subr.bf16.mxu0 0
    %6167 = vmatpush1.bf16.msra.mxu0 0
    %6168 = vmatprep.subr.bf16.mxu0 0
    %6169 = vmatpush1.bf16.msra.mxu0 0
    %6170 = vmatprep.subr.bf16.mxu0 0
    %6171 = vmatpush1.bf16.msra.mxu0 0
    %6172 = vmatprep.subr.bf16.mxu0 0
    %6173 = vmatpush1.bf16.msra.mxu0 0
    %6174 = vmatprep.subr.bf16.mxu0 0
    %6175 = vmatpush1.bf16.msra.mxu0 0
    %6176 = vmatprep.mubr.bf16.mxu0 0
    %6177 = vmatmul.mubr.bf16.gmra.mrb[0].mxu0 %v5884
    %v6178 = vpop.f32.mrb[0].mxu0
    %v6179 = vadd.f32 %v3731, %v6178
    %v6180 = vpop.f32.mrb[0].mxu0
    %v6181 = vadd.f32 %v3735, %v6180
    %v6182 = vpop.f32.mrb[0].mxu0
    %v6183 = vadd.f32 %v3731, %v6182
    %v6184 = vpop.f32.mrb[0].mxu0
    %v6185 = vadd.f32 %v3735, %v6184
    %6186 = vdwg.mxu0
    %6187 = vmatprep.subr.bf16.mxu0 %v3871
    %6188 = vmatpush1.bf16.msra.mxu0 %v3870
    %6189 = vmatprep.subr.bf16.mxu0 %v3887
    %6190 = vmatpush1.bf16.msra.mxu0 %v3886
    %6191 = vmatprep.subr.bf16.mxu0 0
    %6192 = vmatpush1.bf16.msra.mxu0 0
    %6193 = vmatprep.subr.bf16.mxu0 0
    %6194 = vmatpush1.bf16.msra.mxu0 0
    %6195 = vmatprep.subr.bf16.mxu0 0
    %6196 = vmatpush1.bf16.msra.mxu0 0
    %6197 = vmatprep.subr.bf16.mxu0 0
    %6198 = vmatpush1.bf16.msra.mxu0 0
    %6199 = vmatprep.subr.bf16.mxu0 0
    %6200 = vmatpush1.bf16.msra.mxu0 0
    %6201 = vmatprep.subr.bf16.mxu0 0
    %6202 = vmatpush1.bf16.msra.mxu0 0
    %6203 = vmatprep.subr.bf16.mxu0 0
    %6204 = vmatpush1.bf16.msra.mxu0 0
    %6205 = vmatprep.subr.bf16.mxu0 0
    %6206 = vmatpush1.bf16.msra.mxu0 0
    %6207 = vmatprep.subr.bf16.mxu0 0
    %6208 = vmatpush1.bf16.msra.mxu0 0
    %6209 = vmatprep.subr.bf16.mxu0 0
    %6210 = vmatpush1.bf16.msra.mxu0 0
    %6211 = vmatprep.subr.bf16.mxu0 0
    %6212 = vmatpush1.bf16.msra.mxu0 0
    %6213 = vmatprep.subr.bf16.mxu0 0
    %6214 = vmatpush1.bf16.msra.mxu0 0
    %6215 = vmatprep.subr.bf16.mxu0 0
    %6216 = vmatpush1.bf16.msra.mxu0 0
    %6217 = vmatprep.subr.bf16.mxu0 0
    %6218 = vmatpush1.bf16.msra.mxu0 0
    %6219 = vmatprep.mubr.bf16.mxu0 0
    %6220 = vmatmul.mubr.bf16.gmra.mrb[0].mxu0 %v5884
    %v6221 = vpop.f32.mrb[0].mxu0
    %v6222 = vadd.f32 %v3739, %v6221
    %v6223 = vpop.f32.mrb[0].mxu0
    %v6224 = vadd.f32 %v3743, %v6223
    %v6225 = vpop.f32.mrb[0].mxu0
    %v6226 = vadd.f32 %v3739, %v6225
    %v6227 = vpop.f32.mrb[0].mxu0
    %v6228 = vadd.f32 %v3743, %v6227
    %6229 = vdwg.mxu0
    %v6230 = vmax.f32 %v5921, 0.0
    %v6231 = vmax.f32 %v5923, 0.0
    %v6232 = vmax.f32 %v5964, 0.0
    %v6233 = vmax.f32 %v5966, 0.0
    %v6234 = vmax.f32 %v6007, 0.0
    %v6235 = vmax.f32 %v6009, 0.0
    %v6236 = vmax.f32 %v6050, 0.0
    %v6237 = vmax.f32 %v6052, 0.0
    %v6238 = vmax.f32 %v6093, 0.0
    %v6239 = vmax.f32 %v6095, 0.0
    %v6240 = vmax.f32 %v6136, 0.0
    %v6241 = vmax.f32 %v6138, 0.0
    %v6242 = vmax.f32 %v6179, 0.0
    %v6243 = vmax.f32 %v6181, 0.0
    %v6244 = vmax.f32 %v6222, 0.0
    %v6245 = vmax.f32 %v6224, 0.0
    %v6246 = vmax.f32 %v5925, 0.0
    %v6247 = vmax.f32 %v5927, 0.0
    %v6248 = vmax.f32 %v5968, 0.0
    %v6249 = vmax.f32 %v5970, 0.0
    %v6250 = vmax.f32 %v6011, 0.0
    %v6251 = vmax.f32 %v6013, 0.0
    %v6252 = vmax.f32 %v6054, 0.0
    %v6253 = vmax.f32 %v6056, 0.0
    %v6254 = vmax.f32 %v6097, 0.0
    %v6255 = vmax.f32 %v6099, 0.0
    %v6256 = vmax.f32 %v6140, 0.0
    %v6257 = vmax.f32 %v6142, 0.0
    %v6258 = vmax.f32 %v6183, 0.0
    %v6259 = vmax.f32 %v6185, 0.0
    %v6260 = vmax.f32 %v6226, 0.0
    %v6261 = vmax.f32 %v6228, 0.0
    %v6262 = vpack.c.bf16 %v6246, %v6230
    %v6263 = vpack.c.bf16 %v6247, %v6231
    %v6264 = vpack.c.bf16 %v6248, %v6232
    %v6265 = vpack.c.bf16 %v6249, %v6233
    %v6266 = vpack.c.bf16 %v6250, %v6234
    %v6267 = vpack.c.bf16 %v6251, %v6235
    %v6268 = vpack.c.bf16 %v6252, %v6236
    %v6269 = vpack.c.bf16 %v6253, %v6237
    %v6270 = vpack.c.bf16 %v6254, %v6238
    %v6271 = vpack.c.bf16 %v6255, %v6239
    %v6272 = vpack.c.bf16 %v6256, %v6240
    %v6273 = vpack.c.bf16 %v6257, %v6241
    %v6274 = vpack.c.bf16 %v6258, %v6242
    %v6275 = vpack.c.bf16 %v6259, %v6243
    %v6276 = vpack.c.bf16 %v6260, %v6244
    %v6277 = vpack.c.bf16 %v6261, %v6245
    %6278 = vmatprep.subr.bf16.mxu0 0
    %6279 = vmatpush1.bf16.msra.mxu0 %v4827
    %6280 = vmatprep.subr.bf16.mxu0 0
    %6281 = vmatpush1.bf16.msra.mxu0 %v4828
    %6282 = vmatprep.subr.bf16.mxu0 0
    %6283 = vmatpush1.bf16.msra.mxu0 %v4829
    %6284 = vmatprep.subr.bf16.mxu0 0
    %6285 = vmatpush1.bf16.msra.mxu0 %v4830
    %6286 = vmatprep.subr.bf16.mxu0 0
    %6287 = vmatpush1.bf16.msra.mxu0 %v4831
    %6288 = vmatprep.subr.bf16.mxu0 0
    %6289 = vmatpush1.bf16.msra.mxu0 %v4832
    %6290 = vmatprep.subr.bf16.mxu0 0
    %6291 = vmatpush1.bf16.msra.mxu0 %v4833
    %6292 = vmatprep.subr.bf16.mxu0 0
    %6293 = vmatpush1.bf16.msra.mxu0 %v4834
    %6294 = vmatprep.subr.bf16.mxu0 0
    %6295 = vmatpush1.bf16.msra.mxu0 %v4835
    %6296 = vmatprep.subr.bf16.mxu0 0
    %6297 = vmatpush1.bf16.msra.mxu0 %v4836
    %6298 = vmatprep.subr.bf16.mxu0 0
    %6299 = vmatpush1.bf16.msra.mxu0 %v4837
    %6300 = vmatprep.subr.bf16.mxu0 0
    %6301 = vmatpush1.bf16.msra.mxu0 %v4838
    %6302 = vmatprep.subr.bf16.mxu0 0
    %6303 = vmatpush1.bf16.msra.mxu0 %v4839
    %6304 = vmatprep.subr.bf16.mxu0 0
    %6305 = vmatpush1.bf16.msra.mxu0 %v4840
    %6306 = vmatprep.subr.bf16.mxu0 0
    %6307 = vmatpush1.bf16.msra.mxu0 %v4841
    %6308 = vmatprep.subr.bf16.mxu0 0
    %6309 = vmatpush1.bf16.msra.mxu0 %v4842
    %6310 = vmatprep.mubr.bf16.mxu0 %v6263
    %6311 = vmatmul.mubr.bf16.gmra.mrb[0].mxu0 %v6262
    %v6312 = vpop.f32.mrb[0].mxu0
    %v6313 = vadd.f32 %v2758, %v6312
    %v6314 = vpop.f32.mrb[0].mxu0
    %v6315 = vpop.f32.mrb[0].mxu0
    %v6316 = vadd.f32 %v2758, %v6315
    %v6317 = vpop.f32.mrb[0].mxu0
    %6318 = vdwg.mxu0
    %6319 = vmatprep.subr.bf16.mxu0 0
    %6320 = vmatpush1.bf16.msra.mxu0 %v4843
    %6321 = vmatprep.subr.bf16.mxu0 0
    %6322 = vmatpush1.bf16.msra.mxu0 %v4844
    %6323 = vmatprep.subr.bf16.mxu0 0
    %6324 = vmatpush1.bf16.msra.mxu0 %v4845
    %6325 = vmatprep.subr.bf16.mxu0 0
    %6326 = vmatpush1.bf16.msra.mxu0 %v4846
    %6327 = vmatprep.subr.bf16.mxu0 0
    %6328 = vmatpush1.bf16.msra.mxu0 %v4847
    %6329 = vmatprep.subr.bf16.mxu0 0
    %6330 = vmatpush1.bf16.msra.mxu0 %v4848
    %6331 = vmatprep.subr.bf16.mxu0 0
    %6332 = vmatpush1.bf16.msra.mxu0 %v4849
    %6333 = vmatprep.subr.bf16.mxu0 0
    %6334 = vmatpush1.bf16.msra.mxu0 %v4850
    %6335 = vmatprep.subr.bf16.mxu0 0
    %6336 = vmatpush1.bf16.msra.mxu0 %v4851
    %6337 = vmatprep.subr.bf16.mxu0 0
    %6338 = vmatpush1.bf16.msra.mxu0 %v4852
    %6339 = vmatprep.subr.bf16.mxu0 0
    %6340 = vmatpush1.bf16.msra.mxu0 %v4853
    %6341 = vmatprep.subr.bf16.mxu0 0
    %6342 = vmatpush1.bf16.msra.mxu0 %v4854
    %6343 = vmatprep.subr.bf16.mxu0 0
    %6344 = vmatpush1.bf16.msra.mxu0 %v4855
    %6345 = vmatprep.subr.bf16.mxu0 0
    %6346 = vmatpush1.bf16.msra.mxu0 %v4856
    %6347 = vmatprep.subr.bf16.mxu0 0
    %6348 = vmatpush1.bf16.msra.mxu0 %v4857
    %6349 = vmatprep.subr.bf16.mxu0 0
    %6350 = vmatpush1.bf16.msra.mxu0 %v4858
    %6351 = vmatprep.mubr.bf16.mxu0 %v6265
    %6352 = vmatmul.mubr.bf16.gmra.mrb[0].mxu0 %v6264
    %v6353 = vpop.f32.mrb[0].mxu0
    %v6354 = vadd.f32 %v6313, %v6353
    %v6355 = vpop.f32.mrb[0].mxu0
    %v6356 = vpop.f32.mrb[0].mxu0
    %v6357 = vadd.f32 %v6316, %v6356
    %v6358 = vpop.f32.mrb[0].mxu0
    %6359 = vdwg.mxu0
    %6360 = vmatprep.subr.bf16.mxu0 0
    %6361 = vmatpush1.bf16.msra.mxu0 %v4859
    %6362 = vmatprep.subr.bf16.mxu0 0
    %6363 = vmatpush1.bf16.msra.mxu0 %v4860
    %6364 = vmatprep.subr.bf16.mxu0 0
    %6365 = vmatpush1.bf16.msra.mxu0 %v4861
    %6366 = vmatprep.subr.bf16.mxu0 0
    %6367 = vmatpush1.bf16.msra.mxu0 %v4862
    %6368 = vmatprep.subr.bf16.mxu0 0
    %6369 = vmatpush1.bf16.msra.mxu0 %v4863
    %6370 = vmatprep.subr.bf16.mxu0 0
    %6371 = vmatpush1.bf16.msra.mxu0 %v4864
    %6372 = vmatprep.subr.bf16.mxu0 0
    %6373 = vmatpush1.bf16.msra.mxu0 %v4865
    %6374 = vmatprep.subr.bf16.mxu0 0
    %6375 = vmatpush1.bf16.msra.mxu0 %v4866
    %6376 = vmatprep.subr.bf16.mxu0 0
    %6377 = vmatpush1.bf16.msra.mxu0 %v4867
    %6378 = vmatprep.subr.bf16.mxu0 0
    %6379 = vmatpush1.bf16.msra.mxu0 %v4868
    %6380 = vmatprep.subr.bf16.mxu0 0
    %6381 = vmatpush1.bf16.msra.mxu0 %v4869
    %6382 = vmatprep.subr.bf16.mxu0 0
    %6383 = vmatpush1.bf16.msra.mxu0 %v4870
    %6384 = vmatprep.subr.bf16.mxu0 0
    %6385 = vmatpush1.bf16.msra.mxu0 %v4871
    %6386 = vmatprep.subr.bf16.mxu0 0
    %6387 = vmatpush1.bf16.msra.mxu0 %v4872
    %6388 = vmatprep.subr.bf16.mxu0 0
    %6389 = vmatpush1.bf16.msra.mxu0 %v4873
    %6390 = vmatprep.subr.bf16.mxu0 0
    %6391 = vmatpush1.bf16.msra.mxu0 %v4874
    %6392 = vmatprep.mubr.bf16.mxu0 %v6267
    %6393 = vmatmul.mubr.bf16.gmra.mrb[0].mxu0 %v6266
    %v6394 = vpop.f32.mrb[0].mxu0
    %v6395 = vadd.f32 %v6354, %v6394
    %v6396 = vpop.f32.mrb[0].mxu0
    %v6397 = vpop.f32.mrb[0].mxu0
    %v6398 = vadd.f32 %v6357, %v6397
    %v6399 = vpop.f32.mrb[0].mxu0
    %6400 = vdwg.mxu0
    %6401 = vmatprep.subr.bf16.mxu0 0
    %6402 = vmatpush1.bf16.msra.mxu0 %v4875
    %6403 = vmatprep.subr.bf16.mxu0 0
    %6404 = vmatpush1.bf16.msra.mxu0 %v4876
    %6405 = vmatprep.subr.bf16.mxu0 0
    %6406 = vmatpush1.bf16.msra.mxu0 %v4877
    %6407 = vmatprep.subr.bf16.mxu0 0
    %6408 = vmatpush1.bf16.msra.mxu0 %v4878
    %6409 = vmatprep.subr.bf16.mxu0 0
    %6410 = vmatpush1.bf16.msra.mxu0 %v4879
    %6411 = vmatprep.subr.bf16.mxu0 0
    %6412 = vmatpush1.bf16.msra.mxu0 %v4880
    %6413 = vmatprep.subr.bf16.mxu0 0
    %6414 = vmatpush1.bf16.msra.mxu0 %v4881
    %6415 = vmatprep.subr.bf16.mxu0 0
    %6416 = vmatpush1.bf16.msra.mxu0 %v4882
    %6417 = vmatprep.subr.bf16.mxu0 0
    %6418 = vmatpush1.bf16.msra.mxu0 %v4883
    %6419 = vmatprep.subr.bf16.mxu0 0
    %6420 = vmatpush1.bf16.msra.mxu0 %v4884
    %6421 = vmatprep.subr.bf16.mxu0 0
    %6422 = vmatpush1.bf16.msra.mxu0 %v4885
    %6423 = vmatprep.subr.bf16.mxu0 0
    %6424 = vmatpush1.bf16.msra.mxu0 %v4886
    %6425 = vmatprep.subr.bf16.mxu0 0
    %6426 = vmatpush1.bf16.msra.mxu0 %v4887
    %6427 = vmatprep.subr.bf16.mxu0 0
    %6428 = vmatpush1.bf16.msra.mxu0 %v4888
    %6429 = vmatprep.subr.bf16.mxu0 0
    %6430 = vmatpush1.bf16.msra.mxu0 %v4889
    %6431 = vmatprep.subr.bf16.mxu0 0
    %6432 = vmatpush1.bf16.msra.mxu0 %v4890
    %6433 = vmatprep.mubr.bf16.mxu0 %v6269
    %6434 = vmatmul.mubr.bf16.gmra.mrb[0].mxu0 %v6268
    %v6435 = vpop.f32.mrb[0].mxu0
    %v6436 = vadd.f32 %v6395, %v6435
    %v6437 = vpop.f32.mrb[0].mxu0
    %v6438 = vpop.f32.mrb[0].mxu0
    %v6439 = vadd.f32 %v6398, %v6438
    %v6440 = vpop.f32.mrb[0].mxu0
    %6441 = vdwg.mxu0
    %6442 = vmatprep.subr.bf16.mxu0 0
    %6443 = vmatpush1.bf16.msra.mxu0 %v4891
    %6444 = vmatprep.subr.bf16.mxu0 0
    %6445 = vmatpush1.bf16.msra.mxu0 %v4892
    %6446 = vmatprep.subr.bf16.mxu0 0
    %6447 = vmatpush1.bf16.msra.mxu0 %v4893
    %6448 = vmatprep.subr.bf16.mxu0 0
    %6449 = vmatpush1.bf16.msra.mxu0 %v4894
    %6450 = vmatprep.subr.bf16.mxu0 0
    %6451 = vmatpush1.bf16.msra.mxu0 %v4895
    %6452 = vmatprep.subr.bf16.mxu0 0
    %6453 = vmatpush1.bf16.msra.mxu0 %v4896
    %6454 = vmatprep.subr.bf16.mxu0 0
    %6455 = vmatpush1.bf16.msra.mxu0 %v4897
    %6456 = vmatprep.subr.bf16.mxu0 0
    %6457 = vmatpush1.bf16.msra.mxu0 %v4898
    %6458 = vmatprep.subr.bf16.mxu0 0
    %6459 = vmatpush1.bf16.msra.mxu0 %v4899
    %6460 = vmatprep.subr.bf16.mxu0 0
    %6461 = vmatpush1.bf16.msra.mxu0 %v4900
    %6462 = vmatprep.subr.bf16.mxu0 0
    %6463 = vmatpush1.bf16.msra.mxu0 %v4901
    %6464 = vmatprep.subr.bf16.mxu0 0
    %6465 = vmatpush1.bf16.msra.mxu0 %v4902
    %6466 = vmatprep.subr.bf16.mxu0 0
    %6467 = vmatpush1.bf16.msra.mxu0 %v4903
    %6468 = vmatprep.subr.bf16.mxu0 0
    %6469 = vmatpush1.bf16.msra.mxu0 %v4904
    %6470 = vmatprep.subr.bf16.mxu0 0
    %6471 = vmatpush1.bf16.msra.mxu0 %v4905
    %6472 = vmatprep.subr.bf16.mxu0 0
    %6473 = vmatpush1.bf16.msra.mxu0 %v4906
    %6474 = vmatprep.mubr.bf16.mxu0 %v6271
    %6475 = vmatmul.mubr.bf16.gmra.mrb[0].mxu0 %v6270
    %v6476 = vpop.f32.mrb[0].mxu0
    %v6477 = vadd.f32 %v6436, %v6476
    %v6478 = vpop.f32.mrb[0].mxu0
    %v6479 = vpop.f32.mrb[0].mxu0
    %v6480 = vadd.f32 %v6439, %v6479
    %v6481 = vpop.f32.mrb[0].mxu0
    %6482 = vdwg.mxu0
    %6483 = vmatprep.subr.bf16.mxu0 0
    %6484 = vmatpush1.bf16.msra.mxu0 %v4907
    %6485 = vmatprep.subr.bf16.mxu0 0
    %6486 = vmatpush1.bf16.msra.mxu0 %v4908
    %6487 = vmatprep.subr.bf16.mxu0 0
    %6488 = vmatpush1.bf16.msra.mxu0 %v4909
    %6489 = vmatprep.subr.bf16.mxu0 0
    %6490 = vmatpush1.bf16.msra.mxu0 %v4910
    %6491 = vmatprep.subr.bf16.mxu0 0
    %6492 = vmatpush1.bf16.msra.mxu0 %v4911
    %6493 = vmatprep.subr.bf16.mxu0 0
    %6494 = vmatpush1.bf16.msra.mxu0 %v4912
    %6495 = vmatprep.subr.bf16.mxu0 0
    %6496 = vmatpush1.bf16.msra.mxu0 %v4913
    %6497 = vmatprep.subr.bf16.mxu0 0
    %6498 = vmatpush1.bf16.msra.mxu0 %v4914
    %6499 = vmatprep.subr.bf16.mxu0 0
    %6500 = vmatpush1.bf16.msra.mxu0 %v4915
    %6501 = vmatprep.subr.bf16.mxu0 0
    %6502 = vmatpush1.bf16.msra.mxu0 %v4916
    %6503 = vmatprep.subr.bf16.mxu0 0
    %6504 = vmatpush1.bf16.msra.mxu0 %v4917
    %6505 = vmatprep.subr.bf16.mxu0 0
    %6506 = vmatpush1.bf16.msra.mxu0 %v4918
    %6507 = vmatprep.subr.bf16.mxu0 0
    %6508 = vmatpush1.bf16.msra.mxu0 %v4919
    %6509 = vmatprep.subr.bf16.mxu0 0
    %6510 = vmatpush1.bf16.msra.mxu0 %v4920
    %6511 = vmatprep.subr.bf16.mxu0 0
    %6512 = vmatpush1.bf16.msra.mxu0 %v4921
    %6513 = vmatprep.subr.bf16.mxu0 0
    %6514 = vmatpush1.bf16.msra.mxu0 %v4922
    %6515 = vmatprep.mubr.bf16.mxu0 %v6273
    %6516 = vmatmul.mubr.bf16.gmra.mrb[0].mxu0 %v6272
    %v6517 = vpop.f32.mrb[0].mxu0
    %v6518 = vadd.f32 %v6477, %v6517
    %v6519 = vpop.f32.mrb[0].mxu0
    %v6520 = vpop.f32.mrb[0].mxu0
    %v6521 = vadd.f32 %v6480, %v6520
    %v6522 = vpop.f32.mrb[0].mxu0
    %6523 = vdwg.mxu0
    %6524 = vmatprep.subr.bf16.mxu0 0
    %6525 = vmatpush1.bf16.msra.mxu0 %v4923
    %6526 = vmatprep.subr.bf16.mxu0 0
    %6527 = vmatpush1.bf16.msra.mxu0 %v4924
    %6528 = vmatprep.subr.bf16.mxu0 0
    %6529 = vmatpush1.bf16.msra.mxu0 %v4925
    %6530 = vmatprep.subr.bf16.mxu0 0
    %6531 = vmatpush1.bf16.msra.mxu0 %v4926
    %6532 = vmatprep.subr.bf16.mxu0 0
    %6533 = vmatpush1.bf16.msra.mxu0 %v4927
    %6534 = vmatprep.subr.bf16.mxu0 0
    %6535 = vmatpush1.bf16.msra.mxu0 %v4928
    %6536 = vmatprep.subr.bf16.mxu0 0
    %6537 = vmatpush1.bf16.msra.mxu0 %v4929
    %6538 = vmatprep.subr.bf16.mxu0 0
    %6539 = vmatpush1.bf16.msra.mxu0 %v4930
    %6540 = vmatprep.subr.bf16.mxu0 0
    %6541 = vmatpush1.bf16.msra.mxu0 %v4931
    %6542 = vmatprep.subr.bf16.mxu0 0
    %6543 = vmatpush1.bf16.msra.mxu0 %v4932
    %6544 = vmatprep.subr.bf16.mxu0 0
    %6545 = vmatpush1.bf16.msra.mxu0 %v4933
    %6546 = vmatprep.subr.bf16.mxu0 0
    %6547 = vmatpush1.bf16.msra.mxu0 %v4934
    %6548 = vmatprep.subr.bf16.mxu0 0
    %6549 = vmatpush1.bf16.msra.mxu0 %v4935
    %6550 = vmatprep.subr.bf16.mxu0 0
    %6551 = vmatpush1.bf16.msra.mxu0 %v4936
    %6552 = vmatprep.subr.bf16.mxu0 0
    %6553 = vmatpush1.bf16.msra.mxu0 %v4937
    %6554 = vmatprep.subr.bf16.mxu0 0
    %6555 = vmatpush1.bf16.msra.mxu0 %v4938
    %6556 = vmatprep.mubr.bf16.mxu0 %v6275
    %6557 = vmatmul.mubr.bf16.gmra.mrb[0].mxu0 %v6274
    %v6558 = vpop.f32.mrb[0].mxu0
    %v6559 = vadd.f32 %v6518, %v6558
    %v6560 = vpop.f32.mrb[0].mxu0
    %v6561 = vpop.f32.mrb[0].mxu0
    %v6562 = vadd.f32 %v6521, %v6561
    %v6563 = vpop.f32.mrb[0].mxu0
    %6564 = vdwg.mxu0
    %6565 = vmatprep.subr.bf16.mxu0 0
    %6566 = vmatpush1.bf16.msra.mxu0 %v4939
    %6567 = vmatprep.subr.bf16.mxu0 0
    %6568 = vmatpush1.bf16.msra.mxu0 %v4940
    %6569 = vmatprep.subr.bf16.mxu0 0
    %6570 = vmatpush1.bf16.msra.mxu0 %v4941
    %6571 = vmatprep.subr.bf16.mxu0 0
    %6572 = vmatpush1.bf16.msra.mxu0 %v4942
    %6573 = vmatprep.subr.bf16.mxu0 0
    %6574 = vmatpush1.bf16.msra.mxu0 %v4943
    %6575 = vmatprep.subr.bf16.mxu0 0
    %6576 = vmatpush1.bf16.msra.mxu0 %v4944
    %6577 = vmatprep.subr.bf16.mxu0 0
    %6578 = vmatpush1.bf16.msra.mxu0 %v4945
    %6579 = vmatprep.subr.bf16.mxu0 0
    %6580 = vmatpush1.bf16.msra.mxu0 %v4946
    %6581 = vmatprep.subr.bf16.mxu0 0
    %6582 = vmatpush1.bf16.msra.mxu0 %v4947
    %6583 = vmatprep.subr.bf16.mxu0 0
    %6584 = vmatpush1.bf16.msra.mxu0 %v4948
    %6585 = vmatprep.subr.bf16.mxu0 0
    %6586 = vmatpush1.bf16.msra.mxu0 %v4949
    %6587 = vmatprep.subr.bf16.mxu0 0
    %6588 = vmatpush1.bf16.msra.mxu0 %v4950
    %6589 = vmatprep.subr.bf16.mxu0 0
    %6590 = vmatpush1.bf16.msra.mxu0 %v4951
    %6591 = vmatprep.subr.bf16.mxu0 0
    %6592 = vmatpush1.bf16.msra.mxu0 %v4952
    %6593 = vmatprep.subr.bf16.mxu0 0
    %6594 = vmatpush1.bf16.msra.mxu0 %v4953
    %6595 = vmatprep.subr.bf16.mxu0 0
    %6596 = vmatpush1.bf16.msra.mxu0 %v4954
    %6597 = vmatprep.mubr.bf16.mxu0 %v6277
    %6598 = vmatmul.mubr.bf16.gmra.mrb[0].mxu0 %v6276
    %v6599 = vpop.f32.mrb[0].mxu0
    %v6600 = vadd.f32 %v6559, %v6599
    %v6601 = vpop.f32.mrb[0].mxu0
    %v6602 = vpop.f32.mrb[0].mxu0
    %v6603 = vadd.f32 %v6562, %v6602
    %v6604 = vpop.f32.mrb[0].mxu0
    %6605 = vdwg.mxu0
    %v6606 = vadd.f32 %v5880, %v6600
    %v6607 = vadd.f32 %v5881, %v6603
    %v6608 = vsel %vm536, %v6606, 0.0
    %6609 = vadd.xlane.f32.xlu0 %v6608
    %v6610 = vpop.xlane.xlu0 %6609
    %v6611 = vsel %vm536, %v6607, 0.0
    %6612 = vadd.xlane.f32.xlu0 %v6611
    %v6613 = vpop.xlane.xlu0 %6612
    %v6614 = vmul.f32 %v6610, %v930
    %v6615 = vmul.f32 %v6613, %v930
    %v6616 = vsub.f32 %v6606, %v6614
    %v6617 = vsub.f32 %v6607, %v6615
    %v6618 = vmul.f32 %v6616, %v6616
    %v6619 = vmul.f32 %v6617, %v6617
    %v6620 = vsel %vm536, %v6618, 0.0
    %6621 = vadd.xlane.f32.xlu0 %v6620
    %v6622 = vpop.xlane.xlu0 %6621
    %v6623 = vsel %vm536, %v6619, 0.0
    %6624 = vadd.xlane.f32.xlu0 %v6623
    %v6625 = vpop.xlane.xlu0 %6624
    %v6626 = vmul.f32 %v6622, %v930
    %v6627 = vmul.f32 %v6625, %v930
    %v6628 = vadd.f32 %v6626, 1e-05
    %v6629 = vadd.f32 %v6627, 1e-05
    %v6630 = vrsqrt.pop %v6628
    %v6631 = vrsqrt.pop %v6629
    %v6632 = vmul.f32 %v6616, %v6630
    %v6633 = vmul.f32 %v6617, %v6631
    %v6634 = vmul.f32 %v6632, %v2762
    %v6635 = vmul.f32 %v6633, %v2762
    %v6636 = vadd.f32 %v6634, %v2766
    %v6637 = vadd.f32 %v6635, %v2766
    %v6638 = vsel %vm536, %v6636, 0.0
    %6639 = vadd.xlane.f32.xlu0 %v6638
    %v6640 = vpop.xlane.xlu0 %6639
    %v6641 = vsel %vm536, %v6637, 0.0
    %6642 = vadd.xlane.f32.xlu0 %v6641
    %v6643 = vpop.xlane.xlu0 %6642
    %v6644 = vmul.f32 %v6640, %v930
    %v6645 = vmul.f32 %v6643, %v930
    %v6646 = vsub.f32 %v6636, %v6644
    %v6647 = vsub.f32 %v6637, %v6645
    %v6648 = vmul.f32 %v6646, %v6646
    %v6649 = vmul.f32 %v6647, %v6647
    %v6650 = vsel %vm536, %v6648, 0.0
    %6651 = vadd.xlane.f32.xlu0 %v6650
    %v6652 = vpop.xlane.xlu0 %6651
    %v6653 = vsel %vm536, %v6649, 0.0
    %6654 = vadd.xlane.f32.xlu0 %v6653
    %v6655 = vpop.xlane.xlu0 %6654
    %v6656 = vmul.f32 %v6652, %v930
    %v6657 = vmul.f32 %v6655, %v930
    %v6658 = vadd.f32 %v6656, 1e-05
    %v6659 = vadd.f32 %v6657, 1e-05
    %v6660 = vrsqrt.pop %v6658
    %v6661 = vrsqrt.pop %v6659
    %v6662 = vmul.f32 %v6646, %v6660
    %v6663 = vmul.f32 %v6647, %v6661
    %v6664 = vmul.f32 %v6662, %v56
    %v6665 = vmul.f32 %v6663, %v56
    %v6666 = vadd.f32 %v6664, %v60
    %v6667 = vadd.f32 %v6665, %v60
    %v6668 = vpack.c.bf16 %v6667, %v6666
    %v6670 = vsel %vm536, %v6668, 0
    %6672 = vmatprep.subr.bf16.mxu0 0
    %6673 = vmatpush1.bf16.msra.mxu0 %v3169
    %6674 = vmatprep.subr.bf16.mxu0 0
    %6675 = vmatpush1.bf16.msra.mxu0 %v3170
    %6676 = vmatprep.subr.bf16.mxu0 0
    %6677 = vmatpush1.bf16.msra.mxu0 0
    %6678 = vmatprep.subr.bf16.mxu0 0
    %6679 = vmatpush1.bf16.msra.mxu0 0
    %6680 = vmatprep.subr.bf16.mxu0 0
    %6681 = vmatpush1.bf16.msra.mxu0 0
    %6682 = vmatprep.subr.bf16.mxu0 0
    %6683 = vmatpush1.bf16.msra.mxu0 0
    %6684 = vmatprep.subr.bf16.mxu0 0
    %6685 = vmatpush1.bf16.msra.mxu0 0
    %6686 = vmatprep.subr.bf16.mxu0 0
    %6687 = vmatpush1.bf16.msra.mxu0 0
    %6688 = vmatprep.subr.bf16.mxu0 0
    %6689 = vmatpush1.bf16.msra.mxu0 0
    %6690 = vmatprep.subr.bf16.mxu0 0
    %6691 = vmatpush1.bf16.msra.mxu0 0
    %6692 = vmatprep.subr.bf16.mxu0 0
    %6693 = vmatpush1.bf16.msra.mxu0 0
    %6694 = vmatprep.subr.bf16.mxu0 0
    %6695 = vmatpush1.bf16.msra.mxu0 0
    %6696 = vmatprep.subr.bf16.mxu0 0
    %6697 = vmatpush1.bf16.msra.mxu0 0
    %6698 = vmatprep.subr.bf16.mxu0 0
    %6699 = vmatpush1.bf16.msra.mxu0 0
    %6700 = vmatprep.subr.bf16.mxu0 0
    %6701 = vmatpush1.bf16.msra.mxu0 0
    %6702 = vmatprep.subr.bf16.mxu0 0
    %6703 = vmatpush1.bf16.msra.mxu0 0
    %6704 = vmatprep.mubr.bf16.mxu0 0
    %6705 = vmatmul.mubr.bf16.gmra.mrb[0].mxu0 %v6670
    %v6706 = vpop.f32.mrb[0].mxu0
    %v6707 = vadd.f32 %v3152, %v6706
    %v6708 = vpop.f32.mrb[0].mxu0
    %v6709 = vpop.f32.mrb[0].mxu0
    %v6710 = vadd.f32 %v3155, %v6709
    %v6711 = vpop.f32.mrb[0].mxu0
    %6712 = vdwg.mxu0
    %v6713 = vpack.c.bf16 %v6710, %v6707
    %v6715 = vsel %vm536, %v6713, 0
    %6717 = vmatprep.subr.bf16.mxu0 %v3255
    %6718 = vmatpush1.bf16.msra.mxu0 %v3254
    %6719 = vmatprep.subr.bf16.mxu0 %v3258
    %6720 = vmatpush1.bf16.msra.mxu0 %v3257
    %6721 = vmatprep.subr.bf16.mxu0 0
    %6722 = vmatpush1.bf16.msra.mxu0 0
    %6723 = vmatprep.subr.bf16.mxu0 0
    %6724 = vmatpush1.bf16.msra.mxu0 0
    %6725 = vmatprep.subr.bf16.mxu0 0
    %6726 = vmatpush1.bf16.msra.mxu0 0
    %6727 = vmatprep.subr.bf16.mxu0 0
    %6728 = vmatpush1.bf16.msra.mxu0 0
    %6729 = vmatprep.subr.bf16.mxu0 0
    %6730 = vmatpush1.bf16.msra.mxu0 0
    %6731 = vmatprep.subr.bf16.mxu0 0
    %6732 = vmatpush1.bf16.msra.mxu0 0
    %6733 = vmatprep.subr.bf16.mxu0 0
    %6734 = vmatpush1.bf16.msra.mxu0 0
    %6735 = vmatprep.subr.bf16.mxu0 0
    %6736 = vmatpush1.bf16.msra.mxu0 0
    %6737 = vmatprep.subr.bf16.mxu0 0
    %6738 = vmatpush1.bf16.msra.mxu0 0
    %6739 = vmatprep.subr.bf16.mxu0 0
    %6740 = vmatpush1.bf16.msra.mxu0 0
    %6741 = vmatprep.subr.bf16.mxu0 0
    %6742 = vmatpush1.bf16.msra.mxu0 0
    %6743 = vmatprep.subr.bf16.mxu0 0
    %6744 = vmatpush1.bf16.msra.mxu0 0
    %6745 = vmatprep.subr.bf16.mxu0 0
    %6746 = vmatpush1.bf16.msra.mxu0 0
    %6747 = vmatprep.subr.bf16.mxu0 0
    %6748 = vmatpush1.bf16.msra.mxu0 0
    %6749 = vmatprep.mubr.bf16.mxu0 0
    %6750 = vmatmul.mubr.bf16.gmra.mrb[0].mxu0 %v6715
    %v6751 = vpop.f32.mrb[0].mxu0
    %v6752 = vadd.f32 %v3222, %v6751
    %v6753 = vpop.f32.mrb[0].mxu0
    %v6754 = vadd.f32 %v3226, %v6753
    %v6755 = vpop.f32.mrb[0].mxu0
    %v6756 = vadd.f32 %v3222, %v6755
    %v6757 = vpop.f32.mrb[0].mxu0
    %v6758 = vadd.f32 %v3226, %v6757
    %6759 = vdwg.mxu0
    %6760 = vmatprep.subr.bf16.mxu0 0
    %6761 = vmatpush1.bf16.msra.mxu0 %v3256
    %6762 = vmatprep.subr.bf16.mxu0 0
    %6763 = vmatpush1.bf16.msra.mxu0 %v3259
    %6764 = vmatprep.subr.bf16.mxu0 0
    %6765 = vmatpush1.bf16.msra.mxu0 0
    %6766 = vmatprep.subr.bf16.mxu0 0
    %6767 = vmatpush1.bf16.msra.mxu0 0
    %6768 = vmatprep.subr.bf16.mxu0 0
    %6769 = vmatpush1.bf16.msra.mxu0 0
    %6770 = vmatprep.subr.bf16.mxu0 0
    %6771 = vmatpush1.bf16.msra.mxu0 0
    %6772 = vmatprep.subr.bf16.mxu0 0
    %6773 = vmatpush1.bf16.msra.mxu0 0
    %6774 = vmatprep.subr.bf16.mxu0 0
    %6775 = vmatpush1.bf16.msra.mxu0 0
    %6776 = vmatprep.subr.bf16.mxu0 0
    %6777 = vmatpush1.bf16.msra.mxu0 0
    %6778 = vmatprep.subr.bf16.mxu0 0
    %6779 = vmatpush1.bf16.msra.mxu0 0
    %6780 = vmatprep.subr.bf16.mxu0 0
    %6781 = vmatpush1.bf16.msra.mxu0 0
    %6782 = vmatprep.subr.bf16.mxu0 0
    %6783 = vmatpush1.bf16.msra.mxu0 0
    %6784 = vmatprep.subr.bf16.mxu0 0
    %6785 = vmatpush1.bf16.msra.mxu0 0
    %6786 = vmatprep.subr.bf16.mxu0 0
    %6787 = vmatpush1.bf16.msra.mxu0 0
    %6788 = vmatprep.subr.bf16.mxu0 0
    %6789 = vmatpush1.bf16.msra.mxu0 0
    %6790 = vmatprep.subr.bf16.mxu0 0
    %6791 = vmatpush1.bf16.msra.mxu0 0
    %6792 = vmatprep.mubr.bf16.mxu0 0
    %6793 = vmatmul.mubr.bf16.gmra.mrb[0].mxu0 %v6715
    %v6794 = vpop.f32.mrb[0].mxu0
    %v6795 = vadd.f32 %v3230, %v6794
    %v6796 = vpop.f32.mrb[0].mxu0
    %v6797 = vpop.f32.mrb[0].mxu0
    %v6798 = vadd.f32 %v3230, %v6797
    %v6799 = vpop.f32.mrb[0].mxu0
    %6800 = vdwg.mxu0
    %v6801 = vpack.c.bf16 %v6752, %v6752
    %v6802 = vpack.c.bf16 %v6756, %v6756
    %v6803 = vpack.c.bf16 %v6754, %v6754
    %v6804 = vpack.c.bf16 %v6758, %v6758
    %6805 = vmatprep.subr.bf16.mxu0 0
    %6806 = vmatpush1.bf16.xpose.msra.mxu0 %v6803
    %6807 = vmatprep.subr.bf16.mxu0 0
    %6808 = vmatpush1.bf16.xpose.msra.mxu0 0
    %6809 = vmatprep.subr.bf16.mxu0 0
    %6810 = vmatpush1.bf16.xpose.msra.mxu0 0
    %6811 = vmatprep.subr.bf16.mxu0 0
    %6812 = vmatpush1.bf16.xpose.msra.mxu0 0
    %6813 = vmatprep.subr.bf16.mxu0 0
    %6814 = vmatpush1.bf16.xpose.msra.mxu0 0
    %6815 = vmatprep.subr.bf16.mxu0 0
    %6816 = vmatpush1.bf16.xpose.msra.mxu0 0
    %6817 = vmatprep.subr.bf16.mxu0 0
    %6818 = vmatpush1.bf16.xpose.msra.mxu0 0
    %6819 = vmatprep.subr.bf16.mxu0 0
    %6820 = vmatpush1.bf16.xpose.msra.mxu0 0
    %6821 = vmatprep.subr.bf16.mxu0 0
    %6822 = vmatpush1.bf16.xpose.msra.mxu0 0
    %6823 = vmatprep.subr.bf16.mxu0 0
    %6824 = vmatpush1.bf16.xpose.msra.mxu0 0
    %6825 = vmatprep.subr.bf16.mxu0 0
    %6826 = vmatpush1.bf16.xpose.msra.mxu0 0
    %6827 = vmatprep.subr.bf16.mxu0 0
    %6828 = vmatpush1.bf16.xpose.msra.mxu0 0
    %6829 = vmatprep.subr.bf16.mxu0 0
    %6830 = vmatpush1.bf16.xpose.msra.mxu0 0
    %6831 = vmatprep.subr.bf16.mxu0 0
    %6832 = vmatpush1.bf16.xpose.msra.mxu0 0
    %6833 = vmatprep.subr.bf16.mxu0 0
    %6834 = vmatpush1.bf16.xpose.msra.mxu0 0
    %6835 = vmatprep.subr.bf16.mxu0 0
    %6836 = vmatpush1.bf16.xpose.msra.mxu0 0
    %6837 = vmatprep.mubr.bf16.mxu0 0
    %6838 = vmatmul.mubr.bf16.gmra.mrb[0].mxu0 %v6801
    %v6839 = vpop.f32.mrb[0].mxu0
    %v6840 = vadd.f32 0.0, %v6839
    %v6841 = vpop.f32.mrb[0].mxu0
    %v6842 = vpop.f32.mrb[0].mxu0
    %v6843 = vpop.f32.mrb[0].mxu0
    %6844 = vdwg.mxu0
    %6845 = vmatprep.subr.bf16.mxu0 0
    %6846 = vmatpush1.bf16.xpose.msra.mxu0 %v6804
    %6847 = vmatprep.subr.bf16.mxu0 0
    %6848 = vmatpush1.bf16.xpose.msra.mxu0 0
    %6849 = vmatprep.subr.bf16.mxu0 0
    %6850 = vmatpush1.bf16.xpose.msra.mxu0 0
    %6851 = vmatprep.subr.bf16.mxu0 0
    %6852 = vmatpush1.bf16.xpose.msra.mxu0 0
    %6853 = vmatprep.subr.bf16.mxu0 0
    %6854 = vmatpush1.bf16.xpose.msra.mxu0 0
    %6855 = vmatprep.subr.bf16.mxu0 0
    %6856 = vmatpush1.bf16.xpose.msra.mxu0 0
    %6857 = vmatprep.subr.bf16.mxu0 0
    %6858 = vmatpush1.bf16.xpose.msra.mxu0 0
    %6859 = vmatprep.subr.bf16.mxu0 0
    %6860 = vmatpush1.bf16.xpose.msra.mxu0 0
    %6861 = vmatprep.subr.bf16.mxu0 0
    %6862 = vmatpush1.bf16.xpose.msra.mxu0 0
    %6863 = vmatprep.subr.bf16.mxu0 0
    %6864 = vmatpush1.bf16.xpose.msra.mxu0 0
    %6865 = vmatprep.subr.bf16.mxu0 0
    %6866 = vmatpush1.bf16.xpose.msra.mxu0 0
    %6867 = vmatprep.subr.bf16.mxu0 0
    %6868 = vmatpush1.bf16.xpose.msra.mxu0 0
    %6869 = vmatprep.subr.bf16.mxu0 0
    %6870 = vmatpush1.bf16.xpose.msra.mxu0 0
    %6871 = vmatprep.subr.bf16.mxu0 0
    %6872 = vmatpush1.bf16.xpose.msra.mxu0 0
    %6873 = vmatprep.subr.bf16.mxu0 0
    %6874 = vmatpush1.bf16.xpose.msra.mxu0 0
    %6875 = vmatprep.subr.bf16.mxu0 0
    %6876 = vmatpush1.bf16.xpose.msra.mxu0 0
    %6877 = vmatprep.mubr.bf16.mxu0 0
    %6878 = vmatmul.mubr.bf16.gmra.mrb[0].mxu0 %v6802
    %v6879 = vpop.f32.mrb[0].mxu0
    %v6880 = vadd.f32 0.0, %v6879
    %v6881 = vpop.f32.mrb[0].mxu0
    %v6882 = vpop.f32.mrb[0].mxu0
    %v6883 = vpop.f32.mrb[0].mxu0
    %6884 = vdwg.mxu0
    %v6885 = vsel %vm708, %v6840, -inf
    %6886 = vmax.xlane.f32.xlu0 %v6885
    %v6887 = vpop.xlane.xlu0 %6886
    %v6888 = vsel %vm708, %v6880, -inf
    %6889 = vmax.xlane.f32.xlu0 %v6888
    %v6890 = vpop.xlane.xlu0 %6889
    %v6891 = vsub.f32 %v6840, %v6887
    %v6892 = vsub.f32 %v6880, %v6890
    %v6893 = vmul.f32 %v6891, 1.442695
    %v6894 = vpow.pop %v6893
    %v6895 = vmul.f32 %v6892, 1.442695
    %v6896 = vpow.pop %v6895
    %v6897 = vsel %vm708, %v6894, 0.0
    %6898 = vadd.xlane.f32.xlu0 %v6897
    %v6899 = vpop.xlane.xlu0 %6898
    %v6900 = vsel %vm708, %v6896, 0.0
    %6901 = vadd.xlane.f32.xlu0 %v6900
    %v6902 = vpop.xlane.xlu0 %6901
    %v6903 = vrcp.pop %v6899
    %v6904 = vrcp.pop %v6902
    %v6905 = vmul.f32 %v6894, %v6903
    %v6906 = vmul.f32 %v6896, %v6904
    %v6907 = vpack.c.bf16 %v6905, %v6905
    %v6908 = vpack.c.bf16 %v6906, %v6906
    %v6909 = vpack.c.bf16 %v6795, %v6795
    %v6910 = vpack.c.bf16 %v6798, %v6798
    %v6912 = vsel %vm708, %v6907, 0
    %v6915 = vsel %vm738, %v6909, 0
    %6917 = vmatprep.subr.bf16.mxu0 0
    %6918 = vmatpush1.bf16.msra.mxu0 %v6915
    %6919 = vmatprep.subr.bf16.mxu0 0
    %6920 = vmatpush1.bf16.msra.mxu0 0
    %6921 = vmatprep.subr.bf16.mxu0 0
    %6922 = vmatpush1.bf16.msra.mxu0 0
    %6923 = vmatprep.subr.bf16.mxu0 0
    %6924 = vmatpush1.bf16.msra.mxu0 0
    %6925 = vmatprep.subr.bf16.mxu0 0
    %6926 = vmatpush1.bf16.msra.mxu0 0
    %6927 = vmatprep.subr.bf16.mxu0 0
    %6928 = vmatpush1.bf16.msra.mxu0 0
    %6929 = vmatprep.subr.bf16.mxu0 0
    %6930 = vmatpush1.bf16.msra.mxu0 0
    %6931 = vmatprep.subr.bf16.mxu0 0
    %6932 = vmatpush1.bf16.msra.mxu0 0
    %6933 = vmatprep.subr.bf16.mxu0 0
    %6934 = vmatpush1.bf16.msra.mxu0 0
    %6935 = vmatprep.subr.bf16.mxu0 0
    %6936 = vmatpush1.bf16.msra.mxu0 0
    %6937 = vmatprep.subr.bf16.mxu0 0
    %6938 = vmatpush1.bf16.msra.mxu0 0
    %6939 = vmatprep.subr.bf16.mxu0 0
    %6940 = vmatpush1.bf16.msra.mxu0 0
    %6941 = vmatprep.subr.bf16.mxu0 0
    %6942 = vmatpush1.bf16.msra.mxu0 0
    %6943 = vmatprep.subr.bf16.mxu0 0
    %6944 = vmatpush1.bf16.msra.mxu0 0
    %6945 = vmatprep.subr.bf16.mxu0 0
    %6946 = vmatpush1.bf16.msra.mxu0 0
    %6947 = vmatprep.subr.bf16.mxu0 0
    %6948 = vmatpush1.bf16.msra.mxu0 0
    %6949 = vmatprep.mubr.bf16.mxu0 0
    %6950 = vmatmul.mubr.bf16.gmra.mrb[0].mxu0 %v6912
    %v6951 = vpop.f32.mrb[0].mxu0
    %v6952 = vadd.f32 0.0, %v6951
    %v6953 = vpop.f32.mrb[0].mxu0
    %v6954 = vpop.f32.mrb[0].mxu0
    %v6955 = vpop.f32.mrb[0].mxu0
    %6956 = vdwg.mxu0
    %v6958 = vsel %vm708, %v6908, 0
    %v6961 = vsel %vm738, %v6910, 0
    %6963 = vmatprep.subr.bf16.mxu0 0
    %6964 = vmatpush1.bf16.msra.mxu0 %v6961
    %6965 = vmatprep.subr.bf16.mxu0 0
    %6966 = vmatpush1.bf16.msra.mxu0 0
    %6967 = vmatprep.subr.bf16.mxu0 0
    %6968 = vmatpush1.bf16.msra.mxu0 0
    %6969 = vmatprep.subr.bf16.mxu0 0
    %6970 = vmatpush1.bf16.msra.mxu0 0
    %6971 = vmatprep.subr.bf16.mxu0 0
    %6972 = vmatpush1.bf16.msra.mxu0 0
    %6973 = vmatprep.subr.bf16.mxu0 0
    %6974 = vmatpush1.bf16.msra.mxu0 0
    %6975 = vmatprep.subr.bf16.mxu0 0
    %6976 = vmatpush1.bf16.msra.mxu0 0
    %6977 = vmatprep.subr.bf16.mxu0 0
    %6978 = vmatpush1.bf16.msra.mxu0 0
    %6979 = vmatprep.subr.bf16.mxu0 0
    %6980 = vmatpush1.bf16.msra.mxu0 0
    %6981 = vmatprep.subr.bf16.mxu0 0
    %6982 = vmatpush1.bf16.msra.mxu0 0
    %6983 = vmatprep.subr.bf16.mxu0 0
    %6984 = vmatpush1.bf16.msra.mxu0 0
    %6985 = vmatprep.subr.bf16.mxu0 0
    %6986 = vmatpush1.bf16.msra.mxu0 0
    %6987 = vmatprep.subr.bf16.mxu0 0
    %6988 = vmatpush1.bf16.msra.mxu0 0
    %6989 = vmatprep.subr.bf16.mxu0 0
    %6990 = vmatpush1.bf16.msra.mxu0 0
    %6991 = vmatprep.subr.bf16.mxu0 0
    %6992 = vmatpush1.bf16.msra.mxu0 0
    %6993 = vmatprep.subr.bf16.mxu0 0
    %6994 = vmatpush1.bf16.msra.mxu0 0
    %6995 = vmatprep.mubr.bf16.mxu0 0
    %6996 = vmatmul.mubr.bf16.gmra.mrb[0].mxu0 %v6958
    %v6997 = vpop.f32.mrb[0].mxu0
    %v6998 = vadd.f32 0.0, %v6997
    %v6999 = vpop.f32.mrb[0].mxu0
    %v7000 = vpop.f32.mrb[0].mxu0
    %v7001 = vpop.f32.mrb[0].mxu0
    %7002 = vdwg.mxu0
    %v7003 = vpack.c.bf16 %v6998, %v6952
    %7004 = vmatprep.subr.bf16.mxu0 0
    %7005 = vmatpush1.bf16.msra.mxu0 %v3588
    %7006 = vmatprep.subr.bf16.mxu0 0
    %7007 = vmatpush1.bf16.msra.mxu0 %v3589
    %7008 = vmatprep.subr.bf16.mxu0 0
    %7009 = vmatpush1.bf16.msra.mxu0 %v3590
    %7010 = vmatprep.subr.bf16.mxu0 0
    %7011 = vmatpush1.bf16.msra.mxu0 %v3591
    %7012 = vmatprep.subr.bf16.mxu0 0
    %7013 = vmatpush1.bf16.msra.mxu0 %v3592
    %7014 = vmatprep.subr.bf16.mxu0 0
    %7015 = vmatpush1.bf16.msra.mxu0 %v3593
    %7016 = vmatprep.subr.bf16.mxu0 0
    %7017 = vmatpush1.bf16.msra.mxu0 %v3594
    %7018 = vmatprep.subr.bf16.mxu0 0
    %7019 = vmatpush1.bf16.msra.mxu0 %v3595
    %7020 = vmatprep.subr.bf16.mxu0 0
    %7021 = vmatpush1.bf16.msra.mxu0 0
    %7022 = vmatprep.subr.bf16.mxu0 0
    %7023 = vmatpush1.bf16.msra.mxu0 0
    %7024 = vmatprep.subr.bf16.mxu0 0
    %7025 = vmatpush1.bf16.msra.mxu0 0
    %7026 = vmatprep.subr.bf16.mxu0 0
    %7027 = vmatpush1.bf16.msra.mxu0 0
    %7028 = vmatprep.subr.bf16.mxu0 0
    %7029 = vmatpush1.bf16.msra.mxu0 0
    %7030 = vmatprep.subr.bf16.mxu0 0
    %7031 = vmatpush1.bf16.msra.mxu0 0
    %7032 = vmatprep.subr.bf16.mxu0 0
    %7033 = vmatpush1.bf16.msra.mxu0 0
    %7034 = vmatprep.subr.bf16.mxu0 0
    %7035 = vmatpush1.bf16.msra.mxu0 0
    %7036 = vmatprep.mubr.bf16.mxu0 0
    %7037 = vmatmul.mubr.bf16.gmra.mrb[0].mxu0 %v7003
    %v7038 = vpop.f32.mrb[0].mxu0
    %v7039 = vadd.f32 %v2746, %v7038
    %v7040 = vpop.f32.mrb[0].mxu0
    %v7041 = vpop.f32.mrb[0].mxu0
    %v7042 = vadd.f32 %v2746, %v7041
    %v7043 = vpop.f32.mrb[0].mxu0
    %7044 = vdwg.mxu0
    %v7045 = vadd.f32 %v6707, %v7039
    %v7046 = vadd.f32 %v6710, %v7042
    %v7047 = vsel %vm536, %v7045, 0.0
    %7048 = vadd.xlane.f32.xlu0 %v7047
    %v7049 = vpop.xlane.xlu0 %7048
    %v7050 = vsel %vm536, %v7046, 0.0
    %7051 = vadd.xlane.f32.xlu0 %v7050
    %v7052 = vpop.xlane.xlu0 %7051
    %v7053 = vmul.f32 %v7049, %v930
    %v7054 = vmul.f32 %v7052, %v930
    %v7055 = vsub.f32 %v7045, %v7053
    %v7056 = vsub.f32 %v7046, %v7054
    %v7057 = vmul.f32 %v7055, %v7055
    %v7058 = vmul.f32 %v7056, %v7056
    %v7059 = vsel %vm536, %v7057, 0.0
    %7060 = vadd.xlane.f32.xlu0 %v7059
    %v7061 = vpop.xlane.xlu0 %7060
    %v7062 = vsel %vm536, %v7058, 0.0
    %7063 = vadd.xlane.f32.xlu0 %v7062
    %v7064 = vpop.xlane.xlu0 %7063
    %v7065 = vmul.f32 %v7061, %v930
    %v7066 = vmul.f32 %v7064, %v930
    %v7067 = vadd.f32 %v7065, 1e-05
    %v7068 = vadd.f32 %v7066, 1e-05
    %v7069 = vrsqrt.pop %v7067
    %v7070 = vrsqrt.pop %v7068
    %v7071 = vmul.f32 %v7055, %v7069
    %v7072 = vmul.f32 %v7056, %v7070
    %v7073 = vmul.f32 %v7071, %v2750
    %v7074 = vmul.f32 %v7072, %v2750
    %v7075 = vadd.f32 %v7073, %v2754
    %v7076 = vadd.f32 %v7074, %v2754
    %v7077 = vpack.c.bf16 %v7076, %v7075
    %v7079 = vsel %vm536, %v7077, 0
    %7081 = vmatprep.subr.bf16.mxu0 %v3857
    %7082 = vmatpush1.bf16.msra.mxu0 %v3856
    %7083 = vmatprep.subr.bf16.mxu0 %v3873
    %7084 = vmatpush1.bf16.msra.mxu0 %v3872
    %7085 = vmatprep.subr.bf16.mxu0 0
    %7086 = vmatpush1.bf16.msra.mxu0 0
    %7087 = vmatprep.subr.bf16.mxu0 0
    %7088 = vmatpush1.bf16.msra.mxu0 0
    %7089 = vmatprep.subr.bf16.mxu0 0
    %7090 = vmatpush1.bf16.msra.mxu0 0
    %7091 = vmatprep.subr.bf16.mxu0 0
    %7092 = vmatpush1.bf16.msra.mxu0 0
    %7093 = vmatprep.subr.bf16.mxu0 0
    %7094 = vmatpush1.bf16.msra.mxu0 0
    %7095 = vmatprep.subr.bf16.mxu0 0
    %7096 = vmatpush1.bf16.msra.mxu0 0
    %7097 = vmatprep.subr.bf16.mxu0 0
    %7098 = vmatpush1.bf16.msra.mxu0 0
    %7099 = vmatprep.subr.bf16.mxu0 0
    %7100 = vmatpush1.bf16.msra.mxu0 0
    %7101 = vmatprep.subr.bf16.mxu0 0
    %7102 = vmatpush1.bf16.msra.mxu0 0
    %7103 = vmatprep.subr.bf16.mxu0 0
    %7104 = vmatpush1.bf16.msra.mxu0 0
    %7105 = vmatprep.subr.bf16.mxu0 0
    %7106 = vmatpush1.bf16.msra.mxu0 0
    %7107 = vmatprep.subr.bf16.mxu0 0
    %7108 = vmatpush1.bf16.msra.mxu0 0
    %7109 = vmatprep.subr.bf16.mxu0 0
    %7110 = vmatpush1.bf16.msra.mxu0 0
    %7111 = vmatprep.subr.bf16.mxu0 0
    %7112 = vmatpush1.bf16.msra.mxu0 0
    %7113 = vmatprep.mubr.bf16.mxu0 0
    %7114 = vmatmul.mubr.bf16.gmra.mrb[0].mxu0 %v7079
    %v7115 = vpop.f32.mrb[0].mxu0
    %v7116 = vadd.f32 %v3683, %v7115
    %v7117 = vpop.f32.mrb[0].mxu0
    %v7118 = vadd.f32 %v3687, %v7117
    %v7119 = vpop.f32.mrb[0].mxu0
    %v7120 = vadd.f32 %v3683, %v7119
    %v7121 = vpop.f32.mrb[0].mxu0
    %v7122 = vadd.f32 %v3687, %v7121
    %7123 = vdwg.mxu0
    %7124 = vmatprep.subr.bf16.mxu0 %v3859
    %7125 = vmatpush1.bf16.msra.mxu0 %v3858
    %7126 = vmatprep.subr.bf16.mxu0 %v3875
    %7127 = vmatpush1.bf16.msra.mxu0 %v3874
    %7128 = vmatprep.subr.bf16.mxu0 0
    %7129 = vmatpush1.bf16.msra.mxu0 0
    %7130 = vmatprep.subr.bf16.mxu0 0
    %7131 = vmatpush1.bf16.msra.mxu0 0
    %7132 = vmatprep.subr.bf16.mxu0 0
    %7133 = vmatpush1.bf16.msra.mxu0 0
    %7134 = vmatprep.subr.bf16.mxu0 0
    %7135 = vmatpush1.bf16.msra.mxu0 0
    %7136 = vmatprep.subr.bf16.mxu0 0
    %7137 = vmatpush1.bf16.msra.mxu0 0
    %7138 = vmatprep.subr.bf16.mxu0 0
    %7139 = vmatpush1.bf16.msra.mxu0 0
    %7140 = vmatprep.subr.bf16.mxu0 0
    %7141 = vmatpush1.bf16.msra.mxu0 0
    %7142 = vmatprep.subr.bf16.mxu0 0
    %7143 = vmatpush1.bf16.msra.mxu0 0
    %7144 = vmatprep.subr.bf16.mxu0 0
    %7145 = vmatpush1.bf16.msra.mxu0 0
    %7146 = vmatprep.subr.bf16.mxu0 0
    %7147 = vmatpush1.bf16.msra.mxu0 0
    %7148 = vmatprep.subr.bf16.mxu0 0
    %7149 = vmatpush1.bf16.msra.mxu0 0
    %7150 = vmatprep.subr.bf16.mxu0 0
    %7151 = vmatpush1.bf16.msra.mxu0 0
    %7152 = vmatprep.subr.bf16.mxu0 0
    %7153 = vmatpush1.bf16.msra.mxu0 0
    %7154 = vmatprep.subr.bf16.mxu0 0
    %7155 = vmatpush1.bf16.msra.mxu0 0
    %7156 = vmatprep.mubr.bf16.mxu0 0
    %7157 = vmatmul.mubr.bf16.gmra.mrb[0].mxu0 %v7079
    %v7158 = vpop.f32.mrb[0].mxu0
    %v7159 = vadd.f32 %v3691, %v7158
    %v7160 = vpop.f32.mrb[0].mxu0
    %v7161 = vadd.f32 %v3695, %v7160
    %v7162 = vpop.f32.mrb[0].mxu0
    %v7163 = vadd.f32 %v3691, %v7162
    %v7164 = vpop.f32.mrb[0].mxu0
    %v7165 = vadd.f32 %v3695, %v7164
    %7166 = vdwg.mxu0
    %7167 = vmatprep.subr.bf16.mxu0 %v3861
    %7168 = vmatpush1.bf16.msra.mxu0 %v3860
    %7169 = vmatprep.subr.bf16.mxu0 %v3877
    %7170 = vmatpush1.bf16.msra.mxu0 %v3876
    %7171 = vmatprep.subr.bf16.mxu0 0
    %7172 = vmatpush1.bf16.msra.mxu0 0
    %7173 = vmatprep.subr.bf16.mxu0 0
    %7174 = vmatpush1.bf16.msra.mxu0 0
    %7175 = vmatprep.subr.bf16.mxu0 0
    %7176 = vmatpush1.bf16.msra.mxu0 0
    %7177 = vmatprep.subr.bf16.mxu0 0
    %7178 = vmatpush1.bf16.msra.mxu0 0
    %7179 = vmatprep.subr.bf16.mxu0 0
    %7180 = vmatpush1.bf16.msra.mxu0 0
    %7181 = vmatprep.subr.bf16.mxu0 0
    %7182 = vmatpush1.bf16.msra.mxu0 0
    %7183 = vmatprep.subr.bf16.mxu0 0
    %7184 = vmatpush1.bf16.msra.mxu0 0
    %7185 = vmatprep.subr.bf16.mxu0 0
    %7186 = vmatpush1.bf16.msra.mxu0 0
    %7187 = vmatprep.subr.bf16.mxu0 0
    %7188 = vmatpush1.bf16.msra.mxu0 0
    %7189 = vmatprep.subr.bf16.mxu0 0
    %7190 = vmatpush1.bf16.msra.mxu0 0
    %7191 = vmatprep.subr.bf16.mxu0 0
    %7192 = vmatpush1.bf16.msra.mxu0 0
    %7193 = vmatprep.subr.bf16.mxu0 0
    %7194 = vmatpush1.bf16.msra.mxu0 0
    %7195 = vmatprep.subr.bf16.mxu0 0
    %7196 = vmatpush1.bf16.msra.mxu0 0
    %7197 = vmatprep.subr.bf16.mxu0 0
    %7198 = vmatpush1.bf16.msra.mxu0 0
    %7199 = vmatprep.mubr.bf16.mxu0 0
    %7200 = vmatmul.mubr.bf16.gmra.mrb[0].mxu0 %v7079
    %v7201 = vpop.f32.mrb[0].mxu0
    %v7202 = vadd.f32 %v3699, %v7201
    %v7203 = vpop.f32.mrb[0].mxu0
    %v7204 = vadd.f32 %v3703, %v7203
    %v7205 = vpop.f32.mrb[0].mxu0
    %v7206 = vadd.f32 %v3699, %v7205
    %v7207 = vpop.f32.mrb[0].mxu0
    %v7208 = vadd.f32 %v3703, %v7207
    %7209 = vdwg.mxu0
    %7210 = vmatprep.subr.bf16.mxu0 %v3863
    %7211 = vmatpush1.bf16.msra.mxu0 %v3862
    %7212 = vmatprep.subr.bf16.mxu0 %v3879
    %7213 = vmatpush1.bf16.msra.mxu0 %v3878
    %7214 = vmatprep.subr.bf16.mxu0 0
    %7215 = vmatpush1.bf16.msra.mxu0 0
    %7216 = vmatprep.subr.bf16.mxu0 0
    %7217 = vmatpush1.bf16.msra.mxu0 0
    %7218 = vmatprep.subr.bf16.mxu0 0
    %7219 = vmatpush1.bf16.msra.mxu0 0
    %7220 = vmatprep.subr.bf16.mxu0 0
    %7221 = vmatpush1.bf16.msra.mxu0 0
    %7222 = vmatprep.subr.bf16.mxu0 0
    %7223 = vmatpush1.bf16.msra.mxu0 0
    %7224 = vmatprep.subr.bf16.mxu0 0
    %7225 = vmatpush1.bf16.msra.mxu0 0
    %7226 = vmatprep.subr.bf16.mxu0 0
    %7227 = vmatpush1.bf16.msra.mxu0 0
    %7228 = vmatprep.subr.bf16.mxu0 0
    %7229 = vmatpush1.bf16.msra.mxu0 0
    %7230 = vmatprep.subr.bf16.mxu0 0
    %7231 = vmatpush1.bf16.msra.mxu0 0
    %7232 = vmatprep.subr.bf16.mxu0 0
    %7233 = vmatpush1.bf16.msra.mxu0 0
    %7234 = vmatprep.subr.bf16.mxu0 0
    %7235 = vmatpush1.bf16.msra.mxu0 0
    %7236 = vmatprep.subr.bf16.mxu0 0
    %7237 = vmatpush1.bf16.msra.mxu0 0
    %7238 = vmatprep.subr.bf16.mxu0 0
    %7239 = vmatpush1.bf16.msra.mxu0 0
    %7240 = vmatprep.subr.bf16.mxu0 0
    %7241 = vmatpush1.bf16.msra.mxu0 0
    %7242 = vmatprep.mubr.bf16.mxu0 0
    %7243 = vmatmul.mubr.bf16.gmra.mrb[0].mxu0 %v7079
    %v7244 = vpop.f32.mrb[0].mxu0
    %v7245 = vadd.f32 %v3707, %v7244
    %v7246 = vpop.f32.mrb[0].mxu0
    %v7247 = vadd.f32 %v3711, %v7246
    %v7248 = vpop.f32.mrb[0].mxu0
    %v7249 = vadd.f32 %v3707, %v7248
    %v7250 = vpop.f32.mrb[0].mxu0
    %v7251 = vadd.f32 %v3711, %v7250
    %7252 = vdwg.mxu0
    %7253 = vmatprep.subr.bf16.mxu0 %v3865
    %7254 = vmatpush1.bf16.msra.mxu0 %v3864
    %7255 = vmatprep.subr.bf16.mxu0 %v3881
    %7256 = vmatpush1.bf16.msra.mxu0 %v3880
    %7257 = vmatprep.subr.bf16.mxu0 0
    %7258 = vmatpush1.bf16.msra.mxu0 0
    %7259 = vmatprep.subr.bf16.mxu0 0
    %7260 = vmatpush1.bf16.msra.mxu0 0
    %7261 = vmatprep.subr.bf16.mxu0 0
    %7262 = vmatpush1.bf16.msra.mxu0 0
    %7263 = vmatprep.subr.bf16.mxu0 0
    %7264 = vmatpush1.bf16.msra.mxu0 0
    %7265 = vmatprep.subr.bf16.mxu0 0
    %7266 = vmatpush1.bf16.msra.mxu0 0
    %7267 = vmatprep.subr.bf16.mxu0 0
    %7268 = vmatpush1.bf16.msra.mxu0 0
    %7269 = vmatprep.subr.bf16.mxu0 0
    %7270 = vmatpush1.bf16.msra.mxu0 0
    %7271 = vmatprep.subr.bf16.mxu0 0
    %7272 = vmatpush1.bf16.msra.mxu0 0
    %7273 = vmatprep.subr.bf16.mxu0 0
    %7274 = vmatpush1.bf16.msra.mxu0 0
    %7275 = vmatprep.subr.bf16.mxu0 0
    %7276 = vmatpush1.bf16.msra.mxu0 0
    %7277 = vmatprep.subr.bf16.mxu0 0
    %7278 = vmatpush1.bf16.msra.mxu0 0
    %7279 = vmatprep.subr.bf16.mxu0 0
    %7280 = vmatpush1.bf16.msra.mxu0 0
    %7281 = vmatprep.subr.bf16.mxu0 0
    %7282 = vmatpush1.bf16.msra.mxu0 0
    %7283 = vmatprep.subr.bf16.mxu0 0
    %7284 = vmatpush1.bf16.msra.mxu0 0
    %7285 = vmatprep.mubr.bf16.mxu0 0
    %7286 = vmatmul.mubr.bf16.gmra.mrb[0].mxu0 %v7079
    %v7287 = vpop.f32.mrb[0].mxu0
    %v7288 = vadd.f32 %v3715, %v7287
    %v7289 = vpop.f32.mrb[0].mxu0
    %v7290 = vadd.f32 %v3719, %v7289
    %v7291 = vpop.f32.mrb[0].mxu0
    %v7292 = vadd.f32 %v3715, %v7291
    %v7293 = vpop.f32.mrb[0].mxu0
    %v7294 = vadd.f32 %v3719, %v7293
    %7295 = vdwg.mxu0
    %7296 = vmatprep.subr.bf16.mxu0 %v3867
    %7297 = vmatpush1.bf16.msra.mxu0 %v3866
    %7298 = vmatprep.subr.bf16.mxu0 %v3883
    %7299 = vmatpush1.bf16.msra.mxu0 %v3882
    %7300 = vmatprep.subr.bf16.mxu0 0
    %7301 = vmatpush1.bf16.msra.mxu0 0
    %7302 = vmatprep.subr.bf16.mxu0 0
    %7303 = vmatpush1.bf16.msra.mxu0 0
    %7304 = vmatprep.subr.bf16.mxu0 0
    %7305 = vmatpush1.bf16.msra.mxu0 0
    %7306 = vmatprep.subr.bf16.mxu0 0
    %7307 = vmatpush1.bf16.msra.mxu0 0
    %7308 = vmatprep.subr.bf16.mxu0 0
    %7309 = vmatpush1.bf16.msra.mxu0 0
    %7310 = vmatprep.subr.bf16.mxu0 0
    %7311 = vmatpush1.bf16.msra.mxu0 0
    %7312 = vmatprep.subr.bf16.mxu0 0
    %7313 = vmatpush1.bf16.msra.mxu0 0
    %7314 = vmatprep.subr.bf16.mxu0 0
    %7315 = vmatpush1.bf16.msra.mxu0 0
    %7316 = vmatprep.subr.bf16.mxu0 0
    %7317 = vmatpush1.bf16.msra.mxu0 0
    %7318 = vmatprep.subr.bf16.mxu0 0
    %7319 = vmatpush1.bf16.msra.mxu0 0
    %7320 = vmatprep.subr.bf16.mxu0 0
    %7321 = vmatpush1.bf16.msra.mxu0 0
    %7322 = vmatprep.subr.bf16.mxu0 0
    %7323 = vmatpush1.bf16.msra.mxu0 0
    %7324 = vmatprep.subr.bf16.mxu0 0
    %7325 = vmatpush1.bf16.msra.mxu0 0
    %7326 = vmatprep.subr.bf16.mxu0 0
    %7327 = vmatpush1.bf16.msra.mxu0 0
    %7328 = vmatprep.mubr.bf16.mxu0 0
    %7329 = vmatmul.mubr.bf16.gmra.mrb[0].mxu0 %v7079
    %v7330 = vpop.f32.mrb[0].mxu0
    %v7331 = vadd.f32 %v3723, %v7330
    %v7332 = vpop.f32.mrb[0].mxu0
    %v7333 = vadd.f32 %v3727, %v7332
    %v7334 = vpop.f32.mrb[0].mxu0
    %v7335 = vadd.f32 %v3723, %v7334
    %v7336 = vpop.f32.mrb[0].mxu0
    %v7337 = vadd.f32 %v3727, %v7336
    %7338 = vdwg.mxu0
    %7339 = vmatprep.subr.bf16.mxu0 %v3869
    %7340 = vmatpush1.bf16.msra.mxu0 %v3868
    %7341 = vmatprep.subr.bf16.mxu0 %v3885
    %7342 = vmatpush1.bf16.msra.mxu0 %v3884
    %7343 = vmatprep.subr.bf16.mxu0 0
    %7344 = vmatpush1.bf16.msra.mxu0 0
    %7345 = vmatprep.subr.bf16.mxu0 0
    %7346 = vmatpush1.bf16.msra.mxu0 0
    %7347 = vmatprep.subr.bf16.mxu0 0
    %7348 = vmatpush1.bf16.msra.mxu0 0
    %7349 = vmatprep.subr.bf16.mxu0 0
    %7350 = vmatpush1.bf16.msra.mxu0 0
    %7351 = vmatprep.subr.bf16.mxu0 0
    %7352 = vmatpush1.bf16.msra.mxu0 0
    %7353 = vmatprep.subr.bf16.mxu0 0
    %7354 = vmatpush1.bf16.msra.mxu0 0
    %7355 = vmatprep.subr.bf16.mxu0 0
    %7356 = vmatpush1.bf16.msra.mxu0 0
    %7357 = vmatprep.subr.bf16.mxu0 0
    %7358 = vmatpush1.bf16.msra.mxu0 0
    %7359 = vmatprep.subr.bf16.mxu0 0
    %7360 = vmatpush1.bf16.msra.mxu0 0
    %7361 = vmatprep.subr.bf16.mxu0 0
    %7362 = vmatpush1.bf16.msra.mxu0 0
    %7363 = vmatprep.subr.bf16.mxu0 0
    %7364 = vmatpush1.bf16.msra.mxu0 0
    %7365 = vmatprep.subr.bf16.mxu0 0
    %7366 = vmatpush1.bf16.msra.mxu0 0
    %7367 = vmatprep.subr.bf16.mxu0 0
    %7368 = vmatpush1.bf16.msra.mxu0 0
    %7369 = vmatprep.subr.bf16.mxu0 0
    %7370 = vmatpush1.bf16.msra.mxu0 0
    %7371 = vmatprep.mubr.bf16.mxu0 0
    %7372 = vmatmul.mubr.bf16.gmra.mrb[0].mxu0 %v7079
    %v7373 = vpop.f32.mrb[0].mxu0
    %v7374 = vadd.f32 %v3731, %v7373
    %v7375 = vpop.f32.mrb[0].mxu0
    %v7376 = vadd.f32 %v3735, %v7375
    %v7377 = vpop.f32.mrb[0].mxu0
    %v7378 = vadd.f32 %v3731, %v7377
    %v7379 = vpop.f32.mrb[0].mxu0
    %v7380 = vadd.f32 %v3735, %v7379
    %7381 = vdwg.mxu0
    %7382 = vmatprep.subr.bf16.mxu0 %v3871
    %7383 = vmatpush1.bf16.msra.mxu0 %v3870
    %7384 = vmatprep.subr.bf16.mxu0 %v3887
    %7385 = vmatpush1.bf16.msra.mxu0 %v3886
    %7386 = vmatprep.subr.bf16.mxu0 0
    %7387 = vmatpush1.bf16.msra.mxu0 0
    %7388 = vmatprep.subr.bf16.mxu0 0
    %7389 = vmatpush1.bf16.msra.mxu0 0
    %7390 = vmatprep.subr.bf16.mxu0 0
    %7391 = vmatpush1.bf16.msra.mxu0 0
    %7392 = vmatprep.subr.bf16.mxu0 0
    %7393 = vmatpush1.bf16.msra.mxu0 0
    %7394 = vmatprep.subr.bf16.mxu0 0
    %7395 = vmatpush1.bf16.msra.mxu0 0
    %7396 = vmatprep.subr.bf16.mxu0 0
    %7397 = vmatpush1.bf16.msra.mxu0 0
    %7398 = vmatprep.subr.bf16.mxu0 0
    %7399 = vmatpush1.bf16.msra.mxu0 0
    %7400 = vmatprep.subr.bf16.mxu0 0
    %7401 = vmatpush1.bf16.msra.mxu0 0
    %7402 = vmatprep.subr.bf16.mxu0 0
    %7403 = vmatpush1.bf16.msra.mxu0 0
    %7404 = vmatprep.subr.bf16.mxu0 0
    %7405 = vmatpush1.bf16.msra.mxu0 0
    %7406 = vmatprep.subr.bf16.mxu0 0
    %7407 = vmatpush1.bf16.msra.mxu0 0
    %7408 = vmatprep.subr.bf16.mxu0 0
    %7409 = vmatpush1.bf16.msra.mxu0 0
    %7410 = vmatprep.subr.bf16.mxu0 0
    %7411 = vmatpush1.bf16.msra.mxu0 0
    %7412 = vmatprep.subr.bf16.mxu0 0
    %7413 = vmatpush1.bf16.msra.mxu0 0
    %7414 = vmatprep.mubr.bf16.mxu0 0
    %7415 = vmatmul.mubr.bf16.gmra.mrb[0].mxu0 %v7079
    %v7416 = vpop.f32.mrb[0].mxu0
    %v7417 = vadd.f32 %v3739, %v7416
    %v7418 = vpop.f32.mrb[0].mxu0
    %v7419 = vadd.f32 %v3743, %v7418
    %v7420 = vpop.f32.mrb[0].mxu0
    %v7421 = vadd.f32 %v3739, %v7420
    %v7422 = vpop.f32.mrb[0].mxu0
    %v7423 = vadd.f32 %v3743, %v7422
    %7424 = vdwg.mxu0
    %v7425 = vmax.f32 %v7116, 0.0
    %v7426 = vmax.f32 %v7118, 0.0
    %v7427 = vmax.f32 %v7159, 0.0
    %v7428 = vmax.f32 %v7161, 0.0
    %v7429 = vmax.f32 %v7202, 0.0
    %v7430 = vmax.f32 %v7204, 0.0
    %v7431 = vmax.f32 %v7245, 0.0
    %v7432 = vmax.f32 %v7247, 0.0
    %v7433 = vmax.f32 %v7288, 0.0
    %v7434 = vmax.f32 %v7290, 0.0
    %v7435 = vmax.f32 %v7331, 0.0
    %v7436 = vmax.f32 %v7333, 0.0
    %v7437 = vmax.f32 %v7374, 0.0
    %v7438 = vmax.f32 %v7376, 0.0
    %v7439 = vmax.f32 %v7417, 0.0
    %v7440 = vmax.f32 %v7419, 0.0
    %v7441 = vmax.f32 %v7120, 0.0
    %v7442 = vmax.f32 %v7122, 0.0
    %v7443 = vmax.f32 %v7163, 0.0
    %v7444 = vmax.f32 %v7165, 0.0
    %v7445 = vmax.f32 %v7206, 0.0
    %v7446 = vmax.f32 %v7208, 0.0
    %v7447 = vmax.f32 %v7249, 0.0
    %v7448 = vmax.f32 %v7251, 0.0
    %v7449 = vmax.f32 %v7292, 0.0
    %v7450 = vmax.f32 %v7294, 0.0
    %v7451 = vmax.f32 %v7335, 0.0
    %v7452 = vmax.f32 %v7337, 0.0
    %v7453 = vmax.f32 %v7378, 0.0
    %v7454 = vmax.f32 %v7380, 0.0
    %v7455 = vmax.f32 %v7421, 0.0
    %v7456 = vmax.f32 %v7423, 0.0
    %v7457 = vpack.c.bf16 %v7441, %v7425
    %v7458 = vpack.c.bf16 %v7442, %v7426
    %v7459 = vpack.c.bf16 %v7443, %v7427
    %v7460 = vpack.c.bf16 %v7444, %v7428
    %v7461 = vpack.c.bf16 %v7445, %v7429
    %v7462 = vpack.c.bf16 %v7446, %v7430
    %v7463 = vpack.c.bf16 %v7447, %v7431
    %v7464 = vpack.c.bf16 %v7448, %v7432
    %v7465 = vpack.c.bf16 %v7449, %v7433
    %v7466 = vpack.c.bf16 %v7450, %v7434
    %v7467 = vpack.c.bf16 %v7451, %v7435
    %v7468 = vpack.c.bf16 %v7452, %v7436
    %v7469 = vpack.c.bf16 %v7453, %v7437
    %v7470 = vpack.c.bf16 %v7454, %v7438
    %v7471 = vpack.c.bf16 %v7455, %v7439
    %v7472 = vpack.c.bf16 %v7456, %v7440
    %7473 = vmatprep.subr.bf16.mxu0 0
    %7474 = vmatpush1.bf16.msra.mxu0 %v4827
    %7475 = vmatprep.subr.bf16.mxu0 0
    %7476 = vmatpush1.bf16.msra.mxu0 %v4828
    %7477 = vmatprep.subr.bf16.mxu0 0
    %7478 = vmatpush1.bf16.msra.mxu0 %v4829
    %7479 = vmatprep.subr.bf16.mxu0 0
    %7480 = vmatpush1.bf16.msra.mxu0 %v4830
    %7481 = vmatprep.subr.bf16.mxu0 0
    %7482 = vmatpush1.bf16.msra.mxu0 %v4831
    %7483 = vmatprep.subr.bf16.mxu0 0
    %7484 = vmatpush1.bf16.msra.mxu0 %v4832
    %7485 = vmatprep.subr.bf16.mxu0 0
    %7486 = vmatpush1.bf16.msra.mxu0 %v4833
    %7487 = vmatprep.subr.bf16.mxu0 0
    %7488 = vmatpush1.bf16.msra.mxu0 %v4834
    %7489 = vmatprep.subr.bf16.mxu0 0
    %7490 = vmatpush1.bf16.msra.mxu0 %v4835
    %7491 = vmatprep.subr.bf16.mxu0 0
    %7492 = vmatpush1.bf16.msra.mxu0 %v4836
    %7493 = vmatprep.subr.bf16.mxu0 0
    %7494 = vmatpush1.bf16.msra.mxu0 %v4837
    %7495 = vmatprep.subr.bf16.mxu0 0
    %7496 = vmatpush1.bf16.msra.mxu0 %v4838
    %7497 = vmatprep.subr.bf16.mxu0 0
    %7498 = vmatpush1.bf16.msra.mxu0 %v4839
    %7499 = vmatprep.subr.bf16.mxu0 0
    %7500 = vmatpush1.bf16.msra.mxu0 %v4840
    %7501 = vmatprep.subr.bf16.mxu0 0
    %7502 = vmatpush1.bf16.msra.mxu0 %v4841
    %7503 = vmatprep.subr.bf16.mxu0 0
    %7504 = vmatpush1.bf16.msra.mxu0 %v4842
    %7505 = vmatprep.mubr.bf16.mxu0 %v7458
    %7506 = vmatmul.mubr.bf16.gmra.mrb[0].mxu0 %v7457
    %v7507 = vpop.f32.mrb[0].mxu0
    %v7508 = vadd.f32 %v2758, %v7507
    %v7509 = vpop.f32.mrb[0].mxu0
    %v7510 = vpop.f32.mrb[0].mxu0
    %v7511 = vadd.f32 %v2758, %v7510
    %v7512 = vpop.f32.mrb[0].mxu0
    %7513 = vdwg.mxu0
    %7514 = vmatprep.subr.bf16.mxu0 0
    %7515 = vmatpush1.bf16.msra.mxu0 %v4843
    %7516 = vmatprep.subr.bf16.mxu0 0
    %7517 = vmatpush1.bf16.msra.mxu0 %v4844
    %7518 = vmatprep.subr.bf16.mxu0 0
    %7519 = vmatpush1.bf16.msra.mxu0 %v4845
    %7520 = vmatprep.subr.bf16.mxu0 0
    %7521 = vmatpush1.bf16.msra.mxu0 %v4846
    %7522 = vmatprep.subr.bf16.mxu0 0
    %7523 = vmatpush1.bf16.msra.mxu0 %v4847
    %7524 = vmatprep.subr.bf16.mxu0 0
    %7525 = vmatpush1.bf16.msra.mxu0 %v4848
    %7526 = vmatprep.subr.bf16.mxu0 0
    %7527 = vmatpush1.bf16.msra.mxu0 %v4849
    %7528 = vmatprep.subr.bf16.mxu0 0
    %7529 = vmatpush1.bf16.msra.mxu0 %v4850
    %7530 = vmatprep.subr.bf16.mxu0 0
    %7531 = vmatpush1.bf16.msra.mxu0 %v4851
    %7532 = vmatprep.subr.bf16.mxu0 0
    %7533 = vmatpush1.bf16.msra.mxu0 %v4852
    %7534 = vmatprep.subr.bf16.mxu0 0
    %7535 = vmatpush1.bf16.msra.mxu0 %v4853
    %7536 = vmatprep.subr.bf16.mxu0 0
    %7537 = vmatpush1.bf16.msra.mxu0 %v4854
    %7538 = vmatprep.subr.bf16.mxu0 0
    %7539 = vmatpush1.bf16.msra.mxu0 %v4855
    %7540 = vmatprep.subr.bf16.mxu0 0
    %7541 = vmatpush1.bf16.msra.mxu0 %v4856
    %7542 = vmatprep.subr.bf16.mxu0 0
    %7543 = vmatpush1.bf16.msra.mxu0 %v4857
    %7544 = vmatprep.subr.bf16.mxu0 0
    %7545 = vmatpush1.bf16.msra.mxu0 %v4858
    %7546 = vmatprep.mubr.bf16.mxu0 %v7460
    %7547 = vmatmul.mubr.bf16.gmra.mrb[0].mxu0 %v7459
    %v7548 = vpop.f32.mrb[0].mxu0
    %v7549 = vadd.f32 %v7508, %v7548
    %v7550 = vpop.f32.mrb[0].mxu0
    %v7551 = vpop.f32.mrb[0].mxu0
    %v7552 = vadd.f32 %v7511, %v7551
    %v7553 = vpop.f32.mrb[0].mxu0
    %7554 = vdwg.mxu0
    %7555 = vmatprep.subr.bf16.mxu0 0
    %7556 = vmatpush1.bf16.msra.mxu0 %v4859
    %7557 = vmatprep.subr.bf16.mxu0 0
    %7558 = vmatpush1.bf16.msra.mxu0 %v4860
    %7559 = vmatprep.subr.bf16.mxu0 0
    %7560 = vmatpush1.bf16.msra.mxu0 %v4861
    %7561 = vmatprep.subr.bf16.mxu0 0
    %7562 = vmatpush1.bf16.msra.mxu0 %v4862
    %7563 = vmatprep.subr.bf16.mxu0 0
    %7564 = vmatpush1.bf16.msra.mxu0 %v4863
    %7565 = vmatprep.subr.bf16.mxu0 0
    %7566 = vmatpush1.bf16.msra.mxu0 %v4864
    %7567 = vmatprep.subr.bf16.mxu0 0
    %7568 = vmatpush1.bf16.msra.mxu0 %v4865
    %7569 = vmatprep.subr.bf16.mxu0 0
    %7570 = vmatpush1.bf16.msra.mxu0 %v4866
    %7571 = vmatprep.subr.bf16.mxu0 0
    %7572 = vmatpush1.bf16.msra.mxu0 %v4867
    %7573 = vmatprep.subr.bf16.mxu0 0
    %7574 = vmatpush1.bf16.msra.mxu0 %v4868
    %7575 = vmatprep.subr.bf16.mxu0 0
    %7576 = vmatpush1.bf16.msra.mxu0 %v4869
    %7577 = vmatprep.subr.bf16.mxu0 0
    %7578 = vmatpush1.bf16.msra.mxu0 %v4870
    %7579 = vmatprep.subr.bf16.mxu0 0
    %7580 = vmatpush1.bf16.msra.mxu0 %v4871
    %7581 = vmatprep.subr.bf16.mxu0 0
    %7582 = vmatpush1.bf16.msra.mxu0 %v4872
    %7583 = vmatprep.subr.bf16.mxu0 0
    %7584 = vmatpush1.bf16.msra.mxu0 %v4873
    %7585 = vmatprep.subr.bf16.mxu0 0
    %7586 = vmatpush1.bf16.msra.mxu0 %v4874
    %7587 = vmatprep.mubr.bf16.mxu0 %v7462
    %7588 = vmatmul.mubr.bf16.gmra.mrb[0].mxu0 %v7461
    %v7589 = vpop.f32.mrb[0].mxu0
    %v7590 = vadd.f32 %v7549, %v7589
    %v7591 = vpop.f32.mrb[0].mxu0
    %v7592 = vpop.f32.mrb[0].mxu0
    %v7593 = vadd.f32 %v7552, %v7592
    %v7594 = vpop.f32.mrb[0].mxu0
    %7595 = vdwg.mxu0
    %7596 = vmatprep.subr.bf16.mxu0 0
    %7597 = vmatpush1.bf16.msra.mxu0 %v4875
    %7598 = vmatprep.subr.bf16.mxu0 0
    %7599 = vmatpush1.bf16.msra.mxu0 %v4876
    %7600 = vmatprep.subr.bf16.mxu0 0
    %7601 = vmatpush1.bf16.msra.mxu0 %v4877
    %7602 = vmatprep.subr.bf16.mxu0 0
    %7603 = vmatpush1.bf16.msra.mxu0 %v4878
    %7604 = vmatprep.subr.bf16.mxu0 0
    %7605 = vmatpush1.bf16.msra.mxu0 %v4879
    %7606 = vmatprep.subr.bf16.mxu0 0
    %7607 = vmatpush1.bf16.msra.mxu0 %v4880
    %7608 = vmatprep.subr.bf16.mxu0 0
    %7609 = vmatpush1.bf16.msra.mxu0 %v4881
    %7610 = vmatprep.subr.bf16.mxu0 0
    %7611 = vmatpush1.bf16.msra.mxu0 %v4882
    %7612 = vmatprep.subr.bf16.mxu0 0
    %7613 = vmatpush1.bf16.msra.mxu0 %v4883
    %7614 = vmatprep.subr.bf16.mxu0 0
    %7615 = vmatpush1.bf16.msra.mxu0 %v4884
    %7616 = vmatprep.subr.bf16.mxu0 0
    %7617 = vmatpush1.bf16.msra.mxu0 %v4885
    %7618 = vmatprep.subr.bf16.mxu0 0
    %7619 = vmatpush1.bf16.msra.mxu0 %v4886
    %7620 = vmatprep.subr.bf16.mxu0 0
    %7621 = vmatpush1.bf16.msra.mxu0 %v4887
    %7622 = vmatprep.subr.bf16.mxu0 0
    %7623 = vmatpush1.bf16.msra.mxu0 %v4888
    %7624 = vmatprep.subr.bf16.mxu0 0
    %7625 = vmatpush1.bf16.msra.mxu0 %v4889
    %7626 = vmatprep.subr.bf16.mxu0 0
    %7627 = vmatpush1.bf16.msra.mxu0 %v4890
    %7628 = vmatprep.mubr.bf16.mxu0 %v7464
    %7629 = vmatmul.mubr.bf16.gmra.mrb[0].mxu0 %v7463
    %v7630 = vpop.f32.mrb[0].mxu0
    %v7631 = vadd.f32 %v7590, %v7630
    %v7632 = vpop.f32.mrb[0].mxu0
    %v7633 = vpop.f32.mrb[0].mxu0
    %v7634 = vadd.f32 %v7593, %v7633
    %v7635 = vpop.f32.mrb[0].mxu0
    %7636 = vdwg.mxu0
    %7637 = vmatprep.subr.bf16.mxu0 0
    %7638 = vmatpush1.bf16.msra.mxu0 %v4891
    %7639 = vmatprep.subr.bf16.mxu0 0
    %7640 = vmatpush1.bf16.msra.mxu0 %v4892
    %7641 = vmatprep.subr.bf16.mxu0 0
    %7642 = vmatpush1.bf16.msra.mxu0 %v4893
    %7643 = vmatprep.subr.bf16.mxu0 0
    %7644 = vmatpush1.bf16.msra.mxu0 %v4894
    %7645 = vmatprep.subr.bf16.mxu0 0
    %7646 = vmatpush1.bf16.msra.mxu0 %v4895
    %7647 = vmatprep.subr.bf16.mxu0 0
    %7648 = vmatpush1.bf16.msra.mxu0 %v4896
    %7649 = vmatprep.subr.bf16.mxu0 0
    %7650 = vmatpush1.bf16.msra.mxu0 %v4897
    %7651 = vmatprep.subr.bf16.mxu0 0
    %7652 = vmatpush1.bf16.msra.mxu0 %v4898
    %7653 = vmatprep.subr.bf16.mxu0 0
    %7654 = vmatpush1.bf16.msra.mxu0 %v4899
    %7655 = vmatprep.subr.bf16.mxu0 0
    %7656 = vmatpush1.bf16.msra.mxu0 %v4900
    %7657 = vmatprep.subr.bf16.mxu0 0
    %7658 = vmatpush1.bf16.msra.mxu0 %v4901
    %7659 = vmatprep.subr.bf16.mxu0 0
    %7660 = vmatpush1.bf16.msra.mxu0 %v4902
    %7661 = vmatprep.subr.bf16.mxu0 0
    %7662 = vmatpush1.bf16.msra.mxu0 %v4903
    %7663 = vmatprep.subr.bf16.mxu0 0
    %7664 = vmatpush1.bf16.msra.mxu0 %v4904
    %7665 = vmatprep.subr.bf16.mxu0 0
    %7666 = vmatpush1.bf16.msra.mxu0 %v4905
    %7667 = vmatprep.subr.bf16.mxu0 0
    %7668 = vmatpush1.bf16.msra.mxu0 %v4906
    %7669 = vmatprep.mubr.bf16.mxu0 %v7466
    %7670 = vmatmul.mubr.bf16.gmra.mrb[0].mxu0 %v7465
    %v7671 = vpop.f32.mrb[0].mxu0
    %v7672 = vadd.f32 %v7631, %v7671
    %v7673 = vpop.f32.mrb[0].mxu0
    %v7674 = vpop.f32.mrb[0].mxu0
    %v7675 = vadd.f32 %v7634, %v7674
    %v7676 = vpop.f32.mrb[0].mxu0
    %7677 = vdwg.mxu0
    %7678 = vmatprep.subr.bf16.mxu0 0
    %7679 = vmatpush1.bf16.msra.mxu0 %v4907
    %7680 = vmatprep.subr.bf16.mxu0 0
    %7681 = vmatpush1.bf16.msra.mxu0 %v4908
    %7682 = vmatprep.subr.bf16.mxu0 0
    %7683 = vmatpush1.bf16.msra.mxu0 %v4909
    %7684 = vmatprep.subr.bf16.mxu0 0
    %7685 = vmatpush1.bf16.msra.mxu0 %v4910
    %7686 = vmatprep.subr.bf16.mxu0 0
    %7687 = vmatpush1.bf16.msra.mxu0 %v4911
    %7688 = vmatprep.subr.bf16.mxu0 0
    %7689 = vmatpush1.bf16.msra.mxu0 %v4912
    %7690 = vmatprep.subr.bf16.mxu0 0
    %7691 = vmatpush1.bf16.msra.mxu0 %v4913
    %7692 = vmatprep.subr.bf16.mxu0 0
    %7693 = vmatpush1.bf16.msra.mxu0 %v4914
    %7694 = vmatprep.subr.bf16.mxu0 0
    %7695 = vmatpush1.bf16.msra.mxu0 %v4915
    %7696 = vmatprep.subr.bf16.mxu0 0
    %7697 = vmatpush1.bf16.msra.mxu0 %v4916
    %7698 = vmatprep.subr.bf16.mxu0 0
    %7699 = vmatpush1.bf16.msra.mxu0 %v4917
    %7700 = vmatprep.subr.bf16.mxu0 0
    %7701 = vmatpush1.bf16.msra.mxu0 %v4918
    %7702 = vmatprep.subr.bf16.mxu0 0
    %7703 = vmatpush1.bf16.msra.mxu0 %v4919
    %7704 = vmatprep.subr.bf16.mxu0 0
    %7705 = vmatpush1.bf16.msra.mxu0 %v4920
    %7706 = vmatprep.subr.bf16.mxu0 0
    %7707 = vmatpush1.bf16.msra.mxu0 %v4921
    %7708 = vmatprep.subr.bf16.mxu0 0
    %7709 = vmatpush1.bf16.msra.mxu0 %v4922
    %7710 = vmatprep.mubr.bf16.mxu0 %v7468
    %7711 = vmatmul.mubr.bf16.gmra.mrb[0].mxu0 %v7467
    %v7712 = vpop.f32.mrb[0].mxu0
    %v7713 = vadd.f32 %v7672, %v7712
    %v7714 = vpop.f32.mrb[0].mxu0
    %v7715 = vpop.f32.mrb[0].mxu0
    %v7716 = vadd.f32 %v7675, %v7715
    %v7717 = vpop.f32.mrb[0].mxu0
    %7718 = vdwg.mxu0
    %7719 = vmatprep.subr.bf16.mxu0 0
    %7720 = vmatpush1.bf16.msra.mxu0 %v4923
    %7721 = vmatprep.subr.bf16.mxu0 0
    %7722 = vmatpush1.bf16.msra.mxu0 %v4924
    %7723 = vmatprep.subr.bf16.mxu0 0
    %7724 = vmatpush1.bf16.msra.mxu0 %v4925
    %7725 = vmatprep.subr.bf16.mxu0 0
    %7726 = vmatpush1.bf16.msra.mxu0 %v4926
    %7727 = vmatprep.subr.bf16.mxu0 0
    %7728 = vmatpush1.bf16.msra.mxu0 %v4927
    %7729 = vmatprep.subr.bf16.mxu0 0
    %7730 = vmatpush1.bf16.msra.mxu0 %v4928
    %7731 = vmatprep.subr.bf16.mxu0 0
    %7732 = vmatpush1.bf16.msra.mxu0 %v4929
    %7733 = vmatprep.subr.bf16.mxu0 0
    %7734 = vmatpush1.bf16.msra.mxu0 %v4930
    %7735 = vmatprep.subr.bf16.mxu0 0
    %7736 = vmatpush1.bf16.msra.mxu0 %v4931
    %7737 = vmatprep.subr.bf16.mxu0 0
    %7738 = vmatpush1.bf16.msra.mxu0 %v4932
    %7739 = vmatprep.subr.bf16.mxu0 0
    %7740 = vmatpush1.bf16.msra.mxu0 %v4933
    %7741 = vmatprep.subr.bf16.mxu0 0
    %7742 = vmatpush1.bf16.msra.mxu0 %v4934
    %7743 = vmatprep.subr.bf16.mxu0 0
    %7744 = vmatpush1.bf16.msra.mxu0 %v4935
    %7745 = vmatprep.subr.bf16.mxu0 0
    %7746 = vmatpush1.bf16.msra.mxu0 %v4936
    %7747 = vmatprep.subr.bf16.mxu0 0
    %7748 = vmatpush1.bf16.msra.mxu0 %v4937
    %7749 = vmatprep.subr.bf16.mxu0 0
    %7750 = vmatpush1.bf16.msra.mxu0 %v4938
    %7751 = vmatprep.mubr.bf16.mxu0 %v7470
    %7752 = vmatmul.mubr.bf16.gmra.mrb[0].mxu0 %v7469
    %v7753 = vpop.f32.mrb[0].mxu0
    %v7754 = vadd.f32 %v7713, %v7753
    %v7755 = vpop.f32.mrb[0].mxu0
    %v7756 = vpop.f32.mrb[0].mxu0
    %v7757 = vadd.f32 %v7716, %v7756
    %v7758 = vpop.f32.mrb[0].mxu0
    %7759 = vdwg.mxu0
    %7760 = vmatprep.subr.bf16.mxu0 0
    %7761 = vmatpush1.bf16.msra.mxu0 %v4939
    %7762 = vmatprep.subr.bf16.mxu0 0
    %7763 = vmatpush1.bf16.msra.mxu0 %v4940
    %7764 = vmatprep.subr.bf16.mxu0 0
    %7765 = vmatpush1.bf16.msra.mxu0 %v4941
    %7766 = vmatprep.subr.bf16.mxu0 0
    %7767 = vmatpush1.bf16.msra.mxu0 %v4942
    %7768 = vmatprep.subr.bf16.mxu0 0
    %7769 = vmatpush1.bf16.msra.mxu0 %v4943
    %7770 = vmatprep.subr.bf16.mxu0 0
    %7771 = vmatpush1.bf16.msra.mxu0 %v4944
    %7772 = vmatprep.subr.bf16.mxu0 0
    %7773 = vmatpush1.bf16.msra.mxu0 %v4945
    %7774 = vmatprep.subr.bf16.mxu0 0
    %7775 = vmatpush1.bf16.msra.mxu0 %v4946
    %7776 = vmatprep.subr.bf16.mxu0 0
    %7777 = vmatpush1.bf16.msra.mxu0 %v4947
    %7778 = vmatprep.subr.bf16.mxu0 0
    %7779 = vmatpush1.bf16.msra.mxu0 %v4948
    %7780 = vmatprep.subr.bf16.mxu0 0
    %7781 = vmatpush1.bf16.msra.mxu0 %v4949
    %7782 = vmatprep.subr.bf16.mxu0 0
    %7783 = vmatpush1.bf16.msra.mxu0 %v4950
    %7784 = vmatprep.subr.bf16.mxu0 0
    %7785 = vmatpush1.bf16.msra.mxu0 %v4951
    %7786 = vmatprep.subr.bf16.mxu0 0
    %7787 = vmatpush1.bf16.msra.mxu0 %v4952
    %7788 = vmatprep.subr.bf16.mxu0 0
    %7789 = vmatpush1.bf16.msra.mxu0 %v4953
    %7790 = vmatprep.subr.bf16.mxu0 0
    %7791 = vmatpush1.bf16.msra.mxu0 %v4954
    %7792 = vmatprep.mubr.bf16.mxu0 %v7472
    %7793 = vmatmul.mubr.bf16.gmra.mrb[0].mxu0 %v7471
    %v7794 = vpop.f32.mrb[0].mxu0
    %v7795 = vadd.f32 %v7754, %v7794
    %v7796 = vpop.f32.mrb[0].mxu0
    %v7797 = vpop.f32.mrb[0].mxu0
    %v7798 = vadd.f32 %v7757, %v7797
    %v7799 = vpop.f32.mrb[0].mxu0
    %7800 = vdwg.mxu0
    %v7801 = vadd.f32 %v7075, %v7795
    %v7802 = vadd.f32 %v7076, %v7798
    %v7803 = vsel %vm536, %v7801, 0.0
    %7804 = vadd.xlane.f32.xlu0 %v7803
    %v7805 = vpop.xlane.xlu0 %7804
    %v7806 = vsel %vm536, %v7802, 0.0
    %7807 = vadd.xlane.f32.xlu0 %v7806
    %v7808 = vpop.xlane.xlu0 %7807
    %v7809 = vmul.f32 %v7805, %v930
    %v7810 = vmul.f32 %v7808, %v930
    %v7811 = vsub.f32 %v7801, %v7809
    %v7812 = vsub.f32 %v7802, %v7810
    %v7813 = vmul.f32 %v7811, %v7811
    %v7814 = vmul.f32 %v7812, %v7812
    %v7815 = vsel %vm536, %v7813, 0.0
    %7816 = vadd.xlane.f32.xlu0 %v7815
    %v7817 = vpop.xlane.xlu0 %7816
    %v7818 = vsel %vm536, %v7814, 0.0
    %7819 = vadd.xlane.f32.xlu0 %v7818
    %v7820 = vpop.xlane.xlu0 %7819
    %v7821 = vmul.f32 %v7817, %v930
    %v7822 = vmul.f32 %v7820, %v930
    %v7823 = vadd.f32 %v7821, 1e-05
    %v7824 = vadd.f32 %v7822, 1e-05
    %v7825 = vrsqrt.pop %v7823
    %v7826 = vrsqrt.pop %v7824
    %v7827 = vmul.f32 %v7811, %v7825
    %v7828 = vmul.f32 %v7812, %v7826
    %v7829 = vmul.f32 %v7827, %v2762
    %v7830 = vmul.f32 %v7828, %v2762
    %v7831 = vadd.f32 %v7829, %v2766
    %v7832 = vadd.f32 %v7830, %v2766
    %v7833 = vsel %vm536, %v7831, 0.0
    %7834 = vadd.xlane.f32.xlu0 %v7833
    %v7835 = vpop.xlane.xlu0 %7834
    %v7836 = vsel %vm536, %v7832, 0.0
    %7837 = vadd.xlane.f32.xlu0 %v7836
    %v7838 = vpop.xlane.xlu0 %7837
    %v7839 = vmul.f32 %v7835, %v930
    %v7840 = vmul.f32 %v7838, %v930
    %v7841 = vsub.f32 %v7831, %v7839
    %v7842 = vsub.f32 %v7832, %v7840
    %v7843 = vmul.f32 %v7841, %v7841
    %v7844 = vmul.f32 %v7842, %v7842
    %v7845 = vsel %vm536, %v7843, 0.0
    %7846 = vadd.xlane.f32.xlu0 %v7845
    %v7847 = vpop.xlane.xlu0 %7846
    %v7848 = vsel %vm536, %v7844, 0.0
    %7849 = vadd.xlane.f32.xlu0 %v7848
    %v7850 = vpop.xlane.xlu0 %7849
    %v7851 = vmul.f32 %v7847, %v930
    %v7852 = vmul.f32 %v7850, %v930
    %v7853 = vadd.f32 %v7851, 1e-05
    %v7854 = vadd.f32 %v7852, 1e-05
    %v7855 = vrsqrt.pop %v7853
    %v7856 = vrsqrt.pop %v7854
    %v7857 = vmul.f32 %v7841, %v7855
    %v7858 = vmul.f32 %v7842, %v7856
    %v7859 = vmul.f32 %v7857, %v56
    %v7860 = vmul.f32 %v7858, %v56
    %v7861 = vadd.f32 %v7859, %v60
    %v7862 = vadd.f32 %v7860, %v60
    %s7863 = scalar_lea.vmem %s10, 16
    %v7864 = vld [vmem:[%s7863] sm:$0x3f]
    %s7865 = scalar_lea.vmem %s4, 96
    %v7866 = vld [vmem:[%s7865] sm:$0xff]
    %v7867 = vld [vmem:[%s7865 + $0x8] sm:$0xf]
    %v7868 = vld [vmem:[%s7865 + $0xc] sm:$0xff]
    %v7869 = vld [vmem:[%s7865 + $0x14] sm:$0xf]
    %v7870 = vld [vmem:[%s7865 + $0x18] sm:$0xff]
    %v7871 = vld [vmem:[%s7865 + $0x20] sm:$0xf]
    %v7872 = vld [vmem:[%s7865 + $0x24] sm:$0xff]
    %v7873 = vld [vmem:[%s7865 + $0x2c] sm:$0xf]
    %s7874 = scalar_lea.vmem %s5, 6
    %v7875 = vld [vmem:[%s7874] sm:$0x7]
    %s7876 = scalar_lea.vmem %s6, 128
    %v7877 = vld [vmem:[%s7876] sm:$0xf]
    %v7878 = vld [vmem:[%s7876 + $0x4] sm:$0xf]
    %v7879 = vld [vmem:[%s7876 + $0x8] sm:$0xf]
    %v7880 = vld [vmem:[%s7876 + $0xc] sm:$0xf]
    %v7881 = vld [vmem:[%s7876 + $0x10] sm:$0xf]
    %v7882 = vld [vmem:[%s7876 + $0x14] sm:$0xf]
    %v7883 = vld [vmem:[%s7876 + $0x18] sm:$0xf]
    %v7884 = vld [vmem:[%s7876 + $0x1c] sm:$0xf]
    %v7885 = vld [vmem:[%s7876 + $0x20] sm:$0xf]
    %v7886 = vld [vmem:[%s7876 + $0x24] sm:$0xf]
    %v7887 = vld [vmem:[%s7876 + $0x28] sm:$0xf]
    %v7888 = vld [vmem:[%s7876 + $0x2c] sm:$0xf]
    %v7889 = vld [vmem:[%s7876 + $0x30] sm:$0xf]
    %v7890 = vld [vmem:[%s7876 + $0x34] sm:$0xf]
    %v7891 = vld [vmem:[%s7876 + $0x38] sm:$0xf]
    %v7892 = vld [vmem:[%s7876 + $0x3c] sm:$0xf]
    %s7893 = scalar_lea.vmem %s7, 512
    %v7894 = vld [vmem:[%s7893] sm:$0xff]
    %v7895 = vld [vmem:[%s7893 + $0x8] sm:$0xff]
    %v7896 = vld [vmem:[%s7893 + $0x10] sm:$0xff]
    %v7897 = vld [vmem:[%s7893 + $0x18] sm:$0xff]
    %v7898 = vld [vmem:[%s7893 + $0x20] sm:$0xff]
    %v7899 = vld [vmem:[%s7893 + $0x28] sm:$0xff]
    %v7900 = vld [vmem:[%s7893 + $0x30] sm:$0xff]
    %v7901 = vld [vmem:[%s7893 + $0x38] sm:$0xff]
    %v7902 = vld [vmem:[%s7893 + $0x40] sm:$0xff]
    %v7903 = vld [vmem:[%s7893 + $0x48] sm:$0xff]
    %v7904 = vld [vmem:[%s7893 + $0x50] sm:$0xff]
    %v7905 = vld [vmem:[%s7893 + $0x58] sm:$0xff]
    %v7906 = vld [vmem:[%s7893 + $0x60] sm:$0xff]
    %v7907 = vld [vmem:[%s7893 + $0x68] sm:$0xff]
    %v7908 = vld [vmem:[%s7893 + $0x70] sm:$0xff]
    %v7909 = vld [vmem:[%s7893 + $0x78] sm:$0xff]
    %v7910 = vld [vmem:[%s7893 + $0x80] sm:$0xff]
    %v7911 = vld [vmem:[%s7893 + $0x88] sm:$0xff]
    %v7912 = vld [vmem:[%s7893 + $0x90] sm:$0xff]
    %v7913 = vld [vmem:[%s7893 + $0x98] sm:$0xff]
    %v7914 = vld [vmem:[%s7893 + $0xa0] sm:$0xff]
    %v7915 = vld [vmem:[%s7893 + $0xa8] sm:$0xff]
    %v7916 = vld [vmem:[%s7893 + $0xb0] sm:$0xff]
    %v7917 = vld [vmem:[%s7893 + $0xb8] sm:$0xff]
    %v7918 = vld [vmem:[%s7893 + $0xc0] sm:$0xff]
    %v7919 = vld [vmem:[%s7893 + $0xc8] sm:$0xff]
    %v7920 = vld [vmem:[%s7893 + $0xd0] sm:$0xff]
    %v7921 = vld [vmem:[%s7893 + $0xd8] sm:$0xff]
    %v7922 = vld [vmem:[%s7893 + $0xe0] sm:$0xff]
    %v7923 = vld [vmem:[%s7893 + $0xe8] sm:$0xff]
    %v7924 = vld [vmem:[%s7893 + $0xf0] sm:$0xff]
    %v7925 = vld [vmem:[%s7893 + $0xf8] sm:$0xff]
    %s7926 = scalar_lea.vmem %s8, 32
    %v7927 = vld [vmem:[%s7926] sm:$0xff]
    %v7928 = vld [vmem:[%s7926 + $0x8] sm:$0xff]
    %s7929 = scalar_lea.vmem %s9, 2048
    %v7930 = vld [vmem:[%s7929] sm:$0xf]
    %v7931 = vld [vmem:[%s7929 + $0x4] sm:$0xf]
    %v7932 = vld [vmem:[%s7929 + $0x8] sm:$0xf]
    %v7933 = vld [vmem:[%s7929 + $0xc] sm:$0xf]
    %v7934 = vld [vmem:[%s7929 + $0x10] sm:$0xf]
    %v7935 = vld [vmem:[%s7929 + $0x14] sm:$0xf]
    %v7936 = vld [vmem:[%s7929 + $0x18] sm:$0xf]
    %v7937 = vld [vmem:[%s7929 + $0x1c] sm:$0xf]
    %v7938 = vld [vmem:[%s7929 + $0x20] sm:$0xf]
    %v7939 = vld [vmem:[%s7929 + $0x24] sm:$0xf]
    %v7940 = vld [vmem:[%s7929 + $0x28] sm:$0xf]
    %v7941 = vld [vmem:[%s7929 + $0x2c] sm:$0xf]
    %v7942 = vld [vmem:[%s7929 + $0x30] sm:$0xf]
    %v7943 = vld [vmem:[%s7929 + $0x34] sm:$0xf]
    %v7944 = vld [vmem:[%s7929 + $0x38] sm:$0xf]
    %v7945 = vld [vmem:[%s7929 + $0x3c] sm:$0xf]
    %v7946 = vld [vmem:[%s7929 + $0x40] sm:$0xf]
    %v7947 = vld [vmem:[%s7929 + $0x44] sm:$0xf]
    %v7948 = vld [vmem:[%s7929 + $0x48] sm:$0xf]
    %v7949 = vld [vmem:[%s7929 + $0x4c] sm:$0xf]
    %v7950 = vld [vmem:[%s7929 + $0x50] sm:$0xf]
    %v7951 = vld [vmem:[%s7929 + $0x54] sm:$0xf]
    %v7952 = vld [vmem:[%s7929 + $0x58] sm:$0xf]
    %v7953 = vld [vmem:[%s7929 + $0x5c] sm:$0xf]
    %v7954 = vld [vmem:[%s7929 + $0x60] sm:$0xf]
    %v7955 = vld [vmem:[%s7929 + $0x64] sm:$0xf]
    %v7956 = vld [vmem:[%s7929 + $0x68] sm:$0xf]
    %v7957 = vld [vmem:[%s7929 + $0x6c] sm:$0xf]
    %v7958 = vld [vmem:[%s7929 + $0x70] sm:$0xf]
    %v7959 = vld [vmem:[%s7929 + $0x74] sm:$0xf]
    %v7960 = vld [vmem:[%s7929 + $0x78] sm:$0xf]
    %v7961 = vld [vmem:[%s7929 + $0x7c] sm:$0xf]
    %v7962 = vld [vmem:[%s7929 + $0x80] sm:$0xf]
    %v7963 = vld [vmem:[%s7929 + $0x84] sm:$0xf]
    %v7964 = vld [vmem:[%s7929 + $0x88] sm:$0xf]
    %v7965 = vld [vmem:[%s7929 + $0x8c] sm:$0xf]
    %v7966 = vld [vmem:[%s7929 + $0x90] sm:$0xf]
    %v7967 = vld [vmem:[%s7929 + $0x94] sm:$0xf]
    %v7968 = vld [vmem:[%s7929 + $0x98] sm:$0xf]
    %v7969 = vld [vmem:[%s7929 + $0x9c] sm:$0xf]
    %v7970 = vld [vmem:[%s7929 + $0xa0] sm:$0xf]
    %v7971 = vld [vmem:[%s7929 + $0xa4] sm:$0xf]
    %v7972 = vld [vmem:[%s7929 + $0xa8] sm:$0xf]
    %v7973 = vld [vmem:[%s7929 + $0xac] sm:$0xf]
    %v7974 = vld [vmem:[%s7929 + $0xb0] sm:$0xf]
    %v7975 = vld [vmem:[%s7929 + $0xb4] sm:$0xf]
    %v7976 = vld [vmem:[%s7929 + $0xb8] sm:$0xf]
    %v7977 = vld [vmem:[%s7929 + $0xbc] sm:$0xf]
    %v7978 = vld [vmem:[%s7929 + $0xc0] sm:$0xf]
    %v7979 = vld [vmem:[%s7929 + $0xc4] sm:$0xf]
    %v7980 = vld [vmem:[%s7929 + $0xc8] sm:$0xf]
    %v7981 = vld [vmem:[%s7929 + $0xcc] sm:$0xf]
    %v7982 = vld [vmem:[%s7929 + $0xd0] sm:$0xf]
    %v7983 = vld [vmem:[%s7929 + $0xd4] sm:$0xf]
    %v7984 = vld [vmem:[%s7929 + $0xd8] sm:$0xf]
    %v7985 = vld [vmem:[%s7929 + $0xdc] sm:$0xf]
    %v7986 = vld [vmem:[%s7929 + $0xe0] sm:$0xf]
    %v7987 = vld [vmem:[%s7929 + $0xe4] sm:$0xf]
    %v7988 = vld [vmem:[%s7929 + $0xe8] sm:$0xf]
    %v7989 = vld [vmem:[%s7929 + $0xec] sm:$0xf]
    %v7990 = vld [vmem:[%s7929 + $0xf0] sm:$0xf]
    %v7991 = vld [vmem:[%s7929 + $0xf4] sm:$0xf]
    %v7992 = vld [vmem:[%s7929 + $0xf8] sm:$0xf]
    %v7993 = vld [vmem:[%s7929 + $0xfc] sm:$0xf]
    %v7994 = vld [vmem:[%s7929 + $0x100] sm:$0xf]
    %v7995 = vld [vmem:[%s7929 + $0x104] sm:$0xf]
    %v7996 = vld [vmem:[%s7929 + $0x108] sm:$0xf]
    %v7997 = vld [vmem:[%s7929 + $0x10c] sm:$0xf]
    %v7998 = vld [vmem:[%s7929 + $0x110] sm:$0xf]
    %v7999 = vld [vmem:[%s7929 + $0x114] sm:$0xf]
    %v8000 = vld [vmem:[%s7929 + $0x118] sm:$0xf]
    %v8001 = vld [vmem:[%s7929 + $0x11c] sm:$0xf]
    %v8002 = vld [vmem:[%s7929 + $0x120] sm:$0xf]
    %v8003 = vld [vmem:[%s7929 + $0x124] sm:$0xf]
    %v8004 = vld [vmem:[%s7929 + $0x128] sm:$0xf]
    %v8005 = vld [vmem:[%s7929 + $0x12c] sm:$0xf]
    %v8006 = vld [vmem:[%s7929 + $0x130] sm:$0xf]
    %v8007 = vld [vmem:[%s7929 + $0x134] sm:$0xf]
    %v8008 = vld [vmem:[%s7929 + $0x138] sm:$0xf]
    %v8009 = vld [vmem:[%s7929 + $0x13c] sm:$0xf]
    %v8010 = vld [vmem:[%s7929 + $0x140] sm:$0xf]
    %v8011 = vld [vmem:[%s7929 + $0x144] sm:$0xf]
    %v8012 = vld [vmem:[%s7929 + $0x148] sm:$0xf]
    %v8013 = vld [vmem:[%s7929 + $0x14c] sm:$0xf]
    %v8014 = vld [vmem:[%s7929 + $0x150] sm:$0xf]
    %v8015 = vld [vmem:[%s7929 + $0x154] sm:$0xf]
    %v8016 = vld [vmem:[%s7929 + $0x158] sm:$0xf]
    %v8017 = vld [vmem:[%s7929 + $0x15c] sm:$0xf]
    %v8018 = vld [vmem:[%s7929 + $0x160] sm:$0xf]
    %v8019 = vld [vmem:[%s7929 + $0x164] sm:$0xf]
    %v8020 = vld [vmem:[%s7929 + $0x168] sm:$0xf]
    %v8021 = vld [vmem:[%s7929 + $0x16c] sm:$0xf]
    %v8022 = vld [vmem:[%s7929 + $0x170] sm:$0xf]
    %v8023 = vld [vmem:[%s7929 + $0x174] sm:$0xf]
    %v8024 = vld [vmem:[%s7929 + $0x178] sm:$0xf]
    %v8025 = vld [vmem:[%s7929 + $0x17c] sm:$0xf]
    %v8026 = vld [vmem:[%s7929 + $0x180] sm:$0xf]
    %v8027 = vld [vmem:[%s7929 + $0x184] sm:$0xf]
    %v8028 = vld [vmem:[%s7929 + $0x188] sm:$0xf]
    %v8029 = vld [vmem:[%s7929 + $0x18c] sm:$0xf]
    %v8030 = vld [vmem:[%s7929 + $0x190] sm:$0xf]
    %v8031 = vld [vmem:[%s7929 + $0x194] sm:$0xf]
    %v8032 = vld [vmem:[%s7929 + $0x198] sm:$0xf]
    %v8033 = vld [vmem:[%s7929 + $0x19c] sm:$0xf]
    %v8034 = vld [vmem:[%s7929 + $0x1a0] sm:$0xf]
    %v8035 = vld [vmem:[%s7929 + $0x1a4] sm:$0xf]
    %v8036 = vld [vmem:[%s7929 + $0x1a8] sm:$0xf]
    %v8037 = vld [vmem:[%s7929 + $0x1ac] sm:$0xf]
    %v8038 = vld [vmem:[%s7929 + $0x1b0] sm:$0xf]
    %v8039 = vld [vmem:[%s7929 + $0x1b4] sm:$0xf]
    %v8040 = vld [vmem:[%s7929 + $0x1b8] sm:$0xf]
    %v8041 = vld [vmem:[%s7929 + $0x1bc] sm:$0xf]
    %v8042 = vld [vmem:[%s7929 + $0x1c0] sm:$0xf]
    %v8043 = vld [vmem:[%s7929 + $0x1c4] sm:$0xf]
    %v8044 = vld [vmem:[%s7929 + $0x1c8] sm:$0xf]
    %v8045 = vld [vmem:[%s7929 + $0x1cc] sm:$0xf]
    %v8046 = vld [vmem:[%s7929 + $0x1d0] sm:$0xf]
    %v8047 = vld [vmem:[%s7929 + $0x1d4] sm:$0xf]
    %v8048 = vld [vmem:[%s7929 + $0x1d8] sm:$0xf]
    %v8049 = vld [vmem:[%s7929 + $0x1dc] sm:$0xf]
    %v8050 = vld [vmem:[%s7929 + $0x1e0] sm:$0xf]
    %v8051 = vld [vmem:[%s7929 + $0x1e4] sm:$0xf]
    %v8052 = vld [vmem:[%s7929 + $0x1e8] sm:$0xf]
    %v8053 = vld [vmem:[%s7929 + $0x1ec] sm:$0xf]
    %v8054 = vld [vmem:[%s7929 + $0x1f0] sm:$0xf]
    %v8055 = vld [vmem:[%s7929 + $0x1f4] sm:$0xf]
    %v8056 = vld [vmem:[%s7929 + $0x1f8] sm:$0xf]
    %v8057 = vld [vmem:[%s7929 + $0x1fc] sm:$0xf]
    %v8058 = vld [vmem:[%s7929 + $0x200] sm:$0xf]
    %v8059 = vld [vmem:[%s7929 + $0x204] sm:$0xf]
    %v8060 = vld [vmem:[%s7929 + $0x208] sm:$0xf]
    %v8061 = vld [vmem:[%s7929 + $0x20c] sm:$0xf]
    %v8062 = vld [vmem:[%s7929 + $0x210] sm:$0xf]
    %v8063 = vld [vmem:[%s7929 + $0x214] sm:$0xf]
    %v8064 = vld [vmem:[%s7929 + $0x218] sm:$0xf]
    %v8065 = vld [vmem:[%s7929 + $0x21c] sm:$0xf]
    %v8066 = vld [vmem:[%s7929 + $0x220] sm:$0xf]
    %v8067 = vld [vmem:[%s7929 + $0x224] sm:$0xf]
    %v8068 = vld [vmem:[%s7929 + $0x228] sm:$0xf]
    %v8069 = vld [vmem:[%s7929 + $0x22c] sm:$0xf]
    %v8070 = vld [vmem:[%s7929 + $0x230] sm:$0xf]
    %v8071 = vld [vmem:[%s7929 + $0x234] sm:$0xf]
    %v8072 = vld [vmem:[%s7929 + $0x238] sm:$0xf]
    %v8073 = vld [vmem:[%s7929 + $0x23c] sm:$0xf]
    %v8074 = vld [vmem:[%s7929 + $0x240] sm:$0xf]
    %v8075 = vld [vmem:[%s7929 + $0x244] sm:$0xf]
    %v8076 = vld [vmem:[%s7929 + $0x248] sm:$0xf]
    %v8077 = vld [vmem:[%s7929 + $0x24c] sm:$0xf]
    %v8078 = vld [vmem:[%s7929 + $0x250] sm:$0xf]
    %v8079 = vld [vmem:[%s7929 + $0x254] sm:$0xf]
    %v8080 = vld [vmem:[%s7929 + $0x258] sm:$0xf]
    %v8081 = vld [vmem:[%s7929 + $0x25c] sm:$0xf]
    %v8082 = vld [vmem:[%s7929 + $0x260] sm:$0xf]
    %v8083 = vld [vmem:[%s7929 + $0x264] sm:$0xf]
    %v8084 = vld [vmem:[%s7929 + $0x268] sm:$0xf]
    %v8085 = vld [vmem:[%s7929 + $0x26c] sm:$0xf]
    %v8086 = vld [vmem:[%s7929 + $0x270] sm:$0xf]
    %v8087 = vld [vmem:[%s7929 + $0x274] sm:$0xf]
    %v8088 = vld [vmem:[%s7929 + $0x278] sm:$0xf]
    %v8089 = vld [vmem:[%s7929 + $0x27c] sm:$0xf]
    %v8090 = vld [vmem:[%s7929 + $0x280] sm:$0xf]
    %v8091 = vld [vmem:[%s7929 + $0x284] sm:$0xf]
    %v8092 = vld [vmem:[%s7929 + $0x288] sm:$0xf]
    %v8093 = vld [vmem:[%s7929 + $0x28c] sm:$0xf]
    %v8094 = vld [vmem:[%s7929 + $0x290] sm:$0xf]
    %v8095 = vld [vmem:[%s7929 + $0x294] sm:$0xf]
    %v8096 = vld [vmem:[%s7929 + $0x298] sm:$0xf]
    %v8097 = vld [vmem:[%s7929 + $0x29c] sm:$0xf]
    %v8098 = vld [vmem:[%s7929 + $0x2a0] sm:$0xf]
    %v8099 = vld [vmem:[%s7929 + $0x2a4] sm:$0xf]
    %v8100 = vld [vmem:[%s7929 + $0x2a8] sm:$0xf]
    %v8101 = vld [vmem:[%s7929 + $0x2ac] sm:$0xf]
    %v8102 = vld [vmem:[%s7929 + $0x2b0] sm:$0xf]
    %v8103 = vld [vmem:[%s7929 + $0x2b4] sm:$0xf]
    %v8104 = vld [vmem:[%s7929 + $0x2b8] sm:$0xf]
    %v8105 = vld [vmem:[%s7929 + $0x2bc] sm:$0xf]
    %v8106 = vld [vmem:[%s7929 + $0x2c0] sm:$0xf]
    %v8107 = vld [vmem:[%s7929 + $0x2c4] sm:$0xf]
    %v8108 = vld [vmem:[%s7929 + $0x2c8] sm:$0xf]
    %v8109 = vld [vmem:[%s7929 + $0x2cc] sm:$0xf]
    %v8110 = vld [vmem:[%s7929 + $0x2d0] sm:$0xf]
    %v8111 = vld [vmem:[%s7929 + $0x2d4] sm:$0xf]
    %v8112 = vld [vmem:[%s7929 + $0x2d8] sm:$0xf]
    %v8113 = vld [vmem:[%s7929 + $0x2dc] sm:$0xf]
    %v8114 = vld [vmem:[%s7929 + $0x2e0] sm:$0xf]
    %v8115 = vld [vmem:[%s7929 + $0x2e4] sm:$0xf]
    %v8116 = vld [vmem:[%s7929 + $0x2e8] sm:$0xf]
    %v8117 = vld [vmem:[%s7929 + $0x2ec] sm:$0xf]
    %v8118 = vld [vmem:[%s7929 + $0x2f0] sm:$0xf]
    %v8119 = vld [vmem:[%s7929 + $0x2f4] sm:$0xf]
    %v8120 = vld [vmem:[%s7929 + $0x2f8] sm:$0xf]
    %v8121 = vld [vmem:[%s7929 + $0x2fc] sm:$0xf]
    %v8122 = vld [vmem:[%s7929 + $0x300] sm:$0xf]
    %v8123 = vld [vmem:[%s7929 + $0x304] sm:$0xf]
    %v8124 = vld [vmem:[%s7929 + $0x308] sm:$0xf]
    %v8125 = vld [vmem:[%s7929 + $0x30c] sm:$0xf]
    %v8126 = vld [vmem:[%s7929 + $0x310] sm:$0xf]
    %v8127 = vld [vmem:[%s7929 + $0x314] sm:$0xf]
    %v8128 = vld [vmem:[%s7929 + $0x318] sm:$0xf]
    %v8129 = vld [vmem:[%s7929 + $0x31c] sm:$0xf]
    %v8130 = vld [vmem:[%s7929 + $0x320] sm:$0xf]
    %v8131 = vld [vmem:[%s7929 + $0x324] sm:$0xf]
    %v8132 = vld [vmem:[%s7929 + $0x328] sm:$0xf]
    %v8133 = vld [vmem:[%s7929 + $0x32c] sm:$0xf]
    %v8134 = vld [vmem:[%s7929 + $0x330] sm:$0xf]
    %v8135 = vld [vmem:[%s7929 + $0x334] sm:$0xf]
    %v8136 = vld [vmem:[%s7929 + $0x338] sm:$0xf]
    %v8137 = vld [vmem:[%s7929 + $0x33c] sm:$0xf]
    %v8138 = vld [vmem:[%s7929 + $0x340] sm:$0xf]
    %v8139 = vld [vmem:[%s7929 + $0x344] sm:$0xf]
    %v8140 = vld [vmem:[%s7929 + $0x348] sm:$0xf]
    %v8141 = vld [vmem:[%s7929 + $0x34c] sm:$0xf]
    %v8142 = vld [vmem:[%s7929 + $0x350] sm:$0xf]
    %v8143 = vld [vmem:[%s7929 + $0x354] sm:$0xf]
    %v8144 = vld [vmem:[%s7929 + $0x358] sm:$0xf]
    %v8145 = vld [vmem:[%s7929 + $0x35c] sm:$0xf]
    %v8146 = vld [vmem:[%s7929 + $0x360] sm:$0xf]
    %v8147 = vld [vmem:[%s7929 + $0x364] sm:$0xf]
    %v8148 = vld [vmem:[%s7929 + $0x368] sm:$0xf]
    %v8149 = vld [vmem:[%s7929 + $0x36c] sm:$0xf]
    %v8150 = vld [vmem:[%s7929 + $0x370] sm:$0xf]
    %v8151 = vld [vmem:[%s7929 + $0x374] sm:$0xf]
    %v8152 = vld [vmem:[%s7929 + $0x378] sm:$0xf]
    %v8153 = vld [vmem:[%s7929 + $0x37c] sm:$0xf]
    %v8154 = vld [vmem:[%s7929 + $0x380] sm:$0xf]
    %v8155 = vld [vmem:[%s7929 + $0x384] sm:$0xf]
    %v8156 = vld [vmem:[%s7929 + $0x388] sm:$0xf]
    %v8157 = vld [vmem:[%s7929 + $0x38c] sm:$0xf]
    %v8158 = vld [vmem:[%s7929 + $0x390] sm:$0xf]
    %v8159 = vld [vmem:[%s7929 + $0x394] sm:$0xf]
    %v8160 = vld [vmem:[%s7929 + $0x398] sm:$0xf]
    %v8161 = vld [vmem:[%s7929 + $0x39c] sm:$0xf]
    %v8162 = vld [vmem:[%s7929 + $0x3a0] sm:$0xf]
    %v8163 = vld [vmem:[%s7929 + $0x3a4] sm:$0xf]
    %v8164 = vld [vmem:[%s7929 + $0x3a8] sm:$0xf]
    %v8165 = vld [vmem:[%s7929 + $0x3ac] sm:$0xf]
    %v8166 = vld [vmem:[%s7929 + $0x3b0] sm:$0xf]
    %v8167 = vld [vmem:[%s7929 + $0x3b4] sm:$0xf]
    %v8168 = vld [vmem:[%s7929 + $0x3b8] sm:$0xf]
    %v8169 = vld [vmem:[%s7929 + $0x3bc] sm:$0xf]
    %v8170 = vld [vmem:[%s7929 + $0x3c0] sm:$0xf]
    %v8171 = vld [vmem:[%s7929 + $0x3c4] sm:$0xf]
    %v8172 = vld [vmem:[%s7929 + $0x3c8] sm:$0xf]
    %v8173 = vld [vmem:[%s7929 + $0x3cc] sm:$0xf]
    %v8174 = vld [vmem:[%s7929 + $0x3d0] sm:$0xf]
    %v8175 = vld [vmem:[%s7929 + $0x3d4] sm:$0xf]
    %v8176 = vld [vmem:[%s7929 + $0x3d8] sm:$0xf]
    %v8177 = vld [vmem:[%s7929 + $0x3dc] sm:$0xf]
    %v8178 = vld [vmem:[%s7929 + $0x3e0] sm:$0xf]
    %v8179 = vld [vmem:[%s7929 + $0x3e4] sm:$0xf]
    %v8180 = vld [vmem:[%s7929 + $0x3e8] sm:$0xf]
    %v8181 = vld [vmem:[%s7929 + $0x3ec] sm:$0xf]
    %v8182 = vld [vmem:[%s7929 + $0x3f0] sm:$0xf]
    %v8183 = vld [vmem:[%s7929 + $0x3f4] sm:$0xf]
    %v8184 = vld [vmem:[%s7929 + $0x3f8] sm:$0xf]
    %v8185 = vld [vmem:[%s7929 + $0x3fc] sm:$0xf]
    %v8186 = vpack.c.bf16 %v7862, %v7861
    %v8188 = vlaneseq
    %v8189 = vshrl.u32 %v8188, 7
    %v8190 = vsub.s32 0, %v8189
    %v8191 = vrot.slane %v7875, %v8190
    %v8192 = vlaneseq
    %v8193 = vshrl.u32 %v8192, 7
    %v8194 = vsub.s32 1, %v8193
    %v8195 = vrot.slane %v7875, %v8194
    %v8196 = vlaneseq
    %v8197 = vshrl.u32 %v8196, 7
    %v8198 = vsub.s32 2, %v8197
    %v8199 = vrot.slane %v7875, %v8198
    %v8211 = vunpack.c.l.b16 %v7866
    %v8212 = vunpack.c.h.b16 %v7866
    %v8213 = vunpack.c.l.b16 %v7867
    %v8214 = vunpack.c.l.b16 %v7868
    %v8215 = vunpack.c.h.b16 %v7868
    %v8216 = vunpack.c.l.b16 %v7869
    %v8217 = vunpack.c.l.b16 %v7870
    %v8218 = vunpack.c.h.b16 %v7870
    %v8219 = vunpack.c.l.b16 %v7871
    %v8220 = vunpack.c.l.b16 %v7872
    %v8221 = vunpack.c.h.b16 %v7872
    %v8222 = vunpack.c.l.b16 %v7873
    %v8223 = vpack.c.b16 %v8214, %v8211
    %v8224 = vpack.c.b16 %v8215, %v8212
    %v8225 = vpack.c.b16 %v8216, %v8213
    %v8226 = vpack.c.b16 %v8220, %v8217
    %v8227 = vpack.c.b16 %v8221, %v8218
    %v8228 = vpack.c.b16 %v8222, %v8219
    %v8236 = vsel %vm536, %v8186, 0
    %8238 = vmatprep.subr.bf16.mxu0 %v8224
    %8239 = vmatpush1.bf16.msra.mxu0 %v8223
    %8240 = vmatprep.subr.bf16.mxu0 %v8227
    %8241 = vmatpush1.bf16.msra.mxu0 %v8226
    %8242 = vmatprep.subr.bf16.mxu0 0
    %8243 = vmatpush1.bf16.msra.mxu0 0
    %8244 = vmatprep.subr.bf16.mxu0 0
    %8245 = vmatpush1.bf16.msra.mxu0 0
    %8246 = vmatprep.subr.bf16.mxu0 0
    %8247 = vmatpush1.bf16.msra.mxu0 0
    %8248 = vmatprep.subr.bf16.mxu0 0
    %8249 = vmatpush1.bf16.msra.mxu0 0
    %8250 = vmatprep.subr.bf16.mxu0 0
    %8251 = vmatpush1.bf16.msra.mxu0 0
    %8252 = vmatprep.subr.bf16.mxu0 0
    %8253 = vmatpush1.bf16.msra.mxu0 0
    %8254 = vmatprep.subr.bf16.mxu0 0
    %8255 = vmatpush1.bf16.msra.mxu0 0
    %8256 = vmatprep.subr.bf16.mxu0 0
    %8257 = vmatpush1.bf16.msra.mxu0 0
    %8258 = vmatprep.subr.bf16.mxu0 0
    %8259 = vmatpush1.bf16.msra.mxu0 0
    %8260 = vmatprep.subr.bf16.mxu0 0
    %8261 = vmatpush1.bf16.msra.mxu0 0
    %8262 = vmatprep.subr.bf16.mxu0 0
    %8263 = vmatpush1.bf16.msra.mxu0 0
    %8264 = vmatprep.subr.bf16.mxu0 0
    %8265 = vmatpush1.bf16.msra.mxu0 0
    %8266 = vmatprep.subr.bf16.mxu0 0
    %8267 = vmatpush1.bf16.msra.mxu0 0
    %8268 = vmatprep.subr.bf16.mxu0 0
    %8269 = vmatpush1.bf16.msra.mxu0 0
    %8270 = vmatprep.mubr.bf16.mxu0 0
    %8271 = vmatmul.mubr.bf16.gmra.mrb[0].mxu0 %v8236
    %v8272 = vpop.f32.mrb[0].mxu0
    %v8273 = vadd.f32 %v8191, %v8272
    %v8274 = vpop.f32.mrb[0].mxu0
    %v8275 = vadd.f32 %v8195, %v8274
    %v8276 = vpop.f32.mrb[0].mxu0
    %v8277 = vadd.f32 %v8191, %v8276
    %v8278 = vpop.f32.mrb[0].mxu0
    %v8279 = vadd.f32 %v8195, %v8278
    %8280 = vdwg.mxu0
    %8281 = vmatprep.subr.bf16.mxu0 0
    %8282 = vmatpush1.bf16.msra.mxu0 %v8225
    %8283 = vmatprep.subr.bf16.mxu0 0
    %8284 = vmatpush1.bf16.msra.mxu0 %v8228
    %8285 = vmatprep.subr.bf16.mxu0 0
    %8286 = vmatpush1.bf16.msra.mxu0 0
    %8287 = vmatprep.subr.bf16.mxu0 0
    %8288 = vmatpush1.bf16.msra.mxu0 0
    %8289 = vmatprep.subr.bf16.mxu0 0
    %8290 = vmatpush1.bf16.msra.mxu0 0
    %8291 = vmatprep.subr.bf16.mxu0 0
    %8292 = vmatpush1.bf16.msra.mxu0 0
    %8293 = vmatprep.subr.bf16.mxu0 0
    %8294 = vmatpush1.bf16.msra.mxu0 0
    %8295 = vmatprep.subr.bf16.mxu0 0
    %8296 = vmatpush1.bf16.msra.mxu0 0
    %8297 = vmatprep.subr.bf16.mxu0 0
    %8298 = vmatpush1.bf16.msra.mxu0 0
    %8299 = vmatprep.subr.bf16.mxu0 0
    %8300 = vmatpush1.bf16.msra.mxu0 0
    %8301 = vmatprep.subr.bf16.mxu0 0
    %8302 = vmatpush1.bf16.msra.mxu0 0
    %8303 = vmatprep.subr.bf16.mxu0 0
    %8304 = vmatpush1.bf16.msra.mxu0 0
    %8305 = vmatprep.subr.bf16.mxu0 0
    %8306 = vmatpush1.bf16.msra.mxu0 0
    %8307 = vmatprep.subr.bf16.mxu0 0
    %8308 = vmatpush1.bf16.msra.mxu0 0
    %8309 = vmatprep.subr.bf16.mxu0 0
    %8310 = vmatpush1.bf16.msra.mxu0 0
    %8311 = vmatprep.subr.bf16.mxu0 0
    %8312 = vmatpush1.bf16.msra.mxu0 0
    %8313 = vmatprep.mubr.bf16.mxu0 0
    %8314 = vmatmul.mubr.bf16.gmra.mrb[0].mxu0 %v8236
    %v8315 = vpop.f32.mrb[0].mxu0
    %v8316 = vadd.f32 %v8199, %v8315
    %v8317 = vpop.f32.mrb[0].mxu0
    %v8318 = vpop.f32.mrb[0].mxu0
    %v8319 = vadd.f32 %v8199, %v8318
    %v8320 = vpop.f32.mrb[0].mxu0
    %8321 = vdwg.mxu0
    %v8322 = vpack.c.bf16 %v8273, %v8273
    %v8323 = vpack.c.bf16 %v8277, %v8277
    %v8324 = vpack.c.bf16 %v8275, %v8275
    %v8325 = vpack.c.bf16 %v8279, %v8279
    %8326 = vmatprep.subr.bf16.mxu0 0
    %8327 = vmatpush1.bf16.xpose.msra.mxu0 %v8324
    %8328 = vmatprep.subr.bf16.mxu0 0
    %8329 = vmatpush1.bf16.xpose.msra.mxu0 0
    %8330 = vmatprep.subr.bf16.mxu0 0
    %8331 = vmatpush1.bf16.xpose.msra.mxu0 0
    %8332 = vmatprep.subr.bf16.mxu0 0
    %8333 = vmatpush1.bf16.xpose.msra.mxu0 0
    %8334 = vmatprep.subr.bf16.mxu0 0
    %8335 = vmatpush1.bf16.xpose.msra.mxu0 0
    %8336 = vmatprep.subr.bf16.mxu0 0
    %8337 = vmatpush1.bf16.xpose.msra.mxu0 0
    %8338 = vmatprep.subr.bf16.mxu0 0
    %8339 = vmatpush1.bf16.xpose.msra.mxu0 0
    %8340 = vmatprep.subr.bf16.mxu0 0
    %8341 = vmatpush1.bf16.xpose.msra.mxu0 0
    %8342 = vmatprep.subr.bf16.mxu0 0
    %8343 = vmatpush1.bf16.xpose.msra.mxu0 0
    %8344 = vmatprep.subr.bf16.mxu0 0
    %8345 = vmatpush1.bf16.xpose.msra.mxu0 0
    %8346 = vmatprep.subr.bf16.mxu0 0
    %8347 = vmatpush1.bf16.xpose.msra.mxu0 0
    %8348 = vmatprep.subr.bf16.mxu0 0
    %8349 = vmatpush1.bf16.xpose.msra.mxu0 0
    %8350 = vmatprep.subr.bf16.mxu0 0
    %8351 = vmatpush1.bf16.xpose.msra.mxu0 0
    %8352 = vmatprep.subr.bf16.mxu0 0
    %8353 = vmatpush1.bf16.xpose.msra.mxu0 0
    %8354 = vmatprep.subr.bf16.mxu0 0
    %8355 = vmatpush1.bf16.xpose.msra.mxu0 0
    %8356 = vmatprep.subr.bf16.mxu0 0
    %8357 = vmatpush1.bf16.xpose.msra.mxu0 0
    %8358 = vmatprep.mubr.bf16.mxu0 0
    %8359 = vmatmul.mubr.bf16.gmra.mrb[0].mxu0 %v8322
    %v8360 = vpop.f32.mrb[0].mxu0
    %v8361 = vadd.f32 0.0, %v8360
    %v8362 = vpop.f32.mrb[0].mxu0
    %v8363 = vpop.f32.mrb[0].mxu0
    %v8364 = vpop.f32.mrb[0].mxu0
    %8365 = vdwg.mxu0
    %8366 = vmatprep.subr.bf16.mxu0 0
    %8367 = vmatpush1.bf16.xpose.msra.mxu0 %v8325
    %8368 = vmatprep.subr.bf16.mxu0 0
    %8369 = vmatpush1.bf16.xpose.msra.mxu0 0
    %8370 = vmatprep.subr.bf16.mxu0 0
    %8371 = vmatpush1.bf16.xpose.msra.mxu0 0
    %8372 = vmatprep.subr.bf16.mxu0 0
    %8373 = vmatpush1.bf16.xpose.msra.mxu0 0
    %8374 = vmatprep.subr.bf16.mxu0 0
    %8375 = vmatpush1.bf16.xpose.msra.mxu0 0
    %8376 = vmatprep.subr.bf16.mxu0 0
    %8377 = vmatpush1.bf16.xpose.msra.mxu0 0
    %8378 = vmatprep.subr.bf16.mxu0 0
    %8379 = vmatpush1.bf16.xpose.msra.mxu0 0
    %8380 = vmatprep.subr.bf16.mxu0 0
    %8381 = vmatpush1.bf16.xpose.msra.mxu0 0
    %8382 = vmatprep.subr.bf16.mxu0 0
    %8383 = vmatpush1.bf16.xpose.msra.mxu0 0
    %8384 = vmatprep.subr.bf16.mxu0 0
    %8385 = vmatpush1.bf16.xpose.msra.mxu0 0
    %8386 = vmatprep.subr.bf16.mxu0 0
    %8387 = vmatpush1.bf16.xpose.msra.mxu0 0
    %8388 = vmatprep.subr.bf16.mxu0 0
    %8389 = vmatpush1.bf16.xpose.msra.mxu0 0
    %8390 = vmatprep.subr.bf16.mxu0 0
    %8391 = vmatpush1.bf16.xpose.msra.mxu0 0
    %8392 = vmatprep.subr.bf16.mxu0 0
    %8393 = vmatpush1.bf16.xpose.msra.mxu0 0
    %8394 = vmatprep.subr.bf16.mxu0 0
    %8395 = vmatpush1.bf16.xpose.msra.mxu0 0
    %8396 = vmatprep.subr.bf16.mxu0 0
    %8397 = vmatpush1.bf16.xpose.msra.mxu0 0
    %8398 = vmatprep.mubr.bf16.mxu0 0
    %8399 = vmatmul.mubr.bf16.gmra.mrb[0].mxu0 %v8323
    %v8400 = vpop.f32.mrb[0].mxu0
    %v8401 = vadd.f32 0.0, %v8400
    %v8402 = vpop.f32.mrb[0].mxu0
    %v8403 = vpop.f32.mrb[0].mxu0
    %v8404 = vpop.f32.mrb[0].mxu0
    %8405 = vdwg.mxu0
    %v8406 = vsel %vm708, %v8361, -inf
    %8407 = vmax.xlane.f32.xlu0 %v8406
    %v8408 = vpop.xlane.xlu0 %8407
    %v8409 = vsel %vm708, %v8401, -inf
    %8410 = vmax.xlane.f32.xlu0 %v8409
    %v8411 = vpop.xlane.xlu0 %8410
    %v8412 = vsub.f32 %v8361, %v8408
    %v8413 = vsub.f32 %v8401, %v8411
    %v8414 = vmul.f32 %v8412, 1.442695
    %v8415 = vpow.pop %v8414
    %v8416 = vmul.f32 %v8413, 1.442695
    %v8417 = vpow.pop %v8416
    %v8418 = vsel %vm708, %v8415, 0.0
    %8419 = vadd.xlane.f32.xlu0 %v8418
    %v8420 = vpop.xlane.xlu0 %8419
    %v8421 = vsel %vm708, %v8417, 0.0
    %8422 = vadd.xlane.f32.xlu0 %v8421
    %v8423 = vpop.xlane.xlu0 %8422
    %v8424 = vrcp.pop %v8420
    %v8425 = vrcp.pop %v8423
    %v8426 = vmul.f32 %v8415, %v8424
    %v8427 = vmul.f32 %v8417, %v8425
    %v8428 = vpack.c.bf16 %v8426, %v8426
    %v8429 = vpack.c.bf16 %v8427, %v8427
    %v8430 = vpack.c.bf16 %v8316, %v8316
    %v8431 = vpack.c.bf16 %v8319, %v8319
    %v8433 = vsel %vm708, %v8428, 0
    %v8436 = vsel %vm738, %v8430, 0
    %8438 = vmatprep.subr.bf16.mxu0 0
    %8439 = vmatpush1.bf16.msra.mxu0 %v8436
    %8440 = vmatprep.subr.bf16.mxu0 0
    %8441 = vmatpush1.bf16.msra.mxu0 0
    %8442 = vmatprep.subr.bf16.mxu0 0
    %8443 = vmatpush1.bf16.msra.mxu0 0
    %8444 = vmatprep.subr.bf16.mxu0 0
    %8445 = vmatpush1.bf16.msra.mxu0 0
    %8446 = vmatprep.subr.bf16.mxu0 0
    %8447 = vmatpush1.bf16.msra.mxu0 0
    %8448 = vmatprep.subr.bf16.mxu0 0
    %8449 = vmatpush1.bf16.msra.mxu0 0
    %8450 = vmatprep.subr.bf16.mxu0 0
    %8451 = vmatpush1.bf16.msra.mxu0 0
    %8452 = vmatprep.subr.bf16.mxu0 0
    %8453 = vmatpush1.bf16.msra.mxu0 0
    %8454 = vmatprep.subr.bf16.mxu0 0
    %8455 = vmatpush1.bf16.msra.mxu0 0
    %8456 = vmatprep.subr.bf16.mxu0 0
    %8457 = vmatpush1.bf16.msra.mxu0 0
    %8458 = vmatprep.subr.bf16.mxu0 0
    %8459 = vmatpush1.bf16.msra.mxu0 0
    %8460 = vmatprep.subr.bf16.mxu0 0
    %8461 = vmatpush1.bf16.msra.mxu0 0
    %8462 = vmatprep.subr.bf16.mxu0 0
    %8463 = vmatpush1.bf16.msra.mxu0 0
    %8464 = vmatprep.subr.bf16.mxu0 0
    %8465 = vmatpush1.bf16.msra.mxu0 0
    %8466 = vmatprep.subr.bf16.mxu0 0
    %8467 = vmatpush1.bf16.msra.mxu0 0
    %8468 = vmatprep.subr.bf16.mxu0 0
    %8469 = vmatpush1.bf16.msra.mxu0 0
    %8470 = vmatprep.mubr.bf16.mxu0 0
    %8471 = vmatmul.mubr.bf16.gmra.mrb[0].mxu0 %v8433
    %v8472 = vpop.f32.mrb[0].mxu0
    %v8473 = vadd.f32 0.0, %v8472
    %v8474 = vpop.f32.mrb[0].mxu0
    %v8475 = vpop.f32.mrb[0].mxu0
    %v8476 = vpop.f32.mrb[0].mxu0
    %8477 = vdwg.mxu0
    %v8479 = vsel %vm708, %v8429, 0
    %v8482 = vsel %vm738, %v8431, 0
    %8484 = vmatprep.subr.bf16.mxu0 0
    %8485 = vmatpush1.bf16.msra.mxu0 %v8482
    %8486 = vmatprep.subr.bf16.mxu0 0
    %8487 = vmatpush1.bf16.msra.mxu0 0
    %8488 = vmatprep.subr.bf16.mxu0 0
    %8489 = vmatpush1.bf16.msra.mxu0 0
    %8490 = vmatprep.subr.bf16.mxu0 0
    %8491 = vmatpush1.bf16.msra.mxu0 0
    %8492 = vmatprep.subr.bf16.mxu0 0
    %8493 = vmatpush1.bf16.msra.mxu0 0
    %8494 = vmatprep.subr.bf16.mxu0 0
    %8495 = vmatpush1.bf16.msra.mxu0 0
    %8496 = vmatprep.subr.bf16.mxu0 0
    %8497 = vmatpush1.bf16.msra.mxu0 0
    %8498 = vmatprep.subr.bf16.mxu0 0
    %8499 = vmatpush1.bf16.msra.mxu0 0
    %8500 = vmatprep.subr.bf16.mxu0 0
    %8501 = vmatpush1.bf16.msra.mxu0 0
    %8502 = vmatprep.subr.bf16.mxu0 0
    %8503 = vmatpush1.bf16.msra.mxu0 0
    %8504 = vmatprep.subr.bf16.mxu0 0
    %8505 = vmatpush1.bf16.msra.mxu0 0
    %8506 = vmatprep.subr.bf16.mxu0 0
    %8507 = vmatpush1.bf16.msra.mxu0 0
    %8508 = vmatprep.subr.bf16.mxu0 0
    %8509 = vmatpush1.bf16.msra.mxu0 0
    %8510 = vmatprep.subr.bf16.mxu0 0
    %8511 = vmatpush1.bf16.msra.mxu0 0
    %8512 = vmatprep.subr.bf16.mxu0 0
    %8513 = vmatpush1.bf16.msra.mxu0 0
    %8514 = vmatprep.subr.bf16.mxu0 0
    %8515 = vmatpush1.bf16.msra.mxu0 0
    %8516 = vmatprep.mubr.bf16.mxu0 0
    %8517 = vmatmul.mubr.bf16.gmra.mrb[0].mxu0 %v8479
    %v8518 = vpop.f32.mrb[0].mxu0
    %v8519 = vadd.f32 0.0, %v8518
    %v8520 = vpop.f32.mrb[0].mxu0
    %v8521 = vpop.f32.mrb[0].mxu0
    %v8522 = vpop.f32.mrb[0].mxu0
    %8523 = vdwg.mxu0
    %v8524 = vpack.c.bf16 %v8519, %v8473
    %v8525 = vlaneseq
    %v8526 = vshrl.u32 %v8525, 7
    %v8527 = vsub.s32 0, %v8526
    %v8528 = vrot.slane %v7864, %v8527
    %v8545 = vunpack.c.l.b16 %v7877
    %v8546 = vunpack.c.l.b16 %v7878
    %v8547 = vunpack.c.l.b16 %v7879
    %v8548 = vunpack.c.l.b16 %v7880
    %v8549 = vunpack.c.l.b16 %v7881
    %v8550 = vunpack.c.l.b16 %v7882
    %v8551 = vunpack.c.l.b16 %v7883
    %v8552 = vunpack.c.l.b16 %v7884
    %v8553 = vunpack.c.l.b16 %v7885
    %v8554 = vunpack.c.l.b16 %v7886
    %v8555 = vunpack.c.l.b16 %v7887
    %v8556 = vunpack.c.l.b16 %v7888
    %v8557 = vunpack.c.l.b16 %v7889
    %v8558 = vunpack.c.l.b16 %v7890
    %v8559 = vunpack.c.l.b16 %v7891
    %v8560 = vunpack.c.l.b16 %v7892
    %v8561 = vpack.c.b16 %v8546, %v8545
    %v8562 = vpack.c.b16 %v8548, %v8547
    %v8563 = vpack.c.b16 %v8550, %v8549
    %v8564 = vpack.c.b16 %v8552, %v8551
    %v8565 = vpack.c.b16 %v8554, %v8553
    %v8566 = vpack.c.b16 %v8556, %v8555
    %v8567 = vpack.c.b16 %v8558, %v8557
    %v8568 = vpack.c.b16 %v8560, %v8559
    %8577 = vmatprep.subr.bf16.mxu0 0
    %8578 = vmatpush1.bf16.msra.mxu0 %v8561
    %8579 = vmatprep.subr.bf16.mxu0 0
    %8580 = vmatpush1.bf16.msra.mxu0 %v8562
    %8581 = vmatprep.subr.bf16.mxu0 0
    %8582 = vmatpush1.bf16.msra.mxu0 %v8563
    %8583 = vmatprep.subr.bf16.mxu0 0
    %8584 = vmatpush1.bf16.msra.mxu0 %v8564
    %8585 = vmatprep.subr.bf16.mxu0 0
    %8586 = vmatpush1.bf16.msra.mxu0 %v8565
    %8587 = vmatprep.subr.bf16.mxu0 0
    %8588 = vmatpush1.bf16.msra.mxu0 %v8566
    %8589 = vmatprep.subr.bf16.mxu0 0
    %8590 = vmatpush1.bf16.msra.mxu0 %v8567
    %8591 = vmatprep.subr.bf16.mxu0 0
    %8592 = vmatpush1.bf16.msra.mxu0 %v8568
    %8593 = vmatprep.subr.bf16.mxu0 0
    %8594 = vmatpush1.bf16.msra.mxu0 0
    %8595 = vmatprep.subr.bf16.mxu0 0
    %8596 = vmatpush1.bf16.msra.mxu0 0
    %8597 = vmatprep.subr.bf16.mxu0 0
    %8598 = vmatpush1.bf16.msra.mxu0 0
    %8599 = vmatprep.subr.bf16.mxu0 0
    %8600 = vmatpush1.bf16.msra.mxu0 0
    %8601 = vmatprep.subr.bf16.mxu0 0
    %8602 = vmatpush1.bf16.msra.mxu0 0
    %8603 = vmatprep.subr.bf16.mxu0 0
    %8604 = vmatpush1.bf16.msra.mxu0 0
    %8605 = vmatprep.subr.bf16.mxu0 0
    %8606 = vmatpush1.bf16.msra.mxu0 0
    %8607 = vmatprep.subr.bf16.mxu0 0
    %8608 = vmatpush1.bf16.msra.mxu0 0
    %8609 = vmatprep.mubr.bf16.mxu0 0
    %8610 = vmatmul.mubr.bf16.gmra.mrb[0].mxu0 %v8524
    %v8611 = vpop.f32.mrb[0].mxu0
    %v8612 = vadd.f32 %v8528, %v8611
    %v8613 = vpop.f32.mrb[0].mxu0
    %v8614 = vpop.f32.mrb[0].mxu0
    %v8615 = vadd.f32 %v8528, %v8614
    %v8616 = vpop.f32.mrb[0].mxu0
    %8617 = vdwg.mxu0
    %v8618 = vadd.f32 %v7861, %v8612
    %v8619 = vadd.f32 %v7862, %v8615
    %v8620 = vsel %vm536, %v8618, 0.0
    %8621 = vadd.xlane.f32.xlu0 %v8620
    %v8622 = vpop.xlane.xlu0 %8621
    %v8623 = vsel %vm536, %v8619, 0.0
    %8624 = vadd.xlane.f32.xlu0 %v8623
    %v8625 = vpop.xlane.xlu0 %8624
    %v8626 = vmul.f32 %v8622, %v930
    %v8627 = vmul.f32 %v8625, %v930
    %v8628 = vsub.f32 %v8618, %v8626
    %v8629 = vsub.f32 %v8619, %v8627
    %v8630 = vmul.f32 %v8628, %v8628
    %v8631 = vmul.f32 %v8629, %v8629
    %v8632 = vsel %vm536, %v8630, 0.0
    %8633 = vadd.xlane.f32.xlu0 %v8632
    %v8634 = vpop.xlane.xlu0 %8633
    %v8635 = vsel %vm536, %v8631, 0.0
    %8636 = vadd.xlane.f32.xlu0 %v8635
    %v8637 = vpop.xlane.xlu0 %8636
    %v8638 = vmul.f32 %v8634, %v930
    %v8639 = vmul.f32 %v8637, %v930
    %v8640 = vadd.f32 %v8638, 1e-05
    %v8641 = vadd.f32 %v8639, 1e-05
    %v8642 = vrsqrt.pop %v8640
    %v8643 = vrsqrt.pop %v8641
    %v8644 = vmul.f32 %v8628, %v8642
    %v8645 = vmul.f32 %v8629, %v8643
    %v8646 = vlaneseq
    %v8647 = vshrl.u32 %v8646, 7
    %v8648 = vsub.s32 1, %v8647
    %v8649 = vrot.slane %v7864, %v8648
    %v8650 = vmul.f32 %v8644, %v8649
    %v8651 = vmul.f32 %v8645, %v8649
    %v8652 = vlaneseq
    %v8653 = vshrl.u32 %v8652, 7
    %v8654 = vsub.s32 2, %v8653
    %v8655 = vrot.slane %v7864, %v8654
    %v8656 = vadd.f32 %v8650, %v8655
    %v8657 = vadd.f32 %v8651, %v8655
    %v8658 = vpack.c.bf16 %v8657, %v8656
    %v8661 = vlaneseq
    %v8662 = vshrl.u32 %v8661, 7
    %v8663 = vsub.s32 0, %v8662
    %v8664 = vrot.slane %v7927, %v8663
    %v8665 = vlaneseq
    %v8666 = vshrl.u32 %v8665, 7
    %v8667 = vsub.s32 1, %v8666
    %v8668 = vrot.slane %v7927, %v8667
    %v8669 = vlaneseq
    %v8670 = vshrl.u32 %v8669, 7
    %v8671 = vsub.s32 2, %v8670
    %v8672 = vrot.slane %v7927, %v8671
    %v8673 = vlaneseq
    %v8674 = vshrl.u32 %v8673, 7
    %v8675 = vsub.s32 3, %v8674
    %v8676 = vrot.slane %v7927, %v8675
    %v8677 = vlaneseq
    %v8678 = vshrl.u32 %v8677, 7
    %v8679 = vsub.s32 4, %v8678
    %v8680 = vrot.slane %v7927, %v8679
    %v8681 = vlaneseq
    %v8682 = vshrl.u32 %v8681, 7
    %v8683 = vsub.s32 5, %v8682
    %v8684 = vrot.slane %v7927, %v8683
    %v8685 = vlaneseq
    %v8686 = vshrl.u32 %v8685, 7
    %v8687 = vsub.s32 6, %v8686
    %v8688 = vrot.slane %v7927, %v8687
    %v8689 = vlaneseq
    %v8690 = vshrl.u32 %v8689, 7
    %v8691 = vsub.s32 7, %v8690
    %v8692 = vrot.slane %v7927, %v8691
    %v8693 = vlaneseq
    %v8694 = vshrl.u32 %v8693, 7
    %v8695 = vsub.s32 0, %v8694
    %v8696 = vrot.slane %v7928, %v8695
    %v8697 = vlaneseq
    %v8698 = vshrl.u32 %v8697, 7
    %v8699 = vsub.s32 1, %v8698
    %v8700 = vrot.slane %v7928, %v8699
    %v8701 = vlaneseq
    %v8702 = vshrl.u32 %v8701, 7
    %v8703 = vsub.s32 2, %v8702
    %v8704 = vrot.slane %v7928, %v8703
    %v8705 = vlaneseq
    %v8706 = vshrl.u32 %v8705, 7
    %v8707 = vsub.s32 3, %v8706
    %v8708 = vrot.slane %v7928, %v8707
    %v8709 = vlaneseq
    %v8710 = vshrl.u32 %v8709, 7
    %v8711 = vsub.s32 4, %v8710
    %v8712 = vrot.slane %v7928, %v8711
    %v8713 = vlaneseq
    %v8714 = vshrl.u32 %v8713, 7
    %v8715 = vsub.s32 5, %v8714
    %v8716 = vrot.slane %v7928, %v8715
    %v8717 = vlaneseq
    %v8718 = vshrl.u32 %v8717, 7
    %v8719 = vsub.s32 6, %v8718
    %v8720 = vrot.slane %v7928, %v8719
    %v8721 = vlaneseq
    %v8722 = vshrl.u32 %v8721, 7
    %v8723 = vsub.s32 7, %v8722
    %v8724 = vrot.slane %v7928, %v8723
    %v8773 = vunpack.c.l.b16 %v7894
    %v8774 = vunpack.c.h.b16 %v7894
    %v8775 = vunpack.c.l.b16 %v7895
    %v8776 = vunpack.c.h.b16 %v7895
    %v8777 = vunpack.c.l.b16 %v7896
    %v8778 = vunpack.c.h.b16 %v7896
    %v8779 = vunpack.c.l.b16 %v7897
    %v8780 = vunpack.c.h.b16 %v7897
    %v8781 = vunpack.c.l.b16 %v7898
    %v8782 = vunpack.c.h.b16 %v7898
    %v8783 = vunpack.c.l.b16 %v7899
    %v8784 = vunpack.c.h.b16 %v7899
    %v8785 = vunpack.c.l.b16 %v7900
    %v8786 = vunpack.c.h.b16 %v7900
    %v8787 = vunpack.c.l.b16 %v7901
    %v8788 = vunpack.c.h.b16 %v7901
    %v8789 = vunpack.c.l.b16 %v7902
    %v8790 = vunpack.c.h.b16 %v7902
    %v8791 = vunpack.c.l.b16 %v7903
    %v8792 = vunpack.c.h.b16 %v7903
    %v8793 = vunpack.c.l.b16 %v7904
    %v8794 = vunpack.c.h.b16 %v7904
    %v8795 = vunpack.c.l.b16 %v7905
    %v8796 = vunpack.c.h.b16 %v7905
    %v8797 = vunpack.c.l.b16 %v7906
    %v8798 = vunpack.c.h.b16 %v7906
    %v8799 = vunpack.c.l.b16 %v7907
    %v8800 = vunpack.c.h.b16 %v7907
    %v8801 = vunpack.c.l.b16 %v7908
    %v8802 = vunpack.c.h.b16 %v7908
    %v8803 = vunpack.c.l.b16 %v7909
    %v8804 = vunpack.c.h.b16 %v7909
    %v8805 = vunpack.c.l.b16 %v7910
    %v8806 = vunpack.c.h.b16 %v7910
    %v8807 = vunpack.c.l.b16 %v7911
    %v8808 = vunpack.c.h.b16 %v7911
    %v8809 = vunpack.c.l.b16 %v7912
    %v8810 = vunpack.c.h.b16 %v7912
    %v8811 = vunpack.c.l.b16 %v7913
    %v8812 = vunpack.c.h.b16 %v7913
    %v8813 = vunpack.c.l.b16 %v7914
    %v8814 = vunpack.c.h.b16 %v7914
    %v8815 = vunpack.c.l.b16 %v7915
    %v8816 = vunpack.c.h.b16 %v7915
    %v8817 = vunpack.c.l.b16 %v7916
    %v8818 = vunpack.c.h.b16 %v7916
    %v8819 = vunpack.c.l.b16 %v7917
    %v8820 = vunpack.c.h.b16 %v7917
    %v8821 = vunpack.c.l.b16 %v7918
    %v8822 = vunpack.c.h.b16 %v7918
    %v8823 = vunpack.c.l.b16 %v7919
    %v8824 = vunpack.c.h.b16 %v7919
    %v8825 = vunpack.c.l.b16 %v7920
    %v8826 = vunpack.c.h.b16 %v7920
    %v8827 = vunpack.c.l.b16 %v7921
    %v8828 = vunpack.c.h.b16 %v7921
    %v8829 = vunpack.c.l.b16 %v7922
    %v8830 = vunpack.c.h.b16 %v7922
    %v8831 = vunpack.c.l.b16 %v7923
    %v8832 = vunpack.c.h.b16 %v7923
    %v8833 = vunpack.c.l.b16 %v7924
    %v8834 = vunpack.c.h.b16 %v7924
    %v8835 = vunpack.c.l.b16 %v7925
    %v8836 = vunpack.c.h.b16 %v7925
    %v8837 = vpack.c.b16 %v8789, %v8773
    %v8838 = vpack.c.b16 %v8790, %v8774
    %v8839 = vpack.c.b16 %v8791, %v8775
    %v8840 = vpack.c.b16 %v8792, %v8776
    %v8841 = vpack.c.b16 %v8793, %v8777
    %v8842 = vpack.c.b16 %v8794, %v8778
    %v8843 = vpack.c.b16 %v8795, %v8779
    %v8844 = vpack.c.b16 %v8796, %v8780
    %v8845 = vpack.c.b16 %v8797, %v8781
    %v8846 = vpack.c.b16 %v8798, %v8782
    %v8847 = vpack.c.b16 %v8799, %v8783
    %v8848 = vpack.c.b16 %v8800, %v8784
    %v8849 = vpack.c.b16 %v8801, %v8785
    %v8850 = vpack.c.b16 %v8802, %v8786
    %v8851 = vpack.c.b16 %v8803, %v8787
    %v8852 = vpack.c.b16 %v8804, %v8788
    %v8853 = vpack.c.b16 %v8821, %v8805
    %v8854 = vpack.c.b16 %v8822, %v8806
    %v8855 = vpack.c.b16 %v8823, %v8807
    %v8856 = vpack.c.b16 %v8824, %v8808
    %v8857 = vpack.c.b16 %v8825, %v8809
    %v8858 = vpack.c.b16 %v8826, %v8810
    %v8859 = vpack.c.b16 %v8827, %v8811
    %v8860 = vpack.c.b16 %v8828, %v8812
    %v8861 = vpack.c.b16 %v8829, %v8813
    %v8862 = vpack.c.b16 %v8830, %v8814
    %v8863 = vpack.c.b16 %v8831, %v8815
    %v8864 = vpack.c.b16 %v8832, %v8816
    %v8865 = vpack.c.b16 %v8833, %v8817
    %v8866 = vpack.c.b16 %v8834, %v8818
    %v8867 = vpack.c.b16 %v8835, %v8819
    %v8868 = vpack.c.b16 %v8836, %v8820
    %v8902 = vsel %vm536, %v8658, 0
    %8904 = vmatprep.subr.bf16.mxu0 %v8838
    %8905 = vmatpush1.bf16.msra.mxu0 %v8837
    %8906 = vmatprep.subr.bf16.mxu0 %v8854
    %8907 = vmatpush1.bf16.msra.mxu0 %v8853
    %8908 = vmatprep.subr.bf16.mxu0 0
    %8909 = vmatpush1.bf16.msra.mxu0 0
    %8910 = vmatprep.subr.bf16.mxu0 0
    %8911 = vmatpush1.bf16.msra.mxu0 0
    %8912 = vmatprep.subr.bf16.mxu0 0
    %8913 = vmatpush1.bf16.msra.mxu0 0
    %8914 = vmatprep.subr.bf16.mxu0 0
    %8915 = vmatpush1.bf16.msra.mxu0 0
    %8916 = vmatprep.subr.bf16.mxu0 0
    %8917 = vmatpush1.bf16.msra.mxu0 0
    %8918 = vmatprep.subr.bf16.mxu0 0
    %8919 = vmatpush1.bf16.msra.mxu0 0
    %8920 = vmatprep.subr.bf16.mxu0 0
    %8921 = vmatpush1.bf16.msra.mxu0 0
    %8922 = vmatprep.subr.bf16.mxu0 0
    %8923 = vmatpush1.bf16.msra.mxu0 0
    %8924 = vmatprep.subr.bf16.mxu0 0
    %8925 = vmatpush1.bf16.msra.mxu0 0
    %8926 = vmatprep.subr.bf16.mxu0 0
    %8927 = vmatpush1.bf16.msra.mxu0 0
    %8928 = vmatprep.subr.bf16.mxu0 0
    %8929 = vmatpush1.bf16.msra.mxu0 0
    %8930 = vmatprep.subr.bf16.mxu0 0
    %8931 = vmatpush1.bf16.msra.mxu0 0
    %8932 = vmatprep.subr.bf16.mxu0 0
    %8933 = vmatpush1.bf16.msra.mxu0 0
    %8934 = vmatprep.subr.bf16.mxu0 0
    %8935 = vmatpush1.bf16.msra.mxu0 0
    %8936 = vmatprep.mubr.bf16.mxu0 0
    %8937 = vmatmul.mubr.bf16.gmra.mrb[0].mxu0 %v8902
    %v8938 = vpop.f32.mrb[0].mxu0
    %v8939 = vadd.f32 %v8664, %v8938
    %v8940 = vpop.f32.mrb[0].mxu0
    %v8941 = vadd.f32 %v8668, %v8940
    %v8942 = vpop.f32.mrb[0].mxu0
    %v8943 = vadd.f32 %v8664, %v8942
    %v8944 = vpop.f32.mrb[0].mxu0
    %v8945 = vadd.f32 %v8668, %v8944
    %8946 = vdwg.mxu0
    %8947 = vmatprep.subr.bf16.mxu0 %v8840
    %8948 = vmatpush1.bf16.msra.mxu0 %v8839
    %8949 = vmatprep.subr.bf16.mxu0 %v8856
    %8950 = vmatpush1.bf16.msra.mxu0 %v8855
    %8951 = vmatprep.subr.bf16.mxu0 0
    %8952 = vmatpush1.bf16.msra.mxu0 0
    %8953 = vmatprep.subr.bf16.mxu0 0
    %8954 = vmatpush1.bf16.msra.mxu0 0
    %8955 = vmatprep.subr.bf16.mxu0 0
    %8956 = vmatpush1.bf16.msra.mxu0 0
    %8957 = vmatprep.subr.bf16.mxu0 0
    %8958 = vmatpush1.bf16.msra.mxu0 0
    %8959 = vmatprep.subr.bf16.mxu0 0
    %8960 = vmatpush1.bf16.msra.mxu0 0
    %8961 = vmatprep.subr.bf16.mxu0 0
    %8962 = vmatpush1.bf16.msra.mxu0 0
    %8963 = vmatprep.subr.bf16.mxu0 0
    %8964 = vmatpush1.bf16.msra.mxu0 0
    %8965 = vmatprep.subr.bf16.mxu0 0
    %8966 = vmatpush1.bf16.msra.mxu0 0
    %8967 = vmatprep.subr.bf16.mxu0 0
    %8968 = vmatpush1.bf16.msra.mxu0 0
    %8969 = vmatprep.subr.bf16.mxu0 0
    %8970 = vmatpush1.bf16.msra.mxu0 0
    %8971 = vmatprep.subr.bf16.mxu0 0
    %8972 = vmatpush1.bf16.msra.mxu0 0
    %8973 = vmatprep.subr.bf16.mxu0 0
    %8974 = vmatpush1.bf16.msra.mxu0 0
    %8975 = vmatprep.subr.bf16.mxu0 0
    %8976 = vmatpush1.bf16.msra.mxu0 0
    %8977 = vmatprep.subr.bf16.mxu0 0
    %8978 = vmatpush1.bf16.msra.mxu0 0
    %8979 = vmatprep.mubr.bf16.mxu0 0
    %8980 = vmatmul.mubr.bf16.gmra.mrb[0].mxu0 %v8902
    %v8981 = vpop.f32.mrb[0].mxu0
    %v8982 = vadd.f32 %v8672, %v8981
    %v8983 = vpop.f32.mrb[0].mxu0
    %v8984 = vadd.f32 %v8676, %v8983
    %v8985 = vpop.f32.mrb[0].mxu0
    %v8986 = vadd.f32 %v8672, %v8985
    %v8987 = vpop.f32.mrb[0].mxu0
    %v8988 = vadd.f32 %v8676, %v8987
    %8989 = vdwg.mxu0
    %8990 = vmatprep.subr.bf16.mxu0 %v8842
    %8991 = vmatpush1.bf16.msra.mxu0 %v8841
    %8992 = vmatprep.subr.bf16.mxu0 %v8858
    %8993 = vmatpush1.bf16.msra.mxu0 %v8857
    %8994 = vmatprep.subr.bf16.mxu0 0
    %8995 = vmatpush1.bf16.msra.mxu0 0
    %8996 = vmatprep.subr.bf16.mxu0 0
    %8997 = vmatpush1.bf16.msra.mxu0 0
    %8998 = vmatprep.subr.bf16.mxu0 0
    %8999 = vmatpush1.bf16.msra.mxu0 0
    %9000 = vmatprep.subr.bf16.mxu0 0
    %9001 = vmatpush1.bf16.msra.mxu0 0
    %9002 = vmatprep.subr.bf16.mxu0 0
    %9003 = vmatpush1.bf16.msra.mxu0 0
    %9004 = vmatprep.subr.bf16.mxu0 0
    %9005 = vmatpush1.bf16.msra.mxu0 0
    %9006 = vmatprep.subr.bf16.mxu0 0
    %9007 = vmatpush1.bf16.msra.mxu0 0
    %9008 = vmatprep.subr.bf16.mxu0 0
    %9009 = vmatpush1.bf16.msra.mxu0 0
    %9010 = vmatprep.subr.bf16.mxu0 0
    %9011 = vmatpush1.bf16.msra.mxu0 0
    %9012 = vmatprep.subr.bf16.mxu0 0
    %9013 = vmatpush1.bf16.msra.mxu0 0
    %9014 = vmatprep.subr.bf16.mxu0 0
    %9015 = vmatpush1.bf16.msra.mxu0 0
    %9016 = vmatprep.subr.bf16.mxu0 0
    %9017 = vmatpush1.bf16.msra.mxu0 0
    %9018 = vmatprep.subr.bf16.mxu0 0
    %9019 = vmatpush1.bf16.msra.mxu0 0
    %9020 = vmatprep.subr.bf16.mxu0 0
    %9021 = vmatpush1.bf16.msra.mxu0 0
    %9022 = vmatprep.mubr.bf16.mxu0 0
    %9023 = vmatmul.mubr.bf16.gmra.mrb[0].mxu0 %v8902
    %v9024 = vpop.f32.mrb[0].mxu0
    %v9025 = vadd.f32 %v8680, %v9024
    %v9026 = vpop.f32.mrb[0].mxu0
    %v9027 = vadd.f32 %v8684, %v9026
    %v9028 = vpop.f32.mrb[0].mxu0
    %v9029 = vadd.f32 %v8680, %v9028
    %v9030 = vpop.f32.mrb[0].mxu0
    %v9031 = vadd.f32 %v8684, %v9030
    %9032 = vdwg.mxu0
    %9033 = vmatprep.subr.bf16.mxu0 %v8844
    %9034 = vmatpush1.bf16.msra.mxu0 %v8843
    %9035 = vmatprep.subr.bf16.mxu0 %v8860
    %9036 = vmatpush1.bf16.msra.mxu0 %v8859
    %9037 = vmatprep.subr.bf16.mxu0 0
    %9038 = vmatpush1.bf16.msra.mxu0 0
    %9039 = vmatprep.subr.bf16.mxu0 0
    %9040 = vmatpush1.bf16.msra.mxu0 0
    %9041 = vmatprep.subr.bf16.mxu0 0
    %9042 = vmatpush1.bf16.msra.mxu0 0
    %9043 = vmatprep.subr.bf16.mxu0 0
    %9044 = vmatpush1.bf16.msra.mxu0 0
    %9045 = vmatprep.subr.bf16.mxu0 0
    %9046 = vmatpush1.bf16.msra.mxu0 0
    %9047 = vmatprep.subr.bf16.mxu0 0
    %9048 = vmatpush1.bf16.msra.mxu0 0
    %9049 = vmatprep.subr.bf16.mxu0 0
    %9050 = vmatpush1.bf16.msra.mxu0 0
    %9051 = vmatprep.subr.bf16.mxu0 0
    %9052 = vmatpush1.bf16.msra.mxu0 0
    %9053 = vmatprep.subr.bf16.mxu0 0
    %9054 = vmatpush1.bf16.msra.mxu0 0
    %9055 = vmatprep.subr.bf16.mxu0 0
    %9056 = vmatpush1.bf16.msra.mxu0 0
    %9057 = vmatprep.subr.bf16.mxu0 0
    %9058 = vmatpush1.bf16.msra.mxu0 0
    %9059 = vmatprep.subr.bf16.mxu0 0
    %9060 = vmatpush1.bf16.msra.mxu0 0
    %9061 = vmatprep.subr.bf16.mxu0 0
    %9062 = vmatpush1.bf16.msra.mxu0 0
    %9063 = vmatprep.subr.bf16.mxu0 0
    %9064 = vmatpush1.bf16.msra.mxu0 0
    %9065 = vmatprep.mubr.bf16.mxu0 0
    %9066 = vmatmul.mubr.bf16.gmra.mrb[0].mxu0 %v8902
    %v9067 = vpop.f32.mrb[0].mxu0
    %v9068 = vadd.f32 %v8688, %v9067
    %v9069 = vpop.f32.mrb[0].mxu0
    %v9070 = vadd.f32 %v8692, %v9069
    %v9071 = vpop.f32.mrb[0].mxu0
    %v9072 = vadd.f32 %v8688, %v9071
    %v9073 = vpop.f32.mrb[0].mxu0
    %v9074 = vadd.f32 %v8692, %v9073
    %9075 = vdwg.mxu0
    %9076 = vmatprep.subr.bf16.mxu0 %v8846
    %9077 = vmatpush1.bf16.msra.mxu0 %v8845
    %9078 = vmatprep.subr.bf16.mxu0 %v8862
    %9079 = vmatpush1.bf16.msra.mxu0 %v8861
    %9080 = vmatprep.subr.bf16.mxu0 0
    %9081 = vmatpush1.bf16.msra.mxu0 0
    %9082 = vmatprep.subr.bf16.mxu0 0
    %9083 = vmatpush1.bf16.msra.mxu0 0
    %9084 = vmatprep.subr.bf16.mxu0 0
    %9085 = vmatpush1.bf16.msra.mxu0 0
    %9086 = vmatprep.subr.bf16.mxu0 0
    %9087 = vmatpush1.bf16.msra.mxu0 0
    %9088 = vmatprep.subr.bf16.mxu0 0
    %9089 = vmatpush1.bf16.msra.mxu0 0
    %9090 = vmatprep.subr.bf16.mxu0 0
    %9091 = vmatpush1.bf16.msra.mxu0 0
    %9092 = vmatprep.subr.bf16.mxu0 0
    %9093 = vmatpush1.bf16.msra.mxu0 0
    %9094 = vmatprep.subr.bf16.mxu0 0
    %9095 = vmatpush1.bf16.msra.mxu0 0
    %9096 = vmatprep.subr.bf16.mxu0 0
    %9097 = vmatpush1.bf16.msra.mxu0 0
    %9098 = vmatprep.subr.bf16.mxu0 0
    %9099 = vmatpush1.bf16.msra.mxu0 0
    %9100 = vmatprep.subr.bf16.mxu0 0
    %9101 = vmatpush1.bf16.msra.mxu0 0
    %9102 = vmatprep.subr.bf16.mxu0 0
    %9103 = vmatpush1.bf16.msra.mxu0 0
    %9104 = vmatprep.subr.bf16.mxu0 0
    %9105 = vmatpush1.bf16.msra.mxu0 0
    %9106 = vmatprep.subr.bf16.mxu0 0
    %9107 = vmatpush1.bf16.msra.mxu0 0
    %9108 = vmatprep.mubr.bf16.mxu0 0
    %9109 = vmatmul.mubr.bf16.gmra.mrb[0].mxu0 %v8902
    %v9110 = vpop.f32.mrb[0].mxu0
    %v9111 = vadd.f32 %v8696, %v9110
    %v9112 = vpop.f32.mrb[0].mxu0
    %v9113 = vadd.f32 %v8700, %v9112
    %v9114 = vpop.f32.mrb[0].mxu0
    %v9115 = vadd.f32 %v8696, %v9114
    %v9116 = vpop.f32.mrb[0].mxu0
    %v9117 = vadd.f32 %v8700, %v9116
    %9118 = vdwg.mxu0
    %9119 = vmatprep.subr.bf16.mxu0 %v8848
    %9120 = vmatpush1.bf16.msra.mxu0 %v8847
    %9121 = vmatprep.subr.bf16.mxu0 %v8864
    %9122 = vmatpush1.bf16.msra.mxu0 %v8863
    %9123 = vmatprep.subr.bf16.mxu0 0
    %9124 = vmatpush1.bf16.msra.mxu0 0
    %9125 = vmatprep.subr.bf16.mxu0 0
    %9126 = vmatpush1.bf16.msra.mxu0 0
    %9127 = vmatprep.subr.bf16.mxu0 0
    %9128 = vmatpush1.bf16.msra.mxu0 0
    %9129 = vmatprep.subr.bf16.mxu0 0
    %9130 = vmatpush1.bf16.msra.mxu0 0
    %9131 = vmatprep.subr.bf16.mxu0 0
    %9132 = vmatpush1.bf16.msra.mxu0 0
    %9133 = vmatprep.subr.bf16.mxu0 0
    %9134 = vmatpush1.bf16.msra.mxu0 0
    %9135 = vmatprep.subr.bf16.mxu0 0
    %9136 = vmatpush1.bf16.msra.mxu0 0
    %9137 = vmatprep.subr.bf16.mxu0 0
    %9138 = vmatpush1.bf16.msra.mxu0 0
    %9139 = vmatprep.subr.bf16.mxu0 0
    %9140 = vmatpush1.bf16.msra.mxu0 0
    %9141 = vmatprep.subr.bf16.mxu0 0
    %9142 = vmatpush1.bf16.msra.mxu0 0
    %9143 = vmatprep.subr.bf16.mxu0 0
    %9144 = vmatpush1.bf16.msra.mxu0 0
    %9145 = vmatprep.subr.bf16.mxu0 0
    %9146 = vmatpush1.bf16.msra.mxu0 0
    %9147 = vmatprep.subr.bf16.mxu0 0
    %9148 = vmatpush1.bf16.msra.mxu0 0
    %9149 = vmatprep.subr.bf16.mxu0 0
    %9150 = vmatpush1.bf16.msra.mxu0 0
    %9151 = vmatprep.mubr.bf16.mxu0 0
    %9152 = vmatmul.mubr.bf16.gmra.mrb[0].mxu0 %v8902
    %v9153 = vpop.f32.mrb[0].mxu0
    %v9154 = vadd.f32 %v8704, %v9153
    %v9155 = vpop.f32.mrb[0].mxu0
    %v9156 = vadd.f32 %v8708, %v9155
    %v9157 = vpop.f32.mrb[0].mxu0
    %v9158 = vadd.f32 %v8704, %v9157
    %v9159 = vpop.f32.mrb[0].mxu0
    %v9160 = vadd.f32 %v8708, %v9159
    %9161 = vdwg.mxu0
    %9162 = vmatprep.subr.bf16.mxu0 %v8850
    %9163 = vmatpush1.bf16.msra.mxu0 %v8849
    %9164 = vmatprep.subr.bf16.mxu0 %v8866
    %9165 = vmatpush1.bf16.msra.mxu0 %v8865
    %9166 = vmatprep.subr.bf16.mxu0 0
    %9167 = vmatpush1.bf16.msra.mxu0 0
    %9168 = vmatprep.subr.bf16.mxu0 0
    %9169 = vmatpush1.bf16.msra.mxu0 0
    %9170 = vmatprep.subr.bf16.mxu0 0
    %9171 = vmatpush1.bf16.msra.mxu0 0
    %9172 = vmatprep.subr.bf16.mxu0 0
    %9173 = vmatpush1.bf16.msra.mxu0 0
    %9174 = vmatprep.subr.bf16.mxu0 0
    %9175 = vmatpush1.bf16.msra.mxu0 0
    %9176 = vmatprep.subr.bf16.mxu0 0
    %9177 = vmatpush1.bf16.msra.mxu0 0
    %9178 = vmatprep.subr.bf16.mxu0 0
    %9179 = vmatpush1.bf16.msra.mxu0 0
    %9180 = vmatprep.subr.bf16.mxu0 0
    %9181 = vmatpush1.bf16.msra.mxu0 0
    %9182 = vmatprep.subr.bf16.mxu0 0
    %9183 = vmatpush1.bf16.msra.mxu0 0
    %9184 = vmatprep.subr.bf16.mxu0 0
    %9185 = vmatpush1.bf16.msra.mxu0 0
    %9186 = vmatprep.subr.bf16.mxu0 0
    %9187 = vmatpush1.bf16.msra.mxu0 0
    %9188 = vmatprep.subr.bf16.mxu0 0
    %9189 = vmatpush1.bf16.msra.mxu0 0
    %9190 = vmatprep.subr.bf16.mxu0 0
    %9191 = vmatpush1.bf16.msra.mxu0 0
    %9192 = vmatprep.subr.bf16.mxu0 0
    %9193 = vmatpush1.bf16.msra.mxu0 0
    %9194 = vmatprep.mubr.bf16.mxu0 0
    %9195 = vmatmul.mubr.bf16.gmra.mrb[0].mxu0 %v8902
    %v9196 = vpop.f32.mrb[0].mxu0
    %v9197 = vadd.f32 %v8712, %v9196
    %v9198 = vpop.f32.mrb[0].mxu0
    %v9199 = vadd.f32 %v8716, %v9198
    %v9200 = vpop.f32.mrb[0].mxu0
    %v9201 = vadd.f32 %v8712, %v9200
    %v9202 = vpop.f32.mrb[0].mxu0
    %v9203 = vadd.f32 %v8716, %v9202
    %9204 = vdwg.mxu0
    %9205 = vmatprep.subr.bf16.mxu0 %v8852
    %9206 = vmatpush1.bf16.msra.mxu0 %v8851
    %9207 = vmatprep.subr.bf16.mxu0 %v8868
    %9208 = vmatpush1.bf16.msra.mxu0 %v8867
    %9209 = vmatprep.subr.bf16.mxu0 0
    %9210 = vmatpush1.bf16.msra.mxu0 0
    %9211 = vmatprep.subr.bf16.mxu0 0
    %9212 = vmatpush1.bf16.msra.mxu0 0
    %9213 = vmatprep.subr.bf16.mxu0 0
    %9214 = vmatpush1.bf16.msra.mxu0 0
    %9215 = vmatprep.subr.bf16.mxu0 0
    %9216 = vmatpush1.bf16.msra.mxu0 0
    %9217 = vmatprep.subr.bf16.mxu0 0
    %9218 = vmatpush1.bf16.msra.mxu0 0
    %9219 = vmatprep.subr.bf16.mxu0 0
    %9220 = vmatpush1.bf16.msra.mxu0 0
    %9221 = vmatprep.subr.bf16.mxu0 0
    %9222 = vmatpush1.bf16.msra.mxu0 0
    %9223 = vmatprep.subr.bf16.mxu0 0
    %9224 = vmatpush1.bf16.msra.mxu0 0
    %9225 = vmatprep.subr.bf16.mxu0 0
    %9226 = vmatpush1.bf16.msra.mxu0 0
    %9227 = vmatprep.subr.bf16.mxu0 0
    %9228 = vmatpush1.bf16.msra.mxu0 0
    %9229 = vmatprep.subr.bf16.mxu0 0
    %9230 = vmatpush1.bf16.msra.mxu0 0
    %9231 = vmatprep.subr.bf16.mxu0 0
    %9232 = vmatpush1.bf16.msra.mxu0 0
    %9233 = vmatprep.subr.bf16.mxu0 0
    %9234 = vmatpush1.bf16.msra.mxu0 0
    %9235 = vmatprep.subr.bf16.mxu0 0
    %9236 = vmatpush1.bf16.msra.mxu0 0
    %9237 = vmatprep.mubr.bf16.mxu0 0
    %9238 = vmatmul.mubr.bf16.gmra.mrb[0].mxu0 %v8902
    %v9239 = vpop.f32.mrb[0].mxu0
    %v9240 = vadd.f32 %v8720, %v9239
    %v9241 = vpop.f32.mrb[0].mxu0
    %v9242 = vadd.f32 %v8724, %v9241
    %v9243 = vpop.f32.mrb[0].mxu0
    %v9244 = vadd.f32 %v8720, %v9243
    %v9245 = vpop.f32.mrb[0].mxu0
    %v9246 = vadd.f32 %v8724, %v9245
    %9247 = vdwg.mxu0
    %v9248 = vmax.f32 %v8939, 0.0
    %v9249 = vmax.f32 %v8941, 0.0
    %v9250 = vmax.f32 %v8982, 0.0
    %v9251 = vmax.f32 %v8984, 0.0
    %v9252 = vmax.f32 %v9025, 0.0
    %v9253 = vmax.f32 %v9027, 0.0
    %v9254 = vmax.f32 %v9068, 0.0
    %v9255 = vmax.f32 %v9070, 0.0
    %v9256 = vmax.f32 %v9111, 0.0
    %v9257 = vmax.f32 %v9113, 0.0
    %v9258 = vmax.f32 %v9154, 0.0
    %v9259 = vmax.f32 %v9156, 0.0
    %v9260 = vmax.f32 %v9197, 0.0
    %v9261 = vmax.f32 %v9199, 0.0
    %v9262 = vmax.f32 %v9240, 0.0
    %v9263 = vmax.f32 %v9242, 0.0
    %v9264 = vmax.f32 %v8943, 0.0
    %v9265 = vmax.f32 %v8945, 0.0
    %v9266 = vmax.f32 %v8986, 0.0
    %v9267 = vmax.f32 %v8988, 0.0
    %v9268 = vmax.f32 %v9029, 0.0
    %v9269 = vmax.f32 %v9031, 0.0
    %v9270 = vmax.f32 %v9072, 0.0
    %v9271 = vmax.f32 %v9074, 0.0
    %v9272 = vmax.f32 %v9115, 0.0
    %v9273 = vmax.f32 %v9117, 0.0
    %v9274 = vmax.f32 %v9158, 0.0
    %v9275 = vmax.f32 %v9160, 0.0
    %v9276 = vmax.f32 %v9201, 0.0
    %v9277 = vmax.f32 %v9203, 0.0
    %v9278 = vmax.f32 %v9244, 0.0
    %v9279 = vmax.f32 %v9246, 0.0
    %v9280 = vpack.c.bf16 %v9264, %v9248
    %v9281 = vpack.c.bf16 %v9265, %v9249
    %v9282 = vpack.c.bf16 %v9266, %v9250
    %v9283 = vpack.c.bf16 %v9267, %v9251
    %v9284 = vpack.c.bf16 %v9268, %v9252
    %v9285 = vpack.c.bf16 %v9269, %v9253
    %v9286 = vpack.c.bf16 %v9270, %v9254
    %v9287 = vpack.c.bf16 %v9271, %v9255
    %v9288 = vpack.c.bf16 %v9272, %v9256
    %v9289 = vpack.c.bf16 %v9273, %v9257
    %v9290 = vpack.c.bf16 %v9274, %v9258
    %v9291 = vpack.c.bf16 %v9275, %v9259
    %v9292 = vpack.c.bf16 %v9276, %v9260
    %v9293 = vpack.c.bf16 %v9277, %v9261
    %v9294 = vpack.c.bf16 %v9278, %v9262
    %v9295 = vpack.c.bf16 %v9279, %v9263
    %v9296 = vlaneseq
    %v9297 = vshrl.u32 %v9296, 7
    %v9298 = vsub.s32 3, %v9297
    %v9299 = vrot.slane %v7864, %v9298
    %v9556 = vunpack.c.l.b16 %v7930
    %v9557 = vunpack.c.l.b16 %v7931
    %v9558 = vunpack.c.l.b16 %v7932
    %v9559 = vunpack.c.l.b16 %v7933
    %v9560 = vunpack.c.l.b16 %v7934
    %v9561 = vunpack.c.l.b16 %v7935
    %v9562 = vunpack.c.l.b16 %v7936
    %v9563 = vunpack.c.l.b16 %v7937
    %v9564 = vunpack.c.l.b16 %v7938
    %v9565 = vunpack.c.l.b16 %v7939
    %v9566 = vunpack.c.l.b16 %v7940
    %v9567 = vunpack.c.l.b16 %v7941
    %v9568 = vunpack.c.l.b16 %v7942
    %v9569 = vunpack.c.l.b16 %v7943
    %v9570 = vunpack.c.l.b16 %v7944
    %v9571 = vunpack.c.l.b16 %v7945
    %v9572 = vunpack.c.l.b16 %v7946
    %v9573 = vunpack.c.l.b16 %v7947
    %v9574 = vunpack.c.l.b16 %v7948
    %v9575 = vunpack.c.l.b16 %v7949
    %v9576 = vunpack.c.l.b16 %v7950
    %v9577 = vunpack.c.l.b16 %v7951
    %v9578 = vunpack.c.l.b16 %v7952
    %v9579 = vunpack.c.l.b16 %v7953
    %v9580 = vunpack.c.l.b16 %v7954
    %v9581 = vunpack.c.l.b16 %v7955
    %v9582 = vunpack.c.l.b16 %v7956
    %v9583 = vunpack.c.l.b16 %v7957
    %v9584 = vunpack.c.l.b16 %v7958
    %v9585 = vunpack.c.l.b16 %v7959
    %v9586 = vunpack.c.l.b16 %v7960
    %v9587 = vunpack.c.l.b16 %v7961
    %v9588 = vunpack.c.l.b16 %v7962
    %v9589 = vunpack.c.l.b16 %v7963
    %v9590 = vunpack.c.l.b16 %v7964
    %v9591 = vunpack.c.l.b16 %v7965
    %v9592 = vunpack.c.l.b16 %v7966
    %v9593 = vunpack.c.l.b16 %v7967
    %v9594 = vunpack.c.l.b16 %v7968
    %v9595 = vunpack.c.l.b16 %v7969
    %v9596 = vunpack.c.l.b16 %v7970
    %v9597 = vunpack.c.l.b16 %v7971
    %v9598 = vunpack.c.l.b16 %v7972
    %v9599 = vunpack.c.l.b16 %v7973
    %v9600 = vunpack.c.l.b16 %v7974
    %v9601 = vunpack.c.l.b16 %v7975
    %v9602 = vunpack.c.l.b16 %v7976
    %v9603 = vunpack.c.l.b16 %v7977
    %v9604 = vunpack.c.l.b16 %v7978
    %v9605 = vunpack.c.l.b16 %v7979
    %v9606 = vunpack.c.l.b16 %v7980
    %v9607 = vunpack.c.l.b16 %v7981
    %v9608 = vunpack.c.l.b16 %v7982
    %v9609 = vunpack.c.l.b16 %v7983
    %v9610 = vunpack.c.l.b16 %v7984
    %v9611 = vunpack.c.l.b16 %v7985
    %v9612 = vunpack.c.l.b16 %v7986
    %v9613 = vunpack.c.l.b16 %v7987
    %v9614 = vunpack.c.l.b16 %v7988
    %v9615 = vunpack.c.l.b16 %v7989
    %v9616 = vunpack.c.l.b16 %v7990
    %v9617 = vunpack.c.l.b16 %v7991
    %v9618 = vunpack.c.l.b16 %v7992
    %v9619 = vunpack.c.l.b16 %v7993
    %v9620 = vunpack.c.l.b16 %v7994
    %v9621 = vunpack.c.l.b16 %v7995
    %v9622 = vunpack.c.l.b16 %v7996
    %v9623 = vunpack.c.l.b16 %v7997
    %v9624 = vunpack.c.l.b16 %v7998
    %v9625 = vunpack.c.l.b16 %v7999
    %v9626 = vunpack.c.l.b16 %v8000
    %v9627 = vunpack.c.l.b16 %v8001
    %v9628 = vunpack.c.l.b16 %v8002
    %v9629 = vunpack.c.l.b16 %v8003
    %v9630 = vunpack.c.l.b16 %v8004
    %v9631 = vunpack.c.l.b16 %v8005
    %v9632 = vunpack.c.l.b16 %v8006
    %v9633 = vunpack.c.l.b16 %v8007
    %v9634 = vunpack.c.l.b16 %v8008
    %v9635 = vunpack.c.l.b16 %v8009
    %v9636 = vunpack.c.l.b16 %v8010
    %v9637 = vunpack.c.l.b16 %v8011
    %v9638 = vunpack.c.l.b16 %v8012
    %v9639 = vunpack.c.l.b16 %v8013
    %v9640 = vunpack.c.l.b16 %v8014
    %v9641 = vunpack.c.l.b16 %v8015
    %v9642 = vunpack.c.l.b16 %v8016
    %v9643 = vunpack.c.l.b16 %v8017
    %v9644 = vunpack.c.l.b16 %v8018
    %v9645 = vunpack.c.l.b16 %v8019
    %v9646 = vunpack.c.l.b16 %v8020
    %v9647 = vunpack.c.l.b16 %v8021
    %v9648 = vunpack.c.l.b16 %v8022
    %v9649 = vunpack.c.l.b16 %v8023
    %v9650 = vunpack.c.l.b16 %v8024
    %v9651 = vunpack.c.l.b16 %v8025
    %v9652 = vunpack.c.l.b16 %v8026
    %v9653 = vunpack.c.l.b16 %v8027
    %v9654 = vunpack.c.l.b16 %v8028
    %v9655 = vunpack.c.l.b16 %v8029
    %v9656 = vunpack.c.l.b16 %v8030
    %v9657 = vunpack.c.l.b16 %v8031
    %v9658 = vunpack.c.l.b16 %v8032
    %v9659 = vunpack.c.l.b16 %v8033
    %v9660 = vunpack.c.l.b16 %v8034
    %v9661 = vunpack.c.l.b16 %v8035
    %v9662 = vunpack.c.l.b16 %v8036
    %v9663 = vunpack.c.l.b16 %v8037
    %v9664 = vunpack.c.l.b16 %v8038
    %v9665 = vunpack.c.l.b16 %v8039
    %v9666 = vunpack.c.l.b16 %v8040
    %v9667 = vunpack.c.l.b16 %v8041
    %v9668 = vunpack.c.l.b16 %v8042
    %v9669 = vunpack.c.l.b16 %v8043
    %v9670 = vunpack.c.l.b16 %v8044
    %v9671 = vunpack.c.l.b16 %v8045
    %v9672 = vunpack.c.l.b16 %v8046
    %v9673 = vunpack.c.l.b16 %v8047
    %v9674 = vunpack.c.l.b16 %v8048
    %v9675 = vunpack.c.l.b16 %v8049
    %v9676 = vunpack.c.l.b16 %v8050
    %v9677 = vunpack.c.l.b16 %v8051
    %v9678 = vunpack.c.l.b16 %v8052
    %v9679 = vunpack.c.l.b16 %v8053
    %v9680 = vunpack.c.l.b16 %v8054
    %v9681 = vunpack.c.l.b16 %v8055
    %v9682 = vunpack.c.l.b16 %v8056
    %v9683 = vunpack.c.l.b16 %v8057
    %v9684 = vunpack.c.l.b16 %v8058
    %v9685 = vunpack.c.l.b16 %v8059
    %v9686 = vunpack.c.l.b16 %v8060
    %v9687 = vunpack.c.l.b16 %v8061
    %v9688 = vunpack.c.l.b16 %v8062
    %v9689 = vunpack.c.l.b16 %v8063
    %v9690 = vunpack.c.l.b16 %v8064
    %v9691 = vunpack.c.l.b16 %v8065
    %v9692 = vunpack.c.l.b16 %v8066
    %v9693 = vunpack.c.l.b16 %v8067
    %v9694 = vunpack.c.l.b16 %v8068
    %v9695 = vunpack.c.l.b16 %v8069
    %v9696 = vunpack.c.l.b16 %v8070
    %v9697 = vunpack.c.l.b16 %v8071
    %v9698 = vunpack.c.l.b16 %v8072
    %v9699 = vunpack.c.l.b16 %v8073
    %v9700 = vunpack.c.l.b16 %v8074
    %v9701 = vunpack.c.l.b16 %v8075
    %v9702 = vunpack.c.l.b16 %v8076
    %v9703 = vunpack.c.l.b16 %v8077
    %v9704 = vunpack.c.l.b16 %v8078
    %v9705 = vunpack.c.l.b16 %v8079
    %v9706 = vunpack.c.l.b16 %v8080
    %v9707 = vunpack.c.l.b16 %v8081
    %v9708 = vunpack.c.l.b16 %v8082
    %v9709 = vunpack.c.l.b16 %v8083
    %v9710 = vunpack.c.l.b16 %v8084
    %v9711 = vunpack.c.l.b16 %v8085
    %v9712 = vunpack.c.l.b16 %v8086
    %v9713 = vunpack.c.l.b16 %v8087
    %v9714 = vunpack.c.l.b16 %v8088
    %v9715 = vunpack.c.l.b16 %v8089
    %v9716 = vunpack.c.l.b16 %v8090
    %v9717 = vunpack.c.l.b16 %v8091
    %v9718 = vunpack.c.l.b16 %v8092
    %v9719 = vunpack.c.l.b16 %v8093
    %v9720 = vunpack.c.l.b16 %v8094
    %v9721 = vunpack.c.l.b16 %v8095
    %v9722 = vunpack.c.l.b16 %v8096
    %v9723 = vunpack.c.l.b16 %v8097
    %v9724 = vunpack.c.l.b16 %v8098
    %v9725 = vunpack.c.l.b16 %v8099
    %v9726 = vunpack.c.l.b16 %v8100
    %v9727 = vunpack.c.l.b16 %v8101
    %v9728 = vunpack.c.l.b16 %v8102
    %v9729 = vunpack.c.l.b16 %v8103
    %v9730 = vunpack.c.l.b16 %v8104
    %v9731 = vunpack.c.l.b16 %v8105
    %v9732 = vunpack.c.l.b16 %v8106
    %v9733 = vunpack.c.l.b16 %v8107
    %v9734 = vunpack.c.l.b16 %v8108
    %v9735 = vunpack.c.l.b16 %v8109
    %v9736 = vunpack.c.l.b16 %v8110
    %v9737 = vunpack.c.l.b16 %v8111
    %v9738 = vunpack.c.l.b16 %v8112
    %v9739 = vunpack.c.l.b16 %v8113
    %v9740 = vunpack.c.l.b16 %v8114
    %v9741 = vunpack.c.l.b16 %v8115
    %v9742 = vunpack.c.l.b16 %v8116
    %v9743 = vunpack.c.l.b16 %v8117
    %v9744 = vunpack.c.l.b16 %v8118
    %v9745 = vunpack.c.l.b16 %v8119
    %v9746 = vunpack.c.l.b16 %v8120
    %v9747 = vunpack.c.l.b16 %v8121
    %v9748 = vunpack.c.l.b16 %v8122
    %v9749 = vunpack.c.l.b16 %v8123
    %v9750 = vunpack.c.l.b16 %v8124
    %v9751 = vunpack.c.l.b16 %v8125
    %v9752 = vunpack.c.l.b16 %v8126
    %v9753 = vunpack.c.l.b16 %v8127
    %v9754 = vunpack.c.l.b16 %v8128
    %v9755 = vunpack.c.l.b16 %v8129
    %v9756 = vunpack.c.l.b16 %v8130
    %v9757 = vunpack.c.l.b16 %v8131
    %v9758 = vunpack.c.l.b16 %v8132
    %v9759 = vunpack.c.l.b16 %v8133
    %v9760 = vunpack.c.l.b16 %v8134
    %v9761 = vunpack.c.l.b16 %v8135
    %v9762 = vunpack.c.l.b16 %v8136
    %v9763 = vunpack.c.l.b16 %v8137
    %v9764 = vunpack.c.l.b16 %v8138
    %v9765 = vunpack.c.l.b16 %v8139
    %v9766 = vunpack.c.l.b16 %v8140
    %v9767 = vunpack.c.l.b16 %v8141
    %v9768 = vunpack.c.l.b16 %v8142
    %v9769 = vunpack.c.l.b16 %v8143
    %v9770 = vunpack.c.l.b16 %v8144
    %v9771 = vunpack.c.l.b16 %v8145
    %v9772 = vunpack.c.l.b16 %v8146
    %v9773 = vunpack.c.l.b16 %v8147
    %v9774 = vunpack.c.l.b16 %v8148
    %v9775 = vunpack.c.l.b16 %v8149
    %v9776 = vunpack.c.l.b16 %v8150
    %v9777 = vunpack.c.l.b16 %v8151
    %v9778 = vunpack.c.l.b16 %v8152
    %v9779 = vunpack.c.l.b16 %v8153
    %v9780 = vunpack.c.l.b16 %v8154
    %v9781 = vunpack.c.l.b16 %v8155
    %v9782 = vunpack.c.l.b16 %v8156
    %v9783 = vunpack.c.l.b16 %v8157
    %v9784 = vunpack.c.l.b16 %v8158
    %v9785 = vunpack.c.l.b16 %v8159
    %v9786 = vunpack.c.l.b16 %v8160
    %v9787 = vunpack.c.l.b16 %v8161
    %v9788 = vunpack.c.l.b16 %v8162
    %v9789 = vunpack.c.l.b16 %v8163
    %v9790 = vunpack.c.l.b16 %v8164
    %v9791 = vunpack.c.l.b16 %v8165
    %v9792 = vunpack.c.l.b16 %v8166
    %v9793 = vunpack.c.l.b16 %v8167
    %v9794 = vunpack.c.l.b16 %v8168
    %v9795 = vunpack.c.l.b16 %v8169
    %v9796 = vunpack.c.l.b16 %v8170
    %v9797 = vunpack.c.l.b16 %v8171
    %v9798 = vunpack.c.l.b16 %v8172
    %v9799 = vunpack.c.l.b16 %v8173
    %v9800 = vunpack.c.l.b16 %v8174
    %v9801 = vunpack.c.l.b16 %v8175
    %v9802 = vunpack.c.l.b16 %v8176
    %v9803 = vunpack.c.l.b16 %v8177
    %v9804 = vunpack.c.l.b16 %v8178
    %v9805 = vunpack.c.l.b16 %v8179
    %v9806 = vunpack.c.l.b16 %v8180
    %v9807 = vunpack.c.l.b16 %v8181
    %v9808 = vunpack.c.l.b16 %v8182
    %v9809 = vunpack.c.l.b16 %v8183
    %v9810 = vunpack.c.l.b16 %v8184
    %v9811 = vunpack.c.l.b16 %v8185
    %v9812 = vpack.c.b16 %v9557, %v9556
    %v9813 = vpack.c.b16 %v9559, %v9558
    %v9814 = vpack.c.b16 %v9561, %v9560
    %v9815 = vpack.c.b16 %v9563, %v9562
    %v9816 = vpack.c.b16 %v9565, %v9564
    %v9817 = vpack.c.b16 %v9567, %v9566
    %v9818 = vpack.c.b16 %v9569, %v9568
    %v9819 = vpack.c.b16 %v9571, %v9570
    %v9820 = vpack.c.b16 %v9573, %v9572
    %v9821 = vpack.c.b16 %v9575, %v9574
    %v9822 = vpack.c.b16 %v9577, %v9576
    %v9823 = vpack.c.b16 %v9579, %v9578
    %v9824 = vpack.c.b16 %v9581, %v9580
    %v9825 = vpack.c.b16 %v9583, %v9582
    %v9826 = vpack.c.b16 %v9585, %v9584
    %v9827 = vpack.c.b16 %v9587, %v9586
    %v9828 = vpack.c.b16 %v9589, %v9588
    %v9829 = vpack.c.b16 %v9591, %v9590
    %v9830 = vpack.c.b16 %v9593, %v9592
    %v9831 = vpack.c.b16 %v9595, %v9594
    %v9832 = vpack.c.b16 %v9597, %v9596
    %v9833 = vpack.c.b16 %v9599, %v9598
    %v9834 = vpack.c.b16 %v9601, %v9600
    %v9835 = vpack.c.b16 %v9603, %v9602
    %v9836 = vpack.c.b16 %v9605, %v9604
    %v9837 = vpack.c.b16 %v9607, %v9606
    %v9838 = vpack.c.b16 %v9609, %v9608
    %v9839 = vpack.c.b16 %v9611, %v9610
    %v9840 = vpack.c.b16 %v9613, %v9612
    %v9841 = vpack.c.b16 %v9615, %v9614
    %v9842 = vpack.c.b16 %v9617, %v9616
    %v9843 = vpack.c.b16 %v9619, %v9618
    %v9844 = vpack.c.b16 %v9621, %v9620
    %v9845 = vpack.c.b16 %v9623, %v9622
    %v9846 = vpack.c.b16 %v9625, %v9624
    %v9847 = vpack.c.b16 %v9627, %v9626
    %v9848 = vpack.c.b16 %v9629, %v9628
    %v9849 = vpack.c.b16 %v9631, %v9630
    %v9850 = vpack.c.b16 %v9633, %v9632
    %v9851 = vpack.c.b16 %v9635, %v9634
    %v9852 = vpack.c.b16 %v9637, %v9636
    %v9853 = vpack.c.b16 %v9639, %v9638
    %v9854 = vpack.c.b16 %v9641, %v9640
    %v9855 = vpack.c.b16 %v9643, %v9642
    %v9856 = vpack.c.b16 %v9645, %v9644
    %v9857 = vpack.c.b16 %v9647, %v9646
    %v9858 = vpack.c.b16 %v9649, %v9648
    %v9859 = vpack.c.b16 %v9651, %v9650
    %v9860 = vpack.c.b16 %v9653, %v9652
    %v9861 = vpack.c.b16 %v9655, %v9654
    %v9862 = vpack.c.b16 %v9657, %v9656
    %v9863 = vpack.c.b16 %v9659, %v9658
    %v9864 = vpack.c.b16 %v9661, %v9660
    %v9865 = vpack.c.b16 %v9663, %v9662
    %v9866 = vpack.c.b16 %v9665, %v9664
    %v9867 = vpack.c.b16 %v9667, %v9666
    %v9868 = vpack.c.b16 %v9669, %v9668
    %v9869 = vpack.c.b16 %v9671, %v9670
    %v9870 = vpack.c.b16 %v9673, %v9672
    %v9871 = vpack.c.b16 %v9675, %v9674
    %v9872 = vpack.c.b16 %v9677, %v9676
    %v9873 = vpack.c.b16 %v9679, %v9678
    %v9874 = vpack.c.b16 %v9681, %v9680
    %v9875 = vpack.c.b16 %v9683, %v9682
    %v9876 = vpack.c.b16 %v9685, %v9684
    %v9877 = vpack.c.b16 %v9687, %v9686
    %v9878 = vpack.c.b16 %v9689, %v9688
    %v9879 = vpack.c.b16 %v9691, %v9690
    %v9880 = vpack.c.b16 %v9693, %v9692
    %v9881 = vpack.c.b16 %v9695, %v9694
    %v9882 = vpack.c.b16 %v9697, %v9696
    %v9883 = vpack.c.b16 %v9699, %v9698
    %v9884 = vpack.c.b16 %v9701, %v9700
    %v9885 = vpack.c.b16 %v9703, %v9702
    %v9886 = vpack.c.b16 %v9705, %v9704
    %v9887 = vpack.c.b16 %v9707, %v9706
    %v9888 = vpack.c.b16 %v9709, %v9708
    %v9889 = vpack.c.b16 %v9711, %v9710
    %v9890 = vpack.c.b16 %v9713, %v9712
    %v9891 = vpack.c.b16 %v9715, %v9714
    %v9892 = vpack.c.b16 %v9717, %v9716
    %v9893 = vpack.c.b16 %v9719, %v9718
    %v9894 = vpack.c.b16 %v9721, %v9720
    %v9895 = vpack.c.b16 %v9723, %v9722
    %v9896 = vpack.c.b16 %v9725, %v9724
    %v9897 = vpack.c.b16 %v9727, %v9726
    %v9898 = vpack.c.b16 %v9729, %v9728
    %v9899 = vpack.c.b16 %v9731, %v9730
    %v9900 = vpack.c.b16 %v9733, %v9732
    %v9901 = vpack.c.b16 %v9735, %v9734
    %v9902 = vpack.c.b16 %v9737, %v9736
    %v9903 = vpack.c.b16 %v9739, %v9738
    %v9904 = vpack.c.b16 %v9741, %v9740
    %v9905 = vpack.c.b16 %v9743, %v9742
    %v9906 = vpack.c.b16 %v9745, %v9744
    %v9907 = vpack.c.b16 %v9747, %v9746
    %v9908 = vpack.c.b16 %v9749, %v9748
    %v9909 = vpack.c.b16 %v9751, %v9750
    %v9910 = vpack.c.b16 %v9753, %v9752
    %v9911 = vpack.c.b16 %v9755, %v9754
    %v9912 = vpack.c.b16 %v9757, %v9756
    %v9913 = vpack.c.b16 %v9759, %v9758
    %v9914 = vpack.c.b16 %v9761, %v9760
    %v9915 = vpack.c.b16 %v9763, %v9762
    %v9916 = vpack.c.b16 %v9765, %v9764
    %v9917 = vpack.c.b16 %v9767, %v9766
    %v9918 = vpack.c.b16 %v9769, %v9768
    %v9919 = vpack.c.b16 %v9771, %v9770
    %v9920 = vpack.c.b16 %v9773, %v9772
    %v9921 = vpack.c.b16 %v9775, %v9774
    %v9922 = vpack.c.b16 %v9777, %v9776
    %v9923 = vpack.c.b16 %v9779, %v9778
    %v9924 = vpack.c.b16 %v9781, %v9780
    %v9925 = vpack.c.b16 %v9783, %v9782
    %v9926 = vpack.c.b16 %v9785, %v9784
    %v9927 = vpack.c.b16 %v9787, %v9786
    %v9928 = vpack.c.b16 %v9789, %v9788
    %v9929 = vpack.c.b16 %v9791, %v9790
    %v9930 = vpack.c.b16 %v9793, %v9792
    %v9931 = vpack.c.b16 %v9795, %v9794
    %v9932 = vpack.c.b16 %v9797, %v9796
    %v9933 = vpack.c.b16 %v9799, %v9798
    %v9934 = vpack.c.b16 %v9801, %v9800
    %v9935 = vpack.c.b16 %v9803, %v9802
    %v9936 = vpack.c.b16 %v9805, %v9804
    %v9937 = vpack.c.b16 %v9807, %v9806
    %v9938 = vpack.c.b16 %v9809, %v9808
    %v9939 = vpack.c.b16 %v9811, %v9810
    %10068 = vmatprep.subr.bf16.mxu0 0
    %10069 = vmatpush1.bf16.msra.mxu0 %v9812
    %10070 = vmatprep.subr.bf16.mxu0 0
    %10071 = vmatpush1.bf16.msra.mxu0 %v9813
    %10072 = vmatprep.subr.bf16.mxu0 0
    %10073 = vmatpush1.bf16.msra.mxu0 %v9814
    %10074 = vmatprep.subr.bf16.mxu0 0
    %10075 = vmatpush1.bf16.msra.mxu0 %v9815
    %10076 = vmatprep.subr.bf16.mxu0 0
    %10077 = vmatpush1.bf16.msra.mxu0 %v9816
    %10078 = vmatprep.subr.bf16.mxu0 0
    %10079 = vmatpush1.bf16.msra.mxu0 %v9817
    %10080 = vmatprep.subr.bf16.mxu0 0
    %10081 = vmatpush1.bf16.msra.mxu0 %v9818
    %10082 = vmatprep.subr.bf16.mxu0 0
    %10083 = vmatpush1.bf16.msra.mxu0 %v9819
    %10084 = vmatprep.subr.bf16.mxu0 0
    %10085 = vmatpush1.bf16.msra.mxu0 %v9820
    %10086 = vmatprep.subr.bf16.mxu0 0
    %10087 = vmatpush1.bf16.msra.mxu0 %v9821
    %10088 = vmatprep.subr.bf16.mxu0 0
    %10089 = vmatpush1.bf16.msra.mxu0 %v9822
    %10090 = vmatprep.subr.bf16.mxu0 0
    %10091 = vmatpush1.bf16.msra.mxu0 %v9823
    %10092 = vmatprep.subr.bf16.mxu0 0
    %10093 = vmatpush1.bf16.msra.mxu0 %v9824
    %10094 = vmatprep.subr.bf16.mxu0 0
    %10095 = vmatpush1.bf16.msra.mxu0 %v9825
    %10096 = vmatprep.subr.bf16.mxu0 0
    %10097 = vmatpush1.bf16.msra.mxu0 %v9826
    %10098 = vmatprep.subr.bf16.mxu0 0
    %10099 = vmatpush1.bf16.msra.mxu0 %v9827
    %10100 = vmatprep.mubr.bf16.mxu0 %v9281
    %10101 = vmatmul.mubr.bf16.gmra.mrb[0].mxu0 %v9280
    %v10102 = vpop.f32.mrb[0].mxu0
    %v10103 = vadd.f32 %v9299, %v10102
    %v10104 = vpop.f32.mrb[0].mxu0
    %v10105 = vpop.f32.mrb[0].mxu0
    %v10106 = vadd.f32 %v9299, %v10105
    %v10107 = vpop.f32.mrb[0].mxu0
    %10108 = vdwg.mxu0
    %10109 = vmatprep.subr.bf16.mxu0 0
    %10110 = vmatpush1.bf16.msra.mxu0 %v9828
    %10111 = vmatprep.subr.bf16.mxu0 0
    %10112 = vmatpush1.bf16.msra.mxu0 %v9829
    %10113 = vmatprep.subr.bf16.mxu0 0
    %10114 = vmatpush1.bf16.msra.mxu0 %v9830
    %10115 = vmatprep.subr.bf16.mxu0 0
    %10116 = vmatpush1.bf16.msra.mxu0 %v9831
    %10117 = vmatprep.subr.bf16.mxu0 0
    %10118 = vmatpush1.bf16.msra.mxu0 %v9832
    %10119 = vmatprep.subr.bf16.mxu0 0
    %10120 = vmatpush1.bf16.msra.mxu0 %v9833
    %10121 = vmatprep.subr.bf16.mxu0 0
    %10122 = vmatpush1.bf16.msra.mxu0 %v9834
    %10123 = vmatprep.subr.bf16.mxu0 0
    %10124 = vmatpush1.bf16.msra.mxu0 %v9835
    %10125 = vmatprep.subr.bf16.mxu0 0
    %10126 = vmatpush1.bf16.msra.mxu0 %v9836
    %10127 = vmatprep.subr.bf16.mxu0 0
    %10128 = vmatpush1.bf16.msra.mxu0 %v9837
    %10129 = vmatprep.subr.bf16.mxu0 0
    %10130 = vmatpush1.bf16.msra.mxu0 %v9838
    %10131 = vmatprep.subr.bf16.mxu0 0
    %10132 = vmatpush1.bf16.msra.mxu0 %v9839
    %10133 = vmatprep.subr.bf16.mxu0 0
    %10134 = vmatpush1.bf16.msra.mxu0 %v9840
    %10135 = vmatprep.subr.bf16.mxu0 0
    %10136 = vmatpush1.bf16.msra.mxu0 %v9841
    %10137 = vmatprep.subr.bf16.mxu0 0
    %10138 = vmatpush1.bf16.msra.mxu0 %v9842
    %10139 = vmatprep.subr.bf16.mxu0 0
    %10140 = vmatpush1.bf16.msra.mxu0 %v9843
    %10141 = vmatprep.mubr.bf16.mxu0 %v9283
    %10142 = vmatmul.mubr.bf16.gmra.mrb[0].mxu0 %v9282
    %v10143 = vpop.f32.mrb[0].mxu0
    %v10144 = vadd.f32 %v10103, %v10143
    %v10145 = vpop.f32.mrb[0].mxu0
    %v10146 = vpop.f32.mrb[0].mxu0
    %v10147 = vadd.f32 %v10106, %v10146
    %v10148 = vpop.f32.mrb[0].mxu0
    %10149 = vdwg.mxu0
    %10150 = vmatprep.subr.bf16.mxu0 0
    %10151 = vmatpush1.bf16.msra.mxu0 %v9844
    %10152 = vmatprep.subr.bf16.mxu0 0
    %10153 = vmatpush1.bf16.msra.mxu0 %v9845
    %10154 = vmatprep.subr.bf16.mxu0 0
    %10155 = vmatpush1.bf16.msra.mxu0 %v9846
    %10156 = vmatprep.subr.bf16.mxu0 0
    %10157 = vmatpush1.bf16.msra.mxu0 %v9847
    %10158 = vmatprep.subr.bf16.mxu0 0
    %10159 = vmatpush1.bf16.msra.mxu0 %v9848
    %10160 = vmatprep.subr.bf16.mxu0 0
    %10161 = vmatpush1.bf16.msra.mxu0 %v9849
    %10162 = vmatprep.subr.bf16.mxu0 0
    %10163 = vmatpush1.bf16.msra.mxu0 %v9850
    %10164 = vmatprep.subr.bf16.mxu0 0
    %10165 = vmatpush1.bf16.msra.mxu0 %v9851
    %10166 = vmatprep.subr.bf16.mxu0 0
    %10167 = vmatpush1.bf16.msra.mxu0 %v9852
    %10168 = vmatprep.subr.bf16.mxu0 0
    %10169 = vmatpush1.bf16.msra.mxu0 %v9853
    %10170 = vmatprep.subr.bf16.mxu0 0
    %10171 = vmatpush1.bf16.msra.mxu0 %v9854
    %10172 = vmatprep.subr.bf16.mxu0 0
    %10173 = vmatpush1.bf16.msra.mxu0 %v9855
    %10174 = vmatprep.subr.bf16.mxu0 0
    %10175 = vmatpush1.bf16.msra.mxu0 %v9856
    %10176 = vmatprep.subr.bf16.mxu0 0
    %10177 = vmatpush1.bf16.msra.mxu0 %v9857
    %10178 = vmatprep.subr.bf16.mxu0 0
    %10179 = vmatpush1.bf16.msra.mxu0 %v9858
    %10180 = vmatprep.subr.bf16.mxu0 0
    %10181 = vmatpush1.bf16.msra.mxu0 %v9859
    %10182 = vmatprep.mubr.bf16.mxu0 %v9285
    %10183 = vmatmul.mubr.bf16.gmra.mrb[0].mxu0 %v9284
    %v10184 = vpop.f32.mrb[0].mxu0
    %v10185 = vadd.f32 %v10144, %v10184
    %v10186 = vpop.f32.mrb[0].mxu0
    %v10187 = vpop.f32.mrb[0].mxu0
    %v10188 = vadd.f32 %v10147, %v10187
    %v10189 = vpop.f32.mrb[0].mxu0
    %10190 = vdwg.mxu0
    %10191 = vmatprep.subr.bf16.mxu0 0
    %10192 = vmatpush1.bf16.msra.mxu0 %v9860
    %10193 = vmatprep.subr.bf16.mxu0 0
    %10194 = vmatpush1.bf16.msra.mxu0 %v9861
    %10195 = vmatprep.subr.bf16.mxu0 0
    %10196 = vmatpush1.bf16.msra.mxu0 %v9862
    %10197 = vmatprep.subr.bf16.mxu0 0
    %10198 = vmatpush1.bf16.msra.mxu0 %v9863
    %10199 = vmatprep.subr.bf16.mxu0 0
    %10200 = vmatpush1.bf16.msra.mxu0 %v9864
    %10201 = vmatprep.subr.bf16.mxu0 0
    %10202 = vmatpush1.bf16.msra.mxu0 %v9865
    %10203 = vmatprep.subr.bf16.mxu0 0
    %10204 = vmatpush1.bf16.msra.mxu0 %v9866
    %10205 = vmatprep.subr.bf16.mxu0 0
    %10206 = vmatpush1.bf16.msra.mxu0 %v9867
    %10207 = vmatprep.subr.bf16.mxu0 0
    %10208 = vmatpush1.bf16.msra.mxu0 %v9868
    %10209 = vmatprep.subr.bf16.mxu0 0
    %10210 = vmatpush1.bf16.msra.mxu0 %v9869
    %10211 = vmatprep.subr.bf16.mxu0 0
    %10212 = vmatpush1.bf16.msra.mxu0 %v9870
    %10213 = vmatprep.subr.bf16.mxu0 0
    %10214 = vmatpush1.bf16.msra.mxu0 %v9871
    %10215 = vmatprep.subr.bf16.mxu0 0
    %10216 = vmatpush1.bf16.msra.mxu0 %v9872
    %10217 = vmatprep.subr.bf16.mxu0 0
    %10218 = vmatpush1.bf16.msra.mxu0 %v9873
    %10219 = vmatprep.subr.bf16.mxu0 0
    %10220 = vmatpush1.bf16.msra.mxu0 %v9874
    %10221 = vmatprep.subr.bf16.mxu0 0
    %10222 = vmatpush1.bf16.msra.mxu0 %v9875
    %10223 = vmatprep.mubr.bf16.mxu0 %v9287
    %10224 = vmatmul.mubr.bf16.gmra.mrb[0].mxu0 %v9286
    %v10225 = vpop.f32.mrb[0].mxu0
    %v10226 = vadd.f32 %v10185, %v10225
    %v10227 = vpop.f32.mrb[0].mxu0
    %v10228 = vpop.f32.mrb[0].mxu0
    %v10229 = vadd.f32 %v10188, %v10228
    %v10230 = vpop.f32.mrb[0].mxu0
    %10231 = vdwg.mxu0
    %10232 = vmatprep.subr.bf16.mxu0 0
    %10233 = vmatpush1.bf16.msra.mxu0 %v9876
    %10234 = vmatprep.subr.bf16.mxu0 0
    %10235 = vmatpush1.bf16.msra.mxu0 %v9877
    %10236 = vmatprep.subr.bf16.mxu0 0
    %10237 = vmatpush1.bf16.msra.mxu0 %v9878
    %10238 = vmatprep.subr.bf16.mxu0 0
    %10239 = vmatpush1.bf16.msra.mxu0 %v9879
    %10240 = vmatprep.subr.bf16.mxu0 0
    %10241 = vmatpush1.bf16.msra.mxu0 %v9880
    %10242 = vmatprep.subr.bf16.mxu0 0
    %10243 = vmatpush1.bf16.msra.mxu0 %v9881
    %10244 = vmatprep.subr.bf16.mxu0 0
    %10245 = vmatpush1.bf16.msra.mxu0 %v9882
    %10246 = vmatprep.subr.bf16.mxu0 0
    %10247 = vmatpush1.bf16.msra.mxu0 %v9883
    %10248 = vmatprep.subr.bf16.mxu0 0
    %10249 = vmatpush1.bf16.msra.mxu0 %v9884
    %10250 = vmatprep.subr.bf16.mxu0 0
    %10251 = vmatpush1.bf16.msra.mxu0 %v9885
    %10252 = vmatprep.subr.bf16.mxu0 0
    %10253 = vmatpush1.bf16.msra.mxu0 %v9886
    %10254 = vmatprep.subr.bf16.mxu0 0
    %10255 = vmatpush1.bf16.msra.mxu0 %v9887
    %10256 = vmatprep.subr.bf16.mxu0 0
    %10257 = vmatpush1.bf16.msra.mxu0 %v9888
    %10258 = vmatprep.subr.bf16.mxu0 0
    %10259 = vmatpush1.bf16.msra.mxu0 %v9889
    %10260 = vmatprep.subr.bf16.mxu0 0
    %10261 = vmatpush1.bf16.msra.mxu0 %v9890
    %10262 = vmatprep.subr.bf16.mxu0 0
    %10263 = vmatpush1.bf16.msra.mxu0 %v9891
    %10264 = vmatprep.mubr.bf16.mxu0 %v9289
    %10265 = vmatmul.mubr.bf16.gmra.mrb[0].mxu0 %v9288
    %v10266 = vpop.f32.mrb[0].mxu0
    %v10267 = vadd.f32 %v10226, %v10266
    %v10268 = vpop.f32.mrb[0].mxu0
    %v10269 = vpop.f32.mrb[0].mxu0
    %v10270 = vadd.f32 %v10229, %v10269
    %v10271 = vpop.f32.mrb[0].mxu0
    %10272 = vdwg.mxu0
    %10273 = vmatprep.subr.bf16.mxu0 0
    %10274 = vmatpush1.bf16.msra.mxu0 %v9892
    %10275 = vmatprep.subr.bf16.mxu0 0
    %10276 = vmatpush1.bf16.msra.mxu0 %v9893
    %10277 = vmatprep.subr.bf16.mxu0 0
    %10278 = vmatpush1.bf16.msra.mxu0 %v9894
    %10279 = vmatprep.subr.bf16.mxu0 0
    %10280 = vmatpush1.bf16.msra.mxu0 %v9895
    %10281 = vmatprep.subr.bf16.mxu0 0
    %10282 = vmatpush1.bf16.msra.mxu0 %v9896
    %10283 = vmatprep.subr.bf16.mxu0 0
    %10284 = vmatpush1.bf16.msra.mxu0 %v9897
    %10285 = vmatprep.subr.bf16.mxu0 0
    %10286 = vmatpush1.bf16.msra.mxu0 %v9898
    %10287 = vmatprep.subr.bf16.mxu0 0
    %10288 = vmatpush1.bf16.msra.mxu0 %v9899
    %10289 = vmatprep.subr.bf16.mxu0 0
    %10290 = vmatpush1.bf16.msra.mxu0 %v9900
    %10291 = vmatprep.subr.bf16.mxu0 0
    %10292 = vmatpush1.bf16.msra.mxu0 %v9901
    %10293 = vmatprep.subr.bf16.mxu0 0
    %10294 = vmatpush1.bf16.msra.mxu0 %v9902
    %10295 = vmatprep.subr.bf16.mxu0 0
    %10296 = vmatpush1.bf16.msra.mxu0 %v9903
    %10297 = vmatprep.subr.bf16.mxu0 0
    %10298 = vmatpush1.bf16.msra.mxu0 %v9904
    %10299 = vmatprep.subr.bf16.mxu0 0
    %10300 = vmatpush1.bf16.msra.mxu0 %v9905
    %10301 = vmatprep.subr.bf16.mxu0 0
    %10302 = vmatpush1.bf16.msra.mxu0 %v9906
    %10303 = vmatprep.subr.bf16.mxu0 0
    %10304 = vmatpush1.bf16.msra.mxu0 %v9907
    %10305 = vmatprep.mubr.bf16.mxu0 %v9291
    %10306 = vmatmul.mubr.bf16.gmra.mrb[0].mxu0 %v9290
    %v10307 = vpop.f32.mrb[0].mxu0
    %v10308 = vadd.f32 %v10267, %v10307
    %v10309 = vpop.f32.mrb[0].mxu0
    %v10310 = vpop.f32.mrb[0].mxu0
    %v10311 = vadd.f32 %v10270, %v10310
    %v10312 = vpop.f32.mrb[0].mxu0
    %10313 = vdwg.mxu0
    %10314 = vmatprep.subr.bf16.mxu0 0
    %10315 = vmatpush1.bf16.msra.mxu0 %v9908
    %10316 = vmatprep.subr.bf16.mxu0 0
    %10317 = vmatpush1.bf16.msra.mxu0 %v9909
    %10318 = vmatprep.subr.bf16.mxu0 0
    %10319 = vmatpush1.bf16.msra.mxu0 %v9910
    %10320 = vmatprep.subr.bf16.mxu0 0
    %10321 = vmatpush1.bf16.msra.mxu0 %v9911
    %10322 = vmatprep.subr.bf16.mxu0 0
    %10323 = vmatpush1.bf16.msra.mxu0 %v9912
    %10324 = vmatprep.subr.bf16.mxu0 0
    %10325 = vmatpush1.bf16.msra.mxu0 %v9913
    %10326 = vmatprep.subr.bf16.mxu0 0
    %10327 = vmatpush1.bf16.msra.mxu0 %v9914
    %10328 = vmatprep.subr.bf16.mxu0 0
    %10329 = vmatpush1.bf16.msra.mxu0 %v9915
    %10330 = vmatprep.subr.bf16.mxu0 0
    %10331 = vmatpush1.bf16.msra.mxu0 %v9916
    %10332 = vmatprep.subr.bf16.mxu0 0
    %10333 = vmatpush1.bf16.msra.mxu0 %v9917
    %10334 = vmatprep.subr.bf16.mxu0 0
    %10335 = vmatpush1.bf16.msra.mxu0 %v9918
    %10336 = vmatprep.subr.bf16.mxu0 0
    %10337 = vmatpush1.bf16.msra.mxu0 %v9919
    %10338 = vmatprep.subr.bf16.mxu0 0
    %10339 = vmatpush1.bf16.msra.mxu0 %v9920
    %10340 = vmatprep.subr.bf16.mxu0 0
    %10341 = vmatpush1.bf16.msra.mxu0 %v9921
    %10342 = vmatprep.subr.bf16.mxu0 0
    %10343 = vmatpush1.bf16.msra.mxu0 %v9922
    %10344 = vmatprep.subr.bf16.mxu0 0
    %10345 = vmatpush1.bf16.msra.mxu0 %v9923
    %10346 = vmatprep.mubr.bf16.mxu0 %v9293
    %10347 = vmatmul.mubr.bf16.gmra.mrb[0].mxu0 %v9292
    %v10348 = vpop.f32.mrb[0].mxu0
    %v10349 = vadd.f32 %v10308, %v10348
    %v10350 = vpop.f32.mrb[0].mxu0
    %v10351 = vpop.f32.mrb[0].mxu0
    %v10352 = vadd.f32 %v10311, %v10351
    %v10353 = vpop.f32.mrb[0].mxu0
    %10354 = vdwg.mxu0
    %10355 = vmatprep.subr.bf16.mxu0 0
    %10356 = vmatpush1.bf16.msra.mxu0 %v9924
    %10357 = vmatprep.subr.bf16.mxu0 0
    %10358 = vmatpush1.bf16.msra.mxu0 %v9925
    %10359 = vmatprep.subr.bf16.mxu0 0
    %10360 = vmatpush1.bf16.msra.mxu0 %v9926
    %10361 = vmatprep.subr.bf16.mxu0 0
    %10362 = vmatpush1.bf16.msra.mxu0 %v9927
    %10363 = vmatprep.subr.bf16.mxu0 0
    %10364 = vmatpush1.bf16.msra.mxu0 %v9928
    %10365 = vmatprep.subr.bf16.mxu0 0
    %10366 = vmatpush1.bf16.msra.mxu0 %v9929
    %10367 = vmatprep.subr.bf16.mxu0 0
    %10368 = vmatpush1.bf16.msra.mxu0 %v9930
    %10369 = vmatprep.subr.bf16.mxu0 0
    %10370 = vmatpush1.bf16.msra.mxu0 %v9931
    %10371 = vmatprep.subr.bf16.mxu0 0
    %10372 = vmatpush1.bf16.msra.mxu0 %v9932
    %10373 = vmatprep.subr.bf16.mxu0 0
    %10374 = vmatpush1.bf16.msra.mxu0 %v9933
    %10375 = vmatprep.subr.bf16.mxu0 0
    %10376 = vmatpush1.bf16.msra.mxu0 %v9934
    %10377 = vmatprep.subr.bf16.mxu0 0
    %10378 = vmatpush1.bf16.msra.mxu0 %v9935
    %10379 = vmatprep.subr.bf16.mxu0 0
    %10380 = vmatpush1.bf16.msra.mxu0 %v9936
    %10381 = vmatprep.subr.bf16.mxu0 0
    %10382 = vmatpush1.bf16.msra.mxu0 %v9937
    %10383 = vmatprep.subr.bf16.mxu0 0
    %10384 = vmatpush1.bf16.msra.mxu0 %v9938
    %10385 = vmatprep.subr.bf16.mxu0 0
    %10386 = vmatpush1.bf16.msra.mxu0 %v9939
    %10387 = vmatprep.mubr.bf16.mxu0 %v9295
    %10388 = vmatmul.mubr.bf16.gmra.mrb[0].mxu0 %v9294
    %v10389 = vpop.f32.mrb[0].mxu0
    %v10390 = vadd.f32 %v10349, %v10389
    %v10391 = vpop.f32.mrb[0].mxu0
    %v10392 = vpop.f32.mrb[0].mxu0
    %v10393 = vadd.f32 %v10352, %v10392
    %v10394 = vpop.f32.mrb[0].mxu0
    %10395 = vdwg.mxu0
    %v10396 = vadd.f32 %v8656, %v10390
    %v10397 = vadd.f32 %v8657, %v10393
    %v10398 = vsel %vm536, %v10396, 0.0
    %10399 = vadd.xlane.f32.xlu0 %v10398
    %v10400 = vpop.xlane.xlu0 %10399
    %v10401 = vsel %vm536, %v10397, 0.0
    %10402 = vadd.xlane.f32.xlu0 %v10401
    %v10403 = vpop.xlane.xlu0 %10402
    %v10404 = vmul.f32 %v10400, %v930
    %v10405 = vmul.f32 %v10403, %v930
    %v10406 = vsub.f32 %v10396, %v10404
    %v10407 = vsub.f32 %v10397, %v10405
    %v10408 = vmul.f32 %v10406, %v10406
    %v10409 = vmul.f32 %v10407, %v10407
    %v10410 = vsel %vm536, %v10408, 0.0
    %10411 = vadd.xlane.f32.xlu0 %v10410
    %v10412 = vpop.xlane.xlu0 %10411
    %v10413 = vsel %vm536, %v10409, 0.0
    %10414 = vadd.xlane.f32.xlu0 %v10413
    %v10415 = vpop.xlane.xlu0 %10414
    %v10416 = vmul.f32 %v10412, %v930
    %v10417 = vmul.f32 %v10415, %v930
    %v10418 = vadd.f32 %v10416, 1e-05
    %v10419 = vadd.f32 %v10417, 1e-05
    %v10420 = vrsqrt.pop %v10418
    %v10421 = vrsqrt.pop %v10419
    %v10422 = vmul.f32 %v10406, %v10420
    %v10423 = vmul.f32 %v10407, %v10421
    %v10424 = vlaneseq
    %v10425 = vshrl.u32 %v10424, 7
    %v10426 = vsub.s32 4, %v10425
    %v10427 = vrot.slane %v7864, %v10426
    %v10428 = vmul.f32 %v10422, %v10427
    %v10429 = vmul.f32 %v10423, %v10427
    %v10430 = vlaneseq
    %v10431 = vshrl.u32 %v10430, 7
    %v10432 = vsub.s32 5, %v10431
    %v10433 = vrot.slane %v7864, %v10432
    %v10434 = vadd.f32 %v10428, %v10433
    %v10435 = vadd.f32 %v10429, %v10433
    %v10436 = vsel %vm536, %v10434, 0.0
    %10437 = vadd.xlane.f32.xlu0 %v10436
    %v10438 = vpop.xlane.xlu0 %10437
    %v10439 = vsel %vm536, %v10435, 0.0
    %10440 = vadd.xlane.f32.xlu0 %v10439
    %v10441 = vpop.xlane.xlu0 %10440
    %v10442 = vmul.f32 %v10438, %v930
    %v10443 = vmul.f32 %v10441, %v930
    %v10444 = vsub.f32 %v10434, %v10442
    %v10445 = vsub.f32 %v10435, %v10443
    %v10446 = vmul.f32 %v10444, %v10444
    %v10447 = vmul.f32 %v10445, %v10445
    %v10448 = vsel %vm536, %v10446, 0.0
    %10449 = vadd.xlane.f32.xlu0 %v10448
    %v10450 = vpop.xlane.xlu0 %10449
    %v10451 = vsel %vm536, %v10447, 0.0
    %10452 = vadd.xlane.f32.xlu0 %v10451
    %v10453 = vpop.xlane.xlu0 %10452
    %v10454 = vmul.f32 %v10450, %v930
    %v10455 = vmul.f32 %v10453, %v930
    %v10456 = vadd.f32 %v10454, 1e-05
    %v10457 = vadd.f32 %v10455, 1e-05
    %v10458 = vrsqrt.pop %v10456
    %v10459 = vrsqrt.pop %v10457
    %v10460 = vmul.f32 %v10444, %v10458
    %v10461 = vmul.f32 %v10445, %v10459
    %v10462 = vlaneseq
    %v10463 = vshrl.u32 %v10462, 7
    %v10464 = vsub.s32 3, %v10463
    %v10465 = vrot.slane %v52, %v10464
    %v10466 = vmul.f32 %v10460, %v10465
    %v10467 = vmul.f32 %v10461, %v10465
    %v10468 = vlaneseq
    %v10469 = vshrl.u32 %v10468, 7
    %v10470 = vsub.s32 4, %v10469
    %v10471 = vrot.slane %v52, %v10470
    %v10472 = vadd.f32 %v10466, %v10471
    %v10473 = vadd.f32 %v10467, %v10471
    %v10474 = vpack.c.bf16 %v10473, %v10472
    %v10475 = vld [vmem:[%s13] sm:$0xf]
    %v10476 = vld [vmem:[%s13 + $0x4] sm:$0xf]
    %v10477 = vld [vmem:[%s13 + $0x8] sm:$0xf]
    %v10478 = vld [vmem:[%s13 + $0xc] sm:$0xf]
    %v10479 = vld [vmem:[%s14] sm:$0x1]
    %v10481 = vlaneseq
    %v10482 = vshrl.u32 %v10481, 7
    %v10483 = vsub.s32 0, %v10482
    %v10484 = vrot.slane %v10479, %v10483
    %v10490 = vunpack.c.l.b16 %v10475
    %v10491 = vunpack.c.l.b16 %v10476
    %v10492 = vunpack.c.l.b16 %v10477
    %v10493 = vunpack.c.l.b16 %v10478
    %v10494 = vpack.c.b16 %v10491, %v10490
    %v10495 = vpack.c.b16 %v10493, %v10492
    %v10499 = vsel %vm536, %v10474, 0
    %10501 = vmatprep.subr.bf16.mxu0 0
    %10502 = vmatpush1.bf16.msra.mxu0 %v10494
    %10503 = vmatprep.subr.bf16.mxu0 0
    %10504 = vmatpush1.bf16.msra.mxu0 %v10495
    %10505 = vmatprep.subr.bf16.mxu0 0
    %10506 = vmatpush1.bf16.msra.mxu0 0
    %10507 = vmatprep.subr.bf16.mxu0 0
    %10508 = vmatpush1.bf16.msra.mxu0 0
    %10509 = vmatprep.subr.bf16.mxu0 0
    %10510 = vmatpush1.bf16.msra.mxu0 0
    %10511 = vmatprep.subr.bf16.mxu0 0
    %10512 = vmatpush1.bf16.msra.mxu0 0
    %10513 = vmatprep.subr.bf16.mxu0 0
    %10514 = vmatpush1.bf16.msra.mxu0 0
    %10515 = vmatprep.subr.bf16.mxu0 0
    %10516 = vmatpush1.bf16.msra.mxu0 0
    %10517 = vmatprep.subr.bf16.mxu0 0
    %10518 = vmatpush1.bf16.msra.mxu0 0
    %10519 = vmatprep.subr.bf16.mxu0 0
    %10520 = vmatpush1.bf16.msra.mxu0 0
    %10521 = vmatprep.subr.bf16.mxu0 0
    %10522 = vmatpush1.bf16.msra.mxu0 0
    %10523 = vmatprep.subr.bf16.mxu0 0
    %10524 = vmatpush1.bf16.msra.mxu0 0
    %10525 = vmatprep.subr.bf16.mxu0 0
    %10526 = vmatpush1.bf16.msra.mxu0 0
    %10527 = vmatprep.subr.bf16.mxu0 0
    %10528 = vmatpush1.bf16.msra.mxu0 0
    %10529 = vmatprep.subr.bf16.mxu0 0
    %10530 = vmatpush1.bf16.msra.mxu0 0
    %10531 = vmatprep.subr.bf16.mxu0 0
    %10532 = vmatpush1.bf16.msra.mxu0 0
    %10533 = vmatprep.mubr.bf16.mxu0 0
    %10534 = vmatmul.mubr.bf16.gmra.mrb[0].mxu0 %v10499
    %v10535 = vpop.f32.mrb[0].mxu0
    %v10536 = vadd.f32 %v10484, %v10535
    %v10537 = vpop.f32.mrb[0].mxu0
    %v10538 = vpop.f32.mrb[0].mxu0
    %v10539 = vadd.f32 %v10484, %v10538
    %v10540 = vpop.f32.mrb[0].mxu0
    %10541 = vdwg.mxu0
    %10542 = vst [vmem:[#allocation2] sm:$0xff] %v10536
    %10543 = vst [vmem:[#allocation2 + $0x8] sm:$0xff] %v10539
    // Predicated region
    $region62: #{tpu_custom_call.1} parent=1 // pred_check
      _
    $region63: #{tpu_custom_call.1} parent=1 // pred_check_branch
      %10545 = sbr.rel (0) target = $region65
    $region64: #{tpu_custom_call.1} parent=1 // pred_region
      %s10547 = ssub.s32 256, 256
      %10548 = vsyncadd [#allocation3], %s10547
      %s10549 = sshll.u32 [#allocation2], 4
      %s10550 = int_to_ptr.vmem [resolvable:$true] %s10549
      %10555 = dma.vmem_to_hbm [thread:$0]  %s10550, 256, %s15, [#allocation3], 128, 128, 8
    $region65: #{tpu_custom_call.1} parent=1 // pred_fallthru
      _
    // Predicated region
    $region66: #{tpu_custom_call.1} parent=1 // pred_check
      _
    $region67: #{tpu_custom_call.1} parent=1 // pred_check_branch
      %10557 = sbr.rel (0) target = $region69
    $region68: #{tpu_custom_call.1} parent=1 // pred_region
      %10558 = dma.done [#allocation3], 256
    $region69: #{tpu_custom_call.1} parent=1 // pred_fallthru
      _
    %10559 = vsyncpa [#allocation3], 1

</llo_original>
